<compile_context>
chip_gen: v6e
topology: v6e:2x2x1
jax: 0.10.0
libtpu: 0.0.40
codegen_flags: <defaults>
</compile_context>

<pallas_src>
import functools

import jax
import jax.numpy as jnp
from jax.experimental import pallas as pl
from jax.experimental.pallas import tpu as pltpu

HALF = 16              # half-resolution grid (32/2)
CHUNK = HALF * HALF    # 256 lanes per sample
LANE_PAD = 128         # zero tail so shifted lane reads stay in bounds
KH = KW = 5
C_IN, C1, C2 = 3, 6, 16
FC_PAD = 128           # fc feature dims padded to 128 lanes
G1 = 4                 # sublane-aligned row stride for conv1 source groups (3 channels each)
G2 = 8                 # sublane-aligned row stride for conv2 taps (6 channels each)
NG1 = 2 * 2 * 3 * 3    # 36 distinct (row parity, col parity, row shift, col shift) groups
K1 = NG1 * G1          # 144 rhs1 rows (75 useful)
K2 = KH * KW * G2      # 200 rhs2 rows (150 useful)
POOL_OFFS = ((0, 0), (0, 1), (1, 0), (1, 1))


def _g1_index(rh, rw, ah, aw):
    return ((rh * 2 + rw) * 3 + ah) * 3 + aw


# ---------------- fused Pallas kernel ----------------

def _lenet_kernel(xp_ref, w1_ref, b1_ref, w2_ref, b2_ref,
                  w1fc_ref, b1fc_ref, w2fc_ref, b2fc_ref, w3fc_ref, b3fc_ref,
                  out_ref,
                  rhs1_ref, rhs2_ref, a1_ref, y2_ref, xfc_ref):
    bb = out_ref.shape[0]           # samples per grid step
    n = bb * CHUNK                  # lane extent of one activation block
    cdtype = rhs1_ref.dtype         # matmul-input dtype (bf16 or f32)
    nt1 = 512 if n % 512 == 0 else 256
    nt2 = 256

    # one-time init of persistent scratch padding (pad rows/lanes are never rewritten later)
    @pl.when(pl.program_id(0) == 0)
    def _init():
        rhs1_ref[...] = jnp.zeros(rhs1_ref.shape, rhs1_ref.dtype)
        rhs2_ref[...] = jnp.zeros(rhs2_ref.shape, rhs2_ref.dtype)
        a1_ref[:, n:] = jnp.zeros((C1, LANE_PAD), a1_ref.dtype)
        y2_ref[:, n:] = jnp.zeros((C2, LANE_PAD), jnp.float32)

    b1v = b1_ref[...]               # (C1, 1) f32
    b2v = b2_ref[...]               # (C2, 1) f32

    # ---- conv1 patch gather: 36 distinct (parity-plane, shift) groups shared by all
    #      4 pool offsets (was 100 copies).  Each group lands on a 4-row boundary. ----
    for rh in range(2):
        for rw in range(2):
            for ah in range(3):
                for aw in range(3):
                    g = _g1_index(rh, rw, ah, aw)
                    off = ah * HALF + aw
                    rhs1_ref[g * G1:g * G1 + C_IN, :] = (
                        xp_ref[0, rh * 2 + rw, :, off:off + n])

    # ---- conv1: 4 pool-offset matmuls vs the shared patch matrix, fused max + bias + relu,
    #      tiled over lane chunks so nothing big lives in registers. ----
    w1o = [w1_ref[oi] for oi in range(4)]                 # (C1, K1) each
    for c0 in range(0, n, nt1):
        rhs_c = rhs1_ref[:, c0:c0 + nt1]
        p = jnp.dot(w1o[0], rhs_c, preferred_element_type=jnp.float32)
        for oi in range(1, 4):
            p = jnp.maximum(p, jnp.dot(w1o[oi], rhs_c,
                                       preferred_element_type=jnp.float32))
        a1_ref[:, c0:c0 + nt1] = jnp.maximum(p + b1v, 0.0).astype(cdtype)

    # ---- conv2 patch gather (25 taps, 8-row aligned channel groups) ----
    for kh in range(KH):
        for kw in range(KW):
            k = kh * KW + kw
            off = kh * HALF + kw
            rhs2_ref[k * G2:k * G2 + C1, :] = a1_ref[:, off:off + n]

    # ---- conv2 matmul, tiled over lane chunks, result routed through VMEM scratch ----
    w2v = w2_ref[...]                                     # (C2, K2)
    for c0 in range(0, n, nt2):
        y2_ref[:, c0:c0 + nt2] = jnp.dot(w2v, rhs2_ref[:, c0:c0 + nt2],
                                         preferred_element_type=jnp.float32)

    # ---- 2x2 maxpool + bias + relu (per sample, bounded vregs) and relayout
    #      (channel, batch*spatial) -> (batch, channel*spatial) for the MLP. ----
    for b in range(bb):
        s = b * CHUNK
        v = y2_ref[:, s:s + CHUNK]
        v = jnp.maximum(v, y2_ref[:, s + 1:s + 1 + CHUNK])
        v = jnp.maximum(v, y2_ref[:, s + HALF:s + HALF + CHUNK])
        v = jnp.maximum(v, y2_ref[:, s + HALF + 1:s + HALF + 1 + CHUNK])
        a2b = jnp.maximum(v + b2v, 0.0).astype(cdtype)    # (C2, CHUNK)
        # TODO(synk): the per-row relayout below is kept (vs. a sublane-pack reshape /
        # strided store) for lowering robustness; it is ~10% of the step's store traffic.
        for co in range(C2):
            xfc_ref[b:b + 1, co * CHUNK:(co + 1) * CHUNK] = a2b[co:co + 1, :]

    # ---- fc1 (K-chunked accumulation) -> relu -> fc2 -> relu -> fc3 ----
    kc = 512
    acc = jnp.zeros((bb, FC_PAD), jnp.float32)
    for k0 in range(0, C2 * CHUNK, kc):
        acc = acc + jnp.dot(xfc_ref[:, k0:k0 + kc], w1fc_ref[k0:k0 + kc, :],
                            preferred_element_type=jnp.float32)
    h = jnp.maximum(acc + b1fc_ref[...], 0.0).astype(cdtype)
    h = jnp.maximum(jnp.dot(h, w2fc_ref[...], preferred_element_type=jnp.float32)
                    + b2fc_ref[...], 0.0).astype(cdtype)
    out_ref[...] = (jnp.dot(h, w3fc_ref[...], preferred_element_type=jnp.float32)
                    + b3fc_ref[...])


# ---------------- wrapper-side (cheap, non-inflating) preprocessing ----------------

def _prep_input(x, bb, nb, cdtype):
    """(B,3,32,32) -> (nb, 4, 3, bb*256 + LANE_PAD) mod-2 parity split, lane = b*256+m*16+n."""
    b_total = nb * bb
    x = jnp.pad(x, ((0, b_total - x.shape[0]), (0, 0), (0, 0), (0, 0)))
    xp = x.reshape(b_total, C_IN, HALF, 2, HALF, 2)        # (b, ci, m, ph, nn, pw)
    xp = xp.transpose(3, 5, 1, 0, 2, 4)                    # (ph, pw, ci, b, m, nn)
    xp = xp.reshape(4, C_IN, nb, bb, CHUNK)
    xp = xp.transpose(2, 0, 1, 3, 4).reshape(nb, 4, C_IN, bb * CHUNK)
    xp = jnp.pad(xp, ((0, 0), (0, 0), (0, 0), (0, LANE_PAD)))
    return xp.astype(cdtype)


def _prep_params(params, cdtype):
    hid1 = params['fc1_w'].shape[0]          # 120
    hid2 = params['fc2_w'].shape[0]          # 84
    ncls = params['fc3_w'].shape[0]

    # conv1: one weight matrix per pool offset over the 36 shared source groups.
    w1 = params['conv1_w'].astype(jnp.float32)             # (C1, C_IN, 5, 5)
    w1off = jnp.zeros((4, C1, K1), jnp.float32)
    for oi, (di, dj) in enumerate(POOL_OFFS):
        for kh in range(KH):
            rh, ah = (di + kh) % 2, (di + kh) // 2
            for kw in range(KW):
                rw, aw = (dj + kw) % 2, (dj + kw) // 2
                g = _g1_index(rh, rw, ah, aw)
                w1off = w1off.at[oi, :, g * G1:g * G1 + C_IN].set(w1[:, :, kh, kw])
    w1off = w1off.astype(cdtype)

    # conv2: tap-major, channel group padded to 8 rows (matches aligned rhs2 layout).
    w2 = params['conv2_w'].transpose(0, 2, 3, 1).reshape(C2, KH * KW, C1)
    w2m = jnp.pad(w2, ((0, 0), (0, 0), (0, G2 - C1))).reshape(C2, K2).astype(cdtype)

    b1 = params['conv1_b'].reshape(C1, 1).astype(jnp.float32)
    b2 = params['conv2_b'].reshape(C2, 1).astype(jnp.float32)

    # fc1 weight scattered onto the (channel, 16x16 half-res grid) layout; pooled conv2
    # values live at grid (2p, 2q); all other grid slots carry zero weight.
    wg = params['fc1_w'].reshape(hid1, C2, 5, 5).transpose(1, 2, 3, 0)    # (co, p, q, j)
    grid = jnp.zeros((C2, HALF, HALF, FC_PAD), jnp.float32)
    grid = grid.at[:, 0:10:2, 0:10:2, :hid1].set(wg)
    w1fc = grid.reshape(C2 * CHUNK, FC_PAD).astype(cdtype)
    b1fc = jnp.zeros((1, FC_PAD), jnp.float32).at[0, :hid1].set(params['fc1_b'])

    w2fc = jnp.zeros((FC_PAD, FC_PAD), jnp.float32).at[:hid1, :hid2].set(
        params['fc2_w'].T).astype(cdtype)
    b2fc = jnp.zeros((1, FC_PAD), jnp.float32).at[0, :hid2].set(params['fc2_b'])
    w3fc = jnp.zeros((FC_PAD, FC_PAD), jnp.float32).at[:hid2, :ncls].set(
        params['fc3_w'].T).astype(cdtype)
    b3fc = jnp.zeros((1, FC_PAD), jnp.float32).at[0, :ncls].set(params['fc3_b'])

    return (w1off, b1, w2m, b2, w1fc, b1fc, w2fc, b2fc, w3fc, b3fc)


def _full_spec(shape):
    nd = len(shape)
    return pl.BlockSpec(shape, lambda i, nd=nd: (0,) * nd)


def _vmem_limit_bytes(bb, cdtype):
    """Explicit scoped-VMEM budget: scratch + double-buffered weights/IO + headroom."""
    n = bb * CHUNK
    cb = jnp.dtype(cdtype).itemsize
    scratch = ((K1 * n + K2 * n + C1 * (n + LANE_PAD) + bb * C2 * CHUNK) * cb
               + C2 * (n + LANE_PAD) * 4)
    weights = ((4 * C1 * K1 + C2 * K2 + C2 * CHUNK * FC_PAD + 2 * FC_PAD * FC_PAD) * cb
               + (C1 + C2 + 3 * FC_PAD) * 4)
    io = 4 * C_IN * (n + LANE_PAD) * cb + bb * FC_PAD * 4
    total = scratch + 2 * (weights + io)
    # default block_batch keeps this ~16-20 MB (bf16), well under v7x's 64 MiB physical VMEM.
    return int(min(max(total * 5 // 4 + (4 << 20), 16 << 20), 100 << 20))


@functools.partial(jax.jit, static_argnames=('compute_dtype', 'block_batch'))
def lenet_forward(x, params, compute_dtype=jnp.bfloat16, block_batch=64):
    bsz = x.shape[0]
    num_classes = params['fc3_w'].shape[0]
    bb = bsz if bsz <= block_batch else block_batch
    nb = -(-bsz // bb)                          # ceil(B / bb)

    xp = _prep_input(x, bb, nb, compute_dtype)
    weights = _prep_params(params, compute_dtype)

    n = bb * CHUNK
    lane = n + LANE_PAD

    in_specs = [pl.BlockSpec((1, 4, C_IN, lane), lambda i: (i, 0, 0, 0))]
    in_specs += [_full_spec(w.shape) for w in weights]

    out = pl.pallas_call(
        _lenet_kernel,
        out_shape=jax.ShapeDtypeStruct((nb * bb, FC_PAD), jnp.float32),
        grid_spec=pltpu.PrefetchScalarGridSpec(
            num_scalar_prefetch=0,
            grid=(nb,),
            in_specs=in_specs,
            out_specs=pl.BlockSpec((bb, FC_PAD), lambda i: (i, 0)),
            scratch_shapes=[
                pltpu.VMEM((K1, n), compute_dtype),            # conv1 patch matrix (aligned)
                pltpu.VMEM((K2, n), compute_dtype),            # conv2 patch matrix (aligned)
                pltpu.VMEM((C1, n + LANE_PAD), compute_dtype), # pooled conv1 activation
                pltpu.VMEM((C2, n + LANE_PAD), jnp.float32),   # conv2 pre-pool output
                pltpu.VMEM((bb, C2 * CHUNK), compute_dtype),   # MLP input
            ]),
        compiler_params=pltpu.CompilerParams(
            dimension_semantics=("parallel",),
            vmem_limit_bytes=_vmem_limit_bytes(bb, compute_dtype)),
    )(xp, *weights)
    return out[:bsz, :num_classes]


# ---------------- model params + pure-JAX reference ----------------

def init_params(key, num_classes=10):
    ks = jax.random.split(key, 10)

    def u(k, shape, fan_in):
        bound = 1.0 / jnp.sqrt(jnp.float32(fan_in))
        return jax.random.uniform(k, shape, jnp.float32, -bound, bound)

    return dict(
        conv1_w=u(ks[0], (6, 3, 5, 5), 3 * 25),
        conv1_b=u(ks[1], (6,), 3 * 25),
        conv2_w=u(ks[2], (16, 6, 5, 5), 6 * 25),
        conv2_b=u(ks[3], (16,), 6 * 25),
        fc1_w=u(ks[4], (120, 400), 400),
        fc1_b=u(ks[5], (120,), 400),
        fc2_w=u(ks[6], (84, 120), 120),
        fc2_b=u(ks[7], (84,), 120),
        fc3_w=u(ks[8], (num_classes, 84), 84),
        fc3_b=u(ks[9], (num_classes,), 84),
    )


def lenet_reference(x, params):
    def conv(x, w, b):
        y = jax.lax.conv_general_dilated(x, w, (1, 1), 'VALID',
                                         dimension_numbers=('NCHW', 'OIHW', 'NCHW'))
        return y + b.reshape(1, -1, 1, 1)

    def pool(x):
        return jax.lax.reduce_window(x, -jnp.inf, jax.lax.max,
                                     (1, 1, 2, 2), (1, 1, 2, 2), 'VALID')

    y = pool(jax.nn.relu(conv(x, params['conv1_w'], params['conv1_b'])))
    y = pool(jax.nn.relu(conv(y, params['conv2_w'], params['conv2_b'])))
    y = y.reshape(y.shape[0], -1)
    y = jax.nn.relu(y @ params['fc1_w'].T + params['fc1_b'])
    y = jax.nn.relu(y @ params['fc2_w'].T + params['fc2_b'])
    return y @ params['fc3_w'].T + params['fc3_b']


if __name__ == "__main__":
    key = jax.random.PRNGKey(0)
    kx, kp = jax.random.split(key)
    # LeNet's fc1 (16*5*5) fixes the spatial size to 32x32 with 3 input channels.
    x = jax.random.normal(kx, (2, 3, 32, 32), jnp.float32)
    params = init_params(kp, num_classes=10)

    ref = lenet_reference(x, params)

    # f32 matmul inputs: must match the XLA reference tightly.
    out_f32 = jax.block_until_ready(lenet_forward(x, params, compute_dtype=jnp.float32))
    assert out_f32.shape == (2, 10) and out_f32.dtype == jnp.float32
    assert jnp.allclose(out_f32, ref, rtol=2e-3, atol=2e-3), "f32 mismatch vs reference"

    # bf16 matmul inputs (default, MXU-native), f32 accumulation/epilogues.
    out_bf16 = jax.block_until_ready(lenet_forward(x, params, compute_dtype=jnp.bfloat16))
    assert out_bf16.shape == (2, 10) and out_bf16.dtype == jnp.float32
    assert jnp.allclose(out_bf16, ref, rtol=3e-2, atol=3e-2), "bf16 mismatch vs reference"

    print("KERNEL_OK")
</pallas_src>

<mosaic_0001>
module attributes {stable_mosaic.version = 11 : i64} {
  func.func @_lenet_kernel(%arg0: i32, %arg1: memref<1x4x3x640xf32, #tpu.memory_space<vmem>>, %arg2: memref<4x6x144xf32, #tpu.memory_space<vmem>>, %arg3: memref<6x1xf32, #tpu.memory_space<vmem>>, %arg4: memref<16x200xf32, #tpu.memory_space<vmem>>, %arg5: memref<16x1xf32, #tpu.memory_space<vmem>>, %arg6: memref<4096x128xf32, #tpu.memory_space<vmem>>, %arg7: memref<1x128xf32, #tpu.memory_space<vmem>>, %arg8: memref<128x128xf32, #tpu.memory_space<vmem>>, %arg9: memref<1x128xf32, #tpu.memory_space<vmem>>, %arg10: memref<128x128xf32, #tpu.memory_space<vmem>>, %arg11: memref<1x128xf32, #tpu.memory_space<vmem>>, %arg12: memref<2x128xf32, #tpu.memory_space<vmem>>, %arg13: memref<144x512xf32, #tpu.memory_space<vmem>>, %arg14: memref<200x512xf32, #tpu.memory_space<vmem>>, %arg15: memref<6x640xf32, #tpu.memory_space<vmem>>, %arg16: memref<16x640xf32, #tpu.memory_space<vmem>>, %arg17: memref<2x4096xf32, #tpu.memory_space<vmem>>) attributes {dimension_semantics = [#tpu.dimension_semantics<parallel>], iteration_bounds = array<i64: 1>, scalar_prefetch = 0 : i64, scratch_operands = 5 : i64, tpu.core_type = #tpu.core_type<tc>, window_params = [{transform_indices = @transform_0, window_bounds = array<i64: 1, 4, 3, 640>}, {pipeline_mode = #tpu.pipeline_mode<synchronous>, transform_indices = @transform_1, window_bounds = array<i64: 4, 6, 144>}, {pipeline_mode = #tpu.pipeline_mode<synchronous>, transform_indices = @transform_2, window_bounds = array<i64: 6, 1>}, {pipeline_mode = #tpu.pipeline_mode<synchronous>, transform_indices = @transform_3, window_bounds = array<i64: 16, 200>}, {pipeline_mode = #tpu.pipeline_mode<synchronous>, transform_indices = @transform_4, window_bounds = array<i64: 16, 1>}, {pipeline_mode = #tpu.pipeline_mode<synchronous>, transform_indices = @transform_5, window_bounds = array<i64: 4096, 128>}, {pipeline_mode = #tpu.pipeline_mode<synchronous>, transform_indices = @transform_6, window_bounds = array<i64: 1, 128>}, {pipeline_mode = #tpu.pipeline_mode<synchronous>, transform_indices = @transform_7, window_bounds = array<i64: 128, 128>}, {pipeline_mode = #tpu.pipeline_mode<synchronous>, transform_indices = @transform_8, window_bounds = array<i64: 1, 128>}, {pipeline_mode = #tpu.pipeline_mode<synchronous>, transform_indices = @transform_9, window_bounds = array<i64: 128, 128>}, {pipeline_mode = #tpu.pipeline_mode<synchronous>, transform_indices = @transform_10, window_bounds = array<i64: 1, 128>}, {transform_indices = @transform_11, window_bounds = array<i64: 2, 128>}]} {
    %c0_i32 = arith.constant 0 : i32
    %0 = arith.cmpi eq, %arg0, %c0_i32 : i32
    %1 = arith.extui %0 : i1 to i32
    %c0_i32_0 = arith.constant 0 : i32
    %2 = arith.cmpi ne, %1, %c0_i32_0 : i32
    scf.if %2 {
      %cst_416 = arith.constant 0.000000e+00 : f32
      %328 = vector.broadcast %cst_416 : f32 to vector<144x512xf32>
      %c0_417 = arith.constant 0 : index
      %c0_418 = arith.constant 0 : index
      %329 = vector.load %arg13[%c0_417, %c0_418] : memref<144x512xf32, #tpu.memory_space<vmem>>, vector<144x512xf32>
      tpu.vector_store %arg13[%c0_417, %c0_418], %328 {strides = array<i32>} : memref<144x512xf32, #tpu.memory_space<vmem>>, vector<144x512xf32>,
      %cst_419 = arith.constant 0.000000e+00 : f32
      %330 = vector.broadcast %cst_419 : f32 to vector<200x512xf32>
      %c0_420 = arith.constant 0 : index
      %c0_421 = arith.constant 0 : index
      %331 = vector.load %arg14[%c0_420, %c0_421] : memref<200x512xf32, #tpu.memory_space<vmem>>, vector<200x512xf32>
      tpu.vector_store %arg14[%c0_420, %c0_421], %330 {strides = array<i32>} : memref<200x512xf32, #tpu.memory_space<vmem>>, vector<200x512xf32>,
      %cst_422 = arith.constant 0.000000e+00 : f32
      %332 = vector.broadcast %cst_422 : f32 to vector<6x128xf32>
      %c0_423 = arith.constant 0 : index
      %c512_424 = arith.constant 512 : index
      %333 = vector.load %arg15[%c0_423, %c512_424] : memref<6x640xf32, #tpu.memory_space<vmem>>, vector<6x128xf32>
      tpu.vector_store %arg15[%c0_423, %c512_424], %332 {strides = array<i32>} : memref<6x640xf32, #tpu.memory_space<vmem>>, vector<6x128xf32>,
      %cst_425 = arith.constant 0.000000e+00 : f32
      %334 = vector.broadcast %cst_425 : f32 to vector<16x128xf32>
      %c0_426 = arith.constant 0 : index
      %c512_427 = arith.constant 512 : index
      %335 = vector.load %arg16[%c0_426, %c512_427] : memref<16x640xf32, #tpu.memory_space<vmem>>, vector<16x128xf32>
      tpu.vector_store %arg16[%c0_426, %c512_427], %334 {strides = array<i32>} : memref<16x640xf32, #tpu.memory_space<vmem>>, vector<16x128xf32>,
    } else {
    }
    %c0 = arith.constant 0 : index
    %c0_1 = arith.constant 0 : index
    %3 = vector.load %arg3[%c0, %c0_1] : memref<6x1xf32, #tpu.memory_space<vmem>>, vector<6x1xf32>
    %c0_2 = arith.constant 0 : index
    %c0_3 = arith.constant 0 : index
    %4 = vector.load %arg5[%c0_2, %c0_3] : memref<16x1xf32, #tpu.memory_space<vmem>>, vector<16x1xf32>
    %c0_4 = arith.constant 0 : index
    %c0_5 = arith.constant 0 : index
    %c0_6 = arith.constant 0 : index
    %c0_7 = arith.constant 0 : index
    %5 = vector.load %arg1[%c0_4, %c0_5, %c0_6, %c0_7] : memref<1x4x3x640xf32, #tpu.memory_space<vmem>>, vector<1x1x3x512xf32>
    %6 = vector.shape_cast %5 : vector<1x1x3x512xf32> to vector<3x512xf32>
    %c0_8 = arith.constant 0 : index
    %c0_9 = arith.constant 0 : index
    %7 = vector.load %arg13[%c0_8, %c0_9] : memref<144x512xf32, #tpu.memory_space<vmem>>, vector<3x512xf32>
    tpu.vector_store %arg13[%c0_8, %c0_9], %6 {strides = array<i32>} : memref<144x512xf32, #tpu.memory_space<vmem>>, vector<3x512xf32>,
    %c0_10 = arith.constant 0 : index
    %c0_11 = arith.constant 0 : index
    %c0_12 = arith.constant 0 : index
    %c1 = arith.constant 1 : index
    %8 = vector.load %arg1[%c0_10, %c0_11, %c0_12, %c1] : memref<1x4x3x640xf32, #tpu.memory_space<vmem>>, vector<1x1x3x512xf32>
    %9 = vector.shape_cast %8 : vector<1x1x3x512xf32> to vector<3x512xf32>
    %c4 = arith.constant 4 : index
    %c0_13 = arith.constant 0 : index
    %10 = vector.load %arg13[%c4, %c0_13] : memref<144x512xf32, #tpu.memory_space<vmem>>, vector<3x512xf32>
    tpu.vector_store %arg13[%c4, %c0_13], %9 {strides = array<i32>} : memref<144x512xf32, #tpu.memory_space<vmem>>, vector<3x512xf32>,
    %c0_14 = arith.constant 0 : index
    %c0_15 = arith.constant 0 : index
    %c0_16 = arith.constant 0 : index
    %c2 = arith.constant 2 : index
    %11 = vector.load %arg1[%c0_14, %c0_15, %c0_16, %c2] : memref<1x4x3x640xf32, #tpu.memory_space<vmem>>, vector<1x1x3x512xf32>
    %12 = vector.shape_cast %11 : vector<1x1x3x512xf32> to vector<3x512xf32>
    %c8 = arith.constant 8 : index
    %c0_17 = arith.constant 0 : index
    %13 = vector.load %arg13[%c8, %c0_17] : memref<144x512xf32, #tpu.memory_space<vmem>>, vector<3x512xf32>
    tpu.vector_store %arg13[%c8, %c0_17], %12 {strides = array<i32>} : memref<144x512xf32, #tpu.memory_space<vmem>>, vector<3x512xf32>,
    %c0_18 = arith.constant 0 : index
    %c0_19 = arith.constant 0 : index
    %c0_20 = arith.constant 0 : index
    %c16 = arith.constant 16 : index
    %14 = vector.load %arg1[%c0_18, %c0_19, %c0_20, %c16] : memref<1x4x3x640xf32, #tpu.memory_space<vmem>>, vector<1x1x3x512xf32>
    %15 = vector.shape_cast %14 : vector<1x1x3x512xf32> to vector<3x512xf32>
    %c12 = arith.constant 12 : index
    %c0_21 = arith.constant 0 : index
    %16 = vector.load %arg13[%c12, %c0_21] : memref<144x512xf32, #tpu.memory_space<vmem>>, vector<3x512xf32>
    tpu.vector_store %arg13[%c12, %c0_21], %15 {strides = array<i32>} : memref<144x512xf32, #tpu.memory_space<vmem>>, vector<3x512xf32>,
    %c0_22 = arith.constant 0 : index
    %c0_23 = arith.constant 0 : index
    %c0_24 = arith.constant 0 : index
    %c17 = arith.constant 17 : index
    %17 = vector.load %arg1[%c0_22, %c0_23, %c0_24, %c17] : memref<1x4x3x640xf32, #tpu.memory_space<vmem>>, vector<1x1x3x512xf32>
    %18 = vector.shape_cast %17 : vector<1x1x3x512xf32> to vector<3x512xf32>
    %c16_25 = arith.constant 16 : index
    %c0_26 = arith.constant 0 : index
    %19 = vector.load %arg13[%c16_25, %c0_26] : memref<144x512xf32, #tpu.memory_space<vmem>>, vector<3x512xf32>
    tpu.vector_store %arg13[%c16_25, %c0_26], %18 {strides = array<i32>} : memref<144x512xf32, #tpu.memory_space<vmem>>, vector<3x512xf32>,
    %c0_27 = arith.constant 0 : index
    %c0_28 = arith.constant 0 : index
    %c0_29 = arith.constant 0 : index
    %c18 = arith.constant 18 : index
    %20 = vector.load %arg1[%c0_27, %c0_28, %c0_29, %c18] : memref<1x4x3x640xf32, #tpu.memory_space<vmem>>, vector<1x1x3x512xf32>
    %21 = vector.shape_cast %20 : vector<1x1x3x512xf32> to vector<3x512xf32>
    %c20 = arith.constant 20 : index
    %c0_30 = arith.constant 0 : index
    %22 = vector.load %arg13[%c20, %c0_30] : memref<144x512xf32, #tpu.memory_space<vmem>>, vector<3x512xf32>
    tpu.vector_store %arg13[%c20, %c0_30], %21 {strides = array<i32>} : memref<144x512xf32, #tpu.memory_space<vmem>>, vector<3x512xf32>,
    %c0_31 = arith.constant 0 : index
    %c0_32 = arith.constant 0 : index
    %c0_33 = arith.constant 0 : index
    %c32 = arith.constant 32 : index
    %23 = vector.load %arg1[%c0_31, %c0_32, %c0_33, %c32] : memref<1x4x3x640xf32, #tpu.memory_space<vmem>>, vector<1x1x3x512xf32>
    %24 = vector.shape_cast %23 : vector<1x1x3x512xf32> to vector<3x512xf32>
    %c24 = arith.constant 24 : index
    %c0_34 = arith.constant 0 : index
    %25 = vector.load %arg13[%c24, %c0_34] : memref<144x512xf32, #tpu.memory_space<vmem>>, vector<3x512xf32>
    tpu.vector_store %arg13[%c24, %c0_34], %24 {strides = array<i32>} : memref<144x512xf32, #tpu.memory_space<vmem>>, vector<3x512xf32>,
    %c0_35 = arith.constant 0 : index
    %c0_36 = arith.constant 0 : index
    %c0_37 = arith.constant 0 : index
    %c33 = arith.constant 33 : index
    %26 = vector.load %arg1[%c0_35, %c0_36, %c0_37, %c33] : memref<1x4x3x640xf32, #tpu.memory_space<vmem>>, vector<1x1x3x512xf32>
    %27 = vector.shape_cast %26 : vector<1x1x3x512xf32> to vector<3x512xf32>
    %c28 = arith.constant 28 : index
    %c0_38 = arith.constant 0 : index
    %28 = vector.load %arg13[%c28, %c0_38] : memref<144x512xf32, #tpu.memory_space<vmem>>, vector<3x512xf32>
    tpu.vector_store %arg13[%c28, %c0_38], %27 {strides = array<i32>} : memref<144x512xf32, #tpu.memory_space<vmem>>, vector<3x512xf32>,
    %c0_39 = arith.constant 0 : index
    %c0_40 = arith.constant 0 : index
    %c0_41 = arith.constant 0 : index
    %c34 = arith.constant 34 : index
    %29 = vector.load %arg1[%c0_39, %c0_40, %c0_41, %c34] : memref<1x4x3x640xf32, #tpu.memory_space<vmem>>, vector<1x1x3x512xf32>
    %30 = vector.shape_cast %29 : vector<1x1x3x512xf32> to vector<3x512xf32>
    %c32_42 = arith.constant 32 : index
    %c0_43 = arith.constant 0 : index
    %31 = vector.load %arg13[%c32_42, %c0_43] : memref<144x512xf32, #tpu.memory_space<vmem>>, vector<3x512xf32>
    tpu.vector_store %arg13[%c32_42, %c0_43], %30 {strides = array<i32>} : memref<144x512xf32, #tpu.memory_space<vmem>>, vector<3x512xf32>,
    %c0_44 = arith.constant 0 : index
    %c1_45 = arith.constant 1 : index
    %c0_46 = arith.constant 0 : index
    %c0_47 = arith.constant 0 : index
    %32 = vector.load %arg1[%c0_44, %c1_45, %c0_46, %c0_47] : memref<1x4x3x640xf32, #tpu.memory_space<vmem>>, vector<1x1x3x512xf32>
    %33 = vector.shape_cast %32 : vector<1x1x3x512xf32> to vector<3x512xf32>
    %c36 = arith.constant 36 : index
    %c0_48 = arith.constant 0 : index
    %34 = vector.load %arg13[%c36, %c0_48] : memref<144x512xf32, #tpu.memory_space<vmem>>, vector<3x512xf32>
    tpu.vector_store %arg13[%c36, %c0_48], %33 {strides = array<i32>} : memref<144x512xf32, #tpu.memory_space<vmem>>, vector<3x512xf32>,
    %c0_49 = arith.constant 0 : index
    %c1_50 = arith.constant 1 : index
    %c0_51 = arith.constant 0 : index
    %c1_52 = arith.constant 1 : index
    %35 = vector.load %arg1[%c0_49, %c1_50, %c0_51, %c1_52] : memref<1x4x3x640xf32, #tpu.memory_space<vmem>>, vector<1x1x3x512xf32>
    %36 = vector.shape_cast %35 : vector<1x1x3x512xf32> to vector<3x512xf32>
    %c40 = arith.constant 40 : index
    %c0_53 = arith.constant 0 : index
    %37 = vector.load %arg13[%c40, %c0_53] : memref<144x512xf32, #tpu.memory_space<vmem>>, vector<3x512xf32>
    tpu.vector_store %arg13[%c40, %c0_53], %36 {strides = array<i32>} : memref<144x512xf32, #tpu.memory_space<vmem>>, vector<3x512xf32>,
    %c0_54 = arith.constant 0 : index
    %c1_55 = arith.constant 1 : index
    %c0_56 = arith.constant 0 : index
    %c2_57 = arith.constant 2 : index
    %38 = vector.load %arg1[%c0_54, %c1_55, %c0_56, %c2_57] : memref<1x4x3x640xf32, #tpu.memory_space<vmem>>, vector<1x1x3x512xf32>
    %39 = vector.shape_cast %38 : vector<1x1x3x512xf32> to vector<3x512xf32>
    %c44 = arith.constant 44 : index
    %c0_58 = arith.constant 0 : index
    %40 = vector.load %arg13[%c44, %c0_58] : memref<144x512xf32, #tpu.memory_space<vmem>>, vector<3x512xf32>
    tpu.vector_store %arg13[%c44, %c0_58], %39 {strides = array<i32>} : memref<144x512xf32, #tpu.memory_space<vmem>>, vector<3x512xf32>,
    %c0_59 = arith.constant 0 : index
    %c1_60 = arith.constant 1 : index
    %c0_61 = arith.constant 0 : index
    %c16_62 = arith.constant 16 : index
    %41 = vector.load %arg1[%c0_59, %c1_60, %c0_61, %c16_62] : memref<1x4x3x640xf32, #tpu.memory_space<vmem>>, vector<1x1x3x512xf32>
    %42 = vector.shape_cast %41 : vector<1x1x3x512xf32> to vector<3x512xf32>
    %c48 = arith.constant 48 : index
    %c0_63 = arith.constant 0 : index
    %43 = vector.load %arg13[%c48, %c0_63] : memref<144x512xf32, #tpu.memory_space<vmem>>, vector<3x512xf32>
    tpu.vector_store %arg13[%c48, %c0_63], %42 {strides = array<i32>} : memref<144x512xf32, #tpu.memory_space<vmem>>, vector<3x512xf32>,
    %c0_64 = arith.constant 0 : index
    %c1_65 = arith.constant 1 : index
    %c0_66 = arith.constant 0 : index
    %c17_67 = arith.constant 17 : index
    %44 = vector.load %arg1[%c0_64, %c1_65, %c0_66, %c17_67] : memref<1x4x3x640xf32, #tpu.memory_space<vmem>>, vector<1x1x3x512xf32>
    %45 = vector.shape_cast %44 : vector<1x1x3x512xf32> to vector<3x512xf32>
    %c52 = arith.constant 52 : index
    %c0_68 = arith.constant 0 : index
    %46 = vector.load %arg13[%c52, %c0_68] : memref<144x512xf32, #tpu.memory_space<vmem>>, vector<3x512xf32>
    tpu.vector_store %arg13[%c52, %c0_68], %45 {strides = array<i32>} : memref<144x512xf32, #tpu.memory_space<vmem>>, vector<3x512xf32>,
    %c0_69 = arith.constant 0 : index
    %c1_70 = arith.constant 1 : index
    %c0_71 = arith.constant 0 : index
    %c18_72 = arith.constant 18 : index
    %47 = vector.load %arg1[%c0_69, %c1_70, %c0_71, %c18_72] : memref<1x4x3x640xf32, #tpu.memory_space<vmem>>, vector<1x1x3x512xf32>
    %48 = vector.shape_cast %47 : vector<1x1x3x512xf32> to vector<3x512xf32>
    %c56 = arith.constant 56 : index
    %c0_73 = arith.constant 0 : index
    %49 = vector.load %arg13[%c56, %c0_73] : memref<144x512xf32, #tpu.memory_space<vmem>>, vector<3x512xf32>
    tpu.vector_store %arg13[%c56, %c0_73], %48 {strides = array<i32>} : memref<144x512xf32, #tpu.memory_space<vmem>>, vector<3x512xf32>,
    %c0_74 = arith.constant 0 : index
    %c1_75 = arith.constant 1 : index
    %c0_76 = arith.constant 0 : index
    %c32_77 = arith.constant 32 : index
    %50 = vector.load %arg1[%c0_74, %c1_75, %c0_76, %c32_77] : memref<1x4x3x640xf32, #tpu.memory_space<vmem>>, vector<1x1x3x512xf32>
    %51 = vector.shape_cast %50 : vector<1x1x3x512xf32> to vector<3x512xf32>
    %c60 = arith.constant 60 : index
    %c0_78 = arith.constant 0 : index
    %52 = vector.load %arg13[%c60, %c0_78] : memref<144x512xf32, #tpu.memory_space<vmem>>, vector<3x512xf32>
    tpu.vector_store %arg13[%c60, %c0_78], %51 {strides = array<i32>} : memref<144x512xf32, #tpu.memory_space<vmem>>, vector<3x512xf32>,
    %c0_79 = arith.constant 0 : index
    %c1_80 = arith.constant 1 : index
    %c0_81 = arith.constant 0 : index
    %c33_82 = arith.constant 33 : index
    %53 = vector.load %arg1[%c0_79, %c1_80, %c0_81, %c33_82] : memref<1x4x3x640xf32, #tpu.memory_space<vmem>>, vector<1x1x3x512xf32>
    %54 = vector.shape_cast %53 : vector<1x1x3x512xf32> to vector<3x512xf32>
    %c64 = arith.constant 64 : index
    %c0_83 = arith.constant 0 : index
    %55 = vector.load %arg13[%c64, %c0_83] : memref<144x512xf32, #tpu.memory_space<vmem>>, vector<3x512xf32>
    tpu.vector_store %arg13[%c64, %c0_83], %54 {strides = array<i32>} : memref<144x512xf32, #tpu.memory_space<vmem>>, vector<3x512xf32>,
    %c0_84 = arith.constant 0 : index
    %c1_85 = arith.constant 1 : index
    %c0_86 = arith.constant 0 : index
    %c34_87 = arith.constant 34 : index
    %56 = vector.load %arg1[%c0_84, %c1_85, %c0_86, %c34_87] : memref<1x4x3x640xf32, #tpu.memory_space<vmem>>, vector<1x1x3x512xf32>
    %57 = vector.shape_cast %56 : vector<1x1x3x512xf32> to vector<3x512xf32>
    %c68 = arith.constant 68 : index
    %c0_88 = arith.constant 0 : index
    %58 = vector.load %arg13[%c68, %c0_88] : memref<144x512xf32, #tpu.memory_space<vmem>>, vector<3x512xf32>
    tpu.vector_store %arg13[%c68, %c0_88], %57 {strides = array<i32>} : memref<144x512xf32, #tpu.memory_space<vmem>>, vector<3x512xf32>,
    %c0_89 = arith.constant 0 : index
    %c2_90 = arith.constant 2 : index
    %c0_91 = arith.constant 0 : index
    %c0_92 = arith.constant 0 : index
    %59 = vector.load %arg1[%c0_89, %c2_90, %c0_91, %c0_92] : memref<1x4x3x640xf32, #tpu.memory_space<vmem>>, vector<1x1x3x512xf32>
    %60 = vector.shape_cast %59 : vector<1x1x3x512xf32> to vector<3x512xf32>
    %c72 = arith.constant 72 : index
    %c0_93 = arith.constant 0 : index
    %61 = vector.load %arg13[%c72, %c0_93] : memref<144x512xf32, #tpu.memory_space<vmem>>, vector<3x512xf32>
    tpu.vector_store %arg13[%c72, %c0_93], %60 {strides = array<i32>} : memref<144x512xf32, #tpu.memory_space<vmem>>, vector<3x512xf32>,
    %c0_94 = arith.constant 0 : index
    %c2_95 = arith.constant 2 : index
    %c0_96 = arith.constant 0 : index
    %c1_97 = arith.constant 1 : index
    %62 = vector.load %arg1[%c0_94, %c2_95, %c0_96, %c1_97] : memref<1x4x3x640xf32, #tpu.memory_space<vmem>>, vector<1x1x3x512xf32>
    %63 = vector.shape_cast %62 : vector<1x1x3x512xf32> to vector<3x512xf32>
    %c76 = arith.constant 76 : index
    %c0_98 = arith.constant 0 : index
    %64 = vector.load %arg13[%c76, %c0_98] : memref<144x512xf32, #tpu.memory_space<vmem>>, vector<3x512xf32>
    tpu.vector_store %arg13[%c76, %c0_98], %63 {strides = array<i32>} : memref<144x512xf32, #tpu.memory_space<vmem>>, vector<3x512xf32>,
    %c0_99 = arith.constant 0 : index
    %c2_100 = arith.constant 2 : index
    %c0_101 = arith.constant 0 : index
    %c2_102 = arith.constant 2 : index
    %65 = vector.load %arg1[%c0_99, %c2_100, %c0_101, %c2_102] : memref<1x4x3x640xf32, #tpu.memory_space<vmem>>, vector<1x1x3x512xf32>
    %66 = vector.shape_cast %65 : vector<1x1x3x512xf32> to vector<3x512xf32>
    %c80 = arith.constant 80 : index
    %c0_103 = arith.constant 0 : index
    %67 = vector.load %arg13[%c80, %c0_103] : memref<144x512xf32, #tpu.memory_space<vmem>>, vector<3x512xf32>
    tpu.vector_store %arg13[%c80, %c0_103], %66 {strides = array<i32>} : memref<144x512xf32, #tpu.memory_space<vmem>>, vector<3x512xf32>,
    %c0_104 = arith.constant 0 : index
    %c2_105 = arith.constant 2 : index
    %c0_106 = arith.constant 0 : index
    %c16_107 = arith.constant 16 : index
    %68 = vector.load %arg1[%c0_104, %c2_105, %c0_106, %c16_107] : memref<1x4x3x640xf32, #tpu.memory_space<vmem>>, vector<1x1x3x512xf32>
    %69 = vector.shape_cast %68 : vector<1x1x3x512xf32> to vector<3x512xf32>
    %c84 = arith.constant 84 : index
    %c0_108 = arith.constant 0 : index
    %70 = vector.load %arg13[%c84, %c0_108] : memref<144x512xf32, #tpu.memory_space<vmem>>, vector<3x512xf32>
    tpu.vector_store %arg13[%c84, %c0_108], %69 {strides = array<i32>} : memref<144x512xf32, #tpu.memory_space<vmem>>, vector<3x512xf32>,
    %c0_109 = arith.constant 0 : index
    %c2_110 = arith.constant 2 : index
    %c0_111 = arith.constant 0 : index
    %c17_112 = arith.constant 17 : index
    %71 = vector.load %arg1[%c0_109, %c2_110, %c0_111, %c17_112] : memref<1x4x3x640xf32, #tpu.memory_space<vmem>>, vector<1x1x3x512xf32>
    %72 = vector.shape_cast %71 : vector<1x1x3x512xf32> to vector<3x512xf32>
    %c88 = arith.constant 88 : index
    %c0_113 = arith.constant 0 : index
    %73 = vector.load %arg13[%c88, %c0_113] : memref<144x512xf32, #tpu.memory_space<vmem>>, vector<3x512xf32>
    tpu.vector_store %arg13[%c88, %c0_113], %72 {strides = array<i32>} : memref<144x512xf32, #tpu.memory_space<vmem>>, vector<3x512xf32>,
    %c0_114 = arith.constant 0 : index
    %c2_115 = arith.constant 2 : index
    %c0_116 = arith.constant 0 : index
    %c18_117 = arith.constant 18 : index
    %74 = vector.load %arg1[%c0_114, %c2_115, %c0_116, %c18_117] : memref<1x4x3x640xf32, #tpu.memory_space<vmem>>, vector<1x1x3x512xf32>
    %75 = vector.shape_cast %74 : vector<1x1x3x512xf32> to vector<3x512xf32>
    %c92 = arith.constant 92 : index
    %c0_118 = arith.constant 0 : index
    %76 = vector.load %arg13[%c92, %c0_118] : memref<144x512xf32, #tpu.memory_space<vmem>>, vector<3x512xf32>
    tpu.vector_store %arg13[%c92, %c0_118], %75 {strides = array<i32>} : memref<144x512xf32, #tpu.memory_space<vmem>>, vector<3x512xf32>,
    %c0_119 = arith.constant 0 : index
    %c2_120 = arith.constant 2 : index
    %c0_121 = arith.constant 0 : index
    %c32_122 = arith.constant 32 : index
    %77 = vector.load %arg1[%c0_119, %c2_120, %c0_121, %c32_122] : memref<1x4x3x640xf32, #tpu.memory_space<vmem>>, vector<1x1x3x512xf32>
    %78 = vector.shape_cast %77 : vector<1x1x3x512xf32> to vector<3x512xf32>
    %c96 = arith.constant 96 : index
    %c0_123 = arith.constant 0 : index
    %79 = vector.load %arg13[%c96, %c0_123] : memref<144x512xf32, #tpu.memory_space<vmem>>, vector<3x512xf32>
    tpu.vector_store %arg13[%c96, %c0_123], %78 {strides = array<i32>} : memref<144x512xf32, #tpu.memory_space<vmem>>, vector<3x512xf32>,
    %c0_124 = arith.constant 0 : index
    %c2_125 = arith.constant 2 : index
    %c0_126 = arith.constant 0 : index
    %c33_127 = arith.constant 33 : index
    %80 = vector.load %arg1[%c0_124, %c2_125, %c0_126, %c33_127] : memref<1x4x3x640xf32, #tpu.memory_space<vmem>>, vector<1x1x3x512xf32>
    %81 = vector.shape_cast %80 : vector<1x1x3x512xf32> to vector<3x512xf32>
    %c100 = arith.constant 100 : index
    %c0_128 = arith.constant 0 : index
    %82 = vector.load %arg13[%c100, %c0_128] : memref<144x512xf32, #tpu.memory_space<vmem>>, vector<3x512xf32>
    tpu.vector_store %arg13[%c100, %c0_128], %81 {strides = array<i32>} : memref<144x512xf32, #tpu.memory_space<vmem>>, vector<3x512xf32>,
    %c0_129 = arith.constant 0 : index
    %c2_130 = arith.constant 2 : index
    %c0_131 = arith.constant 0 : index
    %c34_132 = arith.constant 34 : index
    %83 = vector.load %arg1[%c0_129, %c2_130, %c0_131, %c34_132] : memref<1x4x3x640xf32, #tpu.memory_space<vmem>>, vector<1x1x3x512xf32>
    %84 = vector.shape_cast %83 : vector<1x1x3x512xf32> to vector<3x512xf32>
    %c104 = arith.constant 104 : index
    %c0_133 = arith.constant 0 : index
    %85 = vector.load %arg13[%c104, %c0_133] : memref<144x512xf32, #tpu.memory_space<vmem>>, vector<3x512xf32>
    tpu.vector_store %arg13[%c104, %c0_133], %84 {strides = array<i32>} : memref<144x512xf32, #tpu.memory_space<vmem>>, vector<3x512xf32>,
    %c0_134 = arith.constant 0 : index
    %c3 = arith.constant 3 : index
    %c0_135 = arith.constant 0 : index
    %c0_136 = arith.constant 0 : index
    %86 = vector.load %arg1[%c0_134, %c3, %c0_135, %c0_136] : memref<1x4x3x640xf32, #tpu.memory_space<vmem>>, vector<1x1x3x512xf32>
    %87 = vector.shape_cast %86 : vector<1x1x3x512xf32> to vector<3x512xf32>
    %c108 = arith.constant 108 : index
    %c0_137 = arith.constant 0 : index
    %88 = vector.load %arg13[%c108, %c0_137] : memref<144x512xf32, #tpu.memory_space<vmem>>, vector<3x512xf32>
    tpu.vector_store %arg13[%c108, %c0_137], %87 {strides = array<i32>} : memref<144x512xf32, #tpu.memory_space<vmem>>, vector<3x512xf32>,
    %c0_138 = arith.constant 0 : index
    %c3_139 = arith.constant 3 : index
    %c0_140 = arith.constant 0 : index
    %c1_141 = arith.constant 1 : index
    %89 = vector.load %arg1[%c0_138, %c3_139, %c0_140, %c1_141] : memref<1x4x3x640xf32, #tpu.memory_space<vmem>>, vector<1x1x3x512xf32>
    %90 = vector.shape_cast %89 : vector<1x1x3x512xf32> to vector<3x512xf32>
    %c112 = arith.constant 112 : index
    %c0_142 = arith.constant 0 : index
    %91 = vector.load %arg13[%c112, %c0_142] : memref<144x512xf32, #tpu.memory_space<vmem>>, vector<3x512xf32>
    tpu.vector_store %arg13[%c112, %c0_142], %90 {strides = array<i32>} : memref<144x512xf32, #tpu.memory_space<vmem>>, vector<3x512xf32>,
    %c0_143 = arith.constant 0 : index
    %c3_144 = arith.constant 3 : index
    %c0_145 = arith.constant 0 : index
    %c2_146 = arith.constant 2 : index
    %92 = vector.load %arg1[%c0_143, %c3_144, %c0_145, %c2_146] : memref<1x4x3x640xf32, #tpu.memory_space<vmem>>, vector<1x1x3x512xf32>
    %93 = vector.shape_cast %92 : vector<1x1x3x512xf32> to vector<3x512xf32>
    %c116 = arith.constant 116 : index
    %c0_147 = arith.constant 0 : index
    %94 = vector.load %arg13[%c116, %c0_147] : memref<144x512xf32, #tpu.memory_space<vmem>>, vector<3x512xf32>
    tpu.vector_store %arg13[%c116, %c0_147], %93 {strides = array<i32>} : memref<144x512xf32, #tpu.memory_space<vmem>>, vector<3x512xf32>,
    %c0_148 = arith.constant 0 : index
    %c3_149 = arith.constant 3 : index
    %c0_150 = arith.constant 0 : index
    %c16_151 = arith.constant 16 : index
    %95 = vector.load %arg1[%c0_148, %c3_149, %c0_150, %c16_151] : memref<1x4x3x640xf32, #tpu.memory_space<vmem>>, vector<1x1x3x512xf32>
    %96 = vector.shape_cast %95 : vector<1x1x3x512xf32> to vector<3x512xf32>
    %c120 = arith.constant 120 : index
    %c0_152 = arith.constant 0 : index
    %97 = vector.load %arg13[%c120, %c0_152] : memref<144x512xf32, #tpu.memory_space<vmem>>, vector<3x512xf32>
    tpu.vector_store %arg13[%c120, %c0_152], %96 {strides = array<i32>} : memref<144x512xf32, #tpu.memory_space<vmem>>, vector<3x512xf32>,
    %c0_153 = arith.constant 0 : index
    %c3_154 = arith.constant 3 : index
    %c0_155 = arith.constant 0 : index
    %c17_156 = arith.constant 17 : index
    %98 = vector.load %arg1[%c0_153, %c3_154, %c0_155, %c17_156] : memref<1x4x3x640xf32, #tpu.memory_space<vmem>>, vector<1x1x3x512xf32>
    %99 = vector.shape_cast %98 : vector<1x1x3x512xf32> to vector<3x512xf32>
    %c124 = arith.constant 124 : index
    %c0_157 = arith.constant 0 : index
    %100 = vector.load %arg13[%c124, %c0_157] : memref<144x512xf32, #tpu.memory_space<vmem>>, vector<3x512xf32>
    tpu.vector_store %arg13[%c124, %c0_157], %99 {strides = array<i32>} : memref<144x512xf32, #tpu.memory_space<vmem>>, vector<3x512xf32>,
    %c0_158 = arith.constant 0 : index
    %c3_159 = arith.constant 3 : index
    %c0_160 = arith.constant 0 : index
    %c18_161 = arith.constant 18 : index
    %101 = vector.load %arg1[%c0_158, %c3_159, %c0_160, %c18_161] : memref<1x4x3x640xf32, #tpu.memory_space<vmem>>, vector<1x1x3x512xf32>
    %102 = vector.shape_cast %101 : vector<1x1x3x512xf32> to vector<3x512xf32>
    %c128 = arith.constant 128 : index
    %c0_162 = arith.constant 0 : index
    %103 = vector.load %arg13[%c128, %c0_162] : memref<144x512xf32, #tpu.memory_space<vmem>>, vector<3x512xf32>
    tpu.vector_store %arg13[%c128, %c0_162], %102 {strides = array<i32>} : memref<144x512xf32, #tpu.memory_space<vmem>>, vector<3x512xf32>,
    %c0_163 = arith.constant 0 : index
    %c3_164 = arith.constant 3 : index
    %c0_165 = arith.constant 0 : index
    %c32_166 = arith.constant 32 : index
    %104 = vector.load %arg1[%c0_163, %c3_164, %c0_165, %c32_166] : memref<1x4x3x640xf32, #tpu.memory_space<vmem>>, vector<1x1x3x512xf32>
    %105 = vector.shape_cast %104 : vector<1x1x3x512xf32> to vector<3x512xf32>
    %c132 = arith.constant 132 : index
    %c0_167 = arith.constant 0 : index
    %106 = vector.load %arg13[%c132, %c0_167] : memref<144x512xf32, #tpu.memory_space<vmem>>, vector<3x512xf32>
    tpu.vector_store %arg13[%c132, %c0_167], %105 {strides = array<i32>} : memref<144x512xf32, #tpu.memory_space<vmem>>, vector<3x512xf32>,
    %c0_168 = arith.constant 0 : index
    %c3_169 = arith.constant 3 : index
    %c0_170 = arith.constant 0 : index
    %c33_171 = arith.constant 33 : index
    %107 = vector.load %arg1[%c0_168, %c3_169, %c0_170, %c33_171] : memref<1x4x3x640xf32, #tpu.memory_space<vmem>>, vector<1x1x3x512xf32>
    %108 = vector.shape_cast %107 : vector<1x1x3x512xf32> to vector<3x512xf32>
    %c136 = arith.constant 136 : index
    %c0_172 = arith.constant 0 : index
    %109 = vector.load %arg13[%c136, %c0_172] : memref<144x512xf32, #tpu.memory_space<vmem>>, vector<3x512xf32>
    tpu.vector_store %arg13[%c136, %c0_172], %108 {strides = array<i32>} : memref<144x512xf32, #tpu.memory_space<vmem>>, vector<3x512xf32>,
    %c0_173 = arith.constant 0 : index
    %c3_174 = arith.constant 3 : index
    %c0_175 = arith.constant 0 : index
    %c34_176 = arith.constant 34 : index
    %110 = vector.load %arg1[%c0_173, %c3_174, %c0_175, %c34_176] : memref<1x4x3x640xf32, #tpu.memory_space<vmem>>, vector<1x1x3x512xf32>
    %111 = vector.shape_cast %110 : vector<1x1x3x512xf32> to vector<3x512xf32>
    %c140 = arith.constant 140 : index
    %c0_177 = arith.constant 0 : index
    %112 = vector.load %arg13[%c140, %c0_177] : memref<144x512xf32, #tpu.memory_space<vmem>>, vector<3x512xf32>
    tpu.vector_store %arg13[%c140, %c0_177], %111 {strides = array<i32>} : memref<144x512xf32, #tpu.memory_space<vmem>>, vector<3x512xf32>,
    %c0_178 = arith.constant 0 : index
    %c0_179 = arith.constant 0 : index
    %c0_180 = arith.constant 0 : index
    %113 = vector.load %arg2[%c0_178, %c0_179, %c0_180] : memref<4x6x144xf32, #tpu.memory_space<vmem>>, vector<1x6x144xf32>
    %114 = vector.shape_cast %113 : vector<1x6x144xf32> to vector<6x144xf32>
    %c1_181 = arith.constant 1 : index
    %c0_182 = arith.constant 0 : index
    %c0_183 = arith.constant 0 : index
    %115 = vector.load %arg2[%c1_181, %c0_182, %c0_183] : memref<4x6x144xf32, #tpu.memory_space<vmem>>, vector<1x6x144xf32>
    %116 = vector.shape_cast %115 : vector<1x6x144xf32> to vector<6x144xf32>
    %c2_184 = arith.constant 2 : index
    %c0_185 = arith.constant 0 : index
    %c0_186 = arith.constant 0 : index
    %117 = vector.load %arg2[%c2_184, %c0_185, %c0_186] : memref<4x6x144xf32, #tpu.memory_space<vmem>>, vector<1x6x144xf32>
    %118 = vector.shape_cast %117 : vector<1x6x144xf32> to vector<6x144xf32>
    %c3_187 = arith.constant 3 : index
    %c0_188 = arith.constant 0 : index
    %c0_189 = arith.constant 0 : index
    %119 = vector.load %arg2[%c3_187, %c0_188, %c0_189] : memref<4x6x144xf32, #tpu.memory_space<vmem>>, vector<1x6x144xf32>
    %120 = vector.shape_cast %119 : vector<1x6x144xf32> to vector<6x144xf32>
    %c0_190 = arith.constant 0 : index
    %c0_191 = arith.constant 0 : index
    %121 = vector.load %arg13[%c0_190, %c0_191] : memref<144x512xf32, #tpu.memory_space<vmem>>, vector<144x512xf32>
    %cst = arith.constant dense<0.000000e+00> : vector<6x512xf32>
    %122 = tpu.matmul %114, %121, %cst {dimension_numbers = #tpu.dot_dimension_numbers<[1], [0], [0], [1], [0, 0, 1, 1], [], []>} : vector<6x144xf32>, vector<144x512xf32>, vector<6x512xf32> -> vector<6x512xf32>
    %cst_192 = arith.constant dense<0.000000e+00> : vector<6x512xf32>
    %123 = tpu.matmul %116, %121, %cst_192 {dimension_numbers = #tpu.dot_dimension_numbers<[1], [0], [0], [1], [0, 0, 1, 1], [], []>} : vector<6x144xf32>, vector<144x512xf32>, vector<6x512xf32> -> vector<6x512xf32>
    %124 = arith.maximumf %122, %123 : vector<6x512xf32>
    %cst_193 = arith.constant dense<0.000000e+00> : vector<6x512xf32>
    %125 = tpu.matmul %118, %121, %cst_193 {dimension_numbers = #tpu.dot_dimension_numbers<[1], [0], [0], [1], [0, 0, 1, 1], [], []>} : vector<6x144xf32>, vector<144x512xf32>, vector<6x512xf32> -> vector<6x512xf32>
    %126 = arith.maximumf %124, %125 : vector<6x512xf32>
    %cst_194 = arith.constant dense<0.000000e+00> : vector<6x512xf32>
    %127 = tpu.matmul %120, %121, %cst_194 {dimension_numbers = #tpu.dot_dimension_numbers<[1], [0], [0], [1], [0, 0, 1, 1], [], []>} : vector<6x144xf32>, vector<144x512xf32>, vector<6x512xf32> -> vector<6x512xf32>
    %128 = arith.maximumf %126, %127 : vector<6x512xf32>
    %129 = vector.broadcast %3 : vector<6x1xf32> to vector<6x512xf32>
    %130 = arith.addf %128, %129 : vector<6x512xf32>
    %cst_195 = arith.constant 0.000000e+00 : f32
    %131 = vector.broadcast %cst_195 : f32 to vector<6x512xf32>
    %132 = arith.maximumf %130, %131 : vector<6x512xf32>
    %c0_196 = arith.constant 0 : index
    %c0_197 = arith.constant 0 : index
    %133 = vector.load %arg15[%c0_196, %c0_197] : memref<6x640xf32, #tpu.memory_space<vmem>>, vector<6x512xf32>
    tpu.vector_store %arg15[%c0_196, %c0_197], %132 {strides = array<i32>} : memref<6x640xf32, #tpu.memory_space<vmem>>, vector<6x512xf32>,
    %c0_198 = arith.constant 0 : index
    %c0_199 = arith.constant 0 : index
    %134 = vector.load %arg15[%c0_198, %c0_199] : memref<6x640xf32, #tpu.memory_space<vmem>>, vector<6x512xf32>
    %c0_200 = arith.constant 0 : index
    %c0_201 = arith.constant 0 : index
    %135 = vector.load %arg14[%c0_200, %c0_201] : memref<200x512xf32, #tpu.memory_space<vmem>>, vector<6x512xf32>
    tpu.vector_store %arg14[%c0_200, %c0_201], %134 {strides = array<i32>} : memref<200x512xf32, #tpu.memory_space<vmem>>, vector<6x512xf32>,
    %c0_202 = arith.constant 0 : index
    %c1_203 = arith.constant 1 : index
    %136 = vector.load %arg15[%c0_202, %c1_203] : memref<6x640xf32, #tpu.memory_space<vmem>>, vector<6x512xf32>
    %c8_204 = arith.constant 8 : index
    %c0_205 = arith.constant 0 : index
    %137 = vector.load %arg14[%c8_204, %c0_205] : memref<200x512xf32, #tpu.memory_space<vmem>>, vector<6x512xf32>
    tpu.vector_store %arg14[%c8_204, %c0_205], %136 {strides = array<i32>} : memref<200x512xf32, #tpu.memory_space<vmem>>, vector<6x512xf32>,
    %c0_206 = arith.constant 0 : index
    %c2_207 = arith.constant 2 : index
    %138 = vector.load %arg15[%c0_206, %c2_207] : memref<6x640xf32, #tpu.memory_space<vmem>>, vector<6x512xf32>
    %c16_208 = arith.constant 16 : index
    %c0_209 = arith.constant 0 : index
    %139 = vector.load %arg14[%c16_208, %c0_209] : memref<200x512xf32, #tpu.memory_space<vmem>>, vector<6x512xf32>
    tpu.vector_store %arg14[%c16_208, %c0_209], %138 {strides = array<i32>} : memref<200x512xf32, #tpu.memory_space<vmem>>, vector<6x512xf32>,
    %c0_210 = arith.constant 0 : index
    %c3_211 = arith.constant 3 : index
    %140 = vector.load %arg15[%c0_210, %c3_211] : memref<6x640xf32, #tpu.memory_space<vmem>>, vector<6x512xf32>
    %c24_212 = arith.constant 24 : index
    %c0_213 = arith.constant 0 : index
    %141 = vector.load %arg14[%c24_212, %c0_213] : memref<200x512xf32, #tpu.memory_space<vmem>>, vector<6x512xf32>
    tpu.vector_store %arg14[%c24_212, %c0_213], %140 {strides = array<i32>} : memref<200x512xf32, #tpu.memory_space<vmem>>, vector<6x512xf32>,
    %c0_214 = arith.constant 0 : index
    %c4_215 = arith.constant 4 : index
    %142 = vector.load %arg15[%c0_214, %c4_215] : memref<6x640xf32, #tpu.memory_space<vmem>>, vector<6x512xf32>
    %c32_216 = arith.constant 32 : index
    %c0_217 = arith.constant 0 : index
    %143 = vector.load %arg14[%c32_216, %c0_217] : memref<200x512xf32, #tpu.memory_space<vmem>>, vector<6x512xf32>
    tpu.vector_store %arg14[%c32_216, %c0_217], %142 {strides = array<i32>} : memref<200x512xf32, #tpu.memory_space<vmem>>, vector<6x512xf32>,
    %c0_218 = arith.constant 0 : index
    %c16_219 = arith.constant 16 : index
    %144 = vector.load %arg15[%c0_218, %c16_219] : memref<6x640xf32, #tpu.memory_space<vmem>>, vector<6x512xf32>
    %c40_220 = arith.constant 40 : index
    %c0_221 = arith.constant 0 : index
    %145 = vector.load %arg14[%c40_220, %c0_221] : memref<200x512xf32, #tpu.memory_space<vmem>>, vector<6x512xf32>
    tpu.vector_store %arg14[%c40_220, %c0_221], %144 {strides = array<i32>} : memref<200x512xf32, #tpu.memory_space<vmem>>, vector<6x512xf32>,
    %c0_222 = arith.constant 0 : index
    %c17_223 = arith.constant 17 : index
    %146 = vector.load %arg15[%c0_222, %c17_223] : memref<6x640xf32, #tpu.memory_space<vmem>>, vector<6x512xf32>
    %c48_224 = arith.constant 48 : index
    %c0_225 = arith.constant 0 : index
    %147 = vector.load %arg14[%c48_224, %c0_225] : memref<200x512xf32, #tpu.memory_space<vmem>>, vector<6x512xf32>
    tpu.vector_store %arg14[%c48_224, %c0_225], %146 {strides = array<i32>} : memref<200x512xf32, #tpu.memory_space<vmem>>, vector<6x512xf32>,
    %c0_226 = arith.constant 0 : index
    %c18_227 = arith.constant 18 : index
    %148 = vector.load %arg15[%c0_226, %c18_227] : memref<6x640xf32, #tpu.memory_space<vmem>>, vector<6x512xf32>
    %c56_228 = arith.constant 56 : index
    %c0_229 = arith.constant 0 : index
    %149 = vector.load %arg14[%c56_228, %c0_229] : memref<200x512xf32, #tpu.memory_space<vmem>>, vector<6x512xf32>
    tpu.vector_store %arg14[%c56_228, %c0_229], %148 {strides = array<i32>} : memref<200x512xf32, #tpu.memory_space<vmem>>, vector<6x512xf32>,
    %c0_230 = arith.constant 0 : index
    %c19 = arith.constant 19 : index
    %150 = vector.load %arg15[%c0_230, %c19] : memref<6x640xf32, #tpu.memory_space<vmem>>, vector<6x512xf32>
    %c64_231 = arith.constant 64 : index
    %c0_232 = arith.constant 0 : index
    %151 = vector.load %arg14[%c64_231, %c0_232] : memref<200x512xf32, #tpu.memory_space<vmem>>, vector<6x512xf32>
    tpu.vector_store %arg14[%c64_231, %c0_232], %150 {strides = array<i32>} : memref<200x512xf32, #tpu.memory_space<vmem>>, vector<6x512xf32>,
    %c0_233 = arith.constant 0 : index
    %c20_234 = arith.constant 20 : index
    %152 = vector.load %arg15[%c0_233, %c20_234] : memref<6x640xf32, #tpu.memory_space<vmem>>, vector<6x512xf32>
    %c72_235 = arith.constant 72 : index
    %c0_236 = arith.constant 0 : index
    %153 = vector.load %arg14[%c72_235, %c0_236] : memref<200x512xf32, #tpu.memory_space<vmem>>, vector<6x512xf32>
    tpu.vector_store %arg14[%c72_235, %c0_236], %152 {strides = array<i32>} : memref<200x512xf32, #tpu.memory_space<vmem>>, vector<6x512xf32>,
    %c0_237 = arith.constant 0 : index
    %c32_238 = arith.constant 32 : index
    %154 = vector.load %arg15[%c0_237, %c32_238] : memref<6x640xf32, #tpu.memory_space<vmem>>, vector<6x512xf32>
    %c80_239 = arith.constant 80 : index
    %c0_240 = arith.constant 0 : index
    %155 = vector.load %arg14[%c80_239, %c0_240] : memref<200x512xf32, #tpu.memory_space<vmem>>, vector<6x512xf32>
    tpu.vector_store %arg14[%c80_239, %c0_240], %154 {strides = array<i32>} : memref<200x512xf32, #tpu.memory_space<vmem>>, vector<6x512xf32>,
    %c0_241 = arith.constant 0 : index
    %c33_242 = arith.constant 33 : index
    %156 = vector.load %arg15[%c0_241, %c33_242] : memref<6x640xf32, #tpu.memory_space<vmem>>, vector<6x512xf32>
    %c88_243 = arith.constant 88 : index
    %c0_244 = arith.constant 0 : index
    %157 = vector.load %arg14[%c88_243, %c0_244] : memref<200x512xf32, #tpu.memory_space<vmem>>, vector<6x512xf32>
    tpu.vector_store %arg14[%c88_243, %c0_244], %156 {strides = array<i32>} : memref<200x512xf32, #tpu.memory_space<vmem>>, vector<6x512xf32>,
    %c0_245 = arith.constant 0 : index
    %c34_246 = arith.constant 34 : index
    %158 = vector.load %arg15[%c0_245, %c34_246] : memref<6x640xf32, #tpu.memory_space<vmem>>, vector<6x512xf32>
    %c96_247 = arith.constant 96 : index
    %c0_248 = arith.constant 0 : index
    %159 = vector.load %arg14[%c96_247, %c0_248] : memref<200x512xf32, #tpu.memory_space<vmem>>, vector<6x512xf32>
    tpu.vector_store %arg14[%c96_247, %c0_248], %158 {strides = array<i32>} : memref<200x512xf32, #tpu.memory_space<vmem>>, vector<6x512xf32>,
    %c0_249 = arith.constant 0 : index
    %c35 = arith.constant 35 : index
    %160 = vector.load %arg15[%c0_249, %c35] : memref<6x640xf32, #tpu.memory_space<vmem>>, vector<6x512xf32>
    %c104_250 = arith.constant 104 : index
    %c0_251 = arith.constant 0 : index
    %161 = vector.load %arg14[%c104_250, %c0_251] : memref<200x512xf32, #tpu.memory_space<vmem>>, vector<6x512xf32>
    tpu.vector_store %arg14[%c104_250, %c0_251], %160 {strides = array<i32>} : memref<200x512xf32, #tpu.memory_space<vmem>>, vector<6x512xf32>,
    %c0_252 = arith.constant 0 : index
    %c36_253 = arith.constant 36 : index
    %162 = vector.load %arg15[%c0_252, %c36_253] : memref<6x640xf32, #tpu.memory_space<vmem>>, vector<6x512xf32>
    %c112_254 = arith.constant 112 : index
    %c0_255 = arith.constant 0 : index
    %163 = vector.load %arg14[%c112_254, %c0_255] : memref<200x512xf32, #tpu.memory_space<vmem>>, vector<6x512xf32>
    tpu.vector_store %arg14[%c112_254, %c0_255], %162 {strides = array<i32>} : memref<200x512xf32, #tpu.memory_space<vmem>>, vector<6x512xf32>,
    %c0_256 = arith.constant 0 : index
    %c48_257 = arith.constant 48 : index
    %164 = vector.load %arg15[%c0_256, %c48_257] : memref<6x640xf32, #tpu.memory_space<vmem>>, vector<6x512xf32>
    %c120_258 = arith.constant 120 : index
    %c0_259 = arith.constant 0 : index
    %165 = vector.load %arg14[%c120_258, %c0_259] : memref<200x512xf32, #tpu.memory_space<vmem>>, vector<6x512xf32>
    tpu.vector_store %arg14[%c120_258, %c0_259], %164 {strides = array<i32>} : memref<200x512xf32, #tpu.memory_space<vmem>>, vector<6x512xf32>,
    %c0_260 = arith.constant 0 : index
    %c49 = arith.constant 49 : index
    %166 = vector.load %arg15[%c0_260, %c49] : memref<6x640xf32, #tpu.memory_space<vmem>>, vector<6x512xf32>
    %c128_261 = arith.constant 128 : index
    %c0_262 = arith.constant 0 : index
    %167 = vector.load %arg14[%c128_261, %c0_262] : memref<200x512xf32, #tpu.memory_space<vmem>>, vector<6x512xf32>
    tpu.vector_store %arg14[%c128_261, %c0_262], %166 {strides = array<i32>} : memref<200x512xf32, #tpu.memory_space<vmem>>, vector<6x512xf32>,
    %c0_263 = arith.constant 0 : index
    %c50 = arith.constant 50 : index
    %168 = vector.load %arg15[%c0_263, %c50] : memref<6x640xf32, #tpu.memory_space<vmem>>, vector<6x512xf32>
    %c136_264 = arith.constant 136 : index
    %c0_265 = arith.constant 0 : index
    %169 = vector.load %arg14[%c136_264, %c0_265] : memref<200x512xf32, #tpu.memory_space<vmem>>, vector<6x512xf32>
    tpu.vector_store %arg14[%c136_264, %c0_265], %168 {strides = array<i32>} : memref<200x512xf32, #tpu.memory_space<vmem>>, vector<6x512xf32>,
    %c0_266 = arith.constant 0 : index
    %c51 = arith.constant 51 : index
    %170 = vector.load %arg15[%c0_266, %c51] : memref<6x640xf32, #tpu.memory_space<vmem>>, vector<6x512xf32>
    %c144 = arith.constant 144 : index
    %c0_267 = arith.constant 0 : index
    %171 = vector.load %arg14[%c144, %c0_267] : memref<200x512xf32, #tpu.memory_space<vmem>>, vector<6x512xf32>
    tpu.vector_store %arg14[%c144, %c0_267], %170 {strides = array<i32>} : memref<200x512xf32, #tpu.memory_space<vmem>>, vector<6x512xf32>,
    %c0_268 = arith.constant 0 : index
    %c52_269 = arith.constant 52 : index
    %172 = vector.load %arg15[%c0_268, %c52_269] : memref<6x640xf32, #tpu.memory_space<vmem>>, vector<6x512xf32>
    %c152 = arith.constant 152 : index
    %c0_270 = arith.constant 0 : index
    %173 = vector.load %arg14[%c152, %c0_270] : memref<200x512xf32, #tpu.memory_space<vmem>>, vector<6x512xf32>
    tpu.vector_store %arg14[%c152, %c0_270], %172 {strides = array<i32>} : memref<200x512xf32, #tpu.memory_space<vmem>>, vector<6x512xf32>,
    %c0_271 = arith.constant 0 : index
    %c64_272 = arith.constant 64 : index
    %174 = vector.load %arg15[%c0_271, %c64_272] : memref<6x640xf32, #tpu.memory_space<vmem>>, vector<6x512xf32>
    %c160 = arith.constant 160 : index
    %c0_273 = arith.constant 0 : index
    %175 = vector.load %arg14[%c160, %c0_273] : memref<200x512xf32, #tpu.memory_space<vmem>>, vector<6x512xf32>
    tpu.vector_store %arg14[%c160, %c0_273], %174 {strides = array<i32>} : memref<200x512xf32, #tpu.memory_space<vmem>>, vector<6x512xf32>,
    %c0_274 = arith.constant 0 : index
    %c65 = arith.constant 65 : index
    %176 = vector.load %arg15[%c0_274, %c65] : memref<6x640xf32, #tpu.memory_space<vmem>>, vector<6x512xf32>
    %c168 = arith.constant 168 : index
    %c0_275 = arith.constant 0 : index
    %177 = vector.load %arg14[%c168, %c0_275] : memref<200x512xf32, #tpu.memory_space<vmem>>, vector<6x512xf32>
    tpu.vector_store %arg14[%c168, %c0_275], %176 {strides = array<i32>} : memref<200x512xf32, #tpu.memory_space<vmem>>, vector<6x512xf32>,
    %c0_276 = arith.constant 0 : index
    %c66 = arith.constant 66 : index
    %178 = vector.load %arg15[%c0_276, %c66] : memref<6x640xf32, #tpu.memory_space<vmem>>, vector<6x512xf32>
    %c176 = arith.constant 176 : index
    %c0_277 = arith.constant 0 : index
    %179 = vector.load %arg14[%c176, %c0_277] : memref<200x512xf32, #tpu.memory_space<vmem>>, vector<6x512xf32>
    tpu.vector_store %arg14[%c176, %c0_277], %178 {strides = array<i32>} : memref<200x512xf32, #tpu.memory_space<vmem>>, vector<6x512xf32>,
    %c0_278 = arith.constant 0 : index
    %c67 = arith.constant 67 : index
    %180 = vector.load %arg15[%c0_278, %c67] : memref<6x640xf32, #tpu.memory_space<vmem>>, vector<6x512xf32>
    %c184 = arith.constant 184 : index
    %c0_279 = arith.constant 0 : index
    %181 = vector.load %arg14[%c184, %c0_279] : memref<200x512xf32, #tpu.memory_space<vmem>>, vector<6x512xf32>
    tpu.vector_store %arg14[%c184, %c0_279], %180 {strides = array<i32>} : memref<200x512xf32, #tpu.memory_space<vmem>>, vector<6x512xf32>,
    %c0_280 = arith.constant 0 : index
    %c68_281 = arith.constant 68 : index
    %182 = vector.load %arg15[%c0_280, %c68_281] : memref<6x640xf32, #tpu.memory_space<vmem>>, vector<6x512xf32>
    %c192 = arith.constant 192 : index
    %c0_282 = arith.constant 0 : index
    %183 = vector.load %arg14[%c192, %c0_282] : memref<200x512xf32, #tpu.memory_space<vmem>>, vector<6x512xf32>
    tpu.vector_store %arg14[%c192, %c0_282], %182 {strides = array<i32>} : memref<200x512xf32, #tpu.memory_space<vmem>>, vector<6x512xf32>,
    %c0_283 = arith.constant 0 : index
    %c0_284 = arith.constant 0 : index
    %184 = vector.load %arg4[%c0_283, %c0_284] : memref<16x200xf32, #tpu.memory_space<vmem>>, vector<16x200xf32>
    %c0_285 = arith.constant 0 : index
    %c0_286 = arith.constant 0 : index
    %185 = vector.load %arg14[%c0_285, %c0_286] : memref<200x512xf32, #tpu.memory_space<vmem>>, vector<200x256xf32>
    %cst_287 = arith.constant dense<0.000000e+00> : vector<16x256xf32>
    %186 = tpu.matmul %184, %185, %cst_287 {dimension_numbers = #tpu.dot_dimension_numbers<[1], [0], [0], [1], [0, 0, 1, 1], [], []>} : vector<16x200xf32>, vector<200x256xf32>, vector<16x256xf32> -> vector<16x256xf32>
    %c0_288 = arith.constant 0 : index
    %c0_289 = arith.constant 0 : index
    %187 = vector.load %arg16[%c0_288, %c0_289] : memref<16x640xf32, #tpu.memory_space<vmem>>, vector<16x256xf32>
    tpu.vector_store %arg16[%c0_288, %c0_289], %186 {strides = array<i32>} : memref<16x640xf32, #tpu.memory_space<vmem>>, vector<16x256xf32>,
    %c0_290 = arith.constant 0 : index
    %c256 = arith.constant 256 : index
    %188 = vector.load %arg14[%c0_290, %c256] : memref<200x512xf32, #tpu.memory_space<vmem>>, vector<200x256xf32>
    %cst_291 = arith.constant dense<0.000000e+00> : vector<16x256xf32>
    %189 = tpu.matmul %184, %188, %cst_291 {dimension_numbers = #tpu.dot_dimension_numbers<[1], [0], [0], [1], [0, 0, 1, 1], [], []>} : vector<16x200xf32>, vector<200x256xf32>, vector<16x256xf32> -> vector<16x256xf32>
    %c0_292 = arith.constant 0 : index
    %c256_293 = arith.constant 256 : index
    %190 = vector.load %arg16[%c0_292, %c256_293] : memref<16x640xf32, #tpu.memory_space<vmem>>, vector<16x256xf32>
    tpu.vector_store %arg16[%c0_292, %c256_293], %189 {strides = array<i32>} : memref<16x640xf32, #tpu.memory_space<vmem>>, vector<16x256xf32>,
    %c0_294 = arith.constant 0 : index
    %c0_295 = arith.constant 0 : index
    %191 = vector.load %arg16[%c0_294, %c0_295] : memref<16x640xf32, #tpu.memory_space<vmem>>, vector<16x256xf32>
    %c0_296 = arith.constant 0 : index
    %c1_297 = arith.constant 1 : index
    %192 = vector.load %arg16[%c0_296, %c1_297] : memref<16x640xf32, #tpu.memory_space<vmem>>, vector<16x256xf32>
    %193 = arith.maximumf %191, %192 : vector<16x256xf32>
    %c0_298 = arith.constant 0 : index
    %c16_299 = arith.constant 16 : index
    %194 = vector.load %arg16[%c0_298, %c16_299] : memref<16x640xf32, #tpu.memory_space<vmem>>, vector<16x256xf32>
    %195 = arith.maximumf %193, %194 : vector<16x256xf32>
    %c0_300 = arith.constant 0 : index
    %c17_301 = arith.constant 17 : index
    %196 = vector.load %arg16[%c0_300, %c17_301] : memref<16x640xf32, #tpu.memory_space<vmem>>, vector<16x256xf32>
    %197 = arith.maximumf %195, %196 : vector<16x256xf32>
    %198 = vector.broadcast %4 : vector<16x1xf32> to vector<16x256xf32>
    %199 = arith.addf %197, %198 : vector<16x256xf32>
    %cst_302 = arith.constant 0.000000e+00 : f32
    %200 = vector.broadcast %cst_302 : f32 to vector<16x256xf32>
    %201 = arith.maximumf %199, %200 : vector<16x256xf32>
    %202 = vector.extract_strided_slice %201 {offsets = [0, 0], sizes = [1, 256], strides = [1, 1]} : vector<16x256xf32> to vector<1x256xf32>
    %c0_303 = arith.constant 0 : index
    %c0_304 = arith.constant 0 : index
    %203 = vector.load %arg17[%c0_303, %c0_304] : memref<2x4096xf32, #tpu.memory_space<vmem>>, vector<1x256xf32>
    tpu.vector_store %arg17[%c0_303, %c0_304], %202 {strides = array<i32>} : memref<2x4096xf32, #tpu.memory_space<vmem>>, vector<1x256xf32>,
    %204 = vector.extract_strided_slice %201 {offsets = [1, 0], sizes = [1, 256], strides = [1, 1]} : vector<16x256xf32> to vector<1x256xf32>
    %c0_305 = arith.constant 0 : index
    %c256_306 = arith.constant 256 : index
    %205 = vector.load %arg17[%c0_305, %c256_306] : memref<2x4096xf32, #tpu.memory_space<vmem>>, vector<1x256xf32>
    tpu.vector_store %arg17[%c0_305, %c256_306], %204 {strides = array<i32>} : memref<2x4096xf32, #tpu.memory_space<vmem>>, vector<1x256xf32>,
    %206 = vector.extract_strided_slice %201 {offsets = [2, 0], sizes = [1, 256], strides = [1, 1]} : vector<16x256xf32> to vector<1x256xf32>
    %c0_307 = arith.constant 0 : index
    %c512 = arith.constant 512 : index
    %207 = vector.load %arg17[%c0_307, %c512] : memref<2x4096xf32, #tpu.memory_space<vmem>>, vector<1x256xf32>
    tpu.vector_store %arg17[%c0_307, %c512], %206 {strides = array<i32>} : memref<2x4096xf32, #tpu.memory_space<vmem>>, vector<1x256xf32>,
    %208 = vector.extract_strided_slice %201 {offsets = [3, 0], sizes = [1, 256], strides = [1, 1]} : vector<16x256xf32> to vector<1x256xf32>
    %c0_308 = arith.constant 0 : index
    %c768 = arith.constant 768 : index
    %209 = vector.load %arg17[%c0_308, %c768] : memref<2x4096xf32, #tpu.memory_space<vmem>>, vector<1x256xf32>
    tpu.vector_store %arg17[%c0_308, %c768], %208 {strides = array<i32>} : memref<2x4096xf32, #tpu.memory_space<vmem>>, vector<1x256xf32>,
    %210 = vector.extract_strided_slice %201 {offsets = [4, 0], sizes = [1, 256], strides = [1, 1]} : vector<16x256xf32> to vector<1x256xf32>
    %c0_309 = arith.constant 0 : index
    %c1024 = arith.constant 1024 : index
    %211 = vector.load %arg17[%c0_309, %c1024] : memref<2x4096xf32, #tpu.memory_space<vmem>>, vector<1x256xf32>
    tpu.vector_store %arg17[%c0_309, %c1024], %210 {strides = array<i32>} : memref<2x4096xf32, #tpu.memory_space<vmem>>, vector<1x256xf32>,
    %212 = vector.extract_strided_slice %201 {offsets = [5, 0], sizes = [1, 256], strides = [1, 1]} : vector<16x256xf32> to vector<1x256xf32>
    %c0_310 = arith.constant 0 : index
    %c1280 = arith.constant 1280 : index
    %213 = vector.load %arg17[%c0_310, %c1280] : memref<2x4096xf32, #tpu.memory_space<vmem>>, vector<1x256xf32>
    tpu.vector_store %arg17[%c0_310, %c1280], %212 {strides = array<i32>} : memref<2x4096xf32, #tpu.memory_space<vmem>>, vector<1x256xf32>,
    %214 = vector.extract_strided_slice %201 {offsets = [6, 0], sizes = [1, 256], strides = [1, 1]} : vector<16x256xf32> to vector<1x256xf32>
    %c0_311 = arith.constant 0 : index
    %c1536 = arith.constant 1536 : index
    %215 = vector.load %arg17[%c0_311, %c1536] : memref<2x4096xf32, #tpu.memory_space<vmem>>, vector<1x256xf32>
    tpu.vector_store %arg17[%c0_311, %c1536], %214 {strides = array<i32>} : memref<2x4096xf32, #tpu.memory_space<vmem>>, vector<1x256xf32>,
    %216 = vector.extract_strided_slice %201 {offsets = [7, 0], sizes = [1, 256], strides = [1, 1]} : vector<16x256xf32> to vector<1x256xf32>
    %c0_312 = arith.constant 0 : index
    %c1792 = arith.constant 1792 : index
    %217 = vector.load %arg17[%c0_312, %c1792] : memref<2x4096xf32, #tpu.memory_space<vmem>>, vector<1x256xf32>
    tpu.vector_store %arg17[%c0_312, %c1792], %216 {strides = array<i32>} : memref<2x4096xf32, #tpu.memory_space<vmem>>, vector<1x256xf32>,
    %218 = vector.extract_strided_slice %201 {offsets = [8, 0], sizes = [1, 256], strides = [1, 1]} : vector<16x256xf32> to vector<1x256xf32>
    %c0_313 = arith.constant 0 : index
    %c2048 = arith.constant 2048 : index
    %219 = vector.load %arg17[%c0_313, %c2048] : memref<2x4096xf32, #tpu.memory_space<vmem>>, vector<1x256xf32>
    tpu.vector_store %arg17[%c0_313, %c2048], %218 {strides = array<i32>} : memref<2x4096xf32, #tpu.memory_space<vmem>>, vector<1x256xf32>,
    %220 = vector.extract_strided_slice %201 {offsets = [9, 0], sizes = [1, 256], strides = [1, 1]} : vector<16x256xf32> to vector<1x256xf32>
    %c0_314 = arith.constant 0 : index
    %c2304 = arith.constant 2304 : index
    %221 = vector.load %arg17[%c0_314, %c2304] : memref<2x4096xf32, #tpu.memory_space<vmem>>, vector<1x256xf32>
    tpu.vector_store %arg17[%c0_314, %c2304], %220 {strides = array<i32>} : memref<2x4096xf32, #tpu.memory_space<vmem>>, vector<1x256xf32>,
    %222 = vector.extract_strided_slice %201 {offsets = [10, 0], sizes = [1, 256], strides = [1, 1]} : vector<16x256xf32> to vector<1x256xf32>
    %c0_315 = arith.constant 0 : index
    %c2560 = arith.constant 2560 : index
    %223 = vector.load %arg17[%c0_315, %c2560] : memref<2x4096xf32, #tpu.memory_space<vmem>>, vector<1x256xf32>
    tpu.vector_store %arg17[%c0_315, %c2560], %222 {strides = array<i32>} : memref<2x4096xf32, #tpu.memory_space<vmem>>, vector<1x256xf32>,
    %224 = vector.extract_strided_slice %201 {offsets = [11, 0], sizes = [1, 256], strides = [1, 1]} : vector<16x256xf32> to vector<1x256xf32>
    %c0_316 = arith.constant 0 : index
    %c2816 = arith.constant 2816 : index
    %225 = vector.load %arg17[%c0_316, %c2816] : memref<2x4096xf32, #tpu.memory_space<vmem>>, vector<1x256xf32>
    tpu.vector_store %arg17[%c0_316, %c2816], %224 {strides = array<i32>} : memref<2x4096xf32, #tpu.memory_space<vmem>>, vector<1x256xf32>,
    %226 = vector.extract_strided_slice %201 {offsets = [12, 0], sizes = [1, 256], strides = [1, 1]} : vector<16x256xf32> to vector<1x256xf32>
    %c0_317 = arith.constant 0 : index
    %c3072 = arith.constant 3072 : index
    %227 = vector.load %arg17[%c0_317, %c3072] : memref<2x4096xf32, #tpu.memory_space<vmem>>, vector<1x256xf32>
    tpu.vector_store %arg17[%c0_317, %c3072], %226 {strides = array<i32>} : memref<2x4096xf32, #tpu.memory_space<vmem>>, vector<1x256xf32>,
    %228 = vector.extract_strided_slice %201 {offsets = [13, 0], sizes = [1, 256], strides = [1, 1]} : vector<16x256xf32> to vector<1x256xf32>
    %c0_318 = arith.constant 0 : index
    %c3328 = arith.constant 3328 : index
    %229 = vector.load %arg17[%c0_318, %c3328] : memref<2x4096xf32, #tpu.memory_space<vmem>>, vector<1x256xf32>
    tpu.vector_store %arg17[%c0_318, %c3328], %228 {strides = array<i32>} : memref<2x4096xf32, #tpu.memory_space<vmem>>, vector<1x256xf32>,
    %230 = vector.extract_strided_slice %201 {offsets = [14, 0], sizes = [1, 256], strides = [1, 1]} : vector<16x256xf32> to vector<1x256xf32>
    %c0_319 = arith.constant 0 : index
    %c3584 = arith.constant 3584 : index
    %231 = vector.load %arg17[%c0_319, %c3584] : memref<2x4096xf32, #tpu.memory_space<vmem>>, vector<1x256xf32>
    tpu.vector_store %arg17[%c0_319, %c3584], %230 {strides = array<i32>} : memref<2x4096xf32, #tpu.memory_space<vmem>>, vector<1x256xf32>,
    %232 = vector.extract_strided_slice %201 {offsets = [15, 0], sizes = [1, 256], strides = [1, 1]} : vector<16x256xf32> to vector<1x256xf32>
    %c0_320 = arith.constant 0 : index
    %c3840 = arith.constant 3840 : index
    %233 = vector.load %arg17[%c0_320, %c3840] : memref<2x4096xf32, #tpu.memory_space<vmem>>, vector<1x256xf32>
    tpu.vector_store %arg17[%c0_320, %c3840], %232 {strides = array<i32>} : memref<2x4096xf32, #tpu.memory_space<vmem>>, vector<1x256xf32>,
    %c0_321 = arith.constant 0 : index
    %c256_322 = arith.constant 256 : index
    %234 = vector.load %arg16[%c0_321, %c256_322] : memref<16x640xf32, #tpu.memory_space<vmem>>, vector<16x256xf32>
    %c0_323 = arith.constant 0 : index
    %c257 = arith.constant 257 : index
    %235 = vector.load %arg16[%c0_323, %c257] : memref<16x640xf32, #tpu.memory_space<vmem>>, vector<16x256xf32>
    %236 = arith.maximumf %234, %235 : vector<16x256xf32>
    %c0_324 = arith.constant 0 : index
    %c272 = arith.constant 272 : index
    %237 = vector.load %arg16[%c0_324, %c272] : memref<16x640xf32, #tpu.memory_space<vmem>>, vector<16x256xf32>
    %238 = arith.maximumf %236, %237 : vector<16x256xf32>
    %c0_325 = arith.constant 0 : index
    %c273 = arith.constant 273 : index
    %239 = vector.load %arg16[%c0_325, %c273] : memref<16x640xf32, #tpu.memory_space<vmem>>, vector<16x256xf32>
    %240 = arith.maximumf %238, %239 : vector<16x256xf32>
    %241 = vector.broadcast %4 : vector<16x1xf32> to vector<16x256xf32>
    %242 = arith.addf %240, %241 : vector<16x256xf32>
    %cst_326 = arith.constant 0.000000e+00 : f32
    %243 = vector.broadcast %cst_326 : f32 to vector<16x256xf32>
    %244 = arith.maximumf %242, %243 : vector<16x256xf32>
    %245 = vector.extract_strided_slice %244 {offsets = [0, 0], sizes = [1, 256], strides = [1, 1]} : vector<16x256xf32> to vector<1x256xf32>
    %c1_327 = arith.constant 1 : index
    %c0_328 = arith.constant 0 : index
    %246 = vector.load %arg17[%c1_327, %c0_328] : memref<2x4096xf32, #tpu.memory_space<vmem>>, vector<1x256xf32>
    tpu.vector_store %arg17[%c1_327, %c0_328], %245 {strides = array<i32>} : memref<2x4096xf32, #tpu.memory_space<vmem>>, vector<1x256xf32>,
    %247 = vector.extract_strided_slice %244 {offsets = [1, 0], sizes = [1, 256], strides = [1, 1]} : vector<16x256xf32> to vector<1x256xf32>
    %c1_329 = arith.constant 1 : index
    %c256_330 = arith.constant 256 : index
    %248 = vector.load %arg17[%c1_329, %c256_330] : memref<2x4096xf32, #tpu.memory_space<vmem>>, vector<1x256xf32>
    tpu.vector_store %arg17[%c1_329, %c256_330], %247 {strides = array<i32>} : memref<2x4096xf32, #tpu.memory_space<vmem>>, vector<1x256xf32>,
    %249 = vector.extract_strided_slice %244 {offsets = [2, 0], sizes = [1, 256], strides = [1, 1]} : vector<16x256xf32> to vector<1x256xf32>
    %c1_331 = arith.constant 1 : index
    %c512_332 = arith.constant 512 : index
    %250 = vector.load %arg17[%c1_331, %c512_332] : memref<2x4096xf32, #tpu.memory_space<vmem>>, vector<1x256xf32>
    tpu.vector_store %arg17[%c1_331, %c512_332], %249 {strides = array<i32>} : memref<2x4096xf32, #tpu.memory_space<vmem>>, vector<1x256xf32>,
    %251 = vector.extract_strided_slice %244 {offsets = [3, 0], sizes = [1, 256], strides = [1, 1]} : vector<16x256xf32> to vector<1x256xf32>
    %c1_333 = arith.constant 1 : index
    %c768_334 = arith.constant 768 : index
    %252 = vector.load %arg17[%c1_333, %c768_334] : memref<2x4096xf32, #tpu.memory_space<vmem>>, vector<1x256xf32>
    tpu.vector_store %arg17[%c1_333, %c768_334], %251 {strides = array<i32>} : memref<2x4096xf32, #tpu.memory_space<vmem>>, vector<1x256xf32>,
    %253 = vector.extract_strided_slice %244 {offsets = [4, 0], sizes = [1, 256], strides = [1, 1]} : vector<16x256xf32> to vector<1x256xf32>
    %c1_335 = arith.constant 1 : index
    %c1024_336 = arith.constant 1024 : index
    %254 = vector.load %arg17[%c1_335, %c1024_336] : memref<2x4096xf32, #tpu.memory_space<vmem>>, vector<1x256xf32>
    tpu.vector_store %arg17[%c1_335, %c1024_336], %253 {strides = array<i32>} : memref<2x4096xf32, #tpu.memory_space<vmem>>, vector<1x256xf32>,
    %255 = vector.extract_strided_slice %244 {offsets = [5, 0], sizes = [1, 256], strides = [1, 1]} : vector<16x256xf32> to vector<1x256xf32>
    %c1_337 = arith.constant 1 : index
    %c1280_338 = arith.constant 1280 : index
    %256 = vector.load %arg17[%c1_337, %c1280_338] : memref<2x4096xf32, #tpu.memory_space<vmem>>, vector<1x256xf32>
    tpu.vector_store %arg17[%c1_337, %c1280_338], %255 {strides = array<i32>} : memref<2x4096xf32, #tpu.memory_space<vmem>>, vector<1x256xf32>,
    %257 = vector.extract_strided_slice %244 {offsets = [6, 0], sizes = [1, 256], strides = [1, 1]} : vector<16x256xf32> to vector<1x256xf32>
    %c1_339 = arith.constant 1 : index
    %c1536_340 = arith.constant 1536 : index
    %258 = vector.load %arg17[%c1_339, %c1536_340] : memref<2x4096xf32, #tpu.memory_space<vmem>>, vector<1x256xf32>
    tpu.vector_store %arg17[%c1_339, %c1536_340], %257 {strides = array<i32>} : memref<2x4096xf32, #tpu.memory_space<vmem>>, vector<1x256xf32>,
    %259 = vector.extract_strided_slice %244 {offsets = [7, 0], sizes = [1, 256], strides = [1, 1]} : vector<16x256xf32> to vector<1x256xf32>
    %c1_341 = arith.constant 1 : index
    %c1792_342 = arith.constant 1792 : index
    %260 = vector.load %arg17[%c1_341, %c1792_342] : memref<2x4096xf32, #tpu.memory_space<vmem>>, vector<1x256xf32>
    tpu.vector_store %arg17[%c1_341, %c1792_342], %259 {strides = array<i32>} : memref<2x4096xf32, #tpu.memory_space<vmem>>, vector<1x256xf32>,
    %261 = vector.extract_strided_slice %244 {offsets = [8, 0], sizes = [1, 256], strides = [1, 1]} : vector<16x256xf32> to vector<1x256xf32>
    %c1_343 = arith.constant 1 : index
    %c2048_344 = arith.constant 2048 : index
    %262 = vector.load %arg17[%c1_343, %c2048_344] : memref<2x4096xf32, #tpu.memory_space<vmem>>, vector<1x256xf32>
    tpu.vector_store %arg17[%c1_343, %c2048_344], %261 {strides = array<i32>} : memref<2x4096xf32, #tpu.memory_space<vmem>>, vector<1x256xf32>,
    %263 = vector.extract_strided_slice %244 {offsets = [9, 0], sizes = [1, 256], strides = [1, 1]} : vector<16x256xf32> to vector<1x256xf32>
    %c1_345 = arith.constant 1 : index
    %c2304_346 = arith.constant 2304 : index
    %264 = vector.load %arg17[%c1_345, %c2304_346] : memref<2x4096xf32, #tpu.memory_space<vmem>>, vector<1x256xf32>
    tpu.vector_store %arg17[%c1_345, %c2304_346], %263 {strides = array<i32>} : memref<2x4096xf32, #tpu.memory_space<vmem>>, vector<1x256xf32>,
    %265 = vector.extract_strided_slice %244 {offsets = [10, 0], sizes = [1, 256], strides = [1, 1]} : vector<16x256xf32> to vector<1x256xf32>
    %c1_347 = arith.constant 1 : index
    %c2560_348 = arith.constant 2560 : index
    %266 = vector.load %arg17[%c1_347, %c2560_348] : memref<2x4096xf32, #tpu.memory_space<vmem>>, vector<1x256xf32>
    tpu.vector_store %arg17[%c1_347, %c2560_348], %265 {strides = array<i32>} : memref<2x4096xf32, #tpu.memory_space<vmem>>, vector<1x256xf32>,
    %267 = vector.extract_strided_slice %244 {offsets = [11, 0], sizes = [1, 256], strides = [1, 1]} : vector<16x256xf32> to vector<1x256xf32>
    %c1_349 = arith.constant 1 : index
    %c2816_350 = arith.constant 2816 : index
    %268 = vector.load %arg17[%c1_349, %c2816_350] : memref<2x4096xf32, #tpu.memory_space<vmem>>, vector<1x256xf32>
    tpu.vector_store %arg17[%c1_349, %c2816_350], %267 {strides = array<i32>} : memref<2x4096xf32, #tpu.memory_space<vmem>>, vector<1x256xf32>,
    %269 = vector.extract_strided_slice %244 {offsets = [12, 0], sizes = [1, 256], strides = [1, 1]} : vector<16x256xf32> to vector<1x256xf32>
    %c1_351 = arith.constant 1 : index
    %c3072_352 = arith.constant 3072 : index
    %270 = vector.load %arg17[%c1_351, %c3072_352] : memref<2x4096xf32, #tpu.memory_space<vmem>>, vector<1x256xf32>
    tpu.vector_store %arg17[%c1_351, %c3072_352], %269 {strides = array<i32>} : memref<2x4096xf32, #tpu.memory_space<vmem>>, vector<1x256xf32>,
    %271 = vector.extract_strided_slice %244 {offsets = [13, 0], sizes = [1, 256], strides = [1, 1]} : vector<16x256xf32> to vector<1x256xf32>
    %c1_353 = arith.constant 1 : index
    %c3328_354 = arith.constant 3328 : index
    %272 = vector.load %arg17[%c1_353, %c3328_354] : memref<2x4096xf32, #tpu.memory_space<vmem>>, vector<1x256xf32>
    tpu.vector_store %arg17[%c1_353, %c3328_354], %271 {strides = array<i32>} : memref<2x4096xf32, #tpu.memory_space<vmem>>, vector<1x256xf32>,
    %273 = vector.extract_strided_slice %244 {offsets = [14, 0], sizes = [1, 256], strides = [1, 1]} : vector<16x256xf32> to vector<1x256xf32>
    %c1_355 = arith.constant 1 : index
    %c3584_356 = arith.constant 3584 : index
    %274 = vector.load %arg17[%c1_355, %c3584_356] : memref<2x4096xf32, #tpu.memory_space<vmem>>, vector<1x256xf32>
    tpu.vector_store %arg17[%c1_355, %c3584_356], %273 {strides = array<i32>} : memref<2x4096xf32, #tpu.memory_space<vmem>>, vector<1x256xf32>,
    %275 = vector.extract_strided_slice %244 {offsets = [15, 0], sizes = [1, 256], strides = [1, 1]} : vector<16x256xf32> to vector<1x256xf32>
    %c1_357 = arith.constant 1 : index
    %c3840_358 = arith.constant 3840 : index
    %276 = vector.load %arg17[%c1_357, %c3840_358] : memref<2x4096xf32, #tpu.memory_space<vmem>>, vector<1x256xf32>
    tpu.vector_store %arg17[%c1_357, %c3840_358], %275 {strides = array<i32>} : memref<2x4096xf32, #tpu.memory_space<vmem>>, vector<1x256xf32>,
    %cst_359 = arith.constant 0.000000e+00 : f32
    %277 = vector.broadcast %cst_359 : f32 to vector<2x128xf32>
    %c0_360 = arith.constant 0 : index
    %c0_361 = arith.constant 0 : index
    %278 = vector.load %arg17[%c0_360, %c0_361] : memref<2x4096xf32, #tpu.memory_space<vmem>>, vector<2x512xf32>
    %c0_362 = arith.constant 0 : index
    %c0_363 = arith.constant 0 : index
    %279 = vector.load %arg6[%c0_362, %c0_363] : memref<4096x128xf32, #tpu.memory_space<vmem>>, vector<512x128xf32>
    %cst_364 = arith.constant dense<0.000000e+00> : vector<2x128xf32>
    %280 = tpu.matmul %278, %279, %cst_364 {dimension_numbers = #tpu.dot_dimension_numbers<[1], [0], [0], [1], [0, 0, 1, 1], [], []>} : vector<2x512xf32>, vector<512x128xf32>, vector<2x128xf32> -> vector<2x128xf32>
    %281 = arith.addf %277, %280 : vector<2x128xf32>
    %c0_365 = arith.constant 0 : index
    %c512_366 = arith.constant 512 : index
    %282 = vector.load %arg17[%c0_365, %c512_366] : memref<2x4096xf32, #tpu.memory_space<vmem>>, vector<2x512xf32>
    %c512_367 = arith.constant 512 : index
    %c0_368 = arith.constant 0 : index
    %283 = vector.load %arg6[%c512_367, %c0_368] : memref<4096x128xf32, #tpu.memory_space<vmem>>, vector<512x128xf32>
    %cst_369 = arith.constant dense<0.000000e+00> : vector<2x128xf32>
    %284 = tpu.matmul %282, %283, %cst_369 {dimension_numbers = #tpu.dot_dimension_numbers<[1], [0], [0], [1], [0, 0, 1, 1], [], []>} : vector<2x512xf32>, vector<512x128xf32>, vector<2x128xf32> -> vector<2x128xf32>
    %285 = arith.addf %281, %284 : vector<2x128xf32>
    %c0_370 = arith.constant 0 : index
    %c1024_371 = arith.constant 1024 : index
    %286 = vector.load %arg17[%c0_370, %c1024_371] : memref<2x4096xf32, #tpu.memory_space<vmem>>, vector<2x512xf32>
    %c1024_372 = arith.constant 1024 : index
    %c0_373 = arith.constant 0 : index
    %287 = vector.load %arg6[%c1024_372, %c0_373] : memref<4096x128xf32, #tpu.memory_space<vmem>>, vector<512x128xf32>
    %cst_374 = arith.constant dense<0.000000e+00> : vector<2x128xf32>
    %288 = tpu.matmul %286, %287, %cst_374 {dimension_numbers = #tpu.dot_dimension_numbers<[1], [0], [0], [1], [0, 0, 1, 1], [], []>} : vector<2x512xf32>, vector<512x128xf32>, vector<2x128xf32> -> vector<2x128xf32>
    %289 = arith.addf %285, %288 : vector<2x128xf32>
    %c0_375 = arith.constant 0 : index
    %c1536_376 = arith.constant 1536 : index
    %290 = vector.load %arg17[%c0_375, %c1536_376] : memref<2x4096xf32, #tpu.memory_space<vmem>>, vector<2x512xf32>
    %c1536_377 = arith.constant 1536 : index
    %c0_378 = arith.constant 0 : index
    %291 = vector.load %arg6[%c1536_377, %c0_378] : memref<4096x128xf32, #tpu.memory_space<vmem>>, vector<512x128xf32>
    %cst_379 = arith.constant dense<0.000000e+00> : vector<2x128xf32>
    %292 = tpu.matmul %290, %291, %cst_379 {dimension_numbers = #tpu.dot_dimension_numbers<[1], [0], [0], [1], [0, 0, 1, 1], [], []>} : vector<2x512xf32>, vector<512x128xf32>, vector<2x128xf32> -> vector<2x128xf32>
    %293 = arith.addf %289, %292 : vector<2x128xf32>
    %c0_380 = arith.constant 0 : index
    %c2048_381 = arith.constant 2048 : index
    %294 = vector.load %arg17[%c0_380, %c2048_381] : memref<2x4096xf32, #tpu.memory_space<vmem>>, vector<2x512xf32>
    %c2048_382 = arith.constant 2048 : index
    %c0_383 = arith.constant 0 : index
    %295 = vector.load %arg6[%c2048_382, %c0_383] : memref<4096x128xf32, #tpu.memory_space<vmem>>, vector<512x128xf32>
    %cst_384 = arith.constant dense<0.000000e+00> : vector<2x128xf32>
    %296 = tpu.matmul %294, %295, %cst_384 {dimension_numbers = #tpu.dot_dimension_numbers<[1], [0], [0], [1], [0, 0, 1, 1], [], []>} : vector<2x512xf32>, vector<512x128xf32>, vector<2x128xf32> -> vector<2x128xf32>
    %297 = arith.addf %293, %296 : vector<2x128xf32>
    %c0_385 = arith.constant 0 : index
    %c2560_386 = arith.constant 2560 : index
    %298 = vector.load %arg17[%c0_385, %c2560_386] : memref<2x4096xf32, #tpu.memory_space<vmem>>, vector<2x512xf32>
    %c2560_387 = arith.constant 2560 : index
    %c0_388 = arith.constant 0 : index
    %299 = vector.load %arg6[%c2560_387, %c0_388] : memref<4096x128xf32, #tpu.memory_space<vmem>>, vector<512x128xf32>
    %cst_389 = arith.constant dense<0.000000e+00> : vector<2x128xf32>
    %300 = tpu.matmul %298, %299, %cst_389 {dimension_numbers = #tpu.dot_dimension_numbers<[1], [0], [0], [1], [0, 0, 1, 1], [], []>} : vector<2x512xf32>, vector<512x128xf32>, vector<2x128xf32> -> vector<2x128xf32>
    %301 = arith.addf %297, %300 : vector<2x128xf32>
    %c0_390 = arith.constant 0 : index
    %c3072_391 = arith.constant 3072 : index
    %302 = vector.load %arg17[%c0_390, %c3072_391] : memref<2x4096xf32, #tpu.memory_space<vmem>>, vector<2x512xf32>
    %c3072_392 = arith.constant 3072 : index
    %c0_393 = arith.constant 0 : index
    %303 = vector.load %arg6[%c3072_392, %c0_393] : memref<4096x128xf32, #tpu.memory_space<vmem>>, vector<512x128xf32>
    %cst_394 = arith.constant dense<0.000000e+00> : vector<2x128xf32>
    %304 = tpu.matmul %302, %303, %cst_394 {dimension_numbers = #tpu.dot_dimension_numbers<[1], [0], [0], [1], [0, 0, 1, 1], [], []>} : vector<2x512xf32>, vector<512x128xf32>, vector<2x128xf32> -> vector<2x128xf32>
    %305 = arith.addf %301, %304 : vector<2x128xf32>
    %c0_395 = arith.constant 0 : index
    %c3584_396 = arith.constant 3584 : index
    %306 = vector.load %arg17[%c0_395, %c3584_396] : memref<2x4096xf32, #tpu.memory_space<vmem>>, vector<2x512xf32>
    %c3584_397 = arith.constant 3584 : index
    %c0_398 = arith.constant 0 : index
    %307 = vector.load %arg6[%c3584_397, %c0_398] : memref<4096x128xf32, #tpu.memory_space<vmem>>, vector<512x128xf32>
    %cst_399 = arith.constant dense<0.000000e+00> : vector<2x128xf32>
    %308 = tpu.matmul %306, %307, %cst_399 {dimension_numbers = #tpu.dot_dimension_numbers<[1], [0], [0], [1], [0, 0, 1, 1], [], []>} : vector<2x512xf32>, vector<512x128xf32>, vector<2x128xf32> -> vector<2x128xf32>
    %309 = arith.addf %305, %308 : vector<2x128xf32>
    %c0_400 = arith.constant 0 : index
    %c0_401 = arith.constant 0 : index
    %310 = vector.load %arg7[%c0_400, %c0_401] : memref<1x128xf32, #tpu.memory_space<vmem>>, vector<1x128xf32>
    %311 = vector.broadcast %310 : vector<1x128xf32> to vector<2x128xf32>
    %312 = arith.addf %309, %311 : vector<2x128xf32>
    %cst_402 = arith.constant 0.000000e+00 : f32
    %313 = vector.broadcast %cst_402 : f32 to vector<2x128xf32>
    %314 = arith.maximumf %312, %313 : vector<2x128xf32>
    %c0_403 = arith.constant 0 : index
    %c0_404 = arith.constant 0 : index
    %315 = vector.load %arg8[%c0_403, %c0_404] : memref<128x128xf32, #tpu.memory_space<vmem>>, vector<128x128xf32>
    %cst_405 = arith.constant dense<0.000000e+00> : vector<2x128xf32>
    %316 = tpu.matmul %314, %315, %cst_405 {dimension_numbers = #tpu.dot_dimension_numbers<[1], [0], [0], [1], [0, 0, 1, 1], [], []>} : vector<2x128xf32>, vector<128x128xf32>, vector<2x128xf32> -> vector<2x128xf32>
    %c0_406 = arith.constant 0 : index
    %c0_407 = arith.constant 0 : index
    %317 = vector.load %arg9[%c0_406, %c0_407] : memref<1x128xf32, #tpu.memory_space<vmem>>, vector<1x128xf32>
    %318 = vector.broadcast %317 : vector<1x128xf32> to vector<2x128xf32>
    %319 = arith.addf %316, %318 : vector<2x128xf32>
    %cst_408 = arith.constant 0.000000e+00 : f32
    %320 = vector.broadcast %cst_408 : f32 to vector<2x128xf32>
    %321 = arith.maximumf %319, %320 : vector<2x128xf32>
    %c0_409 = arith.constant 0 : index
    %c0_410 = arith.constant 0 : index
    %322 = vector.load %arg10[%c0_409, %c0_410] : memref<128x128xf32, #tpu.memory_space<vmem>>, vector<128x128xf32>
    %cst_411 = arith.constant dense<0.000000e+00> : vector<2x128xf32>
    %323 = tpu.matmul %321, %322, %cst_411 {dimension_numbers = #tpu.dot_dimension_numbers<[1], [0], [0], [1], [0, 0, 1, 1], [], []>} : vector<2x128xf32>, vector<128x128xf32>, vector<2x128xf32> -> vector<2x128xf32>
    %c0_412 = arith.constant 0 : index
    %c0_413 = arith.constant 0 : index
    %324 = vector.load %arg11[%c0_412, %c0_413] : memref<1x128xf32, #tpu.memory_space<vmem>>, vector<1x128xf32>
    %325 = vector.broadcast %324 : vector<1x128xf32> to vector<2x128xf32>
    %326 = arith.addf %323, %325 : vector<2x128xf32>
    %c0_414 = arith.constant 0 : index
    %c0_415 = arith.constant 0 : index
    %327 = vector.load %arg12[%c0_414, %c0_415] : memref<2x128xf32, #tpu.memory_space<vmem>>, vector<2x128xf32>
    tpu.vector_store %arg12[%c0_414, %c0_415], %326 {strides = array<i32>} : memref<2x128xf32, #tpu.memory_space<vmem>>, vector<2x128xf32>,
    return
  }
  func.func @transform_0(%arg0: i32) -> (i32, i32, i32, i32) {
    %c0_i32 = arith.constant 0 : i32
    %c0_i32_0 = arith.constant 0 : i32
    %c0_i32_1 = arith.constant 0 : i32
    %c0_i32_2 = arith.constant 0 : i32
    return %arg0, %c0_i32, %c0_i32_0, %c0_i32_1 : i32, i32, i32, i32
  }
  func.func @transform_1(%arg0: i32) -> (i32, i32, i32) {
    %c0_i32 = arith.constant 0 : i32
    %c0_i32_0 = arith.constant 0 : i32
    %c0_i32_1 = arith.constant 0 : i32
    %c0_i32_2 = arith.constant 0 : i32
    return %c0_i32, %c0_i32_0, %c0_i32_1 : i32, i32, i32
  }
  func.func @transform_2(%arg0: i32) -> (i32, i32) {
    %c0_i32 = arith.constant 0 : i32
    %c0_i32_0 = arith.constant 0 : i32
    %c0_i32_1 = arith.constant 0 : i32
    return %c0_i32, %c0_i32_0 : i32, i32
  }
  func.func @transform_3(%arg0: i32) -> (i32, i32) {
    %c0_i32 = arith.constant 0 : i32
    %c0_i32_0 = arith.constant 0 : i32
    %c0_i32_1 = arith.constant 0 : i32
    return %c0_i32, %c0_i32_0 : i32, i32
  }
  func.func @transform_4(%arg0: i32) -> (i32, i32) {
    %c0_i32 = arith.constant 0 : i32
    %c0_i32_0 = arith.constant 0 : i32
    %c0_i32_1 = arith.constant 0 : i32
    return %c0_i32, %c0_i32_0 : i32, i32
  }
  func.func @transform_5(%arg0: i32) -> (i32, i32) {
    %c0_i32 = arith.constant 0 : i32
    %c0_i32_0 = arith.constant 0 : i32
    %c0_i32_1 = arith.constant 0 : i32
    return %c0_i32, %c0_i32_0 : i32, i32
  }
  func.func @transform_6(%arg0: i32) -> (i32, i32) {
    %c0_i32 = arith.constant 0 : i32
    %c0_i32_0 = arith.constant 0 : i32
    %c0_i32_1 = arith.constant 0 : i32
    return %c0_i32, %c0_i32_0 : i32, i32
  }
  func.func @transform_7(%arg0: i32) -> (i32, i32) {
    %c0_i32 = arith.constant 0 : i32
    %c0_i32_0 = arith.constant 0 : i32
    %c0_i32_1 = arith.constant 0 : i32
    return %c0_i32, %c0_i32_0 : i32, i32
  }
  func.func @transform_8(%arg0: i32) -> (i32, i32) {
    %c0_i32 = arith.constant 0 : i32
    %c0_i32_0 = arith.constant 0 : i32
    %c0_i32_1 = arith.constant 0 : i32
    return %c0_i32, %c0_i32_0 : i32, i32
  }
  func.func @transform_9(%arg0: i32) -> (i32, i32) {
    %c0_i32 = arith.constant 0 : i32
    %c0_i32_0 = arith.constant 0 : i32
    %c0_i32_1 = arith.constant 0 : i32
    return %c0_i32, %c0_i32_0 : i32, i32
  }
  func.func @transform_10(%arg0: i32) -> (i32, i32) {
    %c0_i32 = arith.constant 0 : i32
    %c0_i32_0 = arith.constant 0 : i32
    %c0_i32_1 = arith.constant 0 : i32
    return %c0_i32, %c0_i32_0 : i32, i32
  }
  func.func @transform_11(%arg0: i32) -> (i32, i32) {
    %c0_i32 = arith.constant 0 : i32
    %c0_i32_0 = arith.constant 0 : i32
    return %arg0, %c0_i32 : i32, i32
  }
}

</mosaic_0001>

<llo_original>
// kernel: lenet_forward.1
$region0: #{lenet_forward.1}
  #allocation0 [shape = 'u32[]', space=smem, size = 0x4, offset = 0x4, fixed_abs, tag = 'smem constant byte address 0x4 - core index']
  #allocation1 [shape = 'u32[144,128]{1,0:T(1,128)}', space=vmem, size = 0x12000, scoped, tag = 'internal scratch']
  #allocation2 [shape = 'f32[144,512]{1,0:T(8,128)}', space=vmem, size = 0x48000, scoped, tag = 'scratch operand']
  #allocation3 [shape = 'f32[200,512]{1,0:T(8,128)}', space=vmem, size = 0x64000, scoped, tag = 'scratch operand']
  #allocation4 [shape = 'f32[6,640]{1,0:T(8,128)}', space=vmem, size = 0x5000, scoped, tag = 'scratch operand']
  #allocation5 [shape = 'f32[16,640]{1,0:T(8,128)}', space=vmem, size = 0xa000, scoped, tag = 'scratch operand']
  #allocation6 [shape = 'f32[2,4096]{1,0:T(2,128)}', space=vmem, size = 0x8000, scoped, tag = 'scratch operand']
  %s0 = inlined_call_operand.vmem [shape: f32[1,4,3,640], index: 0, kind: input, shape index: {}]
  %s1 = inlined_call_operand.vmem [shape: f32[4,6,144], index: 1, kind: input, shape index: {}]
  %s2 = inlined_call_operand.vmem [shape: f32[6,1], index: 2, kind: input, shape index: {}]
  %s3 = inlined_call_operand.vmem [shape: f32[16,200], index: 3, kind: input, shape index: {}]
  %s4 = inlined_call_operand.vmem [shape: f32[16,1], index: 4, kind: input, shape index: {}]
  %s5 = inlined_call_operand.vmem [shape: f32[4096,128], index: 5, kind: input, shape index: {}]
  %s6 = inlined_call_operand.vmem [shape: f32[1,128], index: 6, kind: input, shape index: {}]
  %s7 = inlined_call_operand.vmem [shape: f32[128,128], index: 7, kind: input, shape index: {}]
  %s8 = inlined_call_operand.vmem [shape: f32[1,128], index: 8, kind: input, shape index: {}]
  %s9 = inlined_call_operand.vmem [shape: f32[128,128], index: 9, kind: input, shape index: {}]
  %s10 = inlined_call_operand.vmem [shape: f32[1,128], index: 10, kind: input, shape index: {}]
  %s11 = inlined_call_operand.hbm [shape: f32[2,128], index: 11, kind: output, shape index: {}]
  %s12 = sld [smem:[#allocation0]]
  $region58: #{lenet_forward.1} parent=0
    _
  %s14 = ssub.s32 1, %s12
  %s15 = scalar_select 0, %s14, %s12
  $region1: #{lenet_forward.1} parent=0
    #allocation7 [shape = 'u8[1024]{0}', space=vmem, size = 0x400, scoped, tag = 'output window, operand 0, single buffered']
    #allocation8 [shape = 's32[1]{0}', space=sflag, size = 0x4, scoped, tag = 'scoped memory for lenet_forward.1']
    %16 = vsyncpa [#allocation8], 0
    // Predicated region
    $region2: #{lenet_forward.1} parent=1 // pred_check
      _
    $region3: #{lenet_forward.1} parent=1 // pred_check_branch
      %18 = sbr.rel (0) target = $region5
    $region4: #{lenet_forward.1} parent=1 // pred_region
      _
    $region5: #{lenet_forward.1} parent=1 // pred_fallthru
      _
    // Predicated region
    $region6: #{lenet_forward.1} parent=1 // pred_check
      _
    $region7: #{lenet_forward.1} parent=1 // pred_check_branch
      %20 = sbr.rel (0) target = $region9
    $region8: #{lenet_forward.1} parent=1 // pred_region
      _
    $region9: #{lenet_forward.1} parent=1 // pred_fallthru
      _
    // Predicated region
    $region10: #{lenet_forward.1} parent=1 // pred_check
      _
    $region11: #{lenet_forward.1} parent=1 // pred_check_branch
      %22 = sbr.rel (0) target = $region13
    $region12: #{lenet_forward.1} parent=1 // pred_region
      _
    $region13: #{lenet_forward.1} parent=1 // pred_fallthru
      _
    // Predicated region
    $region14: #{lenet_forward.1} parent=1 // pred_check
      _
    $region15: #{lenet_forward.1} parent=1 // pred_check_branch
      %24 = sbr.rel (0) target = $region17
    $region16: #{lenet_forward.1} parent=1 // pred_region
      _
    $region17: #{lenet_forward.1} parent=1 // pred_fallthru
      _
    // Predicated region
    $region18: #{lenet_forward.1} parent=1 // pred_check
      _
    $region19: #{lenet_forward.1} parent=1 // pred_check_branch
      %26 = sbr.rel (0) target = $region21
    $region20: #{lenet_forward.1} parent=1 // pred_region
      _
    $region21: #{lenet_forward.1} parent=1 // pred_fallthru
      _
    // Predicated region
    $region22: #{lenet_forward.1} parent=1 // pred_check
      _
    $region23: #{lenet_forward.1} parent=1 // pred_check_branch
      %28 = sbr.rel (0) target = $region25
    $region24: #{lenet_forward.1} parent=1 // pred_region
      _
    $region25: #{lenet_forward.1} parent=1 // pred_fallthru
      _
    // Predicated region
    $region26: #{lenet_forward.1} parent=1 // pred_check
      _
    $region27: #{lenet_forward.1} parent=1 // pred_check_branch
      %30 = sbr.rel (0) target = $region29
    $region28: #{lenet_forward.1} parent=1 // pred_region
      _
    $region29: #{lenet_forward.1} parent=1 // pred_fallthru
      _
    // Predicated region
    $region30: #{lenet_forward.1} parent=1 // pred_check
      _
    $region31: #{lenet_forward.1} parent=1 // pred_check_branch
      %32 = sbr.rel (0) target = $region33
    $region32: #{lenet_forward.1} parent=1 // pred_region
      _
    $region33: #{lenet_forward.1} parent=1 // pred_fallthru
      _
    // Predicated region
    $region34: #{lenet_forward.1} parent=1 // pred_check
      _
    $region35: #{lenet_forward.1} parent=1 // pred_check_branch
      %34 = sbr.rel (0) target = $region37
    $region36: #{lenet_forward.1} parent=1 // pred_region
      _
    $region37: #{lenet_forward.1} parent=1 // pred_fallthru
      _
    // Predicated region
    $region38: #{lenet_forward.1} parent=1 // pred_check
      _
    $region39: #{lenet_forward.1} parent=1 // pred_check_branch
      %36 = sbr.rel (0) target = $region41
    $region40: #{lenet_forward.1} parent=1 // pred_region
      _
    $region41: #{lenet_forward.1} parent=1 // pred_fallthru
      _
    // Predicated region
    $region42: #{lenet_forward.1} parent=1 // pred_check
      _
    $region43: #{lenet_forward.1} parent=1 // pred_check_branch
      %38 = sbr.rel (0) target = $region45
    $region44: #{lenet_forward.1} parent=1 // pred_region
      _
    $region45: #{lenet_forward.1} parent=1 // pred_fallthru
      _
    %p39 = scmp.eq.s32.totalorder 0, 0
    // Predicated region
    $region46: #{lenet_forward.1} parent=1 // pred_check
      %p40 = pneg %p39
    $region47: #{lenet_forward.1} parent=1 // pred_check_branch
      %42 = sbr.rel (%p40) target = $region49
    $region48: #{lenet_forward.1} parent=1 // pred_region
      %43 = vst [vmem:[#allocation2] sm:$0xff] 0.0
      %44 = vst [vmem:[#allocation2 + $0x8] sm:$0xff] 0.0
      %45 = vst [vmem:[#allocation2 + $0x10] sm:$0xff] 0.0
      %46 = vst [vmem:[#allocation2 + $0x18] sm:$0xff] 0.0
      %47 = vst [vmem:[#allocation2 + $0x20] sm:$0xff] 0.0
      %48 = vst [vmem:[#allocation2 + $0x28] sm:$0xff] 0.0
      %49 = vst [vmem:[#allocation2 + $0x30] sm:$0xff] 0.0
      %50 = vst [vmem:[#allocation2 + $0x38] sm:$0xff] 0.0
      %51 = vst [vmem:[#allocation2 + $0x40] sm:$0xff] 0.0
      %52 = vst [vmem:[#allocation2 + $0x48] sm:$0xff] 0.0
      %53 = vst [vmem:[#allocation2 + $0x50] sm:$0xff] 0.0
      %54 = vst [vmem:[#allocation2 + $0x58] sm:$0xff] 0.0
      %55 = vst [vmem:[#allocation2 + $0x60] sm:$0xff] 0.0
      %56 = vst [vmem:[#allocation2 + $0x68] sm:$0xff] 0.0
      %57 = vst [vmem:[#allocation2 + $0x70] sm:$0xff] 0.0
      %58 = vst [vmem:[#allocation2 + $0x78] sm:$0xff] 0.0
      %59 = vst [vmem:[#allocation2 + $0x80] sm:$0xff] 0.0
      %60 = vst [vmem:[#allocation2 + $0x88] sm:$0xff] 0.0
      %61 = vst [vmem:[#allocation2 + $0x90] sm:$0xff] 0.0
      %62 = vst [vmem:[#allocation2 + $0x98] sm:$0xff] 0.0
      %63 = vst [vmem:[#allocation2 + $0xa0] sm:$0xff] 0.0
      %64 = vst [vmem:[#allocation2 + $0xa8] sm:$0xff] 0.0
      %65 = vst [vmem:[#allocation2 + $0xb0] sm:$0xff] 0.0
      %66 = vst [vmem:[#allocation2 + $0xb8] sm:$0xff] 0.0
      %67 = vst [vmem:[#allocation2 + $0xc0] sm:$0xff] 0.0
      %68 = vst [vmem:[#allocation2 + $0xc8] sm:$0xff] 0.0
      %69 = vst [vmem:[#allocation2 + $0xd0] sm:$0xff] 0.0
      %70 = vst [vmem:[#allocation2 + $0xd8] sm:$0xff] 0.0
      %71 = vst [vmem:[#allocation2 + $0xe0] sm:$0xff] 0.0
      %72 = vst [vmem:[#allocation2 + $0xe8] sm:$0xff] 0.0
      %73 = vst [vmem:[#allocation2 + $0xf0] sm:$0xff] 0.0
      %74 = vst [vmem:[#allocation2 + $0xf8] sm:$0xff] 0.0
      %75 = vst [vmem:[#allocation2 + $0x100] sm:$0xff] 0.0
      %76 = vst [vmem:[#allocation2 + $0x108] sm:$0xff] 0.0
      %77 = vst [vmem:[#allocation2 + $0x110] sm:$0xff] 0.0
      %78 = vst [vmem:[#allocation2 + $0x118] sm:$0xff] 0.0
      %79 = vst [vmem:[#allocation2 + $0x120] sm:$0xff] 0.0
      %80 = vst [vmem:[#allocation2 + $0x128] sm:$0xff] 0.0
      %81 = vst [vmem:[#allocation2 + $0x130] sm:$0xff] 0.0
      %82 = vst [vmem:[#allocation2 + $0x138] sm:$0xff] 0.0
      %83 = vst [vmem:[#allocation2 + $0x140] sm:$0xff] 0.0
      %84 = vst [vmem:[#allocation2 + $0x148] sm:$0xff] 0.0
      %85 = vst [vmem:[#allocation2 + $0x150] sm:$0xff] 0.0
      %86 = vst [vmem:[#allocation2 + $0x158] sm:$0xff] 0.0
      %87 = vst [vmem:[#allocation2 + $0x160] sm:$0xff] 0.0
      %88 = vst [vmem:[#allocation2 + $0x168] sm:$0xff] 0.0
      %89 = vst [vmem:[#allocation2 + $0x170] sm:$0xff] 0.0
      %90 = vst [vmem:[#allocation2 + $0x178] sm:$0xff] 0.0
      %91 = vst [vmem:[#allocation2 + $0x180] sm:$0xff] 0.0
      %92 = vst [vmem:[#allocation2 + $0x188] sm:$0xff] 0.0
      %93 = vst [vmem:[#allocation2 + $0x190] sm:$0xff] 0.0
      %94 = vst [vmem:[#allocation2 + $0x198] sm:$0xff] 0.0
      %95 = vst [vmem:[#allocation2 + $0x1a0] sm:$0xff] 0.0
      %96 = vst [vmem:[#allocation2 + $0x1a8] sm:$0xff] 0.0
      %97 = vst [vmem:[#allocation2 + $0x1b0] sm:$0xff] 0.0
      %98 = vst [vmem:[#allocation2 + $0x1b8] sm:$0xff] 0.0
      %99 = vst [vmem:[#allocation2 + $0x1c0] sm:$0xff] 0.0
      %100 = vst [vmem:[#allocation2 + $0x1c8] sm:$0xff] 0.0
      %101 = vst [vmem:[#allocation2 + $0x1d0] sm:$0xff] 0.0
      %102 = vst [vmem:[#allocation2 + $0x1d8] sm:$0xff] 0.0
      %103 = vst [vmem:[#allocation2 + $0x1e0] sm:$0xff] 0.0
      %104 = vst [vmem:[#allocation2 + $0x1e8] sm:$0xff] 0.0
      %105 = vst [vmem:[#allocation2 + $0x1f0] sm:$0xff] 0.0
      %106 = vst [vmem:[#allocation2 + $0x1f8] sm:$0xff] 0.0
      %107 = vst [vmem:[#allocation2 + $0x200] sm:$0xff] 0.0
      %108 = vst [vmem:[#allocation2 + $0x208] sm:$0xff] 0.0
      %109 = vst [vmem:[#allocation2 + $0x210] sm:$0xff] 0.0
      %110 = vst [vmem:[#allocation2 + $0x218] sm:$0xff] 0.0
      %111 = vst [vmem:[#allocation2 + $0x220] sm:$0xff] 0.0
      %112 = vst [vmem:[#allocation2 + $0x228] sm:$0xff] 0.0
      %113 = vst [vmem:[#allocation2 + $0x230] sm:$0xff] 0.0
      %114 = vst [vmem:[#allocation2 + $0x238] sm:$0xff] 0.0
      %115 = vst [vmem:[#allocation3] sm:$0xff] 0.0
      %116 = vst [vmem:[#allocation3 + $0x8] sm:$0xff] 0.0
      %117 = vst [vmem:[#allocation3 + $0x10] sm:$0xff] 0.0
      %118 = vst [vmem:[#allocation3 + $0x18] sm:$0xff] 0.0
      %119 = vst [vmem:[#allocation3 + $0x20] sm:$0xff] 0.0
      %120 = vst [vmem:[#allocation3 + $0x28] sm:$0xff] 0.0
      %121 = vst [vmem:[#allocation3 + $0x30] sm:$0xff] 0.0
      %122 = vst [vmem:[#allocation3 + $0x38] sm:$0xff] 0.0
      %123 = vst [vmem:[#allocation3 + $0x40] sm:$0xff] 0.0
      %124 = vst [vmem:[#allocation3 + $0x48] sm:$0xff] 0.0
      %125 = vst [vmem:[#allocation3 + $0x50] sm:$0xff] 0.0
      %126 = vst [vmem:[#allocation3 + $0x58] sm:$0xff] 0.0
      %127 = vst [vmem:[#allocation3 + $0x60] sm:$0xff] 0.0
      %128 = vst [vmem:[#allocation3 + $0x68] sm:$0xff] 0.0
      %129 = vst [vmem:[#allocation3 + $0x70] sm:$0xff] 0.0
      %130 = vst [vmem:[#allocation3 + $0x78] sm:$0xff] 0.0
      %131 = vst [vmem:[#allocation3 + $0x80] sm:$0xff] 0.0
      %132 = vst [vmem:[#allocation3 + $0x88] sm:$0xff] 0.0
      %133 = vst [vmem:[#allocation3 + $0x90] sm:$0xff] 0.0
      %134 = vst [vmem:[#allocation3 + $0x98] sm:$0xff] 0.0
      %135 = vst [vmem:[#allocation3 + $0xa0] sm:$0xff] 0.0
      %136 = vst [vmem:[#allocation3 + $0xa8] sm:$0xff] 0.0
      %137 = vst [vmem:[#allocation3 + $0xb0] sm:$0xff] 0.0
      %138 = vst [vmem:[#allocation3 + $0xb8] sm:$0xff] 0.0
      %139 = vst [vmem:[#allocation3 + $0xc0] sm:$0xff] 0.0
      %140 = vst [vmem:[#allocation3 + $0xc8] sm:$0xff] 0.0
      %141 = vst [vmem:[#allocation3 + $0xd0] sm:$0xff] 0.0
      %142 = vst [vmem:[#allocation3 + $0xd8] sm:$0xff] 0.0
      %143 = vst [vmem:[#allocation3 + $0xe0] sm:$0xff] 0.0
      %144 = vst [vmem:[#allocation3 + $0xe8] sm:$0xff] 0.0
      %145 = vst [vmem:[#allocation3 + $0xf0] sm:$0xff] 0.0
      %146 = vst [vmem:[#allocation3 + $0xf8] sm:$0xff] 0.0
      %147 = vst [vmem:[#allocation3 + $0x100] sm:$0xff] 0.0
      %148 = vst [vmem:[#allocation3 + $0x108] sm:$0xff] 0.0
      %149 = vst [vmem:[#allocation3 + $0x110] sm:$0xff] 0.0
      %150 = vst [vmem:[#allocation3 + $0x118] sm:$0xff] 0.0
      %151 = vst [vmem:[#allocation3 + $0x120] sm:$0xff] 0.0
      %152 = vst [vmem:[#allocation3 + $0x128] sm:$0xff] 0.0
      %153 = vst [vmem:[#allocation3 + $0x130] sm:$0xff] 0.0
      %154 = vst [vmem:[#allocation3 + $0x138] sm:$0xff] 0.0
      %155 = vst [vmem:[#allocation3 + $0x140] sm:$0xff] 0.0
      %156 = vst [vmem:[#allocation3 + $0x148] sm:$0xff] 0.0
      %157 = vst [vmem:[#allocation3 + $0x150] sm:$0xff] 0.0
      %158 = vst [vmem:[#allocation3 + $0x158] sm:$0xff] 0.0
      %159 = vst [vmem:[#allocation3 + $0x160] sm:$0xff] 0.0
      %160 = vst [vmem:[#allocation3 + $0x168] sm:$0xff] 0.0
      %161 = vst [vmem:[#allocation3 + $0x170] sm:$0xff] 0.0
      %162 = vst [vmem:[#allocation3 + $0x178] sm:$0xff] 0.0
      %163 = vst [vmem:[#allocation3 + $0x180] sm:$0xff] 0.0
      %164 = vst [vmem:[#allocation3 + $0x188] sm:$0xff] 0.0
      %165 = vst [vmem:[#allocation3 + $0x190] sm:$0xff] 0.0
      %166 = vst [vmem:[#allocation3 + $0x198] sm:$0xff] 0.0
      %167 = vst [vmem:[#allocation3 + $0x1a0] sm:$0xff] 0.0
      %168 = vst [vmem:[#allocation3 + $0x1a8] sm:$0xff] 0.0
      %169 = vst [vmem:[#allocation3 + $0x1b0] sm:$0xff] 0.0
      %170 = vst [vmem:[#allocation3 + $0x1b8] sm:$0xff] 0.0
      %171 = vst [vmem:[#allocation3 + $0x1c0] sm:$0xff] 0.0
      %172 = vst [vmem:[#allocation3 + $0x1c8] sm:$0xff] 0.0
      %173 = vst [vmem:[#allocation3 + $0x1d0] sm:$0xff] 0.0
      %174 = vst [vmem:[#allocation3 + $0x1d8] sm:$0xff] 0.0
      %175 = vst [vmem:[#allocation3 + $0x1e0] sm:$0xff] 0.0
      %176 = vst [vmem:[#allocation3 + $0x1e8] sm:$0xff] 0.0
      %177 = vst [vmem:[#allocation3 + $0x1f0] sm:$0xff] 0.0
      %178 = vst [vmem:[#allocation3 + $0x1f8] sm:$0xff] 0.0
      %179 = vst [vmem:[#allocation3 + $0x200] sm:$0xff] 0.0
      %180 = vst [vmem:[#allocation3 + $0x208] sm:$0xff] 0.0
      %181 = vst [vmem:[#allocation3 + $0x210] sm:$0xff] 0.0
      %182 = vst [vmem:[#allocation3 + $0x218] sm:$0xff] 0.0
      %183 = vst [vmem:[#allocation3 + $0x220] sm:$0xff] 0.0
      %184 = vst [vmem:[#allocation3 + $0x228] sm:$0xff] 0.0
      %185 = vst [vmem:[#allocation3 + $0x230] sm:$0xff] 0.0
      %186 = vst [vmem:[#allocation3 + $0x238] sm:$0xff] 0.0
      %187 = vst [vmem:[#allocation3 + $0x240] sm:$0xff] 0.0
      %188 = vst [vmem:[#allocation3 + $0x248] sm:$0xff] 0.0
      %189 = vst [vmem:[#allocation3 + $0x250] sm:$0xff] 0.0
      %190 = vst [vmem:[#allocation3 + $0x258] sm:$0xff] 0.0
      %191 = vst [vmem:[#allocation3 + $0x260] sm:$0xff] 0.0
      %192 = vst [vmem:[#allocation3 + $0x268] sm:$0xff] 0.0
      %193 = vst [vmem:[#allocation3 + $0x270] sm:$0xff] 0.0
      %194 = vst [vmem:[#allocation3 + $0x278] sm:$0xff] 0.0
      %195 = vst [vmem:[#allocation3 + $0x280] sm:$0xff] 0.0
      %196 = vst [vmem:[#allocation3 + $0x288] sm:$0xff] 0.0
      %197 = vst [vmem:[#allocation3 + $0x290] sm:$0xff] 0.0
      %198 = vst [vmem:[#allocation3 + $0x298] sm:$0xff] 0.0
      %199 = vst [vmem:[#allocation3 + $0x2a0] sm:$0xff] 0.0
      %200 = vst [vmem:[#allocation3 + $0x2a8] sm:$0xff] 0.0
      %201 = vst [vmem:[#allocation3 + $0x2b0] sm:$0xff] 0.0
      %202 = vst [vmem:[#allocation3 + $0x2b8] sm:$0xff] 0.0
      %203 = vst [vmem:[#allocation3 + $0x2c0] sm:$0xff] 0.0
      %204 = vst [vmem:[#allocation3 + $0x2c8] sm:$0xff] 0.0
      %205 = vst [vmem:[#allocation3 + $0x2d0] sm:$0xff] 0.0
      %206 = vst [vmem:[#allocation3 + $0x2d8] sm:$0xff] 0.0
      %207 = vst [vmem:[#allocation3 + $0x2e0] sm:$0xff] 0.0
      %208 = vst [vmem:[#allocation3 + $0x2e8] sm:$0xff] 0.0
      %209 = vst [vmem:[#allocation3 + $0x2f0] sm:$0xff] 0.0
      %210 = vst [vmem:[#allocation3 + $0x2f8] sm:$0xff] 0.0
      %211 = vst [vmem:[#allocation3 + $0x300] sm:$0xff] 0.0
      %212 = vst [vmem:[#allocation3 + $0x308] sm:$0xff] 0.0
      %213 = vst [vmem:[#allocation3 + $0x310] sm:$0xff] 0.0
      %214 = vst [vmem:[#allocation3 + $0x318] sm:$0xff] 0.0
      %215 = vst [vmem:[#allocation4 + $0x20] sm:$0x3f] 0.0
      %216 = vst [vmem:[#allocation5 + $0x20] sm:$0xff] 0.0
      %217 = vst [vmem:[#allocation5 + $0x48] sm:$0xff] 0.0
    $region49: #{lenet_forward.1} parent=1 // pred_fallthru
      _
    %v218 = vld [vmem:[%s2] sm:$0x3f]
    %v219 = vld [vmem:[%s4] sm:$0xff]
    %v220 = vld [vmem:[%s4 + $0x8] sm:$0xff]
    %v221 = vld [vmem:[%s0] sm:$0x77]
    %v222 = vld [vmem:[%s0 + $0x8] sm:$0x77]
    %v225 = vcombine.high %v221, %v221
    %v226 = vcombine.high %v222, %v222
    %229 = vst [vmem:[#allocation2] sm:$0x7] %v221
    %230 = vst [vmem:[#allocation2 + $0x8] sm:$0x7] %v225
    %231 = vst [vmem:[#allocation2 + $0x10] sm:$0x7] %v222
    %232 = vst [vmem:[#allocation2 + $0x18] sm:$0x7] %v226
    %v233 = vld [vmem:[%s0] sm:$0x77]
    %v234 = vld [vmem:[%s0 + $0x8] sm:$0x77]
    %v235 = vld [vmem:[%s0 + $0x10] sm:$0x7]
    %v239 = vcombine.low %v233, %v233
    %v240 = vcombine.low %v234, %v234
    %v241 = vcombine.low %v235, %v235
    %242 = vrot.lane.b32.xlu0 %v239, 127
    %v243 = vpop.permute.xlu0 %242
    %244 = vrot.lane.b32.xlu0 %v233, 127
    %v245 = vpop.permute.xlu0 %244
    %246 = vrot.lane.b32.xlu0 %v240, 127
    %v247 = vpop.permute.xlu0 %246
    %248 = vrot.lane.b32.xlu0 %v234, 127
    %v249 = vpop.permute.xlu0 %248
    %250 = vrot.lane.b32.xlu0 %v241, 127
    %v251 = vpop.permute.xlu0 %250
    %vm252 = vcmask 1039360
    %v253 = vsel %vm252, %v243, %v245
    %v254 = vsel %vm252, %v245, %v247
    %v255 = vsel %vm252, %v247, %v249
    %v256 = vsel %vm252, %v249, %v251
    %261 = vst [vmem:[#allocation2] sm:$0x70] %v253
    %262 = vst [vmem:[#allocation2 + $0x8] sm:$0x70] %v254
    %263 = vst [vmem:[#allocation2 + $0x10] sm:$0x70] %v255
    %264 = vst [vmem:[#allocation2 + $0x18] sm:$0x70] %v256
    %v265 = vld [vmem:[%s0] sm:$0x77]
    %v266 = vld [vmem:[%s0 + $0x8] sm:$0x77]
    %v267 = vld [vmem:[%s0 + $0x10] sm:$0x7]
    %v271 = vcombine.high %v265, %v265
    %v272 = vcombine.high %v266, %v266
    %273 = vrot.lane.b32.xlu0 %v265, 126
    %v274 = vpop.permute.xlu0 %273
    %275 = vrot.lane.b32.xlu0 %v271, 126
    %v276 = vpop.permute.xlu0 %275
    %277 = vrot.lane.b32.xlu0 %v266, 126
    %v278 = vpop.permute.xlu0 %277
    %279 = vrot.lane.b32.xlu0 %v272, 126
    %v280 = vpop.permute.xlu0 %279
    %281 = vrot.lane.b32.xlu0 %v267, 126
    %v282 = vpop.permute.xlu0 %281
    %vm283 = vcmask 1031168
    %v284 = vsel %vm283, %v274, %v276
    %v285 = vsel %vm283, %v276, %v278
    %v286 = vsel %vm283, %v278, %v280
    %v287 = vsel %vm283, %v280, %v282
    %292 = vst [vmem:[#allocation2 + $0x20] sm:$0x7] %v284
    %293 = vst [vmem:[#allocation2 + $0x28] sm:$0x7] %v285
    %294 = vst [vmem:[#allocation2 + $0x30] sm:$0x7] %v286
    %295 = vst [vmem:[#allocation2 + $0x38] sm:$0x7] %v287
    %v296 = vld [vmem:[%s0] sm:$0x77]
    %v297 = vld [vmem:[%s0 + $0x8] sm:$0x77]
    %v298 = vld [vmem:[%s0 + $0x10] sm:$0x7]
    %v302 = vcombine.low %v296, %v296
    %v303 = vcombine.low %v297, %v297
    %v304 = vcombine.low %v298, %v298
    %305 = vrot.lane.b32.xlu0 %v302, 112
    %v306 = vpop.permute.xlu0 %305
    %307 = vrot.lane.b32.xlu0 %v296, 112
    %v308 = vpop.permute.xlu0 %307
    %309 = vrot.lane.b32.xlu0 %v303, 112
    %v310 = vpop.permute.xlu0 %309
    %311 = vrot.lane.b32.xlu0 %v297, 112
    %v312 = vpop.permute.xlu0 %311
    %313 = vrot.lane.b32.xlu0 %v304, 112
    %v314 = vpop.permute.xlu0 %313
    %vm315 = vcmask 916480
    %v316 = vsel %vm315, %v306, %v308
    %v317 = vsel %vm315, %v308, %v310
    %v318 = vsel %vm315, %v310, %v312
    %v319 = vsel %vm315, %v312, %v314
    %324 = vst [vmem:[#allocation2 + $0x20] sm:$0x70] %v316
    %325 = vst [vmem:[#allocation2 + $0x28] sm:$0x70] %v317
    %326 = vst [vmem:[#allocation2 + $0x30] sm:$0x70] %v318
    %327 = vst [vmem:[#allocation2 + $0x38] sm:$0x70] %v319
    %v328 = vld [vmem:[%s0] sm:$0x77]
    %v329 = vld [vmem:[%s0 + $0x8] sm:$0x77]
    %v330 = vld [vmem:[%s0 + $0x10] sm:$0x7]
    %v334 = vcombine.high %v328, %v328
    %v335 = vcombine.high %v329, %v329
    %336 = vrot.lane.b32.xlu0 %v328, 111
    %v337 = vpop.permute.xlu0 %336
    %338 = vrot.lane.b32.xlu0 %v334, 111
    %v339 = vpop.permute.xlu0 %338
    %340 = vrot.lane.b32.xlu0 %v329, 111
    %v341 = vpop.permute.xlu0 %340
    %342 = vrot.lane.b32.xlu0 %v335, 111
    %v343 = vpop.permute.xlu0 %342
    %344 = vrot.lane.b32.xlu0 %v330, 111
    %v345 = vpop.permute.xlu0 %344
    %vm346 = vcmask 908288
    %v347 = vsel %vm346, %v337, %v339
    %v348 = vsel %vm346, %v339, %v341
    %v349 = vsel %vm346, %v341, %v343
    %v350 = vsel %vm346, %v343, %v345
    %355 = vst [vmem:[#allocation2 + $0x40] sm:$0x7] %v347
    %356 = vst [vmem:[#allocation2 + $0x48] sm:$0x7] %v348
    %357 = vst [vmem:[#allocation2 + $0x50] sm:$0x7] %v349
    %358 = vst [vmem:[#allocation2 + $0x58] sm:$0x7] %v350
    %v359 = vld [vmem:[%s0] sm:$0x77]
    %v360 = vld [vmem:[%s0 + $0x8] sm:$0x77]
    %v361 = vld [vmem:[%s0 + $0x10] sm:$0x7]
    %v365 = vcombine.low %v359, %v359
    %v366 = vcombine.low %v360, %v360
    %v367 = vcombine.low %v361, %v361
    %368 = vrot.lane.b32.xlu0 %v365, 110
    %v369 = vpop.permute.xlu0 %368
    %370 = vrot.lane.b32.xlu0 %v359, 110
    %v371 = vpop.permute.xlu0 %370
    %372 = vrot.lane.b32.xlu0 %v366, 110
    %v373 = vpop.permute.xlu0 %372
    %374 = vrot.lane.b32.xlu0 %v360, 110
    %v375 = vpop.permute.xlu0 %374
    %376 = vrot.lane.b32.xlu0 %v367, 110
    %v377 = vpop.permute.xlu0 %376
    %vm378 = vcmask 900096
    %v379 = vsel %vm378, %v369, %v371
    %v380 = vsel %vm378, %v371, %v373
    %v381 = vsel %vm378, %v373, %v375
    %v382 = vsel %vm378, %v375, %v377
    %387 = vst [vmem:[#allocation2 + $0x40] sm:$0x70] %v379
    %388 = vst [vmem:[#allocation2 + $0x48] sm:$0x70] %v380
    %389 = vst [vmem:[#allocation2 + $0x50] sm:$0x70] %v381
    %390 = vst [vmem:[#allocation2 + $0x58] sm:$0x70] %v382
    %v391 = vld [vmem:[%s0] sm:$0x77]
    %v392 = vld [vmem:[%s0 + $0x8] sm:$0x77]
    %v393 = vld [vmem:[%s0 + $0x10] sm:$0x7]
    %v397 = vcombine.high %v391, %v391
    %v398 = vcombine.high %v392, %v392
    %399 = vrot.lane.b32.xlu0 %v391, 96
    %v400 = vpop.permute.xlu0 %399
    %401 = vrot.lane.b32.xlu0 %v397, 96
    %v402 = vpop.permute.xlu0 %401
    %403 = vrot.lane.b32.xlu0 %v392, 96
    %v404 = vpop.permute.xlu0 %403
    %405 = vrot.lane.b32.xlu0 %v398, 96
    %v406 = vpop.permute.xlu0 %405
    %407 = vrot.lane.b32.xlu0 %v393, 96
    %v408 = vpop.permute.xlu0 %407
    %vm409 = vcmask 785408
    %v410 = vsel %vm409, %v400, %v402
    %v411 = vsel %vm409, %v402, %v404
    %v412 = vsel %vm409, %v404, %v406
    %v413 = vsel %vm409, %v406, %v408
    %418 = vst [vmem:[#allocation2 + $0x60] sm:$0x7] %v410
    %419 = vst [vmem:[#allocation2 + $0x68] sm:$0x7] %v411
    %420 = vst [vmem:[#allocation2 + $0x70] sm:$0x7] %v412
    %421 = vst [vmem:[#allocation2 + $0x78] sm:$0x7] %v413
    %v422 = vld [vmem:[%s0] sm:$0x77]
    %v423 = vld [vmem:[%s0 + $0x8] sm:$0x77]
    %v424 = vld [vmem:[%s0 + $0x10] sm:$0x7]
    %v428 = vcombine.low %v422, %v422
    %v429 = vcombine.low %v423, %v423
    %v430 = vcombine.low %v424, %v424
    %431 = vrot.lane.b32.xlu0 %v428, 95
    %v432 = vpop.permute.xlu0 %431
    %433 = vrot.lane.b32.xlu0 %v422, 95
    %v434 = vpop.permute.xlu0 %433
    %435 = vrot.lane.b32.xlu0 %v429, 95
    %v436 = vpop.permute.xlu0 %435
    %437 = vrot.lane.b32.xlu0 %v423, 95
    %v438 = vpop.permute.xlu0 %437
    %439 = vrot.lane.b32.xlu0 %v430, 95
    %v440 = vpop.permute.xlu0 %439
    %vm441 = vcmask 777216
    %v442 = vsel %vm441, %v432, %v434
    %v443 = vsel %vm441, %v434, %v436
    %v444 = vsel %vm441, %v436, %v438
    %v445 = vsel %vm441, %v438, %v440
    %450 = vst [vmem:[#allocation2 + $0x60] sm:$0x70] %v442
    %451 = vst [vmem:[#allocation2 + $0x68] sm:$0x70] %v443
    %452 = vst [vmem:[#allocation2 + $0x70] sm:$0x70] %v444
    %453 = vst [vmem:[#allocation2 + $0x78] sm:$0x70] %v445
    %v454 = vld [vmem:[%s0] sm:$0x77]
    %v455 = vld [vmem:[%s0 + $0x8] sm:$0x77]
    %v456 = vld [vmem:[%s0 + $0x10] sm:$0x7]
    %v460 = vcombine.high %v454, %v454
    %v461 = vcombine.high %v455, %v455
    %462 = vrot.lane.b32.xlu0 %v454, 94
    %v463 = vpop.permute.xlu0 %462
    %464 = vrot.lane.b32.xlu0 %v460, 94
    %v465 = vpop.permute.xlu0 %464
    %466 = vrot.lane.b32.xlu0 %v455, 94
    %v467 = vpop.permute.xlu0 %466
    %468 = vrot.lane.b32.xlu0 %v461, 94
    %v469 = vpop.permute.xlu0 %468
    %470 = vrot.lane.b32.xlu0 %v456, 94
    %v471 = vpop.permute.xlu0 %470
    %vm472 = vcmask 769024
    %v473 = vsel %vm472, %v463, %v465
    %v474 = vsel %vm472, %v465, %v467
    %v475 = vsel %vm472, %v467, %v469
    %v476 = vsel %vm472, %v469, %v471
    %481 = vst [vmem:[#allocation2 + $0x80] sm:$0x7] %v473
    %482 = vst [vmem:[#allocation2 + $0x88] sm:$0x7] %v474
    %483 = vst [vmem:[#allocation2 + $0x90] sm:$0x7] %v475
    %484 = vst [vmem:[#allocation2 + $0x98] sm:$0x7] %v476
    %s485 = scalar_lea.vmem %s0, 20
    %v486 = vld [vmem:[%s485] sm:$0x77]
    %v487 = vld [vmem:[%s485 + $0x8] sm:$0x77]
    %v490 = vcombine.low %v486, %v486
    %v491 = vcombine.low %v487, %v487
    %494 = vst [vmem:[#allocation2 + $0x80] sm:$0x70] %v490
    %495 = vst [vmem:[#allocation2 + $0x88] sm:$0x70] %v486
    %496 = vst [vmem:[#allocation2 + $0x90] sm:$0x70] %v491
    %497 = vst [vmem:[#allocation2 + $0x98] sm:$0x70] %v487
    %v498 = vld [vmem:[%s485] sm:$0x77]
    %v499 = vld [vmem:[%s485 + $0x8] sm:$0x77]
    %v500 = vld [vmem:[%s485 + $0x10] sm:$0x7]
    %v504 = vcombine.high %v498, %v498
    %v505 = vcombine.high %v499, %v499
    %506 = vrot.lane.b32.xlu0 %v498, 127
    %v507 = vpop.permute.xlu0 %506
    %508 = vrot.lane.b32.xlu0 %v504, 127
    %v509 = vpop.permute.xlu0 %508
    %510 = vrot.lane.b32.xlu0 %v499, 127
    %v511 = vpop.permute.xlu0 %510
    %512 = vrot.lane.b32.xlu0 %v505, 127
    %v513 = vpop.permute.xlu0 %512
    %514 = vrot.lane.b32.xlu0 %v500, 127
    %v515 = vpop.permute.xlu0 %514
    %v516 = vsel %vm252, %v507, %v509
    %v517 = vsel %vm252, %v509, %v511
    %v518 = vsel %vm252, %v511, %v513
    %v519 = vsel %vm252, %v513, %v515
    %524 = vst [vmem:[#allocation2 + $0xa0] sm:$0x7] %v516
    %525 = vst [vmem:[#allocation2 + $0xa8] sm:$0x7] %v517
    %526 = vst [vmem:[#allocation2 + $0xb0] sm:$0x7] %v518
    %527 = vst [vmem:[#allocation2 + $0xb8] sm:$0x7] %v519
    %v528 = vld [vmem:[%s485] sm:$0x77]
    %v529 = vld [vmem:[%s485 + $0x8] sm:$0x77]
    %v530 = vld [vmem:[%s485 + $0x10] sm:$0x7]
    %v534 = vcombine.low %v528, %v528
    %v535 = vcombine.low %v529, %v529
    %v536 = vcombine.low %v530, %v530
    %537 = vrot.lane.b32.xlu0 %v534, 126
    %v538 = vpop.permute.xlu0 %537
    %539 = vrot.lane.b32.xlu0 %v528, 126
    %v540 = vpop.permute.xlu0 %539
    %541 = vrot.lane.b32.xlu0 %v535, 126
    %v542 = vpop.permute.xlu0 %541
    %543 = vrot.lane.b32.xlu0 %v529, 126
    %v544 = vpop.permute.xlu0 %543
    %545 = vrot.lane.b32.xlu0 %v536, 126
    %v546 = vpop.permute.xlu0 %545
    %v547 = vsel %vm283, %v538, %v540
    %v548 = vsel %vm283, %v540, %v542
    %v549 = vsel %vm283, %v542, %v544
    %v550 = vsel %vm283, %v544, %v546
    %555 = vst [vmem:[#allocation2 + $0xa0] sm:$0x70] %v547
    %556 = vst [vmem:[#allocation2 + $0xa8] sm:$0x70] %v548
    %557 = vst [vmem:[#allocation2 + $0xb0] sm:$0x70] %v549
    %558 = vst [vmem:[#allocation2 + $0xb8] sm:$0x70] %v550
    %v559 = vld [vmem:[%s485] sm:$0x77]
    %v560 = vld [vmem:[%s485 + $0x8] sm:$0x77]
    %v561 = vld [vmem:[%s485 + $0x10] sm:$0x7]
    %v565 = vcombine.high %v559, %v559
    %v566 = vcombine.high %v560, %v560
    %567 = vrot.lane.b32.xlu0 %v559, 112
    %v568 = vpop.permute.xlu0 %567
    %569 = vrot.lane.b32.xlu0 %v565, 112
    %v570 = vpop.permute.xlu0 %569
    %571 = vrot.lane.b32.xlu0 %v560, 112
    %v572 = vpop.permute.xlu0 %571
    %573 = vrot.lane.b32.xlu0 %v566, 112
    %v574 = vpop.permute.xlu0 %573
    %575 = vrot.lane.b32.xlu0 %v561, 112
    %v576 = vpop.permute.xlu0 %575
    %v577 = vsel %vm315, %v568, %v570
    %v578 = vsel %vm315, %v570, %v572
    %v579 = vsel %vm315, %v572, %v574
    %v580 = vsel %vm315, %v574, %v576
    %585 = vst [vmem:[#allocation2 + $0xc0] sm:$0x7] %v577
    %586 = vst [vmem:[#allocation2 + $0xc8] sm:$0x7] %v578
    %587 = vst [vmem:[#allocation2 + $0xd0] sm:$0x7] %v579
    %588 = vst [vmem:[#allocation2 + $0xd8] sm:$0x7] %v580
    %v589 = vld [vmem:[%s485] sm:$0x77]
    %v590 = vld [vmem:[%s485 + $0x8] sm:$0x77]
    %v591 = vld [vmem:[%s485 + $0x10] sm:$0x7]
    %v595 = vcombine.low %v589, %v589
    %v596 = vcombine.low %v590, %v590
    %v597 = vcombine.low %v591, %v591
    %598 = vrot.lane.b32.xlu0 %v595, 111
    %v599 = vpop.permute.xlu0 %598
    %600 = vrot.lane.b32.xlu0 %v589, 111
    %v601 = vpop.permute.xlu0 %600
    %602 = vrot.lane.b32.xlu0 %v596, 111
    %v603 = vpop.permute.xlu0 %602
    %604 = vrot.lane.b32.xlu0 %v590, 111
    %v605 = vpop.permute.xlu0 %604
    %606 = vrot.lane.b32.xlu0 %v597, 111
    %v607 = vpop.permute.xlu0 %606
    %v608 = vsel %vm346, %v599, %v601
    %v609 = vsel %vm346, %v601, %v603
    %v610 = vsel %vm346, %v603, %v605
    %v611 = vsel %vm346, %v605, %v607
    %616 = vst [vmem:[#allocation2 + $0xc0] sm:$0x70] %v608
    %617 = vst [vmem:[#allocation2 + $0xc8] sm:$0x70] %v609
    %618 = vst [vmem:[#allocation2 + $0xd0] sm:$0x70] %v610
    %619 = vst [vmem:[#allocation2 + $0xd8] sm:$0x70] %v611
    %v620 = vld [vmem:[%s485] sm:$0x77]
    %v621 = vld [vmem:[%s485 + $0x8] sm:$0x77]
    %v622 = vld [vmem:[%s485 + $0x10] sm:$0x7]
    %v626 = vcombine.high %v620, %v620
    %v627 = vcombine.high %v621, %v621
    %628 = vrot.lane.b32.xlu0 %v620, 110
    %v629 = vpop.permute.xlu0 %628
    %630 = vrot.lane.b32.xlu0 %v626, 110
    %v631 = vpop.permute.xlu0 %630
    %632 = vrot.lane.b32.xlu0 %v621, 110
    %v633 = vpop.permute.xlu0 %632
    %634 = vrot.lane.b32.xlu0 %v627, 110
    %v635 = vpop.permute.xlu0 %634
    %636 = vrot.lane.b32.xlu0 %v622, 110
    %v637 = vpop.permute.xlu0 %636
    %v638 = vsel %vm378, %v629, %v631
    %v639 = vsel %vm378, %v631, %v633
    %v640 = vsel %vm378, %v633, %v635
    %v641 = vsel %vm378, %v635, %v637
    %646 = vst [vmem:[#allocation2 + $0xe0] sm:$0x7] %v638
    %647 = vst [vmem:[#allocation2 + $0xe8] sm:$0x7] %v639
    %648 = vst [vmem:[#allocation2 + $0xf0] sm:$0x7] %v640
    %649 = vst [vmem:[#allocation2 + $0xf8] sm:$0x7] %v641
    %v650 = vld [vmem:[%s485] sm:$0x77]
    %v651 = vld [vmem:[%s485 + $0x8] sm:$0x77]
    %v652 = vld [vmem:[%s485 + $0x10] sm:$0x7]
    %v656 = vcombine.low %v650, %v650
    %v657 = vcombine.low %v651, %v651
    %v658 = vcombine.low %v652, %v652
    %659 = vrot.lane.b32.xlu0 %v656, 96
    %v660 = vpop.permute.xlu0 %659
    %661 = vrot.lane.b32.xlu0 %v650, 96
    %v662 = vpop.permute.xlu0 %661
    %663 = vrot.lane.b32.xlu0 %v657, 96
    %v664 = vpop.permute.xlu0 %663
    %665 = vrot.lane.b32.xlu0 %v651, 96
    %v666 = vpop.permute.xlu0 %665
    %667 = vrot.lane.b32.xlu0 %v658, 96
    %v668 = vpop.permute.xlu0 %667
    %v669 = vsel %vm409, %v660, %v662
    %v670 = vsel %vm409, %v662, %v664
    %v671 = vsel %vm409, %v664, %v666
    %v672 = vsel %vm409, %v666, %v668
    %677 = vst [vmem:[#allocation2 + $0xe0] sm:$0x70] %v669
    %678 = vst [vmem:[#allocation2 + $0xe8] sm:$0x70] %v670
    %679 = vst [vmem:[#allocation2 + $0xf0] sm:$0x70] %v671
    %680 = vst [vmem:[#allocation2 + $0xf8] sm:$0x70] %v672
    %v681 = vld [vmem:[%s485] sm:$0x77]
    %v682 = vld [vmem:[%s485 + $0x8] sm:$0x77]
    %v683 = vld [vmem:[%s485 + $0x10] sm:$0x7]
    %v687 = vcombine.high %v681, %v681
    %v688 = vcombine.high %v682, %v682
    %689 = vrot.lane.b32.xlu0 %v681, 95
    %v690 = vpop.permute.xlu0 %689
    %691 = vrot.lane.b32.xlu0 %v687, 95
    %v692 = vpop.permute.xlu0 %691
    %693 = vrot.lane.b32.xlu0 %v682, 95
    %v694 = vpop.permute.xlu0 %693
    %695 = vrot.lane.b32.xlu0 %v688, 95
    %v696 = vpop.permute.xlu0 %695
    %697 = vrot.lane.b32.xlu0 %v683, 95
    %v698 = vpop.permute.xlu0 %697
    %v699 = vsel %vm441, %v690, %v692
    %v700 = vsel %vm441, %v692, %v694
    %v701 = vsel %vm441, %v694, %v696
    %v702 = vsel %vm441, %v696, %v698
    %707 = vst [vmem:[#allocation2 + $0x100] sm:$0x7] %v699
    %708 = vst [vmem:[#allocation2 + $0x108] sm:$0x7] %v700
    %709 = vst [vmem:[#allocation2 + $0x110] sm:$0x7] %v701
    %710 = vst [vmem:[#allocation2 + $0x118] sm:$0x7] %v702
    %v711 = vld [vmem:[%s485] sm:$0x77]
    %v712 = vld [vmem:[%s485 + $0x8] sm:$0x77]
    %v713 = vld [vmem:[%s485 + $0x10] sm:$0x7]
    %v717 = vcombine.low %v711, %v711
    %v718 = vcombine.low %v712, %v712
    %v719 = vcombine.low %v713, %v713
    %720 = vrot.lane.b32.xlu0 %v717, 94
    %v721 = vpop.permute.xlu0 %720
    %722 = vrot.lane.b32.xlu0 %v711, 94
    %v723 = vpop.permute.xlu0 %722
    %724 = vrot.lane.b32.xlu0 %v718, 94
    %v725 = vpop.permute.xlu0 %724
    %726 = vrot.lane.b32.xlu0 %v712, 94
    %v727 = vpop.permute.xlu0 %726
    %728 = vrot.lane.b32.xlu0 %v719, 94
    %v729 = vpop.permute.xlu0 %728
    %v730 = vsel %vm472, %v721, %v723
    %v731 = vsel %vm472, %v723, %v725
    %v732 = vsel %vm472, %v725, %v727
    %v733 = vsel %vm472, %v727, %v729
    %738 = vst [vmem:[#allocation2 + $0x100] sm:$0x70] %v730
    %739 = vst [vmem:[#allocation2 + $0x108] sm:$0x70] %v731
    %740 = vst [vmem:[#allocation2 + $0x110] sm:$0x70] %v732
    %741 = vst [vmem:[#allocation2 + $0x118] sm:$0x70] %v733
    %s742 = scalar_lea.vmem %s0, 40
    %v743 = vld [vmem:[%s742] sm:$0x77]
    %v744 = vld [vmem:[%s742 + $0x8] sm:$0x77]
    %v747 = vcombine.high %v743, %v743
    %v748 = vcombine.high %v744, %v744
    %751 = vst [vmem:[#allocation2 + $0x120] sm:$0x7] %v743
    %752 = vst [vmem:[#allocation2 + $0x128] sm:$0x7] %v747
    %753 = vst [vmem:[#allocation2 + $0x130] sm:$0x7] %v744
    %754 = vst [vmem:[#allocation2 + $0x138] sm:$0x7] %v748
    %v755 = vld [vmem:[%s742] sm:$0x77]
    %v756 = vld [vmem:[%s742 + $0x8] sm:$0x77]
    %v757 = vld [vmem:[%s742 + $0x10] sm:$0x7]
    %v761 = vcombine.low %v755, %v755
    %v762 = vcombine.low %v756, %v756
    %v763 = vcombine.low %v757, %v757
    %764 = vrot.lane.b32.xlu0 %v761, 127
    %v765 = vpop.permute.xlu0 %764
    %766 = vrot.lane.b32.xlu0 %v755, 127
    %v767 = vpop.permute.xlu0 %766
    %768 = vrot.lane.b32.xlu0 %v762, 127
    %v769 = vpop.permute.xlu0 %768
    %770 = vrot.lane.b32.xlu0 %v756, 127
    %v771 = vpop.permute.xlu0 %770
    %772 = vrot.lane.b32.xlu0 %v763, 127
    %v773 = vpop.permute.xlu0 %772
    %v774 = vsel %vm252, %v765, %v767
    %v775 = vsel %vm252, %v767, %v769
    %v776 = vsel %vm252, %v769, %v771
    %v777 = vsel %vm252, %v771, %v773
    %782 = vst [vmem:[#allocation2 + $0x120] sm:$0x70] %v774
    %783 = vst [vmem:[#allocation2 + $0x128] sm:$0x70] %v775
    %784 = vst [vmem:[#allocation2 + $0x130] sm:$0x70] %v776
    %785 = vst [vmem:[#allocation2 + $0x138] sm:$0x70] %v777
    %v786 = vld [vmem:[%s742] sm:$0x77]
    %v787 = vld [vmem:[%s742 + $0x8] sm:$0x77]
    %v788 = vld [vmem:[%s742 + $0x10] sm:$0x7]
    %v792 = vcombine.high %v786, %v786
    %v793 = vcombine.high %v787, %v787
    %794 = vrot.lane.b32.xlu0 %v786, 126
    %v795 = vpop.permute.xlu0 %794
    %796 = vrot.lane.b32.xlu0 %v792, 126
    %v797 = vpop.permute.xlu0 %796
    %798 = vrot.lane.b32.xlu0 %v787, 126
    %v799 = vpop.permute.xlu0 %798
    %800 = vrot.lane.b32.xlu0 %v793, 126
    %v801 = vpop.permute.xlu0 %800
    %802 = vrot.lane.b32.xlu0 %v788, 126
    %v803 = vpop.permute.xlu0 %802
    %v804 = vsel %vm283, %v795, %v797
    %v805 = vsel %vm283, %v797, %v799
    %v806 = vsel %vm283, %v799, %v801
    %v807 = vsel %vm283, %v801, %v803
    %812 = vst [vmem:[#allocation2 + $0x140] sm:$0x7] %v804
    %813 = vst [vmem:[#allocation2 + $0x148] sm:$0x7] %v805
    %814 = vst [vmem:[#allocation2 + $0x150] sm:$0x7] %v806
    %815 = vst [vmem:[#allocation2 + $0x158] sm:$0x7] %v807
    %v816 = vld [vmem:[%s742] sm:$0x77]
    %v817 = vld [vmem:[%s742 + $0x8] sm:$0x77]
    %v818 = vld [vmem:[%s742 + $0x10] sm:$0x7]
    %v822 = vcombine.low %v816, %v816
    %v823 = vcombine.low %v817, %v817
    %v824 = vcombine.low %v818, %v818
    %825 = vrot.lane.b32.xlu0 %v822, 112
    %v826 = vpop.permute.xlu0 %825
    %827 = vrot.lane.b32.xlu0 %v816, 112
    %v828 = vpop.permute.xlu0 %827
    %829 = vrot.lane.b32.xlu0 %v823, 112
    %v830 = vpop.permute.xlu0 %829
    %831 = vrot.lane.b32.xlu0 %v817, 112
    %v832 = vpop.permute.xlu0 %831
    %833 = vrot.lane.b32.xlu0 %v824, 112
    %v834 = vpop.permute.xlu0 %833
    %v835 = vsel %vm315, %v826, %v828
    %v836 = vsel %vm315, %v828, %v830
    %v837 = vsel %vm315, %v830, %v832
    %v838 = vsel %vm315, %v832, %v834
    %843 = vst [vmem:[#allocation2 + $0x140] sm:$0x70] %v835
    %844 = vst [vmem:[#allocation2 + $0x148] sm:$0x70] %v836
    %845 = vst [vmem:[#allocation2 + $0x150] sm:$0x70] %v837
    %846 = vst [vmem:[#allocation2 + $0x158] sm:$0x70] %v838
    %v847 = vld [vmem:[%s742] sm:$0x77]
    %v848 = vld [vmem:[%s742 + $0x8] sm:$0x77]
    %v849 = vld [vmem:[%s742 + $0x10] sm:$0x7]
    %v853 = vcombine.high %v847, %v847
    %v854 = vcombine.high %v848, %v848
    %855 = vrot.lane.b32.xlu0 %v847, 111
    %v856 = vpop.permute.xlu0 %855
    %857 = vrot.lane.b32.xlu0 %v853, 111
    %v858 = vpop.permute.xlu0 %857
    %859 = vrot.lane.b32.xlu0 %v848, 111
    %v860 = vpop.permute.xlu0 %859
    %861 = vrot.lane.b32.xlu0 %v854, 111
    %v862 = vpop.permute.xlu0 %861
    %863 = vrot.lane.b32.xlu0 %v849, 111
    %v864 = vpop.permute.xlu0 %863
    %v865 = vsel %vm346, %v856, %v858
    %v866 = vsel %vm346, %v858, %v860
    %v867 = vsel %vm346, %v860, %v862
    %v868 = vsel %vm346, %v862, %v864
    %873 = vst [vmem:[#allocation2 + $0x160] sm:$0x7] %v865
    %874 = vst [vmem:[#allocation2 + $0x168] sm:$0x7] %v866
    %875 = vst [vmem:[#allocation2 + $0x170] sm:$0x7] %v867
    %876 = vst [vmem:[#allocation2 + $0x178] sm:$0x7] %v868
    %v877 = vld [vmem:[%s742] sm:$0x77]
    %v878 = vld [vmem:[%s742 + $0x8] sm:$0x77]
    %v879 = vld [vmem:[%s742 + $0x10] sm:$0x7]
    %v883 = vcombine.low %v877, %v877
    %v884 = vcombine.low %v878, %v878
    %v885 = vcombine.low %v879, %v879
    %886 = vrot.lane.b32.xlu0 %v883, 110
    %v887 = vpop.permute.xlu0 %886
    %888 = vrot.lane.b32.xlu0 %v877, 110
    %v889 = vpop.permute.xlu0 %888
    %890 = vrot.lane.b32.xlu0 %v884, 110
    %v891 = vpop.permute.xlu0 %890
    %892 = vrot.lane.b32.xlu0 %v878, 110
    %v893 = vpop.permute.xlu0 %892
    %894 = vrot.lane.b32.xlu0 %v885, 110
    %v895 = vpop.permute.xlu0 %894
    %v896 = vsel %vm378, %v887, %v889
    %v897 = vsel %vm378, %v889, %v891
    %v898 = vsel %vm378, %v891, %v893
    %v899 = vsel %vm378, %v893, %v895
    %904 = vst [vmem:[#allocation2 + $0x160] sm:$0x70] %v896
    %905 = vst [vmem:[#allocation2 + $0x168] sm:$0x70] %v897
    %906 = vst [vmem:[#allocation2 + $0x170] sm:$0x70] %v898
    %907 = vst [vmem:[#allocation2 + $0x178] sm:$0x70] %v899
    %v908 = vld [vmem:[%s742] sm:$0x77]
    %v909 = vld [vmem:[%s742 + $0x8] sm:$0x77]
    %v910 = vld [vmem:[%s742 + $0x10] sm:$0x7]
    %v914 = vcombine.high %v908, %v908
    %v915 = vcombine.high %v909, %v909
    %916 = vrot.lane.b32.xlu0 %v908, 96
    %v917 = vpop.permute.xlu0 %916
    %918 = vrot.lane.b32.xlu0 %v914, 96
    %v919 = vpop.permute.xlu0 %918
    %920 = vrot.lane.b32.xlu0 %v909, 96
    %v921 = vpop.permute.xlu0 %920
    %922 = vrot.lane.b32.xlu0 %v915, 96
    %v923 = vpop.permute.xlu0 %922
    %924 = vrot.lane.b32.xlu0 %v910, 96
    %v925 = vpop.permute.xlu0 %924
    %v926 = vsel %vm409, %v917, %v919
    %v927 = vsel %vm409, %v919, %v921
    %v928 = vsel %vm409, %v921, %v923
    %v929 = vsel %vm409, %v923, %v925
    %934 = vst [vmem:[#allocation2 + $0x180] sm:$0x7] %v926
    %935 = vst [vmem:[#allocation2 + $0x188] sm:$0x7] %v927
    %936 = vst [vmem:[#allocation2 + $0x190] sm:$0x7] %v928
    %937 = vst [vmem:[#allocation2 + $0x198] sm:$0x7] %v929
    %v938 = vld [vmem:[%s742] sm:$0x77]
    %v939 = vld [vmem:[%s742 + $0x8] sm:$0x77]
    %v940 = vld [vmem:[%s742 + $0x10] sm:$0x7]
    %v944 = vcombine.low %v938, %v938
    %v945 = vcombine.low %v939, %v939
    %v946 = vcombine.low %v940, %v940
    %947 = vrot.lane.b32.xlu0 %v944, 95
    %v948 = vpop.permute.xlu0 %947
    %949 = vrot.lane.b32.xlu0 %v938, 95
    %v950 = vpop.permute.xlu0 %949
    %951 = vrot.lane.b32.xlu0 %v945, 95
    %v952 = vpop.permute.xlu0 %951
    %953 = vrot.lane.b32.xlu0 %v939, 95
    %v954 = vpop.permute.xlu0 %953
    %955 = vrot.lane.b32.xlu0 %v946, 95
    %v956 = vpop.permute.xlu0 %955
    %v957 = vsel %vm441, %v948, %v950
    %v958 = vsel %vm441, %v950, %v952
    %v959 = vsel %vm441, %v952, %v954
    %v960 = vsel %vm441, %v954, %v956
    %965 = vst [vmem:[#allocation2 + $0x180] sm:$0x70] %v957
    %966 = vst [vmem:[#allocation2 + $0x188] sm:$0x70] %v958
    %967 = vst [vmem:[#allocation2 + $0x190] sm:$0x70] %v959
    %968 = vst [vmem:[#allocation2 + $0x198] sm:$0x70] %v960
    %v969 = vld [vmem:[%s742] sm:$0x77]
    %v970 = vld [vmem:[%s742 + $0x8] sm:$0x77]
    %v971 = vld [vmem:[%s742 + $0x10] sm:$0x7]
    %v975 = vcombine.high %v969, %v969
    %v976 = vcombine.high %v970, %v970
    %977 = vrot.lane.b32.xlu0 %v969, 94
    %v978 = vpop.permute.xlu0 %977
    %979 = vrot.lane.b32.xlu0 %v975, 94
    %v980 = vpop.permute.xlu0 %979
    %981 = vrot.lane.b32.xlu0 %v970, 94
    %v982 = vpop.permute.xlu0 %981
    %983 = vrot.lane.b32.xlu0 %v976, 94
    %v984 = vpop.permute.xlu0 %983
    %985 = vrot.lane.b32.xlu0 %v971, 94
    %v986 = vpop.permute.xlu0 %985
    %v987 = vsel %vm472, %v978, %v980
    %v988 = vsel %vm472, %v980, %v982
    %v989 = vsel %vm472, %v982, %v984
    %v990 = vsel %vm472, %v984, %v986
    %995 = vst [vmem:[#allocation2 + $0x1a0] sm:$0x7] %v987
    %996 = vst [vmem:[#allocation2 + $0x1a8] sm:$0x7] %v988
    %997 = vst [vmem:[#allocation2 + $0x1b0] sm:$0x7] %v989
    %998 = vst [vmem:[#allocation2 + $0x1b8] sm:$0x7] %v990
    %s999 = scalar_lea.vmem %s0, 60
    %v1000 = vld [vmem:[%s999] sm:$0x77]
    %v1001 = vld [vmem:[%s999 + $0x8] sm:$0x77]
    %v1004 = vcombine.low %v1000, %v1000
    %v1005 = vcombine.low %v1001, %v1001
    %1008 = vst [vmem:[#allocation2 + $0x1a0] sm:$0x70] %v1004
    %1009 = vst [vmem:[#allocation2 + $0x1a8] sm:$0x70] %v1000
    %1010 = vst [vmem:[#allocation2 + $0x1b0] sm:$0x70] %v1005
    %1011 = vst [vmem:[#allocation2 + $0x1b8] sm:$0x70] %v1001
    %v1012 = vld [vmem:[%s999] sm:$0x77]
    %v1013 = vld [vmem:[%s999 + $0x8] sm:$0x77]
    %v1014 = vld [vmem:[%s999 + $0x10] sm:$0x7]
    %v1018 = vcombine.high %v1012, %v1012
    %v1019 = vcombine.high %v1013, %v1013
    %1020 = vrot.lane.b32.xlu0 %v1012, 127
    %v1021 = vpop.permute.xlu0 %1020
    %1022 = vrot.lane.b32.xlu0 %v1018, 127
    %v1023 = vpop.permute.xlu0 %1022
    %1024 = vrot.lane.b32.xlu0 %v1013, 127
    %v1025 = vpop.permute.xlu0 %1024
    %1026 = vrot.lane.b32.xlu0 %v1019, 127
    %v1027 = vpop.permute.xlu0 %1026
    %1028 = vrot.lane.b32.xlu0 %v1014, 127
    %v1029 = vpop.permute.xlu0 %1028
    %v1030 = vsel %vm252, %v1021, %v1023
    %v1031 = vsel %vm252, %v1023, %v1025
    %v1032 = vsel %vm252, %v1025, %v1027
    %v1033 = vsel %vm252, %v1027, %v1029
    %1038 = vst [vmem:[#allocation2 + $0x1c0] sm:$0x7] %v1030
    %1039 = vst [vmem:[#allocation2 + $0x1c8] sm:$0x7] %v1031
    %1040 = vst [vmem:[#allocation2 + $0x1d0] sm:$0x7] %v1032
    %1041 = vst [vmem:[#allocation2 + $0x1d8] sm:$0x7] %v1033
    %v1042 = vld [vmem:[%s999] sm:$0x77]
    %v1043 = vld [vmem:[%s999 + $0x8] sm:$0x77]
    %v1044 = vld [vmem:[%s999 + $0x10] sm:$0x7]
    %v1048 = vcombine.low %v1042, %v1042
    %v1049 = vcombine.low %v1043, %v1043
    %v1050 = vcombine.low %v1044, %v1044
    %1051 = vrot.lane.b32.xlu0 %v1048, 126
    %v1052 = vpop.permute.xlu0 %1051
    %1053 = vrot.lane.b32.xlu0 %v1042, 126
    %v1054 = vpop.permute.xlu0 %1053
    %1055 = vrot.lane.b32.xlu0 %v1049, 126
    %v1056 = vpop.permute.xlu0 %1055
    %1057 = vrot.lane.b32.xlu0 %v1043, 126
    %v1058 = vpop.permute.xlu0 %1057
    %1059 = vrot.lane.b32.xlu0 %v1050, 126
    %v1060 = vpop.permute.xlu0 %1059
    %v1061 = vsel %vm283, %v1052, %v1054
    %v1062 = vsel %vm283, %v1054, %v1056
    %v1063 = vsel %vm283, %v1056, %v1058
    %v1064 = vsel %vm283, %v1058, %v1060
    %1069 = vst [vmem:[#allocation2 + $0x1c0] sm:$0x70] %v1061
    %1070 = vst [vmem:[#allocation2 + $0x1c8] sm:$0x70] %v1062
    %1071 = vst [vmem:[#allocation2 + $0x1d0] sm:$0x70] %v1063
    %1072 = vst [vmem:[#allocation2 + $0x1d8] sm:$0x70] %v1064
    %v1073 = vld [vmem:[%s999] sm:$0x77]
    %v1074 = vld [vmem:[%s999 + $0x8] sm:$0x77]
    %v1075 = vld [vmem:[%s999 + $0x10] sm:$0x7]
    %v1079 = vcombine.high %v1073, %v1073
    %v1080 = vcombine.high %v1074, %v1074
    %1081 = vrot.lane.b32.xlu0 %v1073, 112
    %v1082 = vpop.permute.xlu0 %1081
    %1083 = vrot.lane.b32.xlu0 %v1079, 112
    %v1084 = vpop.permute.xlu0 %1083
    %1085 = vrot.lane.b32.xlu0 %v1074, 112
    %v1086 = vpop.permute.xlu0 %1085
    %1087 = vrot.lane.b32.xlu0 %v1080, 112
    %v1088 = vpop.permute.xlu0 %1087
    %1089 = vrot.lane.b32.xlu0 %v1075, 112
    %v1090 = vpop.permute.xlu0 %1089
    %v1091 = vsel %vm315, %v1082, %v1084
    %v1092 = vsel %vm315, %v1084, %v1086
    %v1093 = vsel %vm315, %v1086, %v1088
    %v1094 = vsel %vm315, %v1088, %v1090
    %1099 = vst [vmem:[#allocation2 + $0x1e0] sm:$0x7] %v1091
    %1100 = vst [vmem:[#allocation2 + $0x1e8] sm:$0x7] %v1092
    %1101 = vst [vmem:[#allocation2 + $0x1f0] sm:$0x7] %v1093
    %1102 = vst [vmem:[#allocation2 + $0x1f8] sm:$0x7] %v1094
    %v1103 = vld [vmem:[%s999] sm:$0x77]
    %v1104 = vld [vmem:[%s999 + $0x8] sm:$0x77]
    %v1105 = vld [vmem:[%s999 + $0x10] sm:$0x7]
    %v1109 = vcombine.low %v1103, %v1103
    %v1110 = vcombine.low %v1104, %v1104
    %v1111 = vcombine.low %v1105, %v1105
    %1112 = vrot.lane.b32.xlu0 %v1109, 111
    %v1113 = vpop.permute.xlu0 %1112
    %1114 = vrot.lane.b32.xlu0 %v1103, 111
    %v1115 = vpop.permute.xlu0 %1114
    %1116 = vrot.lane.b32.xlu0 %v1110, 111
    %v1117 = vpop.permute.xlu0 %1116
    %1118 = vrot.lane.b32.xlu0 %v1104, 111
    %v1119 = vpop.permute.xlu0 %1118
    %1120 = vrot.lane.b32.xlu0 %v1111, 111
    %v1121 = vpop.permute.xlu0 %1120
    %v1122 = vsel %vm346, %v1113, %v1115
    %v1123 = vsel %vm346, %v1115, %v1117
    %v1124 = vsel %vm346, %v1117, %v1119
    %v1125 = vsel %vm346, %v1119, %v1121
    %1130 = vst [vmem:[#allocation2 + $0x1e0] sm:$0x70] %v1122
    %1131 = vst [vmem:[#allocation2 + $0x1e8] sm:$0x70] %v1123
    %1132 = vst [vmem:[#allocation2 + $0x1f0] sm:$0x70] %v1124
    %1133 = vst [vmem:[#allocation2 + $0x1f8] sm:$0x70] %v1125
    %v1134 = vld [vmem:[%s999] sm:$0x77]
    %v1135 = vld [vmem:[%s999 + $0x8] sm:$0x77]
    %v1136 = vld [vmem:[%s999 + $0x10] sm:$0x7]
    %v1140 = vcombine.high %v1134, %v1134
    %v1141 = vcombine.high %v1135, %v1135
    %1142 = vrot.lane.b32.xlu0 %v1134, 110
    %v1143 = vpop.permute.xlu0 %1142
    %1144 = vrot.lane.b32.xlu0 %v1140, 110
    %v1145 = vpop.permute.xlu0 %1144
    %1146 = vrot.lane.b32.xlu0 %v1135, 110
    %v1147 = vpop.permute.xlu0 %1146
    %1148 = vrot.lane.b32.xlu0 %v1141, 110
    %v1149 = vpop.permute.xlu0 %1148
    %1150 = vrot.lane.b32.xlu0 %v1136, 110
    %v1151 = vpop.permute.xlu0 %1150
    %v1152 = vsel %vm378, %v1143, %v1145
    %v1153 = vsel %vm378, %v1145, %v1147
    %v1154 = vsel %vm378, %v1147, %v1149
    %v1155 = vsel %vm378, %v1149, %v1151
    %1160 = vst [vmem:[#allocation2 + $0x200] sm:$0x7] %v1152
    %1161 = vst [vmem:[#allocation2 + $0x208] sm:$0x7] %v1153
    %1162 = vst [vmem:[#allocation2 + $0x210] sm:$0x7] %v1154
    %1163 = vst [vmem:[#allocation2 + $0x218] sm:$0x7] %v1155
    %v1164 = vld [vmem:[%s999] sm:$0x77]
    %v1165 = vld [vmem:[%s999 + $0x8] sm:$0x77]
    %v1166 = vld [vmem:[%s999 + $0x10] sm:$0x7]
    %v1170 = vcombine.low %v1164, %v1164
    %v1171 = vcombine.low %v1165, %v1165
    %v1172 = vcombine.low %v1166, %v1166
    %1173 = vrot.lane.b32.xlu0 %v1170, 96
    %v1174 = vpop.permute.xlu0 %1173
    %1175 = vrot.lane.b32.xlu0 %v1164, 96
    %v1176 = vpop.permute.xlu0 %1175
    %1177 = vrot.lane.b32.xlu0 %v1171, 96
    %v1178 = vpop.permute.xlu0 %1177
    %1179 = vrot.lane.b32.xlu0 %v1165, 96
    %v1180 = vpop.permute.xlu0 %1179
    %1181 = vrot.lane.b32.xlu0 %v1172, 96
    %v1182 = vpop.permute.xlu0 %1181
    %v1183 = vsel %vm409, %v1174, %v1176
    %v1184 = vsel %vm409, %v1176, %v1178
    %v1185 = vsel %vm409, %v1178, %v1180
    %v1186 = vsel %vm409, %v1180, %v1182
    %1191 = vst [vmem:[#allocation2 + $0x200] sm:$0x70] %v1183
    %1192 = vst [vmem:[#allocation2 + $0x208] sm:$0x70] %v1184
    %1193 = vst [vmem:[#allocation2 + $0x210] sm:$0x70] %v1185
    %1194 = vst [vmem:[#allocation2 + $0x218] sm:$0x70] %v1186
    %v1195 = vld [vmem:[%s999] sm:$0x77]
    %v1196 = vld [vmem:[%s999 + $0x8] sm:$0x77]
    %v1197 = vld [vmem:[%s999 + $0x10] sm:$0x7]
    %v1201 = vcombine.high %v1195, %v1195
    %v1202 = vcombine.high %v1196, %v1196
    %1203 = vrot.lane.b32.xlu0 %v1195, 95
    %v1204 = vpop.permute.xlu0 %1203
    %1205 = vrot.lane.b32.xlu0 %v1201, 95
    %v1206 = vpop.permute.xlu0 %1205
    %1207 = vrot.lane.b32.xlu0 %v1196, 95
    %v1208 = vpop.permute.xlu0 %1207
    %1209 = vrot.lane.b32.xlu0 %v1202, 95
    %v1210 = vpop.permute.xlu0 %1209
    %1211 = vrot.lane.b32.xlu0 %v1197, 95
    %v1212 = vpop.permute.xlu0 %1211
    %v1213 = vsel %vm441, %v1204, %v1206
    %v1214 = vsel %vm441, %v1206, %v1208
    %v1215 = vsel %vm441, %v1208, %v1210
    %v1216 = vsel %vm441, %v1210, %v1212
    %1221 = vst [vmem:[#allocation2 + $0x220] sm:$0x7] %v1213
    %1222 = vst [vmem:[#allocation2 + $0x228] sm:$0x7] %v1214
    %1223 = vst [vmem:[#allocation2 + $0x230] sm:$0x7] %v1215
    %1224 = vst [vmem:[#allocation2 + $0x238] sm:$0x7] %v1216
    %v1225 = vld [vmem:[%s999] sm:$0x77]
    %v1226 = vld [vmem:[%s999 + $0x8] sm:$0x77]
    %v1227 = vld [vmem:[%s999 + $0x10] sm:$0x7]
    %v1231 = vcombine.low %v1225, %v1225
    %v1232 = vcombine.low %v1226, %v1226
    %v1233 = vcombine.low %v1227, %v1227
    %1234 = vrot.lane.b32.xlu0 %v1231, 94
    %v1235 = vpop.permute.xlu0 %1234
    %1236 = vrot.lane.b32.xlu0 %v1225, 94
    %v1237 = vpop.permute.xlu0 %1236
    %1238 = vrot.lane.b32.xlu0 %v1232, 94
    %v1239 = vpop.permute.xlu0 %1238
    %1240 = vrot.lane.b32.xlu0 %v1226, 94
    %v1241 = vpop.permute.xlu0 %1240
    %1242 = vrot.lane.b32.xlu0 %v1233, 94
    %v1243 = vpop.permute.xlu0 %1242
    %v1244 = vsel %vm472, %v1235, %v1237
    %v1245 = vsel %vm472, %v1237, %v1239
    %v1246 = vsel %vm472, %v1239, %v1241
    %v1247 = vsel %vm472, %v1241, %v1243
    %1252 = vst [vmem:[#allocation2 + $0x220] sm:$0x70] %v1244
    %1253 = vst [vmem:[#allocation2 + $0x228] sm:$0x70] %v1245
    %1254 = vst [vmem:[#allocation2 + $0x230] sm:$0x70] %v1246
    %1255 = vst [vmem:[#allocation2 + $0x238] sm:$0x70] %v1247
    %v1256 = vld [vmem:[%s1] sm:$0x3f]
    %v1257 = vld [vmem:[%s1 + $0x8] sm:$0x3f]
    %s1258 = scalar_lea.vmem %s1, 16
    %v1259 = vld [vmem:[%s1258] sm:$0x3f]
    %v1260 = vld [vmem:[%s1258 + $0x8] sm:$0x3f]
    %s1261 = scalar_lea.vmem %s1, 32
    %v1262 = vld [vmem:[%s1261] sm:$0x3f]
    %v1263 = vld [vmem:[%s1261 + $0x8] sm:$0x3f]
    %s1264 = scalar_lea.vmem %s1, 48
    %v1265 = vld [vmem:[%s1264] sm:$0x3f]
    %v1266 = vld [vmem:[%s1264 + $0x8] sm:$0x3f]
    %v1267 = vld [vmem:[#allocation2] sm:$0xff]
    %v1268 = vld [vmem:[#allocation2 + $0x8] sm:$0xff]
    %v1269 = vld [vmem:[#allocation2 + $0x10] sm:$0xff]
    %v1270 = vld [vmem:[#allocation2 + $0x18] sm:$0xff]
    %v1271 = vld [vmem:[#allocation2 + $0x20] sm:$0xff]
    %v1272 = vld [vmem:[#allocation2 + $0x28] sm:$0xff]
    %v1273 = vld [vmem:[#allocation2 + $0x30] sm:$0xff]
    %v1274 = vld [vmem:[#allocation2 + $0x38] sm:$0xff]
    %v1275 = vld [vmem:[#allocation2 + $0x40] sm:$0xff]
    %v1276 = vld [vmem:[#allocation2 + $0x48] sm:$0xff]
    %v1277 = vld [vmem:[#allocation2 + $0x50] sm:$0xff]
    %v1278 = vld [vmem:[#allocation2 + $0x58] sm:$0xff]
    %v1279 = vld [vmem:[#allocation2 + $0x60] sm:$0xff]
    %v1280 = vld [vmem:[#allocation2 + $0x68] sm:$0xff]
    %v1281 = vld [vmem:[#allocation2 + $0x70] sm:$0xff]
    %v1282 = vld [vmem:[#allocation2 + $0x78] sm:$0xff]
    %v1283 = vld [vmem:[#allocation2 + $0x80] sm:$0xff]
    %v1284 = vld [vmem:[#allocation2 + $0x88] sm:$0xff]
    %v1285 = vld [vmem:[#allocation2 + $0x90] sm:$0xff]
    %v1286 = vld [vmem:[#allocation2 + $0x98] sm:$0xff]
    %v1287 = vld [vmem:[#allocation2 + $0xa0] sm:$0xff]
    %v1288 = vld [vmem:[#allocation2 + $0xa8] sm:$0xff]
    %v1289 = vld [vmem:[#allocation2 + $0xb0] sm:$0xff]
    %v1290 = vld [vmem:[#allocation2 + $0xb8] sm:$0xff]
    %v1291 = vld [vmem:[#allocation2 + $0xc0] sm:$0xff]
    %v1292 = vld [vmem:[#allocation2 + $0xc8] sm:$0xff]
    %v1293 = vld [vmem:[#allocation2 + $0xd0] sm:$0xff]
    %v1294 = vld [vmem:[#allocation2 + $0xd8] sm:$0xff]
    %v1295 = vld [vmem:[#allocation2 + $0xe0] sm:$0xff]
    %v1296 = vld [vmem:[#allocation2 + $0xe8] sm:$0xff]
    %v1297 = vld [vmem:[#allocation2 + $0xf0] sm:$0xff]
    %v1298 = vld [vmem:[#allocation2 + $0xf8] sm:$0xff]
    %v1299 = vld [vmem:[#allocation2 + $0x100] sm:$0xff]
    %v1300 = vld [vmem:[#allocation2 + $0x108] sm:$0xff]
    %v1301 = vld [vmem:[#allocation2 + $0x110] sm:$0xff]
    %v1302 = vld [vmem:[#allocation2 + $0x118] sm:$0xff]
    %v1303 = vld [vmem:[#allocation2 + $0x120] sm:$0xff]
    %v1304 = vld [vmem:[#allocation2 + $0x128] sm:$0xff]
    %v1305 = vld [vmem:[#allocation2 + $0x130] sm:$0xff]
    %v1306 = vld [vmem:[#allocation2 + $0x138] sm:$0xff]
    %v1307 = vld [vmem:[#allocation2 + $0x140] sm:$0xff]
    %v1308 = vld [vmem:[#allocation2 + $0x148] sm:$0xff]
    %v1309 = vld [vmem:[#allocation2 + $0x150] sm:$0xff]
    %v1310 = vld [vmem:[#allocation2 + $0x158] sm:$0xff]
    %v1311 = vld [vmem:[#allocation2 + $0x160] sm:$0xff]
    %v1312 = vld [vmem:[#allocation2 + $0x168] sm:$0xff]
    %v1313 = vld [vmem:[#allocation2 + $0x170] sm:$0xff]
    %v1314 = vld [vmem:[#allocation2 + $0x178] sm:$0xff]
    %v1315 = vld [vmem:[#allocation2 + $0x180] sm:$0xff]
    %v1316 = vld [vmem:[#allocation2 + $0x188] sm:$0xff]
    %v1317 = vld [vmem:[#allocation2 + $0x190] sm:$0xff]
    %v1318 = vld [vmem:[#allocation2 + $0x198] sm:$0xff]
    %v1319 = vld [vmem:[#allocation2 + $0x1a0] sm:$0xff]
    %v1320 = vld [vmem:[#allocation2 + $0x1a8] sm:$0xff]
    %v1321 = vld [vmem:[#allocation2 + $0x1b0] sm:$0xff]
    %v1322 = vld [vmem:[#allocation2 + $0x1b8] sm:$0xff]
    %v1323 = vld [vmem:[#allocation2 + $0x1c0] sm:$0xff]
    %v1324 = vld [vmem:[#allocation2 + $0x1c8] sm:$0xff]
    %v1325 = vld [vmem:[#allocation2 + $0x1d0] sm:$0xff]
    %v1326 = vld [vmem:[#allocation2 + $0x1d8] sm:$0xff]
    %v1327 = vld [vmem:[#allocation2 + $0x1e0] sm:$0xff]
    %v1328 = vld [vmem:[#allocation2 + $0x1e8] sm:$0xff]
    %v1329 = vld [vmem:[#allocation2 + $0x1f0] sm:$0xff]
    %v1330 = vld [vmem:[#allocation2 + $0x1f8] sm:$0xff]
    %v1331 = vld [vmem:[#allocation2 + $0x200] sm:$0xff]
    %v1332 = vld [vmem:[#allocation2 + $0x208] sm:$0xff]
    %v1333 = vld [vmem:[#allocation2 + $0x210] sm:$0xff]
    %v1334 = vld [vmem:[#allocation2 + $0x218] sm:$0xff]
    %v1335 = vld [vmem:[#allocation2 + $0x220] sm:$0xff]
    %v1336 = vld [vmem:[#allocation2 + $0x228] sm:$0xff]
    %v1337 = vld [vmem:[#allocation2 + $0x230] sm:$0xff]
    %v1338 = vld [vmem:[#allocation2 + $0x238] sm:$0xff]
    %vm1339 = vcmask 130048
    %v1341 = vsel %vm1339, %v1257, 0
    %1343 = vmatprep.subr.mxu0 %v1328
    %1344 = vmatpush1.msra.mxu0 %v1327
    %1345 = vmatprep.subr.mxu0 %v1324
    %1346 = vmatpush1.msra.mxu0 %v1323
    %1347 = vmatprep.subr.mxu0 %v1320
    %1348 = vmatpush1.msra.mxu0 %v1319
    %1349 = vmatprep.subr.mxu0 %v1316
    %1350 = vmatpush1.msra.mxu0 %v1315
    %1351 = vmatprep.subr.mxu0 %v1312
    %1352 = vmatpush1.msra.mxu0 %v1311
    %1353 = vmatprep.subr.mxu0 %v1308
    %1354 = vmatpush1.msra.mxu0 %v1307
    %1355 = vmatprep.subr.mxu0 %v1304
    %1356 = vmatpush1.msra.mxu0 %v1303
    %1357 = vmatprep.subr.mxu0 %v1300
    %1358 = vmatpush1.msra.mxu0 %v1299
    %1359 = vmatprep.subr.mxu0 %v1296
    %1360 = vmatpush1.msra.mxu0 %v1295
    %1361 = vmatprep.subr.mxu0 %v1292
    %1362 = vmatpush1.msra.mxu0 %v1291
    %1363 = vmatprep.subr.mxu0 %v1288
    %1364 = vmatpush1.msra.mxu0 %v1287
    %1365 = vmatprep.subr.mxu0 %v1284
    %1366 = vmatpush1.msra.mxu0 %v1283
    %1367 = vmatprep.subr.mxu0 %v1280
    %1368 = vmatpush1.msra.mxu0 %v1279
    %1369 = vmatprep.subr.mxu0 %v1276
    %1370 = vmatpush1.msra.mxu0 %v1275
    %1371 = vmatprep.subr.mxu0 %v1272
    %1372 = vmatpush1.msra.mxu0 %v1271
    %1373 = vmatprep.subr.mxu0 %v1268
    %1374 = vmatpush1.msra.mxu0 %v1267
    %1375 = vmatprep.subr.mxu0 0.0
    %1376 = vmatpush2.msra.mxu0 0.0
    %1377 = vmatprep.subr.mxu0 0.0
    %1378 = vmatpush2.msra.mxu0 0.0
    %1379 = vmatprep.subr.mxu0 0.0
    %1380 = vmatpush2.msra.mxu0 0.0
    %1381 = vmatprep.subr.mxu0 0.0
    %1382 = vmatpush2.msra.mxu0 0.0
    %1383 = vmatprep.subr.mxu0 0.0
    %1384 = vmatpush2.msra.mxu0 0.0
    %1385 = vmatprep.subr.mxu0 0.0
    %1386 = vmatpush2.msra.mxu0 0.0
    %1387 = vmatprep.subr.mxu0 0.0
    %1388 = vmatpush2.msra.mxu0 0.0
    %1389 = vmatprep.subr.mxu0 0.0
    %1390 = vmatpush2.msra.mxu0 0.0
    %1391 = vmatprep.subr.mxu0 0.0
    %1392 = vmatpush2.msra.mxu0 0.0
    %1393 = vmatprep.subr.mxu0 0.0
    %1394 = vmatpush2.msra.mxu0 0.0
    %1395 = vmatprep.subr.mxu0 0.0
    %1396 = vmatpush2.msra.mxu0 0.0
    %1397 = vmatprep.subr.mxu0 0.0
    %1398 = vmatpush2.msra.mxu0 0.0
    %1399 = vmatprep.subr.mxu0 0.0
    %1400 = vmatpush2.msra.mxu0 0.0
    %1401 = vmatprep.subr.mxu0 0.0
    %1402 = vmatpush2.msra.mxu0 0.0
    %1403 = vmatprep.subr.mxu0 %v1336
    %1404 = vmatpush2.msra.mxu0 %v1335
    %1405 = vmatprep.subr.mxu0 %v1332
    %1406 = vmatpush2.msra.mxu0 %v1331
    %1407 = vmatprep.mubr.f32.mxu0 %v1341
    %1408 = vmatmul.mubr.f32.gmra.mxu0 %v1256
    %v1409 = vpop.f32.mrf.mxu0
    %v1410 = vadd.f32 0.0, %v1409
    %v1411 = vpop.f32.mrf.mxu0
    %v1412 = vadd.f32 0.0, %v1411
    %1413 = vdwg.mxu0
    %1414 = vmatprep.subr.mxu0 %v1330
    %1415 = vmatpush1.msra.mxu0 %v1329
    %1416 = vmatprep.subr.mxu0 %v1326
    %1417 = vmatpush1.msra.mxu0 %v1325
    %1418 = vmatprep.subr.mxu0 %v1322
    %1419 = vmatpush1.msra.mxu0 %v1321
    %1420 = vmatprep.subr.mxu0 %v1318
    %1421 = vmatpush1.msra.mxu0 %v1317
    %1422 = vmatprep.subr.mxu0 %v1314
    %1423 = vmatpush1.msra.mxu0 %v1313
    %1424 = vmatprep.subr.mxu0 %v1310
    %1425 = vmatpush1.msra.mxu0 %v1309
    %1426 = vmatprep.subr.mxu0 %v1306
    %1427 = vmatpush1.msra.mxu0 %v1305
    %1428 = vmatprep.subr.mxu0 %v1302
    %1429 = vmatpush1.msra.mxu0 %v1301
    %1430 = vmatprep.subr.mxu0 %v1298
    %1431 = vmatpush1.msra.mxu0 %v1297
    %1432 = vmatprep.subr.mxu0 %v1294
    %1433 = vmatpush1.msra.mxu0 %v1293
    %1434 = vmatprep.subr.mxu0 %v1290
    %1435 = vmatpush1.msra.mxu0 %v1289
    %1436 = vmatprep.subr.mxu0 %v1286
    %1437 = vmatpush1.msra.mxu0 %v1285
    %1438 = vmatprep.subr.mxu0 %v1282
    %1439 = vmatpush1.msra.mxu0 %v1281
    %1440 = vmatprep.subr.mxu0 %v1278
    %1441 = vmatpush1.msra.mxu0 %v1277
    %1442 = vmatprep.subr.mxu0 %v1274
    %1443 = vmatpush1.msra.mxu0 %v1273
    %1444 = vmatprep.subr.mxu0 %v1270
    %1445 = vmatpush1.msra.mxu0 %v1269
    %1446 = vmatprep.subr.mxu0 0.0
    %1447 = vmatpush2.msra.mxu0 0.0
    %1448 = vmatprep.subr.mxu0 0.0
    %1449 = vmatpush2.msra.mxu0 0.0
    %1450 = vmatprep.subr.mxu0 0.0
    %1451 = vmatpush2.msra.mxu0 0.0
    %1452 = vmatprep.subr.mxu0 0.0
    %1453 = vmatpush2.msra.mxu0 0.0
    %1454 = vmatprep.subr.mxu0 0.0
    %1455 = vmatpush2.msra.mxu0 0.0
    %1456 = vmatprep.subr.mxu0 0.0
    %1457 = vmatpush2.msra.mxu0 0.0
    %1458 = vmatprep.subr.mxu0 0.0
    %1459 = vmatpush2.msra.mxu0 0.0
    %1460 = vmatprep.subr.mxu0 0.0
    %1461 = vmatpush2.msra.mxu0 0.0
    %1462 = vmatprep.subr.mxu0 0.0
    %1463 = vmatpush2.msra.mxu0 0.0
    %1464 = vmatprep.subr.mxu0 0.0
    %1465 = vmatpush2.msra.mxu0 0.0
    %1466 = vmatprep.subr.mxu0 0.0
    %1467 = vmatpush2.msra.mxu0 0.0
    %1468 = vmatprep.subr.mxu0 0.0
    %1469 = vmatpush2.msra.mxu0 0.0
    %1470 = vmatprep.subr.mxu0 0.0
    %1471 = vmatpush2.msra.mxu0 0.0
    %1472 = vmatprep.subr.mxu0 0.0
    %1473 = vmatpush2.msra.mxu0 0.0
    %1474 = vmatprep.subr.mxu0 %v1338
    %1475 = vmatpush2.msra.mxu0 %v1337
    %1476 = vmatprep.subr.mxu0 %v1334
    %1477 = vmatpush2.msra.mxu0 %v1333
    %1478 = vmatprep.mubr.f32.mxu0 %v1341
    %1479 = vmatmul.mubr.f32.gmra.mxu0 %v1256
    %v1480 = vpop.f32.mrf.mxu0
    %v1481 = vadd.f32 0.0, %v1480
    %v1482 = vpop.f32.mrf.mxu0
    %v1483 = vadd.f32 0.0, %v1482
    %1484 = vdwg.mxu0
    %v1486 = vsel %vm1339, %v1260, 0
    %1488 = vmatprep.subr.mxu0 %v1328
    %1489 = vmatpush1.msra.mxu0 %v1327
    %1490 = vmatprep.subr.mxu0 %v1324
    %1491 = vmatpush1.msra.mxu0 %v1323
    %1492 = vmatprep.subr.mxu0 %v1320
    %1493 = vmatpush1.msra.mxu0 %v1319
    %1494 = vmatprep.subr.mxu0 %v1316
    %1495 = vmatpush1.msra.mxu0 %v1315
    %1496 = vmatprep.subr.mxu0 %v1312
    %1497 = vmatpush1.msra.mxu0 %v1311
    %1498 = vmatprep.subr.mxu0 %v1308
    %1499 = vmatpush1.msra.mxu0 %v1307
    %1500 = vmatprep.subr.mxu0 %v1304
    %1501 = vmatpush1.msra.mxu0 %v1303
    %1502 = vmatprep.subr.mxu0 %v1300
    %1503 = vmatpush1.msra.mxu0 %v1299
    %1504 = vmatprep.subr.mxu0 %v1296
    %1505 = vmatpush1.msra.mxu0 %v1295
    %1506 = vmatprep.subr.mxu0 %v1292
    %1507 = vmatpush1.msra.mxu0 %v1291
    %1508 = vmatprep.subr.mxu0 %v1288
    %1509 = vmatpush1.msra.mxu0 %v1287
    %1510 = vmatprep.subr.mxu0 %v1284
    %1511 = vmatpush1.msra.mxu0 %v1283
    %1512 = vmatprep.subr.mxu0 %v1280
    %1513 = vmatpush1.msra.mxu0 %v1279
    %1514 = vmatprep.subr.mxu0 %v1276
    %1515 = vmatpush1.msra.mxu0 %v1275
    %1516 = vmatprep.subr.mxu0 %v1272
    %1517 = vmatpush1.msra.mxu0 %v1271
    %1518 = vmatprep.subr.mxu0 %v1268
    %1519 = vmatpush1.msra.mxu0 %v1267
    %1520 = vmatprep.subr.mxu0 0.0
    %1521 = vmatpush2.msra.mxu0 0.0
    %1522 = vmatprep.subr.mxu0 0.0
    %1523 = vmatpush2.msra.mxu0 0.0
    %1524 = vmatprep.subr.mxu0 0.0
    %1525 = vmatpush2.msra.mxu0 0.0
    %1526 = vmatprep.subr.mxu0 0.0
    %1527 = vmatpush2.msra.mxu0 0.0
    %1528 = vmatprep.subr.mxu0 0.0
    %1529 = vmatpush2.msra.mxu0 0.0
    %1530 = vmatprep.subr.mxu0 0.0
    %1531 = vmatpush2.msra.mxu0 0.0
    %1532 = vmatprep.subr.mxu0 0.0
    %1533 = vmatpush2.msra.mxu0 0.0
    %1534 = vmatprep.subr.mxu0 0.0
    %1535 = vmatpush2.msra.mxu0 0.0
    %1536 = vmatprep.subr.mxu0 0.0
    %1537 = vmatpush2.msra.mxu0 0.0
    %1538 = vmatprep.subr.mxu0 0.0
    %1539 = vmatpush2.msra.mxu0 0.0
    %1540 = vmatprep.subr.mxu0 0.0
    %1541 = vmatpush2.msra.mxu0 0.0
    %1542 = vmatprep.subr.mxu0 0.0
    %1543 = vmatpush2.msra.mxu0 0.0
    %1544 = vmatprep.subr.mxu0 0.0
    %1545 = vmatpush2.msra.mxu0 0.0
    %1546 = vmatprep.subr.mxu0 0.0
    %1547 = vmatpush2.msra.mxu0 0.0
    %1548 = vmatprep.subr.mxu0 %v1336
    %1549 = vmatpush2.msra.mxu0 %v1335
    %1550 = vmatprep.subr.mxu0 %v1332
    %1551 = vmatpush2.msra.mxu0 %v1331
    %1552 = vmatprep.mubr.f32.mxu0 %v1486
    %1553 = vmatmul.mubr.f32.gmra.mxu0 %v1259
    %v1554 = vpop.f32.mrf.mxu0
    %v1555 = vadd.f32 0.0, %v1554
    %v1556 = vpop.f32.mrf.mxu0
    %v1557 = vadd.f32 0.0, %v1556
    %1558 = vdwg.mxu0
    %1559 = vmatprep.subr.mxu0 %v1330
    %1560 = vmatpush1.msra.mxu0 %v1329
    %1561 = vmatprep.subr.mxu0 %v1326
    %1562 = vmatpush1.msra.mxu0 %v1325
    %1563 = vmatprep.subr.mxu0 %v1322
    %1564 = vmatpush1.msra.mxu0 %v1321
    %1565 = vmatprep.subr.mxu0 %v1318
    %1566 = vmatpush1.msra.mxu0 %v1317
    %1567 = vmatprep.subr.mxu0 %v1314
    %1568 = vmatpush1.msra.mxu0 %v1313
    %1569 = vmatprep.subr.mxu0 %v1310
    %1570 = vmatpush1.msra.mxu0 %v1309
    %1571 = vmatprep.subr.mxu0 %v1306
    %1572 = vmatpush1.msra.mxu0 %v1305
    %1573 = vmatprep.subr.mxu0 %v1302
    %1574 = vmatpush1.msra.mxu0 %v1301
    %1575 = vmatprep.subr.mxu0 %v1298
    %1576 = vmatpush1.msra.mxu0 %v1297
    %1577 = vmatprep.subr.mxu0 %v1294
    %1578 = vmatpush1.msra.mxu0 %v1293
    %1579 = vmatprep.subr.mxu0 %v1290
    %1580 = vmatpush1.msra.mxu0 %v1289
    %1581 = vmatprep.subr.mxu0 %v1286
    %1582 = vmatpush1.msra.mxu0 %v1285
    %1583 = vmatprep.subr.mxu0 %v1282
    %1584 = vmatpush1.msra.mxu0 %v1281
    %1585 = vmatprep.subr.mxu0 %v1278
    %1586 = vmatpush1.msra.mxu0 %v1277
    %1587 = vmatprep.subr.mxu0 %v1274
    %1588 = vmatpush1.msra.mxu0 %v1273
    %1589 = vmatprep.subr.mxu0 %v1270
    %1590 = vmatpush1.msra.mxu0 %v1269
    %1591 = vmatprep.subr.mxu0 0.0
    %1592 = vmatpush2.msra.mxu0 0.0
    %1593 = vmatprep.subr.mxu0 0.0
    %1594 = vmatpush2.msra.mxu0 0.0
    %1595 = vmatprep.subr.mxu0 0.0
    %1596 = vmatpush2.msra.mxu0 0.0
    %1597 = vmatprep.subr.mxu0 0.0
    %1598 = vmatpush2.msra.mxu0 0.0
    %1599 = vmatprep.subr.mxu0 0.0
    %1600 = vmatpush2.msra.mxu0 0.0
    %1601 = vmatprep.subr.mxu0 0.0
    %1602 = vmatpush2.msra.mxu0 0.0
    %1603 = vmatprep.subr.mxu0 0.0
    %1604 = vmatpush2.msra.mxu0 0.0
    %1605 = vmatprep.subr.mxu0 0.0
    %1606 = vmatpush2.msra.mxu0 0.0
    %1607 = vmatprep.subr.mxu0 0.0
    %1608 = vmatpush2.msra.mxu0 0.0
    %1609 = vmatprep.subr.mxu0 0.0
    %1610 = vmatpush2.msra.mxu0 0.0
    %1611 = vmatprep.subr.mxu0 0.0
    %1612 = vmatpush2.msra.mxu0 0.0
    %1613 = vmatprep.subr.mxu0 0.0
    %1614 = vmatpush2.msra.mxu0 0.0
    %1615 = vmatprep.subr.mxu0 0.0
    %1616 = vmatpush2.msra.mxu0 0.0
    %1617 = vmatprep.subr.mxu0 0.0
    %1618 = vmatpush2.msra.mxu0 0.0
    %1619 = vmatprep.subr.mxu0 %v1338
    %1620 = vmatpush2.msra.mxu0 %v1337
    %1621 = vmatprep.subr.mxu0 %v1334
    %1622 = vmatpush2.msra.mxu0 %v1333
    %1623 = vmatprep.mubr.f32.mxu0 %v1486
    %1624 = vmatmul.mubr.f32.gmra.mxu0 %v1259
    %v1625 = vpop.f32.mrf.mxu0
    %v1626 = vadd.f32 0.0, %v1625
    %v1627 = vpop.f32.mrf.mxu0
    %v1628 = vadd.f32 0.0, %v1627
    %1629 = vdwg.mxu0
    %v1630 = vmax.f32 %v1410, %v1555
    %v1631 = vmax.f32 %v1412, %v1557
    %v1632 = vmax.f32 %v1481, %v1626
    %v1633 = vmax.f32 %v1483, %v1628
    %v1635 = vsel %vm1339, %v1263, 0
    %1637 = vmatprep.subr.mxu0 %v1328
    %1638 = vmatpush1.msra.mxu0 %v1327
    %1639 = vmatprep.subr.mxu0 %v1324
    %1640 = vmatpush1.msra.mxu0 %v1323
    %1641 = vmatprep.subr.mxu0 %v1320
    %1642 = vmatpush1.msra.mxu0 %v1319
    %1643 = vmatprep.subr.mxu0 %v1316
    %1644 = vmatpush1.msra.mxu0 %v1315
    %1645 = vmatprep.subr.mxu0 %v1312
    %1646 = vmatpush1.msra.mxu0 %v1311
    %1647 = vmatprep.subr.mxu0 %v1308
    %1648 = vmatpush1.msra.mxu0 %v1307
    %1649 = vmatprep.subr.mxu0 %v1304
    %1650 = vmatpush1.msra.mxu0 %v1303
    %1651 = vmatprep.subr.mxu0 %v1300
    %1652 = vmatpush1.msra.mxu0 %v1299
    %1653 = vmatprep.subr.mxu0 %v1296
    %1654 = vmatpush1.msra.mxu0 %v1295
    %1655 = vmatprep.subr.mxu0 %v1292
    %1656 = vmatpush1.msra.mxu0 %v1291
    %1657 = vmatprep.subr.mxu0 %v1288
    %1658 = vmatpush1.msra.mxu0 %v1287
    %1659 = vmatprep.subr.mxu0 %v1284
    %1660 = vmatpush1.msra.mxu0 %v1283
    %1661 = vmatprep.subr.mxu0 %v1280
    %1662 = vmatpush1.msra.mxu0 %v1279
    %1663 = vmatprep.subr.mxu0 %v1276
    %1664 = vmatpush1.msra.mxu0 %v1275
    %1665 = vmatprep.subr.mxu0 %v1272
    %1666 = vmatpush1.msra.mxu0 %v1271
    %1667 = vmatprep.subr.mxu0 %v1268
    %1668 = vmatpush1.msra.mxu0 %v1267
    %1669 = vmatprep.subr.mxu0 0.0
    %1670 = vmatpush2.msra.mxu0 0.0
    %1671 = vmatprep.subr.mxu0 0.0
    %1672 = vmatpush2.msra.mxu0 0.0
    %1673 = vmatprep.subr.mxu0 0.0
    %1674 = vmatpush2.msra.mxu0 0.0
    %1675 = vmatprep.subr.mxu0 0.0
    %1676 = vmatpush2.msra.mxu0 0.0
    %1677 = vmatprep.subr.mxu0 0.0
    %1678 = vmatpush2.msra.mxu0 0.0
    %1679 = vmatprep.subr.mxu0 0.0
    %1680 = vmatpush2.msra.mxu0 0.0
    %1681 = vmatprep.subr.mxu0 0.0
    %1682 = vmatpush2.msra.mxu0 0.0
    %1683 = vmatprep.subr.mxu0 0.0
    %1684 = vmatpush2.msra.mxu0 0.0
    %1685 = vmatprep.subr.mxu0 0.0
    %1686 = vmatpush2.msra.mxu0 0.0
    %1687 = vmatprep.subr.mxu0 0.0
    %1688 = vmatpush2.msra.mxu0 0.0
    %1689 = vmatprep.subr.mxu0 0.0
    %1690 = vmatpush2.msra.mxu0 0.0
    %1691 = vmatprep.subr.mxu0 0.0
    %1692 = vmatpush2.msra.mxu0 0.0
    %1693 = vmatprep.subr.mxu0 0.0
    %1694 = vmatpush2.msra.mxu0 0.0
    %1695 = vmatprep.subr.mxu0 0.0
    %1696 = vmatpush2.msra.mxu0 0.0
    %1697 = vmatprep.subr.mxu0 %v1336
    %1698 = vmatpush2.msra.mxu0 %v1335
    %1699 = vmatprep.subr.mxu0 %v1332
    %1700 = vmatpush2.msra.mxu0 %v1331
    %1701 = vmatprep.mubr.f32.mxu0 %v1635
    %1702 = vmatmul.mubr.f32.gmra.mxu0 %v1262
    %v1703 = vpop.f32.mrf.mxu0
    %v1704 = vadd.f32 0.0, %v1703
    %v1705 = vpop.f32.mrf.mxu0
    %v1706 = vadd.f32 0.0, %v1705
    %1707 = vdwg.mxu0
    %1708 = vmatprep.subr.mxu0 %v1330
    %1709 = vmatpush1.msra.mxu0 %v1329
    %1710 = vmatprep.subr.mxu0 %v1326
    %1711 = vmatpush1.msra.mxu0 %v1325
    %1712 = vmatprep.subr.mxu0 %v1322
    %1713 = vmatpush1.msra.mxu0 %v1321
    %1714 = vmatprep.subr.mxu0 %v1318
    %1715 = vmatpush1.msra.mxu0 %v1317
    %1716 = vmatprep.subr.mxu0 %v1314
    %1717 = vmatpush1.msra.mxu0 %v1313
    %1718 = vmatprep.subr.mxu0 %v1310
    %1719 = vmatpush1.msra.mxu0 %v1309
    %1720 = vmatprep.subr.mxu0 %v1306
    %1721 = vmatpush1.msra.mxu0 %v1305
    %1722 = vmatprep.subr.mxu0 %v1302
    %1723 = vmatpush1.msra.mxu0 %v1301
    %1724 = vmatprep.subr.mxu0 %v1298
    %1725 = vmatpush1.msra.mxu0 %v1297
    %1726 = vmatprep.subr.mxu0 %v1294
    %1727 = vmatpush1.msra.mxu0 %v1293
    %1728 = vmatprep.subr.mxu0 %v1290
    %1729 = vmatpush1.msra.mxu0 %v1289
    %1730 = vmatprep.subr.mxu0 %v1286
    %1731 = vmatpush1.msra.mxu0 %v1285
    %1732 = vmatprep.subr.mxu0 %v1282
    %1733 = vmatpush1.msra.mxu0 %v1281
    %1734 = vmatprep.subr.mxu0 %v1278
    %1735 = vmatpush1.msra.mxu0 %v1277
    %1736 = vmatprep.subr.mxu0 %v1274
    %1737 = vmatpush1.msra.mxu0 %v1273
    %1738 = vmatprep.subr.mxu0 %v1270
    %1739 = vmatpush1.msra.mxu0 %v1269
    %1740 = vmatprep.subr.mxu0 0.0
    %1741 = vmatpush2.msra.mxu0 0.0
    %1742 = vmatprep.subr.mxu0 0.0
    %1743 = vmatpush2.msra.mxu0 0.0
    %1744 = vmatprep.subr.mxu0 0.0
    %1745 = vmatpush2.msra.mxu0 0.0
    %1746 = vmatprep.subr.mxu0 0.0
    %1747 = vmatpush2.msra.mxu0 0.0
    %1748 = vmatprep.subr.mxu0 0.0
    %1749 = vmatpush2.msra.mxu0 0.0
    %1750 = vmatprep.subr.mxu0 0.0
    %1751 = vmatpush2.msra.mxu0 0.0
    %1752 = vmatprep.subr.mxu0 0.0
    %1753 = vmatpush2.msra.mxu0 0.0
    %1754 = vmatprep.subr.mxu0 0.0
    %1755 = vmatpush2.msra.mxu0 0.0
    %1756 = vmatprep.subr.mxu0 0.0
    %1757 = vmatpush2.msra.mxu0 0.0
    %1758 = vmatprep.subr.mxu0 0.0
    %1759 = vmatpush2.msra.mxu0 0.0
    %1760 = vmatprep.subr.mxu0 0.0
    %1761 = vmatpush2.msra.mxu0 0.0
    %1762 = vmatprep.subr.mxu0 0.0
    %1763 = vmatpush2.msra.mxu0 0.0
    %1764 = vmatprep.subr.mxu0 0.0
    %1765 = vmatpush2.msra.mxu0 0.0
    %1766 = vmatprep.subr.mxu0 0.0
    %1767 = vmatpush2.msra.mxu0 0.0
    %1768 = vmatprep.subr.mxu0 %v1338
    %1769 = vmatpush2.msra.mxu0 %v1337
    %1770 = vmatprep.subr.mxu0 %v1334
    %1771 = vmatpush2.msra.mxu0 %v1333
    %1772 = vmatprep.mubr.f32.mxu0 %v1635
    %1773 = vmatmul.mubr.f32.gmra.mxu0 %v1262
    %v1774 = vpop.f32.mrf.mxu0
    %v1775 = vadd.f32 0.0, %v1774
    %v1776 = vpop.f32.mrf.mxu0
    %v1777 = vadd.f32 0.0, %v1776
    %1778 = vdwg.mxu0
    %v1779 = vmax.f32 %v1630, %v1704
    %v1780 = vmax.f32 %v1631, %v1706
    %v1781 = vmax.f32 %v1632, %v1775
    %v1782 = vmax.f32 %v1633, %v1777
    %v1784 = vsel %vm1339, %v1266, 0
    %1786 = vmatprep.subr.mxu0 %v1328
    %1787 = vmatpush1.msra.mxu0 %v1327
    %1788 = vmatprep.subr.mxu0 %v1324
    %1789 = vmatpush1.msra.mxu0 %v1323
    %1790 = vmatprep.subr.mxu0 %v1320
    %1791 = vmatpush1.msra.mxu0 %v1319
    %1792 = vmatprep.subr.mxu0 %v1316
    %1793 = vmatpush1.msra.mxu0 %v1315
    %1794 = vmatprep.subr.mxu0 %v1312
    %1795 = vmatpush1.msra.mxu0 %v1311
    %1796 = vmatprep.subr.mxu0 %v1308
    %1797 = vmatpush1.msra.mxu0 %v1307
    %1798 = vmatprep.subr.mxu0 %v1304
    %1799 = vmatpush1.msra.mxu0 %v1303
    %1800 = vmatprep.subr.mxu0 %v1300
    %1801 = vmatpush1.msra.mxu0 %v1299
    %1802 = vmatprep.subr.mxu0 %v1296
    %1803 = vmatpush1.msra.mxu0 %v1295
    %1804 = vmatprep.subr.mxu0 %v1292
    %1805 = vmatpush1.msra.mxu0 %v1291
    %1806 = vmatprep.subr.mxu0 %v1288
    %1807 = vmatpush1.msra.mxu0 %v1287
    %1808 = vmatprep.subr.mxu0 %v1284
    %1809 = vmatpush1.msra.mxu0 %v1283
    %1810 = vmatprep.subr.mxu0 %v1280
    %1811 = vmatpush1.msra.mxu0 %v1279
    %1812 = vmatprep.subr.mxu0 %v1276
    %1813 = vmatpush1.msra.mxu0 %v1275
    %1814 = vmatprep.subr.mxu0 %v1272
    %1815 = vmatpush1.msra.mxu0 %v1271
    %1816 = vmatprep.subr.mxu0 %v1268
    %1817 = vmatpush1.msra.mxu0 %v1267
    %1818 = vmatprep.subr.mxu0 0.0
    %1819 = vmatpush2.msra.mxu0 0.0
    %1820 = vmatprep.subr.mxu0 0.0
    %1821 = vmatpush2.msra.mxu0 0.0
    %1822 = vmatprep.subr.mxu0 0.0
    %1823 = vmatpush2.msra.mxu0 0.0
    %1824 = vmatprep.subr.mxu0 0.0
    %1825 = vmatpush2.msra.mxu0 0.0
    %1826 = vmatprep.subr.mxu0 0.0
    %1827 = vmatpush2.msra.mxu0 0.0
    %1828 = vmatprep.subr.mxu0 0.0
    %1829 = vmatpush2.msra.mxu0 0.0
    %1830 = vmatprep.subr.mxu0 0.0
    %1831 = vmatpush2.msra.mxu0 0.0
    %1832 = vmatprep.subr.mxu0 0.0
    %1833 = vmatpush2.msra.mxu0 0.0
    %1834 = vmatprep.subr.mxu0 0.0
    %1835 = vmatpush2.msra.mxu0 0.0
    %1836 = vmatprep.subr.mxu0 0.0
    %1837 = vmatpush2.msra.mxu0 0.0
    %1838 = vmatprep.subr.mxu0 0.0
    %1839 = vmatpush2.msra.mxu0 0.0
    %1840 = vmatprep.subr.mxu0 0.0
    %1841 = vmatpush2.msra.mxu0 0.0
    %1842 = vmatprep.subr.mxu0 0.0
    %1843 = vmatpush2.msra.mxu0 0.0
    %1844 = vmatprep.subr.mxu0 0.0
    %1845 = vmatpush2.msra.mxu0 0.0
    %1846 = vmatprep.subr.mxu0 %v1336
    %1847 = vmatpush2.msra.mxu0 %v1335
    %1848 = vmatprep.subr.mxu0 %v1332
    %1849 = vmatpush2.msra.mxu0 %v1331
    %1850 = vmatprep.mubr.f32.mxu0 %v1784
    %1851 = vmatmul.mubr.f32.gmra.mxu0 %v1265
    %v1852 = vpop.f32.mrf.mxu0
    %v1853 = vadd.f32 0.0, %v1852
    %v1854 = vpop.f32.mrf.mxu0
    %v1855 = vadd.f32 0.0, %v1854
    %1856 = vdwg.mxu0
    %1857 = vmatprep.subr.mxu0 %v1330
    %1858 = vmatpush1.msra.mxu0 %v1329
    %1859 = vmatprep.subr.mxu0 %v1326
    %1860 = vmatpush1.msra.mxu0 %v1325
    %1861 = vmatprep.subr.mxu0 %v1322
    %1862 = vmatpush1.msra.mxu0 %v1321
    %1863 = vmatprep.subr.mxu0 %v1318
    %1864 = vmatpush1.msra.mxu0 %v1317
    %1865 = vmatprep.subr.mxu0 %v1314
    %1866 = vmatpush1.msra.mxu0 %v1313
    %1867 = vmatprep.subr.mxu0 %v1310
    %1868 = vmatpush1.msra.mxu0 %v1309
    %1869 = vmatprep.subr.mxu0 %v1306
    %1870 = vmatpush1.msra.mxu0 %v1305
    %1871 = vmatprep.subr.mxu0 %v1302
    %1872 = vmatpush1.msra.mxu0 %v1301
    %1873 = vmatprep.subr.mxu0 %v1298
    %1874 = vmatpush1.msra.mxu0 %v1297
    %1875 = vmatprep.subr.mxu0 %v1294
    %1876 = vmatpush1.msra.mxu0 %v1293
    %1877 = vmatprep.subr.mxu0 %v1290
    %1878 = vmatpush1.msra.mxu0 %v1289
    %1879 = vmatprep.subr.mxu0 %v1286
    %1880 = vmatpush1.msra.mxu0 %v1285
    %1881 = vmatprep.subr.mxu0 %v1282
    %1882 = vmatpush1.msra.mxu0 %v1281
    %1883 = vmatprep.subr.mxu0 %v1278
    %1884 = vmatpush1.msra.mxu0 %v1277
    %1885 = vmatprep.subr.mxu0 %v1274
    %1886 = vmatpush1.msra.mxu0 %v1273
    %1887 = vmatprep.subr.mxu0 %v1270
    %1888 = vmatpush1.msra.mxu0 %v1269
    %1889 = vmatprep.subr.mxu0 0.0
    %1890 = vmatpush2.msra.mxu0 0.0
    %1891 = vmatprep.subr.mxu0 0.0
    %1892 = vmatpush2.msra.mxu0 0.0
    %1893 = vmatprep.subr.mxu0 0.0
    %1894 = vmatpush2.msra.mxu0 0.0
    %1895 = vmatprep.subr.mxu0 0.0
    %1896 = vmatpush2.msra.mxu0 0.0
    %1897 = vmatprep.subr.mxu0 0.0
    %1898 = vmatpush2.msra.mxu0 0.0
    %1899 = vmatprep.subr.mxu0 0.0
    %1900 = vmatpush2.msra.mxu0 0.0
    %1901 = vmatprep.subr.mxu0 0.0
    %1902 = vmatpush2.msra.mxu0 0.0
    %1903 = vmatprep.subr.mxu0 0.0
    %1904 = vmatpush2.msra.mxu0 0.0
    %1905 = vmatprep.subr.mxu0 0.0
    %1906 = vmatpush2.msra.mxu0 0.0
    %1907 = vmatprep.subr.mxu0 0.0
    %1908 = vmatpush2.msra.mxu0 0.0
    %1909 = vmatprep.subr.mxu0 0.0
    %1910 = vmatpush2.msra.mxu0 0.0
    %1911 = vmatprep.subr.mxu0 0.0
    %1912 = vmatpush2.msra.mxu0 0.0
    %1913 = vmatprep.subr.mxu0 0.0
    %1914 = vmatpush2.msra.mxu0 0.0
    %1915 = vmatprep.subr.mxu0 0.0
    %1916 = vmatpush2.msra.mxu0 0.0
    %1917 = vmatprep.subr.mxu0 %v1338
    %1918 = vmatpush2.msra.mxu0 %v1337
    %1919 = vmatprep.subr.mxu0 %v1334
    %1920 = vmatpush2.msra.mxu0 %v1333
    %1921 = vmatprep.mubr.f32.mxu0 %v1784
    %1922 = vmatmul.mubr.f32.gmra.mxu0 %v1265
    %v1923 = vpop.f32.mrf.mxu0
    %v1924 = vadd.f32 0.0, %v1923
    %v1925 = vpop.f32.mrf.mxu0
    %v1926 = vadd.f32 0.0, %v1925
    %1927 = vdwg.mxu0
    %v1928 = vmax.f32 %v1779, %v1853
    %v1929 = vmax.f32 %v1780, %v1855
    %v1930 = vmax.f32 %v1781, %v1924
    %v1931 = vmax.f32 %v1782, %v1926
    %1933 = vset.pattern.permute.xlu0 0
    %1934 = vperm.xlu0 %1933, %v218
    %v1935 = vpop.permute.xlu0 %1934
    %v1937 = vadd.f32 %v1928, %v1935
    %v1938 = vadd.f32 %v1929, %v1935
    %v1939 = vadd.f32 %v1930, %v1935
    %v1940 = vadd.f32 %v1931, %v1935
    %v1941 = vmax.f32 %v1937, 0.0
    %v1942 = vmax.f32 %v1938, 0.0
    %v1943 = vmax.f32 %v1939, 0.0
    %v1944 = vmax.f32 %v1940, 0.0
    %1945 = vst [vmem:[#allocation4] sm:$0x3f] %v1941
    %1946 = vst [vmem:[#allocation4 + $0x8] sm:$0x3f] %v1942
    %1947 = vst [vmem:[#allocation4 + $0x10] sm:$0x3f] %v1943
    %1948 = vst [vmem:[#allocation4 + $0x18] sm:$0x3f] %v1944
    %v1949 = vld [vmem:[#allocation4] sm:$0x3f]
    %v1950 = vld [vmem:[#allocation4 + $0x8] sm:$0x3f]
    %v1951 = vld [vmem:[#allocation4 + $0x10] sm:$0x3f]
    %v1952 = vld [vmem:[#allocation4 + $0x18] sm:$0x3f]
    %1953 = vst [vmem:[#allocation3] sm:$0x3f] %v1949
    %1954 = vst [vmem:[#allocation3 + $0x8] sm:$0x3f] %v1950
    %1955 = vst [vmem:[#allocation3 + $0x10] sm:$0x3f] %v1951
    %1956 = vst [vmem:[#allocation3 + $0x18] sm:$0x3f] %v1952
    %v1957 = vld [vmem:[#allocation4] sm:$0x3f]
    %v1958 = vld [vmem:[#allocation4 + $0x8] sm:$0x3f]
    %v1959 = vld [vmem:[#allocation4 + $0x10] sm:$0x3f]
    %v1960 = vld [vmem:[#allocation4 + $0x18] sm:$0x3f]
    %v1961 = vld [vmem:[#allocation4 + $0x20] sm:$0x3f]
    %1967 = vrot.lane.b32.xlu0 %v1957, 127
    %v1968 = vpop.permute.xlu0 %1967
    %1969 = vrot.lane.b32.xlu0 %v1958, 127
    %v1970 = vpop.permute.xlu0 %1969
    %1971 = vrot.lane.b32.xlu0 %v1959, 127
    %v1972 = vpop.permute.xlu0 %1971
    %1973 = vrot.lane.b32.xlu0 %v1960, 127
    %v1974 = vpop.permute.xlu0 %1973
    %1975 = vrot.lane.b32.xlu0 %v1961, 127
    %v1976 = vpop.permute.xlu0 %1975
    %v1977 = vsel %vm252, %v1968, %v1970
    %v1978 = vsel %vm252, %v1970, %v1972
    %v1979 = vsel %vm252, %v1972, %v1974
    %v1980 = vsel %vm252, %v1974, %v1976
    %1985 = vst [vmem:[#allocation3 + $0x20] sm:$0x3f] %v1977
    %1986 = vst [vmem:[#allocation3 + $0x28] sm:$0x3f] %v1978
    %1987 = vst [vmem:[#allocation3 + $0x30] sm:$0x3f] %v1979
    %1988 = vst [vmem:[#allocation3 + $0x38] sm:$0x3f] %v1980
    %v1989 = vld [vmem:[#allocation4] sm:$0x3f]
    %v1990 = vld [vmem:[#allocation4 + $0x8] sm:$0x3f]
    %v1991 = vld [vmem:[#allocation4 + $0x10] sm:$0x3f]
    %v1992 = vld [vmem:[#allocation4 + $0x18] sm:$0x3f]
    %v1993 = vld [vmem:[#allocation4 + $0x20] sm:$0x3f]
    %1999 = vrot.lane.b32.xlu0 %v1989, 126
    %v2000 = vpop.permute.xlu0 %1999
    %2001 = vrot.lane.b32.xlu0 %v1990, 126
    %v2002 = vpop.permute.xlu0 %2001
    %2003 = vrot.lane.b32.xlu0 %v1991, 126
    %v2004 = vpop.permute.xlu0 %2003
    %2005 = vrot.lane.b32.xlu0 %v1992, 126
    %v2006 = vpop.permute.xlu0 %2005
    %2007 = vrot.lane.b32.xlu0 %v1993, 126
    %v2008 = vpop.permute.xlu0 %2007
    %v2009 = vsel %vm283, %v2000, %v2002
    %v2010 = vsel %vm283, %v2002, %v2004
    %v2011 = vsel %vm283, %v2004, %v2006
    %v2012 = vsel %vm283, %v2006, %v2008
    %2017 = vst [vmem:[#allocation3 + $0x40] sm:$0x3f] %v2009
    %2018 = vst [vmem:[#allocation3 + $0x48] sm:$0x3f] %v2010
    %2019 = vst [vmem:[#allocation3 + $0x50] sm:$0x3f] %v2011
    %2020 = vst [vmem:[#allocation3 + $0x58] sm:$0x3f] %v2012
    %v2021 = vld [vmem:[#allocation4] sm:$0x3f]
    %v2022 = vld [vmem:[#allocation4 + $0x8] sm:$0x3f]
    %v2023 = vld [vmem:[#allocation4 + $0x10] sm:$0x3f]
    %v2024 = vld [vmem:[#allocation4 + $0x18] sm:$0x3f]
    %v2025 = vld [vmem:[#allocation4 + $0x20] sm:$0x3f]
    %2031 = vrot.lane.b32.xlu0 %v2021, 125
    %v2032 = vpop.permute.xlu0 %2031
    %2033 = vrot.lane.b32.xlu0 %v2022, 125
    %v2034 = vpop.permute.xlu0 %2033
    %2035 = vrot.lane.b32.xlu0 %v2023, 125
    %v2036 = vpop.permute.xlu0 %2035
    %2037 = vrot.lane.b32.xlu0 %v2024, 125
    %v2038 = vpop.permute.xlu0 %2037
    %2039 = vrot.lane.b32.xlu0 %v2025, 125
    %v2040 = vpop.permute.xlu0 %2039
    %vm2041 = vcmask 1022976
    %v2042 = vsel %vm2041, %v2032, %v2034
    %v2043 = vsel %vm2041, %v2034, %v2036
    %v2044 = vsel %vm2041, %v2036, %v2038
    %v2045 = vsel %vm2041, %v2038, %v2040
    %2050 = vst [vmem:[#allocation3 + $0x60] sm:$0x3f] %v2042
    %2051 = vst [vmem:[#allocation3 + $0x68] sm:$0x3f] %v2043
    %2052 = vst [vmem:[#allocation3 + $0x70] sm:$0x3f] %v2044
    %2053 = vst [vmem:[#allocation3 + $0x78] sm:$0x3f] %v2045
    %v2054 = vld [vmem:[#allocation4] sm:$0x3f]
    %v2055 = vld [vmem:[#allocation4 + $0x8] sm:$0x3f]
    %v2056 = vld [vmem:[#allocation4 + $0x10] sm:$0x3f]
    %v2057 = vld [vmem:[#allocation4 + $0x18] sm:$0x3f]
    %v2058 = vld [vmem:[#allocation4 + $0x20] sm:$0x3f]
    %2064 = vrot.lane.b32.xlu0 %v2054, 124
    %v2065 = vpop.permute.xlu0 %2064
    %2066 = vrot.lane.b32.xlu0 %v2055, 124
    %v2067 = vpop.permute.xlu0 %2066
    %2068 = vrot.lane.b32.xlu0 %v2056, 124
    %v2069 = vpop.permute.xlu0 %2068
    %2070 = vrot.lane.b32.xlu0 %v2057, 124
    %v2071 = vpop.permute.xlu0 %2070
    %2072 = vrot.lane.b32.xlu0 %v2058, 124
    %v2073 = vpop.permute.xlu0 %2072
    %vm2074 = vcmask 1014784
    %v2075 = vsel %vm2074, %v2065, %v2067
    %v2076 = vsel %vm2074, %v2067, %v2069
    %v2077 = vsel %vm2074, %v2069, %v2071
    %v2078 = vsel %vm2074, %v2071, %v2073
    %2083 = vst [vmem:[#allocation3 + $0x80] sm:$0x3f] %v2075
    %2084 = vst [vmem:[#allocation3 + $0x88] sm:$0x3f] %v2076
    %2085 = vst [vmem:[#allocation3 + $0x90] sm:$0x3f] %v2077
    %2086 = vst [vmem:[#allocation3 + $0x98] sm:$0x3f] %v2078
    %v2087 = vld [vmem:[#allocation4] sm:$0x3f]
    %v2088 = vld [vmem:[#allocation4 + $0x8] sm:$0x3f]
    %v2089 = vld [vmem:[#allocation4 + $0x10] sm:$0x3f]
    %v2090 = vld [vmem:[#allocation4 + $0x18] sm:$0x3f]
    %v2091 = vld [vmem:[#allocation4 + $0x20] sm:$0x3f]
    %2097 = vrot.lane.b32.xlu0 %v2087, 112
    %v2098 = vpop.permute.xlu0 %2097
    %2099 = vrot.lane.b32.xlu0 %v2088, 112
    %v2100 = vpop.permute.xlu0 %2099
    %2101 = vrot.lane.b32.xlu0 %v2089, 112
    %v2102 = vpop.permute.xlu0 %2101
    %2103 = vrot.lane.b32.xlu0 %v2090, 112
    %v2104 = vpop.permute.xlu0 %2103
    %2105 = vrot.lane.b32.xlu0 %v2091, 112
    %v2106 = vpop.permute.xlu0 %2105
    %v2107 = vsel %vm315, %v2098, %v2100
    %v2108 = vsel %vm315, %v2100, %v2102
    %v2109 = vsel %vm315, %v2102, %v2104
    %v2110 = vsel %vm315, %v2104, %v2106
    %2115 = vst [vmem:[#allocation3 + $0xa0] sm:$0x3f] %v2107
    %2116 = vst [vmem:[#allocation3 + $0xa8] sm:$0x3f] %v2108
    %2117 = vst [vmem:[#allocation3 + $0xb0] sm:$0x3f] %v2109
    %2118 = vst [vmem:[#allocation3 + $0xb8] sm:$0x3f] %v2110
    %v2119 = vld [vmem:[#allocation4] sm:$0x3f]
    %v2120 = vld [vmem:[#allocation4 + $0x8] sm:$0x3f]
    %v2121 = vld [vmem:[#allocation4 + $0x10] sm:$0x3f]
    %v2122 = vld [vmem:[#allocation4 + $0x18] sm:$0x3f]
    %v2123 = vld [vmem:[#allocation4 + $0x20] sm:$0x3f]
    %2129 = vrot.lane.b32.xlu0 %v2119, 111
    %v2130 = vpop.permute.xlu0 %2129
    %2131 = vrot.lane.b32.xlu0 %v2120, 111
    %v2132 = vpop.permute.xlu0 %2131
    %2133 = vrot.lane.b32.xlu0 %v2121, 111
    %v2134 = vpop.permute.xlu0 %2133
    %2135 = vrot.lane.b32.xlu0 %v2122, 111
    %v2136 = vpop.permute.xlu0 %2135
    %2137 = vrot.lane.b32.xlu0 %v2123, 111
    %v2138 = vpop.permute.xlu0 %2137
    %v2139 = vsel %vm346, %v2130, %v2132
    %v2140 = vsel %vm346, %v2132, %v2134
    %v2141 = vsel %vm346, %v2134, %v2136
    %v2142 = vsel %vm346, %v2136, %v2138
    %2147 = vst [vmem:[#allocation3 + $0xc0] sm:$0x3f] %v2139
    %2148 = vst [vmem:[#allocation3 + $0xc8] sm:$0x3f] %v2140
    %2149 = vst [vmem:[#allocation3 + $0xd0] sm:$0x3f] %v2141
    %2150 = vst [vmem:[#allocation3 + $0xd8] sm:$0x3f] %v2142
    %v2151 = vld [vmem:[#allocation4] sm:$0x3f]
    %v2152 = vld [vmem:[#allocation4 + $0x8] sm:$0x3f]
    %v2153 = vld [vmem:[#allocation4 + $0x10] sm:$0x3f]
    %v2154 = vld [vmem:[#allocation4 + $0x18] sm:$0x3f]
    %v2155 = vld [vmem:[#allocation4 + $0x20] sm:$0x3f]
    %2161 = vrot.lane.b32.xlu0 %v2151, 110
    %v2162 = vpop.permute.xlu0 %2161
    %2163 = vrot.lane.b32.xlu0 %v2152, 110
    %v2164 = vpop.permute.xlu0 %2163
    %2165 = vrot.lane.b32.xlu0 %v2153, 110
    %v2166 = vpop.permute.xlu0 %2165
    %2167 = vrot.lane.b32.xlu0 %v2154, 110
    %v2168 = vpop.permute.xlu0 %2167
    %2169 = vrot.lane.b32.xlu0 %v2155, 110
    %v2170 = vpop.permute.xlu0 %2169
    %v2171 = vsel %vm378, %v2162, %v2164
    %v2172 = vsel %vm378, %v2164, %v2166
    %v2173 = vsel %vm378, %v2166, %v2168
    %v2174 = vsel %vm378, %v2168, %v2170
    %2179 = vst [vmem:[#allocation3 + $0xe0] sm:$0x3f] %v2171
    %2180 = vst [vmem:[#allocation3 + $0xe8] sm:$0x3f] %v2172
    %2181 = vst [vmem:[#allocation3 + $0xf0] sm:$0x3f] %v2173
    %2182 = vst [vmem:[#allocation3 + $0xf8] sm:$0x3f] %v2174
    %v2183 = vld [vmem:[#allocation4] sm:$0x3f]
    %v2184 = vld [vmem:[#allocation4 + $0x8] sm:$0x3f]
    %v2185 = vld [vmem:[#allocation4 + $0x10] sm:$0x3f]
    %v2186 = vld [vmem:[#allocation4 + $0x18] sm:$0x3f]
    %v2187 = vld [vmem:[#allocation4 + $0x20] sm:$0x3f]
    %2193 = vrot.lane.b32.xlu0 %v2183, 109
    %v2194 = vpop.permute.xlu0 %2193
    %2195 = vrot.lane.b32.xlu0 %v2184, 109
    %v2196 = vpop.permute.xlu0 %2195
    %2197 = vrot.lane.b32.xlu0 %v2185, 109
    %v2198 = vpop.permute.xlu0 %2197
    %2199 = vrot.lane.b32.xlu0 %v2186, 109
    %v2200 = vpop.permute.xlu0 %2199
    %2201 = vrot.lane.b32.xlu0 %v2187, 109
    %v2202 = vpop.permute.xlu0 %2201
    %vm2203 = vcmask 891904
    %v2204 = vsel %vm2203, %v2194, %v2196
    %v2205 = vsel %vm2203, %v2196, %v2198
    %v2206 = vsel %vm2203, %v2198, %v2200
    %v2207 = vsel %vm2203, %v2200, %v2202
    %2212 = vst [vmem:[#allocation3 + $0x100] sm:$0x3f] %v2204
    %2213 = vst [vmem:[#allocation3 + $0x108] sm:$0x3f] %v2205
    %2214 = vst [vmem:[#allocation3 + $0x110] sm:$0x3f] %v2206
    %2215 = vst [vmem:[#allocation3 + $0x118] sm:$0x3f] %v2207
    %v2216 = vld [vmem:[#allocation4] sm:$0x3f]
    %v2217 = vld [vmem:[#allocation4 + $0x8] sm:$0x3f]
    %v2218 = vld [vmem:[#allocation4 + $0x10] sm:$0x3f]
    %v2219 = vld [vmem:[#allocation4 + $0x18] sm:$0x3f]
    %v2220 = vld [vmem:[#allocation4 + $0x20] sm:$0x3f]
    %2226 = vrot.lane.b32.xlu0 %v2216, 108
    %v2227 = vpop.permute.xlu0 %2226
    %2228 = vrot.lane.b32.xlu0 %v2217, 108
    %v2229 = vpop.permute.xlu0 %2228
    %2230 = vrot.lane.b32.xlu0 %v2218, 108
    %v2231 = vpop.permute.xlu0 %2230
    %2232 = vrot.lane.b32.xlu0 %v2219, 108
    %v2233 = vpop.permute.xlu0 %2232
    %2234 = vrot.lane.b32.xlu0 %v2220, 108
    %v2235 = vpop.permute.xlu0 %2234
    %vm2236 = vcmask 883712
    %v2237 = vsel %vm2236, %v2227, %v2229
    %v2238 = vsel %vm2236, %v2229, %v2231
    %v2239 = vsel %vm2236, %v2231, %v2233
    %v2240 = vsel %vm2236, %v2233, %v2235
    %2245 = vst [vmem:[#allocation3 + $0x120] sm:$0x3f] %v2237
    %2246 = vst [vmem:[#allocation3 + $0x128] sm:$0x3f] %v2238
    %2247 = vst [vmem:[#allocation3 + $0x130] sm:$0x3f] %v2239
    %2248 = vst [vmem:[#allocation3 + $0x138] sm:$0x3f] %v2240
    %v2249 = vld [vmem:[#allocation4] sm:$0x3f]
    %v2250 = vld [vmem:[#allocation4 + $0x8] sm:$0x3f]
    %v2251 = vld [vmem:[#allocation4 + $0x10] sm:$0x3f]
    %v2252 = vld [vmem:[#allocation4 + $0x18] sm:$0x3f]
    %v2253 = vld [vmem:[#allocation4 + $0x20] sm:$0x3f]
    %2259 = vrot.lane.b32.xlu0 %v2249, 96
    %v2260 = vpop.permute.xlu0 %2259
    %2261 = vrot.lane.b32.xlu0 %v2250, 96
    %v2262 = vpop.permute.xlu0 %2261
    %2263 = vrot.lane.b32.xlu0 %v2251, 96
    %v2264 = vpop.permute.xlu0 %2263
    %2265 = vrot.lane.b32.xlu0 %v2252, 96
    %v2266 = vpop.permute.xlu0 %2265
    %2267 = vrot.lane.b32.xlu0 %v2253, 96
    %v2268 = vpop.permute.xlu0 %2267
    %v2269 = vsel %vm409, %v2260, %v2262
    %v2270 = vsel %vm409, %v2262, %v2264
    %v2271 = vsel %vm409, %v2264, %v2266
    %v2272 = vsel %vm409, %v2266, %v2268
    %2277 = vst [vmem:[#allocation3 + $0x140] sm:$0x3f] %v2269
    %2278 = vst [vmem:[#allocation3 + $0x148] sm:$0x3f] %v2270
    %2279 = vst [vmem:[#allocation3 + $0x150] sm:$0x3f] %v2271
    %2280 = vst [vmem:[#allocation3 + $0x158] sm:$0x3f] %v2272
    %v2281 = vld [vmem:[#allocation4] sm:$0x3f]
    %v2282 = vld [vmem:[#allocation4 + $0x8] sm:$0x3f]
    %v2283 = vld [vmem:[#allocation4 + $0x10] sm:$0x3f]
    %v2284 = vld [vmem:[#allocation4 + $0x18] sm:$0x3f]
    %v2285 = vld [vmem:[#allocation4 + $0x20] sm:$0x3f]
    %2291 = vrot.lane.b32.xlu0 %v2281, 95
    %v2292 = vpop.permute.xlu0 %2291
    %2293 = vrot.lane.b32.xlu0 %v2282, 95
    %v2294 = vpop.permute.xlu0 %2293
    %2295 = vrot.lane.b32.xlu0 %v2283, 95
    %v2296 = vpop.permute.xlu0 %2295
    %2297 = vrot.lane.b32.xlu0 %v2284, 95
    %v2298 = vpop.permute.xlu0 %2297
    %2299 = vrot.lane.b32.xlu0 %v2285, 95
    %v2300 = vpop.permute.xlu0 %2299
    %v2301 = vsel %vm441, %v2292, %v2294
    %v2302 = vsel %vm441, %v2294, %v2296
    %v2303 = vsel %vm441, %v2296, %v2298
    %v2304 = vsel %vm441, %v2298, %v2300
    %2309 = vst [vmem:[#allocation3 + $0x160] sm:$0x3f] %v2301
    %2310 = vst [vmem:[#allocation3 + $0x168] sm:$0x3f] %v2302
    %2311 = vst [vmem:[#allocation3 + $0x170] sm:$0x3f] %v2303
    %2312 = vst [vmem:[#allocation3 + $0x178] sm:$0x3f] %v2304
    %v2313 = vld [vmem:[#allocation4] sm:$0x3f]
    %v2314 = vld [vmem:[#allocation4 + $0x8] sm:$0x3f]
    %v2315 = vld [vmem:[#allocation4 + $0x10] sm:$0x3f]
    %v2316 = vld [vmem:[#allocation4 + $0x18] sm:$0x3f]
    %v2317 = vld [vmem:[#allocation4 + $0x20] sm:$0x3f]
    %2323 = vrot.lane.b32.xlu0 %v2313, 94
    %v2324 = vpop.permute.xlu0 %2323
    %2325 = vrot.lane.b32.xlu0 %v2314, 94
    %v2326 = vpop.permute.xlu0 %2325
    %2327 = vrot.lane.b32.xlu0 %v2315, 94
    %v2328 = vpop.permute.xlu0 %2327
    %2329 = vrot.lane.b32.xlu0 %v2316, 94
    %v2330 = vpop.permute.xlu0 %2329
    %2331 = vrot.lane.b32.xlu0 %v2317, 94
    %v2332 = vpop.permute.xlu0 %2331
    %v2333 = vsel %vm472, %v2324, %v2326
    %v2334 = vsel %vm472, %v2326, %v2328
    %v2335 = vsel %vm472, %v2328, %v2330
    %v2336 = vsel %vm472, %v2330, %v2332
    %2341 = vst [vmem:[#allocation3 + $0x180] sm:$0x3f] %v2333
    %2342 = vst [vmem:[#allocation3 + $0x188] sm:$0x3f] %v2334
    %2343 = vst [vmem:[#allocation3 + $0x190] sm:$0x3f] %v2335
    %2344 = vst [vmem:[#allocation3 + $0x198] sm:$0x3f] %v2336
    %v2345 = vld [vmem:[#allocation4] sm:$0x3f]
    %v2346 = vld [vmem:[#allocation4 + $0x8] sm:$0x3f]
    %v2347 = vld [vmem:[#allocation4 + $0x10] sm:$0x3f]
    %v2348 = vld [vmem:[#allocation4 + $0x18] sm:$0x3f]
    %v2349 = vld [vmem:[#allocation4 + $0x20] sm:$0x3f]
    %2355 = vrot.lane.b32.xlu0 %v2345, 93
    %v2356 = vpop.permute.xlu0 %2355
    %2357 = vrot.lane.b32.xlu0 %v2346, 93
    %v2358 = vpop.permute.xlu0 %2357
    %2359 = vrot.lane.b32.xlu0 %v2347, 93
    %v2360 = vpop.permute.xlu0 %2359
    %2361 = vrot.lane.b32.xlu0 %v2348, 93
    %v2362 = vpop.permute.xlu0 %2361
    %2363 = vrot.lane.b32.xlu0 %v2349, 93
    %v2364 = vpop.permute.xlu0 %2363
    %vm2365 = vcmask 760832
    %v2366 = vsel %vm2365, %v2356, %v2358
    %v2367 = vsel %vm2365, %v2358, %v2360
    %v2368 = vsel %vm2365, %v2360, %v2362
    %v2369 = vsel %vm2365, %v2362, %v2364
    %2374 = vst [vmem:[#allocation3 + $0x1a0] sm:$0x3f] %v2366
    %2375 = vst [vmem:[#allocation3 + $0x1a8] sm:$0x3f] %v2367
    %2376 = vst [vmem:[#allocation3 + $0x1b0] sm:$0x3f] %v2368
    %2377 = vst [vmem:[#allocation3 + $0x1b8] sm:$0x3f] %v2369
    %v2378 = vld [vmem:[#allocation4] sm:$0x3f]
    %v2379 = vld [vmem:[#allocation4 + $0x8] sm:$0x3f]
    %v2380 = vld [vmem:[#allocation4 + $0x10] sm:$0x3f]
    %v2381 = vld [vmem:[#allocation4 + $0x18] sm:$0x3f]
    %v2382 = vld [vmem:[#allocation4 + $0x20] sm:$0x3f]
    %2388 = vrot.lane.b32.xlu0 %v2378, 92
    %v2389 = vpop.permute.xlu0 %2388
    %2390 = vrot.lane.b32.xlu0 %v2379, 92
    %v2391 = vpop.permute.xlu0 %2390
    %2392 = vrot.lane.b32.xlu0 %v2380, 92
    %v2393 = vpop.permute.xlu0 %2392
    %2394 = vrot.lane.b32.xlu0 %v2381, 92
    %v2395 = vpop.permute.xlu0 %2394
    %2396 = vrot.lane.b32.xlu0 %v2382, 92
    %v2397 = vpop.permute.xlu0 %2396
    %vm2398 = vcmask 752640
    %v2399 = vsel %vm2398, %v2389, %v2391
    %v2400 = vsel %vm2398, %v2391, %v2393
    %v2401 = vsel %vm2398, %v2393, %v2395
    %v2402 = vsel %vm2398, %v2395, %v2397
    %2407 = vst [vmem:[#allocation3 + $0x1c0] sm:$0x3f] %v2399
    %2408 = vst [vmem:[#allocation3 + $0x1c8] sm:$0x3f] %v2400
    %2409 = vst [vmem:[#allocation3 + $0x1d0] sm:$0x3f] %v2401
    %2410 = vst [vmem:[#allocation3 + $0x1d8] sm:$0x3f] %v2402
    %v2411 = vld [vmem:[#allocation4] sm:$0x3f]
    %v2412 = vld [vmem:[#allocation4 + $0x8] sm:$0x3f]
    %v2413 = vld [vmem:[#allocation4 + $0x10] sm:$0x3f]
    %v2414 = vld [vmem:[#allocation4 + $0x18] sm:$0x3f]
    %v2415 = vld [vmem:[#allocation4 + $0x20] sm:$0x3f]
    %2421 = vrot.lane.b32.xlu0 %v2411, 80
    %v2422 = vpop.permute.xlu0 %2421
    %2423 = vrot.lane.b32.xlu0 %v2412, 80
    %v2424 = vpop.permute.xlu0 %2423
    %2425 = vrot.lane.b32.xlu0 %v2413, 80
    %v2426 = vpop.permute.xlu0 %2425
    %2427 = vrot.lane.b32.xlu0 %v2414, 80
    %v2428 = vpop.permute.xlu0 %2427
    %2429 = vrot.lane.b32.xlu0 %v2415, 80
    %v2430 = vpop.permute.xlu0 %2429
    %vm2431 = vcmask 654336
    %v2432 = vsel %vm2431, %v2422, %v2424
    %v2433 = vsel %vm2431, %v2424, %v2426
    %v2434 = vsel %vm2431, %v2426, %v2428
    %v2435 = vsel %vm2431, %v2428, %v2430
    %2440 = vst [vmem:[#allocation3 + $0x1e0] sm:$0x3f] %v2432
    %2441 = vst [vmem:[#allocation3 + $0x1e8] sm:$0x3f] %v2433
    %2442 = vst [vmem:[#allocation3 + $0x1f0] sm:$0x3f] %v2434
    %2443 = vst [vmem:[#allocation3 + $0x1f8] sm:$0x3f] %v2435
    %v2444 = vld [vmem:[#allocation4] sm:$0x3f]
    %v2445 = vld [vmem:[#allocation4 + $0x8] sm:$0x3f]
    %v2446 = vld [vmem:[#allocation4 + $0x10] sm:$0x3f]
    %v2447 = vld [vmem:[#allocation4 + $0x18] sm:$0x3f]
    %v2448 = vld [vmem:[#allocation4 + $0x20] sm:$0x3f]
    %2454 = vrot.lane.b32.xlu0 %v2444, 79
    %v2455 = vpop.permute.xlu0 %2454
    %2456 = vrot.lane.b32.xlu0 %v2445, 79
    %v2457 = vpop.permute.xlu0 %2456
    %2458 = vrot.lane.b32.xlu0 %v2446, 79
    %v2459 = vpop.permute.xlu0 %2458
    %2460 = vrot.lane.b32.xlu0 %v2447, 79
    %v2461 = vpop.permute.xlu0 %2460
    %2462 = vrot.lane.b32.xlu0 %v2448, 79
    %v2463 = vpop.permute.xlu0 %2462
    %vm2464 = vcmask 646144
    %v2465 = vsel %vm2464, %v2455, %v2457
    %v2466 = vsel %vm2464, %v2457, %v2459
    %v2467 = vsel %vm2464, %v2459, %v2461
    %v2468 = vsel %vm2464, %v2461, %v2463
    %2473 = vst [vmem:[#allocation3 + $0x200] sm:$0x3f] %v2465
    %2474 = vst [vmem:[#allocation3 + $0x208] sm:$0x3f] %v2466
    %2475 = vst [vmem:[#allocation3 + $0x210] sm:$0x3f] %v2467
    %2476 = vst [vmem:[#allocation3 + $0x218] sm:$0x3f] %v2468
    %v2477 = vld [vmem:[#allocation4] sm:$0x3f]
    %v2478 = vld [vmem:[#allocation4 + $0x8] sm:$0x3f]
    %v2479 = vld [vmem:[#allocation4 + $0x10] sm:$0x3f]
    %v2480 = vld [vmem:[#allocation4 + $0x18] sm:$0x3f]
    %v2481 = vld [vmem:[#allocation4 + $0x20] sm:$0x3f]
    %2487 = vrot.lane.b32.xlu0 %v2477, 78
    %v2488 = vpop.permute.xlu0 %2487
    %2489 = vrot.lane.b32.xlu0 %v2478, 78
    %v2490 = vpop.permute.xlu0 %2489
    %2491 = vrot.lane.b32.xlu0 %v2479, 78
    %v2492 = vpop.permute.xlu0 %2491
    %2493 = vrot.lane.b32.xlu0 %v2480, 78
    %v2494 = vpop.permute.xlu0 %2493
    %2495 = vrot.lane.b32.xlu0 %v2481, 78
    %v2496 = vpop.permute.xlu0 %2495
    %vm2497 = vcmask 637952
    %v2498 = vsel %vm2497, %v2488, %v2490
    %v2499 = vsel %vm2497, %v2490, %v2492
    %v2500 = vsel %vm2497, %v2492, %v2494
    %v2501 = vsel %vm2497, %v2494, %v2496
    %2506 = vst [vmem:[#allocation3 + $0x220] sm:$0x3f] %v2498
    %2507 = vst [vmem:[#allocation3 + $0x228] sm:$0x3f] %v2499
    %2508 = vst [vmem:[#allocation3 + $0x230] sm:$0x3f] %v2500
    %2509 = vst [vmem:[#allocation3 + $0x238] sm:$0x3f] %v2501
    %v2510 = vld [vmem:[#allocation4] sm:$0x3f]
    %v2511 = vld [vmem:[#allocation4 + $0x8] sm:$0x3f]
    %v2512 = vld [vmem:[#allocation4 + $0x10] sm:$0x3f]
    %v2513 = vld [vmem:[#allocation4 + $0x18] sm:$0x3f]
    %v2514 = vld [vmem:[#allocation4 + $0x20] sm:$0x3f]
    %2520 = vrot.lane.b32.xlu0 %v2510, 77
    %v2521 = vpop.permute.xlu0 %2520
    %2522 = vrot.lane.b32.xlu0 %v2511, 77
    %v2523 = vpop.permute.xlu0 %2522
    %2524 = vrot.lane.b32.xlu0 %v2512, 77
    %v2525 = vpop.permute.xlu0 %2524
    %2526 = vrot.lane.b32.xlu0 %v2513, 77
    %v2527 = vpop.permute.xlu0 %2526
    %2528 = vrot.lane.b32.xlu0 %v2514, 77
    %v2529 = vpop.permute.xlu0 %2528
    %vm2530 = vcmask 629760
    %v2531 = vsel %vm2530, %v2521, %v2523
    %v2532 = vsel %vm2530, %v2523, %v2525
    %v2533 = vsel %vm2530, %v2525, %v2527
    %v2534 = vsel %vm2530, %v2527, %v2529
    %2539 = vst [vmem:[#allocation3 + $0x240] sm:$0x3f] %v2531
    %2540 = vst [vmem:[#allocation3 + $0x248] sm:$0x3f] %v2532
    %2541 = vst [vmem:[#allocation3 + $0x250] sm:$0x3f] %v2533
    %2542 = vst [vmem:[#allocation3 + $0x258] sm:$0x3f] %v2534
    %v2543 = vld [vmem:[#allocation4] sm:$0x3f]
    %v2544 = vld [vmem:[#allocation4 + $0x8] sm:$0x3f]
    %v2545 = vld [vmem:[#allocation4 + $0x10] sm:$0x3f]
    %v2546 = vld [vmem:[#allocation4 + $0x18] sm:$0x3f]
    %v2547 = vld [vmem:[#allocation4 + $0x20] sm:$0x3f]
    %2553 = vrot.lane.b32.xlu0 %v2543, 76
    %v2554 = vpop.permute.xlu0 %2553
    %2555 = vrot.lane.b32.xlu0 %v2544, 76
    %v2556 = vpop.permute.xlu0 %2555
    %2557 = vrot.lane.b32.xlu0 %v2545, 76
    %v2558 = vpop.permute.xlu0 %2557
    %2559 = vrot.lane.b32.xlu0 %v2546, 76
    %v2560 = vpop.permute.xlu0 %2559
    %2561 = vrot.lane.b32.xlu0 %v2547, 76
    %v2562 = vpop.permute.xlu0 %2561
    %vm2563 = vcmask 621568
    %v2564 = vsel %vm2563, %v2554, %v2556
    %v2565 = vsel %vm2563, %v2556, %v2558
    %v2566 = vsel %vm2563, %v2558, %v2560
    %v2567 = vsel %vm2563, %v2560, %v2562
    %2572 = vst [vmem:[#allocation3 + $0x260] sm:$0x3f] %v2564
    %2573 = vst [vmem:[#allocation3 + $0x268] sm:$0x3f] %v2565
    %2574 = vst [vmem:[#allocation3 + $0x270] sm:$0x3f] %v2566
    %2575 = vst [vmem:[#allocation3 + $0x278] sm:$0x3f] %v2567
    %v2576 = vld [vmem:[#allocation4] sm:$0x3f]
    %v2577 = vld [vmem:[#allocation4 + $0x8] sm:$0x3f]
    %v2578 = vld [vmem:[#allocation4 + $0x10] sm:$0x3f]
    %v2579 = vld [vmem:[#allocation4 + $0x18] sm:$0x3f]
    %v2580 = vld [vmem:[#allocation4 + $0x20] sm:$0x3f]
    %2586 = vrot.lane.b32.xlu0 %v2576, 64
    %v2587 = vpop.permute.xlu0 %2586
    %2588 = vrot.lane.b32.xlu0 %v2577, 64
    %v2589 = vpop.permute.xlu0 %2588
    %2590 = vrot.lane.b32.xlu0 %v2578, 64
    %v2591 = vpop.permute.xlu0 %2590
    %2592 = vrot.lane.b32.xlu0 %v2579, 64
    %v2593 = vpop.permute.xlu0 %2592
    %2594 = vrot.lane.b32.xlu0 %v2580, 64
    %v2595 = vpop.permute.xlu0 %2594
    %vm2596 = vcmask 523264
    %v2597 = vsel %vm2596, %v2587, %v2589
    %v2598 = vsel %vm2596, %v2589, %v2591
    %v2599 = vsel %vm2596, %v2591, %v2593
    %v2600 = vsel %vm2596, %v2593, %v2595
    %2605 = vst [vmem:[#allocation3 + $0x280] sm:$0x3f] %v2597
    %2606 = vst [vmem:[#allocation3 + $0x288] sm:$0x3f] %v2598
    %2607 = vst [vmem:[#allocation3 + $0x290] sm:$0x3f] %v2599
    %2608 = vst [vmem:[#allocation3 + $0x298] sm:$0x3f] %v2600
    %v2609 = vld [vmem:[#allocation4] sm:$0x3f]
    %v2610 = vld [vmem:[#allocation4 + $0x8] sm:$0x3f]
    %v2611 = vld [vmem:[#allocation4 + $0x10] sm:$0x3f]
    %v2612 = vld [vmem:[#allocation4 + $0x18] sm:$0x3f]
    %v2613 = vld [vmem:[#allocation4 + $0x20] sm:$0x3f]
    %2619 = vrot.lane.b32.xlu0 %v2609, 63
    %v2620 = vpop.permute.xlu0 %2619
    %2621 = vrot.lane.b32.xlu0 %v2610, 63
    %v2622 = vpop.permute.xlu0 %2621
    %2623 = vrot.lane.b32.xlu0 %v2611, 63
    %v2624 = vpop.permute.xlu0 %2623
    %2625 = vrot.lane.b32.xlu0 %v2612, 63
    %v2626 = vpop.permute.xlu0 %2625
    %2627 = vrot.lane.b32.xlu0 %v2613, 63
    %v2628 = vpop.permute.xlu0 %2627
    %vm2629 = vcmask 515072
    %v2630 = vsel %vm2629, %v2620, %v2622
    %v2631 = vsel %vm2629, %v2622, %v2624
    %v2632 = vsel %vm2629, %v2624, %v2626
    %v2633 = vsel %vm2629, %v2626, %v2628
    %2638 = vst [vmem:[#allocation3 + $0x2a0] sm:$0x3f] %v2630
    %2639 = vst [vmem:[#allocation3 + $0x2a8] sm:$0x3f] %v2631
    %2640 = vst [vmem:[#allocation3 + $0x2b0] sm:$0x3f] %v2632
    %2641 = vst [vmem:[#allocation3 + $0x2b8] sm:$0x3f] %v2633
    %v2642 = vld [vmem:[#allocation4] sm:$0x3f]
    %v2643 = vld [vmem:[#allocation4 + $0x8] sm:$0x3f]
    %v2644 = vld [vmem:[#allocation4 + $0x10] sm:$0x3f]
    %v2645 = vld [vmem:[#allocation4 + $0x18] sm:$0x3f]
    %v2646 = vld [vmem:[#allocation4 + $0x20] sm:$0x3f]
    %2652 = vrot.lane.b32.xlu0 %v2642, 62
    %v2653 = vpop.permute.xlu0 %2652
    %2654 = vrot.lane.b32.xlu0 %v2643, 62
    %v2655 = vpop.permute.xlu0 %2654
    %2656 = vrot.lane.b32.xlu0 %v2644, 62
    %v2657 = vpop.permute.xlu0 %2656
    %2658 = vrot.lane.b32.xlu0 %v2645, 62
    %v2659 = vpop.permute.xlu0 %2658
    %2660 = vrot.lane.b32.xlu0 %v2646, 62
    %v2661 = vpop.permute.xlu0 %2660
    %vm2662 = vcmask 506880
    %v2663 = vsel %vm2662, %v2653, %v2655
    %v2664 = vsel %vm2662, %v2655, %v2657
    %v2665 = vsel %vm2662, %v2657, %v2659
    %v2666 = vsel %vm2662, %v2659, %v2661
    %2671 = vst [vmem:[#allocation3 + $0x2c0] sm:$0x3f] %v2663
    %2672 = vst [vmem:[#allocation3 + $0x2c8] sm:$0x3f] %v2664
    %2673 = vst [vmem:[#allocation3 + $0x2d0] sm:$0x3f] %v2665
    %2674 = vst [vmem:[#allocation3 + $0x2d8] sm:$0x3f] %v2666
    %v2675 = vld [vmem:[#allocation4] sm:$0x3f]
    %v2676 = vld [vmem:[#allocation4 + $0x8] sm:$0x3f]
    %v2677 = vld [vmem:[#allocation4 + $0x10] sm:$0x3f]
    %v2678 = vld [vmem:[#allocation4 + $0x18] sm:$0x3f]
    %v2679 = vld [vmem:[#allocation4 + $0x20] sm:$0x3f]
    %2685 = vrot.lane.b32.xlu0 %v2675, 61
    %v2686 = vpop.permute.xlu0 %2685
    %2687 = vrot.lane.b32.xlu0 %v2676, 61
    %v2688 = vpop.permute.xlu0 %2687
    %2689 = vrot.lane.b32.xlu0 %v2677, 61
    %v2690 = vpop.permute.xlu0 %2689
    %2691 = vrot.lane.b32.xlu0 %v2678, 61
    %v2692 = vpop.permute.xlu0 %2691
    %2693 = vrot.lane.b32.xlu0 %v2679, 61
    %v2694 = vpop.permute.xlu0 %2693
    %vm2695 = vcmask 498688
    %v2696 = vsel %vm2695, %v2686, %v2688
    %v2697 = vsel %vm2695, %v2688, %v2690
    %v2698 = vsel %vm2695, %v2690, %v2692
    %v2699 = vsel %vm2695, %v2692, %v2694
    %2704 = vst [vmem:[#allocation3 + $0x2e0] sm:$0x3f] %v2696
    %2705 = vst [vmem:[#allocation3 + $0x2e8] sm:$0x3f] %v2697
    %2706 = vst [vmem:[#allocation3 + $0x2f0] sm:$0x3f] %v2698
    %2707 = vst [vmem:[#allocation3 + $0x2f8] sm:$0x3f] %v2699
    %v2708 = vld [vmem:[#allocation4] sm:$0x3f]
    %v2709 = vld [vmem:[#allocation4 + $0x8] sm:$0x3f]
    %v2710 = vld [vmem:[#allocation4 + $0x10] sm:$0x3f]
    %v2711 = vld [vmem:[#allocation4 + $0x18] sm:$0x3f]
    %v2712 = vld [vmem:[#allocation4 + $0x20] sm:$0x3f]
    %2718 = vrot.lane.b32.xlu0 %v2708, 60
    %v2719 = vpop.permute.xlu0 %2718
    %2720 = vrot.lane.b32.xlu0 %v2709, 60
    %v2721 = vpop.permute.xlu0 %2720
    %2722 = vrot.lane.b32.xlu0 %v2710, 60
    %v2723 = vpop.permute.xlu0 %2722
    %2724 = vrot.lane.b32.xlu0 %v2711, 60
    %v2725 = vpop.permute.xlu0 %2724
    %2726 = vrot.lane.b32.xlu0 %v2712, 60
    %v2727 = vpop.permute.xlu0 %2726
    %vm2728 = vcmask 490496
    %v2729 = vsel %vm2728, %v2719, %v2721
    %v2730 = vsel %vm2728, %v2721, %v2723
    %v2731 = vsel %vm2728, %v2723, %v2725
    %v2732 = vsel %vm2728, %v2725, %v2727
    %2737 = vst [vmem:[#allocation3 + $0x300] sm:$0x3f] %v2729
    %2738 = vst [vmem:[#allocation3 + $0x308] sm:$0x3f] %v2730
    %2739 = vst [vmem:[#allocation3 + $0x310] sm:$0x3f] %v2731
    %2740 = vst [vmem:[#allocation3 + $0x318] sm:$0x3f] %v2732
    %v2741 = vld [vmem:[%s3] sm:$0xff]
    %v2742 = vld [vmem:[%s3 + $0x8] sm:$0xff]
    %v2743 = vld [vmem:[%s3 + $0x10] sm:$0xff]
    %v2744 = vld [vmem:[%s3 + $0x18] sm:$0xff]
    %v2745 = vld [vmem:[#allocation3] sm:$0xff]
    %v2746 = vld [vmem:[#allocation3 + $0x8] sm:$0xff]
    %v2747 = vld [vmem:[#allocation3 + $0x20] sm:$0xff]
    %v2748 = vld [vmem:[#allocation3 + $0x28] sm:$0xff]
    %v2749 = vld [vmem:[#allocation3 + $0x40] sm:$0xff]
    %v2750 = vld [vmem:[#allocation3 + $0x48] sm:$0xff]
    %v2751 = vld [vmem:[#allocation3 + $0x60] sm:$0xff]
    %v2752 = vld [vmem:[#allocation3 + $0x68] sm:$0xff]
    %v2753 = vld [vmem:[#allocation3 + $0x80] sm:$0xff]
    %v2754 = vld [vmem:[#allocation3 + $0x88] sm:$0xff]
    %v2755 = vld [vmem:[#allocation3 + $0xa0] sm:$0xff]
    %v2756 = vld [vmem:[#allocation3 + $0xa8] sm:$0xff]
    %v2757 = vld [vmem:[#allocation3 + $0xc0] sm:$0xff]
    %v2758 = vld [vmem:[#allocation3 + $0xc8] sm:$0xff]
    %v2759 = vld [vmem:[#allocation3 + $0xe0] sm:$0xff]
    %v2760 = vld [vmem:[#allocation3 + $0xe8] sm:$0xff]
    %v2761 = vld [vmem:[#allocation3 + $0x100] sm:$0xff]
    %v2762 = vld [vmem:[#allocation3 + $0x108] sm:$0xff]
    %v2763 = vld [vmem:[#allocation3 + $0x120] sm:$0xff]
    %v2764 = vld [vmem:[#allocation3 + $0x128] sm:$0xff]
    %v2765 = vld [vmem:[#allocation3 + $0x140] sm:$0xff]
    %v2766 = vld [vmem:[#allocation3 + $0x148] sm:$0xff]
    %v2767 = vld [vmem:[#allocation3 + $0x160] sm:$0xff]
    %v2768 = vld [vmem:[#allocation3 + $0x168] sm:$0xff]
    %v2769 = vld [vmem:[#allocation3 + $0x180] sm:$0xff]
    %v2770 = vld [vmem:[#allocation3 + $0x188] sm:$0xff]
    %v2771 = vld [vmem:[#allocation3 + $0x1a0] sm:$0xff]
    %v2772 = vld [vmem:[#allocation3 + $0x1a8] sm:$0xff]
    %v2773 = vld [vmem:[#allocation3 + $0x1c0] sm:$0xff]
    %v2774 = vld [vmem:[#allocation3 + $0x1c8] sm:$0xff]
    %v2775 = vld [vmem:[#allocation3 + $0x1e0] sm:$0xff]
    %v2776 = vld [vmem:[#allocation3 + $0x1e8] sm:$0xff]
    %v2777 = vld [vmem:[#allocation3 + $0x200] sm:$0xff]
    %v2778 = vld [vmem:[#allocation3 + $0x208] sm:$0xff]
    %v2779 = vld [vmem:[#allocation3 + $0x220] sm:$0xff]
    %v2780 = vld [vmem:[#allocation3 + $0x228] sm:$0xff]
    %v2781 = vld [vmem:[#allocation3 + $0x240] sm:$0xff]
    %v2782 = vld [vmem:[#allocation3 + $0x248] sm:$0xff]
    %v2783 = vld [vmem:[#allocation3 + $0x260] sm:$0xff]
    %v2784 = vld [vmem:[#allocation3 + $0x268] sm:$0xff]
    %v2785 = vld [vmem:[#allocation3 + $0x280] sm:$0xff]
    %v2786 = vld [vmem:[#allocation3 + $0x288] sm:$0xff]
    %v2787 = vld [vmem:[#allocation3 + $0x2a0] sm:$0xff]
    %v2788 = vld [vmem:[#allocation3 + $0x2a8] sm:$0xff]
    %v2789 = vld [vmem:[#allocation3 + $0x2c0] sm:$0xff]
    %v2790 = vld [vmem:[#allocation3 + $0x2c8] sm:$0xff]
    %v2791 = vld [vmem:[#allocation3 + $0x2e0] sm:$0xff]
    %v2792 = vld [vmem:[#allocation3 + $0x2e8] sm:$0xff]
    %v2793 = vld [vmem:[#allocation3 + $0x300] sm:$0xff]
    %v2794 = vld [vmem:[#allocation3 + $0x308] sm:$0xff]
    %vm2795 = vcmask 588800
    %v2797 = vsel %vm2795, %v2742, 0
    %v2800 = vsel %vm2795, %v2744, 0
    %2802 = vmatprep.subr.mxu0 %v2776
    %2803 = vmatpush1.msra.mxu0 %v2775
    %2804 = vmatprep.subr.mxu0 %v2774
    %2805 = vmatpush1.msra.mxu0 %v2773
    %2806 = vmatprep.subr.mxu0 %v2772
    %2807 = vmatpush1.msra.mxu0 %v2771
    %2808 = vmatprep.subr.mxu0 %v2770
    %2809 = vmatpush1.msra.mxu0 %v2769
    %2810 = vmatprep.subr.mxu0 %v2768
    %2811 = vmatpush1.msra.mxu0 %v2767
    %2812 = vmatprep.subr.mxu0 %v2766
    %2813 = vmatpush1.msra.mxu0 %v2765
    %2814 = vmatprep.subr.mxu0 %v2764
    %2815 = vmatpush1.msra.mxu0 %v2763
    %2816 = vmatprep.subr.mxu0 %v2762
    %2817 = vmatpush1.msra.mxu0 %v2761
    %2818 = vmatprep.subr.mxu0 %v2760
    %2819 = vmatpush1.msra.mxu0 %v2759
    %2820 = vmatprep.subr.mxu0 %v2758
    %2821 = vmatpush1.msra.mxu0 %v2757
    %2822 = vmatprep.subr.mxu0 %v2756
    %2823 = vmatpush1.msra.mxu0 %v2755
    %2824 = vmatprep.subr.mxu0 %v2754
    %2825 = vmatpush1.msra.mxu0 %v2753
    %2826 = vmatprep.subr.mxu0 %v2752
    %2827 = vmatpush1.msra.mxu0 %v2751
    %2828 = vmatprep.subr.mxu0 %v2750
    %2829 = vmatpush1.msra.mxu0 %v2749
    %2830 = vmatprep.subr.mxu0 %v2748
    %2831 = vmatpush1.msra.mxu0 %v2747
    %2832 = vmatprep.subr.mxu0 %v2746
    %2833 = vmatpush1.msra.mxu0 %v2745
    %2834 = vmatprep.subr.mxu0 0.0
    %2835 = vmatpush2.msra.mxu0 0.0
    %2836 = vmatprep.subr.mxu0 0.0
    %2837 = vmatpush2.msra.mxu0 0.0
    %2838 = vmatprep.subr.mxu0 0.0
    %2839 = vmatpush2.msra.mxu0 0.0
    %2840 = vmatprep.subr.mxu0 0.0
    %2841 = vmatpush2.msra.mxu0 0.0
    %2842 = vmatprep.subr.mxu0 0.0
    %2843 = vmatpush2.msra.mxu0 0.0
    %2844 = vmatprep.subr.mxu0 0.0
    %2845 = vmatpush2.msra.mxu0 0.0
    %2846 = vmatprep.subr.mxu0 0.0
    %2847 = vmatpush2.msra.mxu0 0.0
    %2848 = vmatprep.subr.mxu0 %v2794
    %2849 = vmatpush2.msra.mxu0 %v2793
    %2850 = vmatprep.subr.mxu0 %v2792
    %2851 = vmatpush2.msra.mxu0 %v2791
    %2852 = vmatprep.subr.mxu0 %v2790
    %2853 = vmatpush2.msra.mxu0 %v2789
    %2854 = vmatprep.subr.mxu0 %v2788
    %2855 = vmatpush2.msra.mxu0 %v2787
    %2856 = vmatprep.subr.mxu0 %v2786
    %2857 = vmatpush2.msra.mxu0 %v2785
    %2858 = vmatprep.subr.mxu0 %v2784
    %2859 = vmatpush2.msra.mxu0 %v2783
    %2860 = vmatprep.subr.mxu0 %v2782
    %2861 = vmatpush2.msra.mxu0 %v2781
    %2862 = vmatprep.subr.mxu0 %v2780
    %2863 = vmatpush2.msra.mxu0 %v2779
    %2864 = vmatprep.subr.mxu0 %v2778
    %2865 = vmatpush2.msra.mxu0 %v2777
    %2866 = vmatprep.mubr.f32.mxu0 %v2797
    %2867 = vmatmul.mubr.f32.gmra.mxu0 %v2741
    %v2868 = vpop.f32.mrf.mxu0
    %v2869 = vadd.f32 0.0, %v2868
    %v2870 = vpop.f32.mrf.mxu0
    %v2871 = vadd.f32 0.0, %v2870
    %2872 = vmatprep.mubr.f32.mxu0 %v2800
    %2873 = vmatmul.mubr.f32.gmra.mxu0 %v2743
    %v2874 = vpop.f32.mrf.mxu0
    %v2875 = vadd.f32 0.0, %v2874
    %v2876 = vpop.f32.mrf.mxu0
    %v2877 = vadd.f32 0.0, %v2876
    %2878 = vdwg.mxu0
    %2879 = vst [vmem:[#allocation5] sm:$0xff] %v2869
    %2880 = vst [vmem:[#allocation5 + $0x8] sm:$0xff] %v2871
    %2881 = vst [vmem:[#allocation5 + $0x28] sm:$0xff] %v2875
    %2882 = vst [vmem:[#allocation5 + $0x30] sm:$0xff] %v2877
    %v2883 = vld [vmem:[#allocation3 + $0x10] sm:$0xff]
    %v2884 = vld [vmem:[#allocation3 + $0x18] sm:$0xff]
    %v2885 = vld [vmem:[#allocation3 + $0x30] sm:$0xff]
    %v2886 = vld [vmem:[#allocation3 + $0x38] sm:$0xff]
    %v2887 = vld [vmem:[#allocation3 + $0x50] sm:$0xff]
    %v2888 = vld [vmem:[#allocation3 + $0x58] sm:$0xff]
    %v2889 = vld [vmem:[#allocation3 + $0x70] sm:$0xff]
    %v2890 = vld [vmem:[#allocation3 + $0x78] sm:$0xff]
    %v2891 = vld [vmem:[#allocation3 + $0x90] sm:$0xff]
    %v2892 = vld [vmem:[#allocation3 + $0x98] sm:$0xff]
    %v2893 = vld [vmem:[#allocation3 + $0xb0] sm:$0xff]
    %v2894 = vld [vmem:[#allocation3 + $0xb8] sm:$0xff]
    %v2895 = vld [vmem:[#allocation3 + $0xd0] sm:$0xff]
    %v2896 = vld [vmem:[#allocation3 + $0xd8] sm:$0xff]
    %v2897 = vld [vmem:[#allocation3 + $0xf0] sm:$0xff]
    %v2898 = vld [vmem:[#allocation3 + $0xf8] sm:$0xff]
    %v2899 = vld [vmem:[#allocation3 + $0x110] sm:$0xff]
    %v2900 = vld [vmem:[#allocation3 + $0x118] sm:$0xff]
    %v2901 = vld [vmem:[#allocation3 + $0x130] sm:$0xff]
    %v2902 = vld [vmem:[#allocation3 + $0x138] sm:$0xff]
    %v2903 = vld [vmem:[#allocation3 + $0x150] sm:$0xff]
    %v2904 = vld [vmem:[#allocation3 + $0x158] sm:$0xff]
    %v2905 = vld [vmem:[#allocation3 + $0x170] sm:$0xff]
    %v2906 = vld [vmem:[#allocation3 + $0x178] sm:$0xff]
    %v2907 = vld [vmem:[#allocation3 + $0x190] sm:$0xff]
    %v2908 = vld [vmem:[#allocation3 + $0x198] sm:$0xff]
    %v2909 = vld [vmem:[#allocation3 + $0x1b0] sm:$0xff]
    %v2910 = vld [vmem:[#allocation3 + $0x1b8] sm:$0xff]
    %v2911 = vld [vmem:[#allocation3 + $0x1d0] sm:$0xff]
    %v2912 = vld [vmem:[#allocation3 + $0x1d8] sm:$0xff]
    %v2913 = vld [vmem:[#allocation3 + $0x1f0] sm:$0xff]
    %v2914 = vld [vmem:[#allocation3 + $0x1f8] sm:$0xff]
    %v2915 = vld [vmem:[#allocation3 + $0x210] sm:$0xff]
    %v2916 = vld [vmem:[#allocation3 + $0x218] sm:$0xff]
    %v2917 = vld [vmem:[#allocation3 + $0x230] sm:$0xff]
    %v2918 = vld [vmem:[#allocation3 + $0x238] sm:$0xff]
    %v2919 = vld [vmem:[#allocation3 + $0x250] sm:$0xff]
    %v2920 = vld [vmem:[#allocation3 + $0x258] sm:$0xff]
    %v2921 = vld [vmem:[#allocation3 + $0x270] sm:$0xff]
    %v2922 = vld [vmem:[#allocation3 + $0x278] sm:$0xff]
    %v2923 = vld [vmem:[#allocation3 + $0x290] sm:$0xff]
    %v2924 = vld [vmem:[#allocation3 + $0x298] sm:$0xff]
    %v2925 = vld [vmem:[#allocation3 + $0x2b0] sm:$0xff]
    %v2926 = vld [vmem:[#allocation3 + $0x2b8] sm:$0xff]
    %v2927 = vld [vmem:[#allocation3 + $0x2d0] sm:$0xff]
    %v2928 = vld [vmem:[#allocation3 + $0x2d8] sm:$0xff]
    %v2929 = vld [vmem:[#allocation3 + $0x2f0] sm:$0xff]
    %v2930 = vld [vmem:[#allocation3 + $0x2f8] sm:$0xff]
    %v2931 = vld [vmem:[#allocation3 + $0x310] sm:$0xff]
    %v2932 = vld [vmem:[#allocation3 + $0x318] sm:$0xff]
    %2933 = vmatprep.subr.mxu0 %v2914
    %2934 = vmatpush1.msra.mxu0 %v2913
    %2935 = vmatprep.subr.mxu0 %v2912
    %2936 = vmatpush1.msra.mxu0 %v2911
    %2937 = vmatprep.subr.mxu0 %v2910
    %2938 = vmatpush1.msra.mxu0 %v2909
    %2939 = vmatprep.subr.mxu0 %v2908
    %2940 = vmatpush1.msra.mxu0 %v2907
    %2941 = vmatprep.subr.mxu0 %v2906
    %2942 = vmatpush1.msra.mxu0 %v2905
    %2943 = vmatprep.subr.mxu0 %v2904
    %2944 = vmatpush1.msra.mxu0 %v2903
    %2945 = vmatprep.subr.mxu0 %v2902
    %2946 = vmatpush1.msra.mxu0 %v2901
    %2947 = vmatprep.subr.mxu0 %v2900
    %2948 = vmatpush1.msra.mxu0 %v2899
    %2949 = vmatprep.subr.mxu0 %v2898
    %2950 = vmatpush1.msra.mxu0 %v2897
    %2951 = vmatprep.subr.mxu0 %v2896
    %2952 = vmatpush1.msra.mxu0 %v2895
    %2953 = vmatprep.subr.mxu0 %v2894
    %2954 = vmatpush1.msra.mxu0 %v2893
    %2955 = vmatprep.subr.mxu0 %v2892
    %2956 = vmatpush1.msra.mxu0 %v2891
    %2957 = vmatprep.subr.mxu0 %v2890
    %2958 = vmatpush1.msra.mxu0 %v2889
    %2959 = vmatprep.subr.mxu0 %v2888
    %2960 = vmatpush1.msra.mxu0 %v2887
    %2961 = vmatprep.subr.mxu0 %v2886
    %2962 = vmatpush1.msra.mxu0 %v2885
    %2963 = vmatprep.subr.mxu0 %v2884
    %2964 = vmatpush1.msra.mxu0 %v2883
    %2965 = vmatprep.subr.mxu0 0.0
    %2966 = vmatpush2.msra.mxu0 0.0
    %2967 = vmatprep.subr.mxu0 0.0
    %2968 = vmatpush2.msra.mxu0 0.0
    %2969 = vmatprep.subr.mxu0 0.0
    %2970 = vmatpush2.msra.mxu0 0.0
    %2971 = vmatprep.subr.mxu0 0.0
    %2972 = vmatpush2.msra.mxu0 0.0
    %2973 = vmatprep.subr.mxu0 0.0
    %2974 = vmatpush2.msra.mxu0 0.0
    %2975 = vmatprep.subr.mxu0 0.0
    %2976 = vmatpush2.msra.mxu0 0.0
    %2977 = vmatprep.subr.mxu0 0.0
    %2978 = vmatpush2.msra.mxu0 0.0
    %2979 = vmatprep.subr.mxu0 %v2932
    %2980 = vmatpush2.msra.mxu0 %v2931
    %2981 = vmatprep.subr.mxu0 %v2930
    %2982 = vmatpush2.msra.mxu0 %v2929
    %2983 = vmatprep.subr.mxu0 %v2928
    %2984 = vmatpush2.msra.mxu0 %v2927
    %2985 = vmatprep.subr.mxu0 %v2926
    %2986 = vmatpush2.msra.mxu0 %v2925
    %2987 = vmatprep.subr.mxu0 %v2924
    %2988 = vmatpush2.msra.mxu0 %v2923
    %2989 = vmatprep.subr.mxu0 %v2922
    %2990 = vmatpush2.msra.mxu0 %v2921
    %2991 = vmatprep.subr.mxu0 %v2920
    %2992 = vmatpush2.msra.mxu0 %v2919
    %2993 = vmatprep.subr.mxu0 %v2918
    %2994 = vmatpush2.msra.mxu0 %v2917
    %2995 = vmatprep.subr.mxu0 %v2916
    %2996 = vmatpush2.msra.mxu0 %v2915
    %2997 = vmatprep.mubr.f32.mxu0 %v2797
    %2998 = vmatmul.mubr.f32.gmra.mxu0 %v2741
    %v2999 = vpop.f32.mrf.mxu0
    %v3000 = vadd.f32 0.0, %v2999
    %v3001 = vpop.f32.mrf.mxu0
    %v3002 = vadd.f32 0.0, %v3001
    %3003 = vmatprep.mubr.f32.mxu0 %v2800
    %3004 = vmatmul.mubr.f32.gmra.mxu0 %v2743
    %v3005 = vpop.f32.mrf.mxu0
    %v3006 = vadd.f32 0.0, %v3005
    %v3007 = vpop.f32.mrf.mxu0
    %v3008 = vadd.f32 0.0, %v3007
    %3009 = vdwg.mxu0
    %3010 = vst [vmem:[#allocation5 + $0x10] sm:$0xff] %v3000
    %3011 = vst [vmem:[#allocation5 + $0x18] sm:$0xff] %v3002
    %3012 = vst [vmem:[#allocation5 + $0x38] sm:$0xff] %v3006
    %3013 = vst [vmem:[#allocation5 + $0x40] sm:$0xff] %v3008
    %v3014 = vld [vmem:[#allocation5] sm:$0xff]
    %v3015 = vld [vmem:[#allocation5 + $0x8] sm:$0xff]
    %v3016 = vld [vmem:[#allocation5 + $0x28] sm:$0xff]
    %v3017 = vld [vmem:[#allocation5 + $0x30] sm:$0xff]
    %v3018 = vld [vmem:[#allocation5 + $0x10] sm:$0xff]
    %v3019 = vld [vmem:[#allocation5 + $0x38] sm:$0xff]
    %3026 = vrot.lane.b32.xlu0 %v3014, 127
    %v3027 = vpop.permute.xlu0 %3026
    %3028 = vrot.lane.b32.xlu0 %v3015, 127
    %v3029 = vpop.permute.xlu0 %3028
    %3030 = vrot.lane.b32.xlu0 %v3018, 127
    %v3031 = vpop.permute.xlu0 %3030
    %3032 = vrot.lane.b32.xlu0 %v3016, 127
    %v3033 = vpop.permute.xlu0 %3032
    %3034 = vrot.lane.b32.xlu0 %v3017, 127
    %v3035 = vpop.permute.xlu0 %3034
    %3036 = vrot.lane.b32.xlu0 %v3019, 127
    %v3037 = vpop.permute.xlu0 %3036
    %v3038 = vsel %vm252, %v3027, %v3029
    %v3039 = vsel %vm252, %v3029, %v3031
    %v3040 = vsel %vm252, %v3033, %v3035
    %v3041 = vsel %vm252, %v3035, %v3037
    %v3046 = vmax.f32 %v3014, %v3038
    %v3047 = vmax.f32 %v3015, %v3039
    %v3048 = vmax.f32 %v3016, %v3040
    %v3049 = vmax.f32 %v3017, %v3041
    %3050 = vrot.lane.b32.xlu0 %v3014, 112
    %v3051 = vpop.permute.xlu0 %3050
    %3052 = vrot.lane.b32.xlu0 %v3015, 112
    %v3053 = vpop.permute.xlu0 %3052
    %3054 = vrot.lane.b32.xlu0 %v3018, 112
    %v3055 = vpop.permute.xlu0 %3054
    %3056 = vrot.lane.b32.xlu0 %v3016, 112
    %v3057 = vpop.permute.xlu0 %3056
    %3058 = vrot.lane.b32.xlu0 %v3017, 112
    %v3059 = vpop.permute.xlu0 %3058
    %3060 = vrot.lane.b32.xlu0 %v3019, 112
    %v3061 = vpop.permute.xlu0 %3060
    %v3062 = vsel %vm315, %v3051, %v3053
    %v3063 = vsel %vm315, %v3053, %v3055
    %v3064 = vsel %vm315, %v3057, %v3059
    %v3065 = vsel %vm315, %v3059, %v3061
    %v3070 = vmax.f32 %v3046, %v3062
    %v3071 = vmax.f32 %v3047, %v3063
    %v3072 = vmax.f32 %v3048, %v3064
    %v3073 = vmax.f32 %v3049, %v3065
    %3074 = vrot.lane.b32.xlu0 %v3014, 111
    %v3075 = vpop.permute.xlu0 %3074
    %3076 = vrot.lane.b32.xlu0 %v3015, 111
    %v3077 = vpop.permute.xlu0 %3076
    %3078 = vrot.lane.b32.xlu0 %v3018, 111
    %v3079 = vpop.permute.xlu0 %3078
    %3080 = vrot.lane.b32.xlu0 %v3016, 111
    %v3081 = vpop.permute.xlu0 %3080
    %3082 = vrot.lane.b32.xlu0 %v3017, 111
    %v3083 = vpop.permute.xlu0 %3082
    %3084 = vrot.lane.b32.xlu0 %v3019, 111
    %v3085 = vpop.permute.xlu0 %3084
    %v3086 = vsel %vm346, %v3075, %v3077
    %v3087 = vsel %vm346, %v3077, %v3079
    %v3088 = vsel %vm346, %v3081, %v3083
    %v3089 = vsel %vm346, %v3083, %v3085
    %v3094 = vmax.f32 %v3070, %v3086
    %v3095 = vmax.f32 %v3071, %v3087
    %v3096 = vmax.f32 %v3072, %v3088
    %v3097 = vmax.f32 %v3073, %v3089
    %3099 = vset.pattern.permute.xlu0 0
    %3100 = vperm.xlu0 %3099, %v219
    %v3101 = vpop.permute.xlu0 %3100
    %3104 = vset.pattern.permute.xlu0 0
    %3105 = vperm.xlu0 %3104, %v220
    %v3106 = vpop.permute.xlu0 %3105
    %v3108 = vadd.f32 %v3094, %v3101
    %v3109 = vadd.f32 %v3095, %v3101
    %v3110 = vadd.f32 %v3096, %v3106
    %v3111 = vadd.f32 %v3097, %v3106
    %v3112 = vmax.f32 %v3108, 0.0
    %v3113 = vmax.f32 %v3109, 0.0
    %v3114 = vmax.f32 %v3110, 0.0
    %v3115 = vmax.f32 %v3111, 0.0
    %v3118 = vcombine.low %v3112, %v3113
    %v3120 = vunpack.c.l.s4 1966171168
    %v3121 = vunpack.c.0.s8 %v3120
    %v3122 = vlaneseq
    %v3123 = vshrl.u32 %v3122, 7
    %v3124 = vsub.s32 %v3121, %v3123
    %v3125 = vrot.slane %v3118, %v3124
    %v3127 = vunpack.c.l.s4 1966171168
    %v3128 = vunpack.c.0.s8 %v3127
    %v3129 = vlaneseq
    %v3130 = vshrl.u32 %v3129, 7
    %v3131 = vsub.s32 %v3128, %v3130
    %v3132 = vrot.slane %v3125, %v3131
    %v3134 = vlaneseq
    %vm3135 = vcmp.ge.s32.totalorder %v3134, 0
    %vm3136 = vcmp.lt.s32.totalorder %v3134, 256
    %vm3137 = vmand %vm3135, %vm3136
    %3138 = vst.msk [vmem:[#allocation6] ss:$2 sm:$0x3] %vm3137, %v3132
    %v3139 = vcombine.high %v3125, %v3125
    %v3141 = vunpack.c.l.s4 1966171168
    %v3142 = vunpack.c.0.s8 %v3141
    %v3143 = vlaneseq
    %v3144 = vshrl.u32 %v3143, 7
    %v3145 = vsub.s32 %v3142, %v3144
    %v3146 = vrot.slane %v3139, %v3145
    %s3148 = scalar_lea.vmem [#allocation6], 4
    %3149 = vst.msk [vmem:[%s3148] ss:$2 sm:$0x3] %vm3137, %v3146
    %v3150 = vcombine.high %v3132, %v3132
    %s3152 = scalar_lea.vmem [#allocation6], 8
    %3153 = vst.msk [vmem:[%s3152] ss:$2 sm:$0x3] %vm3137, %v3150
    %v3154 = vcombine.high %v3146, %v3146
    %s3156 = scalar_lea.vmem [#allocation6], 12
    %3157 = vst.msk [vmem:[%s3156] ss:$2 sm:$0x3] %vm3137, %v3154
    %v3158 = vcombine.high %v3112, %v3113
    %v3160 = vunpack.c.l.s4 1966171168
    %v3161 = vunpack.c.0.s8 %v3160
    %v3162 = vlaneseq
    %v3163 = vshrl.u32 %v3162, 7
    %v3164 = vsub.s32 %v3161, %v3163
    %v3165 = vrot.slane %v3158, %v3164
    %v3167 = vunpack.c.l.s4 1966171168
    %v3168 = vunpack.c.0.s8 %v3167
    %v3169 = vlaneseq
    %v3170 = vshrl.u32 %v3169, 7
    %v3171 = vsub.s32 %v3168, %v3170
    %v3172 = vrot.slane %v3165, %v3171
    %s3174 = scalar_lea.vmem [#allocation6], 16
    %3175 = vst.msk [vmem:[%s3174] ss:$2 sm:$0x3] %vm3137, %v3172
    %v3176 = vcombine.high %v3165, %v3165
    %v3178 = vunpack.c.l.s4 1966171168
    %v3179 = vunpack.c.0.s8 %v3178
    %v3180 = vlaneseq
    %v3181 = vshrl.u32 %v3180, 7
    %v3182 = vsub.s32 %v3179, %v3181
    %v3183 = vrot.slane %v3176, %v3182
    %s3185 = scalar_lea.vmem [#allocation6], 20
    %3186 = vst.msk [vmem:[%s3185] ss:$2 sm:$0x3] %vm3137, %v3183
    %v3187 = vcombine.high %v3172, %v3172
    %s3189 = scalar_lea.vmem [#allocation6], 24
    %3190 = vst.msk [vmem:[%s3189] ss:$2 sm:$0x3] %vm3137, %v3187
    %v3191 = vcombine.high %v3183, %v3183
    %s3193 = scalar_lea.vmem [#allocation6], 28
    %3194 = vst.msk [vmem:[%s3193] ss:$2 sm:$0x3] %vm3137, %v3191
    %v3197 = vcombine.low %v3114, %v3115
    %v3199 = vunpack.c.l.s4 1966171168
    %v3200 = vunpack.c.0.s8 %v3199
    %v3201 = vlaneseq
    %v3202 = vshrl.u32 %v3201, 7
    %v3203 = vsub.s32 %v3200, %v3202
    %v3204 = vrot.slane %v3197, %v3203
    %v3206 = vunpack.c.l.s4 1966171168
    %v3207 = vunpack.c.0.s8 %v3206
    %v3208 = vlaneseq
    %v3209 = vshrl.u32 %v3208, 7
    %v3210 = vsub.s32 %v3207, %v3209
    %v3211 = vrot.slane %v3204, %v3210
    %s3213 = scalar_lea.vmem [#allocation6], 32
    %3214 = vst.msk [vmem:[%s3213] ss:$2 sm:$0x3] %vm3137, %v3211
    %v3215 = vcombine.high %v3204, %v3204
    %v3217 = vunpack.c.l.s4 1966171168
    %v3218 = vunpack.c.0.s8 %v3217
    %v3219 = vlaneseq
    %v3220 = vshrl.u32 %v3219, 7
    %v3221 = vsub.s32 %v3218, %v3220
    %v3222 = vrot.slane %v3215, %v3221
    %s3224 = scalar_lea.vmem [#allocation6], 36
    %3225 = vst.msk [vmem:[%s3224] ss:$2 sm:$0x3] %vm3137, %v3222
    %v3226 = vcombine.high %v3211, %v3211
    %s3228 = scalar_lea.vmem [#allocation6], 40
    %3229 = vst.msk [vmem:[%s3228] ss:$2 sm:$0x3] %vm3137, %v3226
    %v3230 = vcombine.high %v3222, %v3222
    %s3232 = scalar_lea.vmem [#allocation6], 44
    %3233 = vst.msk [vmem:[%s3232] ss:$2 sm:$0x3] %vm3137, %v3230
    %v3234 = vcombine.high %v3114, %v3115
    %v3236 = vunpack.c.l.s4 1966171168
    %v3237 = vunpack.c.0.s8 %v3236
    %v3238 = vlaneseq
    %v3239 = vshrl.u32 %v3238, 7
    %v3240 = vsub.s32 %v3237, %v3239
    %v3241 = vrot.slane %v3234, %v3240
    %v3243 = vunpack.c.l.s4 1966171168
    %v3244 = vunpack.c.0.s8 %v3243
    %v3245 = vlaneseq
    %v3246 = vshrl.u32 %v3245, 7
    %v3247 = vsub.s32 %v3244, %v3246
    %v3248 = vrot.slane %v3241, %v3247
    %s3250 = scalar_lea.vmem [#allocation6], 48
    %3251 = vst.msk [vmem:[%s3250] ss:$2 sm:$0x3] %vm3137, %v3248
    %v3252 = vcombine.high %v3241, %v3241
    %v3254 = vunpack.c.l.s4 1966171168
    %v3255 = vunpack.c.0.s8 %v3254
    %v3256 = vlaneseq
    %v3257 = vshrl.u32 %v3256, 7
    %v3258 = vsub.s32 %v3255, %v3257
    %v3259 = vrot.slane %v3252, %v3258
    %s3261 = scalar_lea.vmem [#allocation6], 52
    %3262 = vst.msk [vmem:[%s3261] ss:$2 sm:$0x3] %vm3137, %v3259
    %v3263 = vcombine.high %v3248, %v3248
    %s3265 = scalar_lea.vmem [#allocation6], 56
    %3266 = vst.msk [vmem:[%s3265] ss:$2 sm:$0x3] %vm3137, %v3263
    %v3267 = vcombine.high %v3259, %v3259
    %s3269 = scalar_lea.vmem [#allocation6], 60
    %3270 = vst.msk [vmem:[%s3269] ss:$2 sm:$0x3] %vm3137, %v3267
    %v3271 = vld [vmem:[#allocation5 + $0x10] sm:$0xff]
    %v3272 = vld [vmem:[#allocation5 + $0x18] sm:$0xff]
    %v3273 = vld [vmem:[#allocation5 + $0x38] sm:$0xff]
    %v3274 = vld [vmem:[#allocation5 + $0x40] sm:$0xff]
    %v3275 = vld [vmem:[#allocation5 + $0x10] sm:$0xff]
    %v3276 = vld [vmem:[#allocation5 + $0x18] sm:$0xff]
    %v3277 = vld [vmem:[#allocation5 + $0x20] sm:$0xff]
    %v3278 = vld [vmem:[#allocation5 + $0x38] sm:$0xff]
    %v3279 = vld [vmem:[#allocation5 + $0x40] sm:$0xff]
    %v3280 = vld [vmem:[#allocation5 + $0x48] sm:$0xff]
    %3287 = vrot.lane.b32.xlu0 %v3275, 127
    %v3288 = vpop.permute.xlu0 %3287
    %3289 = vrot.lane.b32.xlu0 %v3276, 127
    %v3290 = vpop.permute.xlu0 %3289
    %3291 = vrot.lane.b32.xlu0 %v3277, 127
    %v3292 = vpop.permute.xlu0 %3291
    %3293 = vrot.lane.b32.xlu0 %v3278, 127
    %v3294 = vpop.permute.xlu0 %3293
    %3295 = vrot.lane.b32.xlu0 %v3279, 127
    %v3296 = vpop.permute.xlu0 %3295
    %3297 = vrot.lane.b32.xlu0 %v3280, 127
    %v3298 = vpop.permute.xlu0 %3297
    %v3299 = vsel %vm252, %v3288, %v3290
    %v3300 = vsel %vm252, %v3290, %v3292
    %v3301 = vsel %vm252, %v3294, %v3296
    %v3302 = vsel %vm252, %v3296, %v3298
    %v3307 = vmax.f32 %v3271, %v3299
    %v3308 = vmax.f32 %v3272, %v3300
    %v3309 = vmax.f32 %v3273, %v3301
    %v3310 = vmax.f32 %v3274, %v3302
    %3311 = vrot.lane.b32.xlu0 %v3275, 112
    %v3312 = vpop.permute.xlu0 %3311
    %3313 = vrot.lane.b32.xlu0 %v3276, 112
    %v3314 = vpop.permute.xlu0 %3313
    %3315 = vrot.lane.b32.xlu0 %v3277, 112
    %v3316 = vpop.permute.xlu0 %3315
    %3317 = vrot.lane.b32.xlu0 %v3278, 112
    %v3318 = vpop.permute.xlu0 %3317
    %3319 = vrot.lane.b32.xlu0 %v3279, 112
    %v3320 = vpop.permute.xlu0 %3319
    %3321 = vrot.lane.b32.xlu0 %v3280, 112
    %v3322 = vpop.permute.xlu0 %3321
    %v3323 = vsel %vm315, %v3312, %v3314
    %v3324 = vsel %vm315, %v3314, %v3316
    %v3325 = vsel %vm315, %v3318, %v3320
    %v3326 = vsel %vm315, %v3320, %v3322
    %v3331 = vmax.f32 %v3307, %v3323
    %v3332 = vmax.f32 %v3308, %v3324
    %v3333 = vmax.f32 %v3309, %v3325
    %v3334 = vmax.f32 %v3310, %v3326
    %3335 = vrot.lane.b32.xlu0 %v3275, 111
    %v3336 = vpop.permute.xlu0 %3335
    %3337 = vrot.lane.b32.xlu0 %v3276, 111
    %v3338 = vpop.permute.xlu0 %3337
    %3339 = vrot.lane.b32.xlu0 %v3277, 111
    %v3340 = vpop.permute.xlu0 %3339
    %3341 = vrot.lane.b32.xlu0 %v3278, 111
    %v3342 = vpop.permute.xlu0 %3341
    %3343 = vrot.lane.b32.xlu0 %v3279, 111
    %v3344 = vpop.permute.xlu0 %3343
    %3345 = vrot.lane.b32.xlu0 %v3280, 111
    %v3346 = vpop.permute.xlu0 %3345
    %v3347 = vsel %vm346, %v3336, %v3338
    %v3348 = vsel %vm346, %v3338, %v3340
    %v3349 = vsel %vm346, %v3342, %v3344
    %v3350 = vsel %vm346, %v3344, %v3346
    %v3355 = vmax.f32 %v3331, %v3347
    %v3356 = vmax.f32 %v3332, %v3348
    %v3357 = vmax.f32 %v3333, %v3349
    %v3358 = vmax.f32 %v3334, %v3350
    %v3359 = vadd.f32 %v3355, %v3101
    %v3360 = vadd.f32 %v3356, %v3101
    %v3361 = vadd.f32 %v3357, %v3106
    %v3362 = vadd.f32 %v3358, %v3106
    %v3363 = vmax.f32 %v3359, 0.0
    %v3364 = vmax.f32 %v3360, 0.0
    %v3365 = vmax.f32 %v3361, 0.0
    %v3366 = vmax.f32 %v3362, 0.0
    %v3369 = vcombine.low %v3363, %v3364
    %v3371 = vunpack.c.l.s4 1966171168
    %v3372 = vunpack.c.0.s8 %v3371
    %v3373 = vlaneseq
    %v3374 = vshrl.u32 %v3373, 7
    %v3375 = vsub.s32 %v3372, %v3374
    %v3376 = vrot.slane %v3369, %v3375
    %v3378 = vunpack.c.l.s4 1966171168
    %v3379 = vunpack.c.0.s8 %v3378
    %v3380 = vlaneseq
    %v3381 = vshrl.u32 %v3380, 7
    %v3382 = vsub.s32 %v3379, %v3381
    %v3383 = vrot.slane %v3376, %v3382
    %s3385 = scalar_lea.vmem [#allocation6], 1
    %3386 = vst.msk [vmem:[%s3385] ss:$2 sm:$0x3] %vm3137, %v3383
    %v3387 = vcombine.high %v3376, %v3376
    %v3389 = vunpack.c.l.s4 1966171168
    %v3390 = vunpack.c.0.s8 %v3389
    %v3391 = vlaneseq
    %v3392 = vshrl.u32 %v3391, 7
    %v3393 = vsub.s32 %v3390, %v3392
    %v3394 = vrot.slane %v3387, %v3393
    %s3396 = scalar_lea.vmem [#allocation6], 5
    %3397 = vst.msk [vmem:[%s3396] ss:$2 sm:$0x3] %vm3137, %v3394
    %v3398 = vcombine.high %v3383, %v3383
    %s3400 = scalar_lea.vmem [#allocation6], 9
    %3401 = vst.msk [vmem:[%s3400] ss:$2 sm:$0x3] %vm3137, %v3398
    %v3402 = vcombine.high %v3394, %v3394
    %s3404 = scalar_lea.vmem [#allocation6], 13
    %3405 = vst.msk [vmem:[%s3404] ss:$2 sm:$0x3] %vm3137, %v3402
    %v3406 = vcombine.high %v3363, %v3364
    %v3408 = vunpack.c.l.s4 1966171168
    %v3409 = vunpack.c.0.s8 %v3408
    %v3410 = vlaneseq
    %v3411 = vshrl.u32 %v3410, 7
    %v3412 = vsub.s32 %v3409, %v3411
    %v3413 = vrot.slane %v3406, %v3412
    %v3415 = vunpack.c.l.s4 1966171168
    %v3416 = vunpack.c.0.s8 %v3415
    %v3417 = vlaneseq
    %v3418 = vshrl.u32 %v3417, 7
    %v3419 = vsub.s32 %v3416, %v3418
    %v3420 = vrot.slane %v3413, %v3419
    %s3422 = scalar_lea.vmem [#allocation6], 17
    %3423 = vst.msk [vmem:[%s3422] ss:$2 sm:$0x3] %vm3137, %v3420
    %v3424 = vcombine.high %v3413, %v3413
    %v3426 = vunpack.c.l.s4 1966171168
    %v3427 = vunpack.c.0.s8 %v3426
    %v3428 = vlaneseq
    %v3429 = vshrl.u32 %v3428, 7
    %v3430 = vsub.s32 %v3427, %v3429
    %v3431 = vrot.slane %v3424, %v3430
    %s3433 = scalar_lea.vmem [#allocation6], 21
    %3434 = vst.msk [vmem:[%s3433] ss:$2 sm:$0x3] %vm3137, %v3431
    %v3435 = vcombine.high %v3420, %v3420
    %s3437 = scalar_lea.vmem [#allocation6], 25
    %3438 = vst.msk [vmem:[%s3437] ss:$2 sm:$0x3] %vm3137, %v3435
    %v3439 = vcombine.high %v3431, %v3431
    %s3441 = scalar_lea.vmem [#allocation6], 29
    %3442 = vst.msk [vmem:[%s3441] ss:$2 sm:$0x3] %vm3137, %v3439
    %v3445 = vcombine.low %v3365, %v3366
    %v3447 = vunpack.c.l.s4 1966171168
    %v3448 = vunpack.c.0.s8 %v3447
    %v3449 = vlaneseq
    %v3450 = vshrl.u32 %v3449, 7
    %v3451 = vsub.s32 %v3448, %v3450
    %v3452 = vrot.slane %v3445, %v3451
    %v3454 = vunpack.c.l.s4 1966171168
    %v3455 = vunpack.c.0.s8 %v3454
    %v3456 = vlaneseq
    %v3457 = vshrl.u32 %v3456, 7
    %v3458 = vsub.s32 %v3455, %v3457
    %v3459 = vrot.slane %v3452, %v3458
    %s3461 = scalar_lea.vmem [#allocation6], 33
    %3462 = vst.msk [vmem:[%s3461] ss:$2 sm:$0x3] %vm3137, %v3459
    %v3463 = vcombine.high %v3452, %v3452
    %v3465 = vunpack.c.l.s4 1966171168
    %v3466 = vunpack.c.0.s8 %v3465
    %v3467 = vlaneseq
    %v3468 = vshrl.u32 %v3467, 7
    %v3469 = vsub.s32 %v3466, %v3468
    %v3470 = vrot.slane %v3463, %v3469
    %s3472 = scalar_lea.vmem [#allocation6], 37
    %3473 = vst.msk [vmem:[%s3472] ss:$2 sm:$0x3] %vm3137, %v3470
    %v3474 = vcombine.high %v3459, %v3459
    %s3476 = scalar_lea.vmem [#allocation6], 41
    %3477 = vst.msk [vmem:[%s3476] ss:$2 sm:$0x3] %vm3137, %v3474
    %v3478 = vcombine.high %v3470, %v3470
    %s3480 = scalar_lea.vmem [#allocation6], 45
    %3481 = vst.msk [vmem:[%s3480] ss:$2 sm:$0x3] %vm3137, %v3478
    %v3482 = vcombine.high %v3365, %v3366
    %v3484 = vunpack.c.l.s4 1966171168
    %v3485 = vunpack.c.0.s8 %v3484
    %v3486 = vlaneseq
    %v3487 = vshrl.u32 %v3486, 7
    %v3488 = vsub.s32 %v3485, %v3487
    %v3489 = vrot.slane %v3482, %v3488
    %v3491 = vunpack.c.l.s4 1966171168
    %v3492 = vunpack.c.0.s8 %v3491
    %v3493 = vlaneseq
    %v3494 = vshrl.u32 %v3493, 7
    %v3495 = vsub.s32 %v3492, %v3494
    %v3496 = vrot.slane %v3489, %v3495
    %s3498 = scalar_lea.vmem [#allocation6], 49
    %3499 = vst.msk [vmem:[%s3498] ss:$2 sm:$0x3] %vm3137, %v3496
    %v3500 = vcombine.high %v3489, %v3489
    %v3502 = vunpack.c.l.s4 1966171168
    %v3503 = vunpack.c.0.s8 %v3502
    %v3504 = vlaneseq
    %v3505 = vshrl.u32 %v3504, 7
    %v3506 = vsub.s32 %v3503, %v3505
    %v3507 = vrot.slane %v3500, %v3506
    %s3509 = scalar_lea.vmem [#allocation6], 53
    %3510 = vst.msk [vmem:[%s3509] ss:$2 sm:$0x3] %vm3137, %v3507
    %v3511 = vcombine.high %v3496, %v3496
    %s3513 = scalar_lea.vmem [#allocation6], 57
    %3514 = vst.msk [vmem:[%s3513] ss:$2 sm:$0x3] %vm3137, %v3511
    %v3515 = vcombine.high %v3507, %v3507
    %s3517 = scalar_lea.vmem [#allocation6], 61
    %3518 = vst.msk [vmem:[%s3517] ss:$2 sm:$0x3] %vm3137, %v3515
    %v3519 = vld [vmem:[#allocation6] sm:$0xff]
    %v3520 = vld [vmem:[%s5] sm:$0xff]
    %v3521 = vld [vmem:[%s5 + $0x8] sm:$0xff]
    %v3522 = vld [vmem:[%s5 + $0x10] sm:$0xff]
    %v3523 = vld [vmem:[%s5 + $0x18] sm:$0xff]
    %v3524 = vld [vmem:[%s5 + $0x20] sm:$0xff]
    %v3525 = vld [vmem:[%s5 + $0x28] sm:$0xff]
    %v3526 = vld [vmem:[%s5 + $0x30] sm:$0xff]
    %v3527 = vld [vmem:[%s5 + $0x38] sm:$0xff]
    %v3528 = vld [vmem:[%s5 + $0x40] sm:$0xff]
    %v3529 = vld [vmem:[%s5 + $0x48] sm:$0xff]
    %v3530 = vld [vmem:[%s5 + $0x50] sm:$0xff]
    %v3531 = vld [vmem:[%s5 + $0x58] sm:$0xff]
    %v3532 = vld [vmem:[%s5 + $0x60] sm:$0xff]
    %v3533 = vld [vmem:[%s5 + $0x68] sm:$0xff]
    %v3534 = vld [vmem:[%s5 + $0x70] sm:$0xff]
    %v3535 = vld [vmem:[%s5 + $0x78] sm:$0xff]
    %v3536 = vld [vmem:[%s5 + $0x80] sm:$0xff]
    %v3537 = vld [vmem:[%s5 + $0x88] sm:$0xff]
    %v3538 = vld [vmem:[%s5 + $0x90] sm:$0xff]
    %v3539 = vld [vmem:[%s5 + $0x98] sm:$0xff]
    %v3540 = vld [vmem:[%s5 + $0xa0] sm:$0xff]
    %v3541 = vld [vmem:[%s5 + $0xa8] sm:$0xff]
    %v3542 = vld [vmem:[%s5 + $0xb0] sm:$0xff]
    %v3543 = vld [vmem:[%s5 + $0xb8] sm:$0xff]
    %v3544 = vld [vmem:[%s5 + $0xc0] sm:$0xff]
    %v3545 = vld [vmem:[%s5 + $0xc8] sm:$0xff]
    %v3546 = vld [vmem:[%s5 + $0xd0] sm:$0xff]
    %v3547 = vld [vmem:[%s5 + $0xd8] sm:$0xff]
    %v3548 = vld [vmem:[%s5 + $0xe0] sm:$0xff]
    %v3549 = vld [vmem:[%s5 + $0xe8] sm:$0xff]
    %v3550 = vld [vmem:[%s5 + $0xf0] sm:$0xff]
    %v3551 = vld [vmem:[%s5 + $0xf8] sm:$0xff]
    %v3552 = vld [vmem:[%s5 + $0x100] sm:$0xff]
    %v3553 = vld [vmem:[%s5 + $0x108] sm:$0xff]
    %v3554 = vld [vmem:[%s5 + $0x110] sm:$0xff]
    %v3555 = vld [vmem:[%s5 + $0x118] sm:$0xff]
    %v3556 = vld [vmem:[%s5 + $0x120] sm:$0xff]
    %v3557 = vld [vmem:[%s5 + $0x128] sm:$0xff]
    %v3558 = vld [vmem:[%s5 + $0x130] sm:$0xff]
    %v3559 = vld [vmem:[%s5 + $0x138] sm:$0xff]
    %v3560 = vld [vmem:[%s5 + $0x140] sm:$0xff]
    %v3561 = vld [vmem:[%s5 + $0x148] sm:$0xff]
    %v3562 = vld [vmem:[%s5 + $0x150] sm:$0xff]
    %v3563 = vld [vmem:[%s5 + $0x158] sm:$0xff]
    %v3564 = vld [vmem:[%s5 + $0x160] sm:$0xff]
    %v3565 = vld [vmem:[%s5 + $0x168] sm:$0xff]
    %v3566 = vld [vmem:[%s5 + $0x170] sm:$0xff]
    %v3567 = vld [vmem:[%s5 + $0x178] sm:$0xff]
    %v3568 = vld [vmem:[%s5 + $0x180] sm:$0xff]
    %v3569 = vld [vmem:[%s5 + $0x188] sm:$0xff]
    %v3570 = vld [vmem:[%s5 + $0x190] sm:$0xff]
    %v3571 = vld [vmem:[%s5 + $0x198] sm:$0xff]
    %v3572 = vld [vmem:[%s5 + $0x1a0] sm:$0xff]
    %v3573 = vld [vmem:[%s5 + $0x1a8] sm:$0xff]
    %v3574 = vld [vmem:[%s5 + $0x1b0] sm:$0xff]
    %v3575 = vld [vmem:[%s5 + $0x1b8] sm:$0xff]
    %v3576 = vld [vmem:[%s5 + $0x1c0] sm:$0xff]
    %v3577 = vld [vmem:[%s5 + $0x1c8] sm:$0xff]
    %v3578 = vld [vmem:[%s5 + $0x1d0] sm:$0xff]
    %v3579 = vld [vmem:[%s5 + $0x1d8] sm:$0xff]
    %v3580 = vld [vmem:[%s5 + $0x1e0] sm:$0xff]
    %v3581 = vld [vmem:[%s5 + $0x1e8] sm:$0xff]
    %v3582 = vld [vmem:[%s5 + $0x1f0] sm:$0xff]
    %v3583 = vld [vmem:[%s5 + $0x1f8] sm:$0xff]
    %v3584 = vld [vmem:[#allocation6 + $0x8] sm:$0xff]
    %v3585 = vld [vmem:[%s5 + $0x200] sm:$0xff]
    %v3586 = vld [vmem:[%s5 + $0x208] sm:$0xff]
    %v3587 = vld [vmem:[%s5 + $0x210] sm:$0xff]
    %v3588 = vld [vmem:[%s5 + $0x218] sm:$0xff]
    %v3589 = vld [vmem:[%s5 + $0x220] sm:$0xff]
    %v3590 = vld [vmem:[%s5 + $0x228] sm:$0xff]
    %v3591 = vld [vmem:[%s5 + $0x230] sm:$0xff]
    %v3592 = vld [vmem:[%s5 + $0x238] sm:$0xff]
    %v3593 = vld [vmem:[%s5 + $0x240] sm:$0xff]
    %v3594 = vld [vmem:[%s5 + $0x248] sm:$0xff]
    %v3595 = vld [vmem:[%s5 + $0x250] sm:$0xff]
    %v3596 = vld [vmem:[%s5 + $0x258] sm:$0xff]
    %v3597 = vld [vmem:[%s5 + $0x260] sm:$0xff]
    %v3598 = vld [vmem:[%s5 + $0x268] sm:$0xff]
    %v3599 = vld [vmem:[%s5 + $0x270] sm:$0xff]
    %v3600 = vld [vmem:[%s5 + $0x278] sm:$0xff]
    %v3601 = vld [vmem:[%s5 + $0x280] sm:$0xff]
    %v3602 = vld [vmem:[%s5 + $0x288] sm:$0xff]
    %v3603 = vld [vmem:[%s5 + $0x290] sm:$0xff]
    %v3604 = vld [vmem:[%s5 + $0x298] sm:$0xff]
    %v3605 = vld [vmem:[%s5 + $0x2a0] sm:$0xff]
    %v3606 = vld [vmem:[%s5 + $0x2a8] sm:$0xff]
    %v3607 = vld [vmem:[%s5 + $0x2b0] sm:$0xff]
    %v3608 = vld [vmem:[%s5 + $0x2b8] sm:$0xff]
    %v3609 = vld [vmem:[%s5 + $0x2c0] sm:$0xff]
    %v3610 = vld [vmem:[%s5 + $0x2c8] sm:$0xff]
    %v3611 = vld [vmem:[%s5 + $0x2d0] sm:$0xff]
    %v3612 = vld [vmem:[%s5 + $0x2d8] sm:$0xff]
    %v3613 = vld [vmem:[%s5 + $0x2e0] sm:$0xff]
    %v3614 = vld [vmem:[%s5 + $0x2e8] sm:$0xff]
    %v3615 = vld [vmem:[%s5 + $0x2f0] sm:$0xff]
    %v3616 = vld [vmem:[%s5 + $0x2f8] sm:$0xff]
    %v3617 = vld [vmem:[%s5 + $0x300] sm:$0xff]
    %v3618 = vld [vmem:[%s5 + $0x308] sm:$0xff]
    %v3619 = vld [vmem:[%s5 + $0x310] sm:$0xff]
    %v3620 = vld [vmem:[%s5 + $0x318] sm:$0xff]
    %v3621 = vld [vmem:[%s5 + $0x320] sm:$0xff]
    %v3622 = vld [vmem:[%s5 + $0x328] sm:$0xff]
    %v3623 = vld [vmem:[%s5 + $0x330] sm:$0xff]
    %v3624 = vld [vmem:[%s5 + $0x338] sm:$0xff]
    %v3625 = vld [vmem:[%s5 + $0x340] sm:$0xff]
    %v3626 = vld [vmem:[%s5 + $0x348] sm:$0xff]
    %v3627 = vld [vmem:[%s5 + $0x350] sm:$0xff]
    %v3628 = vld [vmem:[%s5 + $0x358] sm:$0xff]
    %v3629 = vld [vmem:[%s5 + $0x360] sm:$0xff]
    %v3630 = vld [vmem:[%s5 + $0x368] sm:$0xff]
    %v3631 = vld [vmem:[%s5 + $0x370] sm:$0xff]
    %v3632 = vld [vmem:[%s5 + $0x378] sm:$0xff]
    %v3633 = vld [vmem:[%s5 + $0x380] sm:$0xff]
    %v3634 = vld [vmem:[%s5 + $0x388] sm:$0xff]
    %v3635 = vld [vmem:[%s5 + $0x390] sm:$0xff]
    %v3636 = vld [vmem:[%s5 + $0x398] sm:$0xff]
    %v3637 = vld [vmem:[%s5 + $0x3a0] sm:$0xff]
    %v3638 = vld [vmem:[%s5 + $0x3a8] sm:$0xff]
    %v3639 = vld [vmem:[%s5 + $0x3b0] sm:$0xff]
    %v3640 = vld [vmem:[%s5 + $0x3b8] sm:$0xff]
    %v3641 = vld [vmem:[%s5 + $0x3c0] sm:$0xff]
    %v3642 = vld [vmem:[%s5 + $0x3c8] sm:$0xff]
    %v3643 = vld [vmem:[%s5 + $0x3d0] sm:$0xff]
    %v3644 = vld [vmem:[%s5 + $0x3d8] sm:$0xff]
    %v3645 = vld [vmem:[%s5 + $0x3e0] sm:$0xff]
    %v3646 = vld [vmem:[%s5 + $0x3e8] sm:$0xff]
    %v3647 = vld [vmem:[%s5 + $0x3f0] sm:$0xff]
    %v3648 = vld [vmem:[%s5 + $0x3f8] sm:$0xff]
    %v3650 = vcombine.high %v3584, %v3584
    %v3652 = vunpack.c.l.s4 1983009808
    %v3653 = vunpack.c.0.s8 %v3652
    %v3654 = vlaneseq
    %v3655 = vshrl.u32 %v3654, 7
    %v3656 = vsub.s32 %v3653, %v3655
    %v3657 = vrot.slane %v3584, %v3656
    %v3659 = vunpack.c.l.s4 1983009808
    %v3660 = vunpack.c.0.s8 %v3659
    %v3661 = vlaneseq
    %v3662 = vshrl.u32 %v3661, 7
    %v3663 = vsub.s32 %v3660, %v3662
    %v3664 = vrot.slane %v3650, %v3663
    %v3665 = vcombine.high %v3657, %v3657
    %v3666 = vcombine.high %v3664, %v3664
    %3671 = vmatprep.subr.mxu0 0.0
    %3672 = vmatpush1.msra.mxu0 %v3600
    %3673 = vmatprep.subr.mxu0 0.0
    %3674 = vmatpush1.msra.mxu0 %v3599
    %3675 = vmatprep.subr.mxu0 0.0
    %3676 = vmatpush1.msra.mxu0 %v3598
    %3677 = vmatprep.subr.mxu0 0.0
    %3678 = vmatpush1.msra.mxu0 %v3597
    %3679 = vmatprep.subr.mxu0 0.0
    %3680 = vmatpush1.msra.mxu0 %v3596
    %3681 = vmatprep.subr.mxu0 0.0
    %3682 = vmatpush1.msra.mxu0 %v3595
    %3683 = vmatprep.subr.mxu0 0.0
    %3684 = vmatpush1.msra.mxu0 %v3594
    %3685 = vmatprep.subr.mxu0 0.0
    %3686 = vmatpush1.msra.mxu0 %v3593
    %3687 = vmatprep.subr.mxu0 0.0
    %3688 = vmatpush1.msra.mxu0 %v3592
    %3689 = vmatprep.subr.mxu0 0.0
    %3690 = vmatpush1.msra.mxu0 %v3591
    %3691 = vmatprep.subr.mxu0 0.0
    %3692 = vmatpush1.msra.mxu0 %v3590
    %3693 = vmatprep.subr.mxu0 0.0
    %3694 = vmatpush1.msra.mxu0 %v3589
    %3695 = vmatprep.subr.mxu0 0.0
    %3696 = vmatpush1.msra.mxu0 %v3588
    %3697 = vmatprep.subr.mxu0 0.0
    %3698 = vmatpush1.msra.mxu0 %v3587
    %3699 = vmatprep.subr.mxu0 0.0
    %3700 = vmatpush1.msra.mxu0 %v3586
    %3701 = vmatprep.subr.mxu0 0.0
    %3702 = vmatpush1.msra.mxu0 %v3585
    %3703 = vmatprep.subr.mxu0 0.0
    %3704 = vmatpush2.msra.mxu0 %v3616
    %3705 = vmatprep.subr.mxu0 0.0
    %3706 = vmatpush2.msra.mxu0 %v3615
    %3707 = vmatprep.subr.mxu0 0.0
    %3708 = vmatpush2.msra.mxu0 %v3614
    %3709 = vmatprep.subr.mxu0 0.0
    %3710 = vmatpush2.msra.mxu0 %v3613
    %3711 = vmatprep.subr.mxu0 0.0
    %3712 = vmatpush2.msra.mxu0 %v3612
    %3713 = vmatprep.subr.mxu0 0.0
    %3714 = vmatpush2.msra.mxu0 %v3611
    %3715 = vmatprep.subr.mxu0 0.0
    %3716 = vmatpush2.msra.mxu0 %v3610
    %3717 = vmatprep.subr.mxu0 0.0
    %3718 = vmatpush2.msra.mxu0 %v3609
    %3719 = vmatprep.subr.mxu0 0.0
    %3720 = vmatpush2.msra.mxu0 %v3608
    %3721 = vmatprep.subr.mxu0 0.0
    %3722 = vmatpush2.msra.mxu0 %v3607
    %3723 = vmatprep.subr.mxu0 0.0
    %3724 = vmatpush2.msra.mxu0 %v3606
    %3725 = vmatprep.subr.mxu0 0.0
    %3726 = vmatpush2.msra.mxu0 %v3605
    %3727 = vmatprep.subr.mxu0 0.0
    %3728 = vmatpush2.msra.mxu0 %v3604
    %3729 = vmatprep.subr.mxu0 0.0
    %3730 = vmatpush2.msra.mxu0 %v3603
    %3731 = vmatprep.subr.mxu0 0.0
    %3732 = vmatpush2.msra.mxu0 %v3602
    %3733 = vmatprep.subr.mxu0 0.0
    %3734 = vmatpush2.msra.mxu0 %v3601
    %3735 = vmatprep.mubr.f32.mxu0 %v3665
    %3736 = vmatmul.mubr.f32.gmra.mxu0 %v3657
    %v3737 = vpop.f32.mrf.mxu0
    %v3738 = vadd.f32 0.0, %v3737
    %v3739 = vpop.f32.mrf.mxu0
    %3740 = vdwg.mxu0
    %3741 = vmatprep.subr.mxu0 0.0
    %3742 = vmatpush1.msra.mxu0 %v3632
    %3743 = vmatprep.subr.mxu0 0.0
    %3744 = vmatpush1.msra.mxu0 %v3631
    %3745 = vmatprep.subr.mxu0 0.0
    %3746 = vmatpush1.msra.mxu0 %v3630
    %3747 = vmatprep.subr.mxu0 0.0
    %3748 = vmatpush1.msra.mxu0 %v3629
    %3749 = vmatprep.subr.mxu0 0.0
    %3750 = vmatpush1.msra.mxu0 %v3628
    %3751 = vmatprep.subr.mxu0 0.0
    %3752 = vmatpush1.msra.mxu0 %v3627
    %3753 = vmatprep.subr.mxu0 0.0
    %3754 = vmatpush1.msra.mxu0 %v3626
    %3755 = vmatprep.subr.mxu0 0.0
    %3756 = vmatpush1.msra.mxu0 %v3625
    %3757 = vmatprep.subr.mxu0 0.0
    %3758 = vmatpush1.msra.mxu0 %v3624
    %3759 = vmatprep.subr.mxu0 0.0
    %3760 = vmatpush1.msra.mxu0 %v3623
    %3761 = vmatprep.subr.mxu0 0.0
    %3762 = vmatpush1.msra.mxu0 %v3622
    %3763 = vmatprep.subr.mxu0 0.0
    %3764 = vmatpush1.msra.mxu0 %v3621
    %3765 = vmatprep.subr.mxu0 0.0
    %3766 = vmatpush1.msra.mxu0 %v3620
    %3767 = vmatprep.subr.mxu0 0.0
    %3768 = vmatpush1.msra.mxu0 %v3619
    %3769 = vmatprep.subr.mxu0 0.0
    %3770 = vmatpush1.msra.mxu0 %v3618
    %3771 = vmatprep.subr.mxu0 0.0
    %3772 = vmatpush1.msra.mxu0 %v3617
    %3773 = vmatprep.subr.mxu0 0.0
    %3774 = vmatpush2.msra.mxu0 %v3648
    %3775 = vmatprep.subr.mxu0 0.0
    %3776 = vmatpush2.msra.mxu0 %v3647
    %3777 = vmatprep.subr.mxu0 0.0
    %3778 = vmatpush2.msra.mxu0 %v3646
    %3779 = vmatprep.subr.mxu0 0.0
    %3780 = vmatpush2.msra.mxu0 %v3645
    %3781 = vmatprep.subr.mxu0 0.0
    %3782 = vmatpush2.msra.mxu0 %v3644
    %3783 = vmatprep.subr.mxu0 0.0
    %3784 = vmatpush2.msra.mxu0 %v3643
    %3785 = vmatprep.subr.mxu0 0.0
    %3786 = vmatpush2.msra.mxu0 %v3642
    %3787 = vmatprep.subr.mxu0 0.0
    %3788 = vmatpush2.msra.mxu0 %v3641
    %3789 = vmatprep.subr.mxu0 0.0
    %3790 = vmatpush2.msra.mxu0 %v3640
    %3791 = vmatprep.subr.mxu0 0.0
    %3792 = vmatpush2.msra.mxu0 %v3639
    %3793 = vmatprep.subr.mxu0 0.0
    %3794 = vmatpush2.msra.mxu0 %v3638
    %3795 = vmatprep.subr.mxu0 0.0
    %3796 = vmatpush2.msra.mxu0 %v3637
    %3797 = vmatprep.subr.mxu0 0.0
    %3798 = vmatpush2.msra.mxu0 %v3636
    %3799 = vmatprep.subr.mxu0 0.0
    %3800 = vmatpush2.msra.mxu0 %v3635
    %3801 = vmatprep.subr.mxu0 0.0
    %3802 = vmatpush2.msra.mxu0 %v3634
    %3803 = vmatprep.subr.mxu0 0.0
    %3804 = vmatpush2.msra.mxu0 %v3633
    %3805 = vmatprep.mubr.f32.mxu0 %v3666
    %3806 = vmatmul.mubr.f32.gmra.mxu0 %v3664
    %v3807 = vpop.f32.mrf.mxu0
    %v3808 = vadd.f32 %v3738, %v3807
    %v3809 = vpop.f32.mrf.mxu0
    %3810 = vdwg.mxu0
    %v3812 = vcombine.high %v3519, %v3519
    %v3814 = vunpack.c.l.s4 1983009808
    %v3815 = vunpack.c.0.s8 %v3814
    %v3816 = vlaneseq
    %v3817 = vshrl.u32 %v3816, 7
    %v3818 = vsub.s32 %v3815, %v3817
    %v3819 = vrot.slane %v3519, %v3818
    %v3821 = vunpack.c.l.s4 1983009808
    %v3822 = vunpack.c.0.s8 %v3821
    %v3823 = vlaneseq
    %v3824 = vshrl.u32 %v3823, 7
    %v3825 = vsub.s32 %v3822, %v3824
    %v3826 = vrot.slane %v3812, %v3825
    %v3827 = vcombine.high %v3819, %v3819
    %v3828 = vcombine.high %v3826, %v3826
    %3833 = vmatprep.subr.mxu0 0.0
    %3834 = vmatpush1.msra.mxu0 %v3535
    %3835 = vmatprep.subr.mxu0 0.0
    %3836 = vmatpush1.msra.mxu0 %v3534
    %3837 = vmatprep.subr.mxu0 0.0
    %3838 = vmatpush1.msra.mxu0 %v3533
    %3839 = vmatprep.subr.mxu0 0.0
    %3840 = vmatpush1.msra.mxu0 %v3532
    %3841 = vmatprep.subr.mxu0 0.0
    %3842 = vmatpush1.msra.mxu0 %v3531
    %3843 = vmatprep.subr.mxu0 0.0
    %3844 = vmatpush1.msra.mxu0 %v3530
    %3845 = vmatprep.subr.mxu0 0.0
    %3846 = vmatpush1.msra.mxu0 %v3529
    %3847 = vmatprep.subr.mxu0 0.0
    %3848 = vmatpush1.msra.mxu0 %v3528
    %3849 = vmatprep.subr.mxu0 0.0
    %3850 = vmatpush1.msra.mxu0 %v3527
    %3851 = vmatprep.subr.mxu0 0.0
    %3852 = vmatpush1.msra.mxu0 %v3526
    %3853 = vmatprep.subr.mxu0 0.0
    %3854 = vmatpush1.msra.mxu0 %v3525
    %3855 = vmatprep.subr.mxu0 0.0
    %3856 = vmatpush1.msra.mxu0 %v3524
    %3857 = vmatprep.subr.mxu0 0.0
    %3858 = vmatpush1.msra.mxu0 %v3523
    %3859 = vmatprep.subr.mxu0 0.0
    %3860 = vmatpush1.msra.mxu0 %v3522
    %3861 = vmatprep.subr.mxu0 0.0
    %3862 = vmatpush1.msra.mxu0 %v3521
    %3863 = vmatprep.subr.mxu0 0.0
    %3864 = vmatpush1.msra.mxu0 %v3520
    %3865 = vmatprep.subr.mxu0 0.0
    %3866 = vmatpush2.msra.mxu0 %v3551
    %3867 = vmatprep.subr.mxu0 0.0
    %3868 = vmatpush2.msra.mxu0 %v3550
    %3869 = vmatprep.subr.mxu0 0.0
    %3870 = vmatpush2.msra.mxu0 %v3549
    %3871 = vmatprep.subr.mxu0 0.0
    %3872 = vmatpush2.msra.mxu0 %v3548
    %3873 = vmatprep.subr.mxu0 0.0
    %3874 = vmatpush2.msra.mxu0 %v3547
    %3875 = vmatprep.subr.mxu0 0.0
    %3876 = vmatpush2.msra.mxu0 %v3546
    %3877 = vmatprep.subr.mxu0 0.0
    %3878 = vmatpush2.msra.mxu0 %v3545
    %3879 = vmatprep.subr.mxu0 0.0
    %3880 = vmatpush2.msra.mxu0 %v3544
    %3881 = vmatprep.subr.mxu0 0.0
    %3882 = vmatpush2.msra.mxu0 %v3543
    %3883 = vmatprep.subr.mxu0 0.0
    %3884 = vmatpush2.msra.mxu0 %v3542
    %3885 = vmatprep.subr.mxu0 0.0
    %3886 = vmatpush2.msra.mxu0 %v3541
    %3887 = vmatprep.subr.mxu0 0.0
    %3888 = vmatpush2.msra.mxu0 %v3540
    %3889 = vmatprep.subr.mxu0 0.0
    %3890 = vmatpush2.msra.mxu0 %v3539
    %3891 = vmatprep.subr.mxu0 0.0
    %3892 = vmatpush2.msra.mxu0 %v3538
    %3893 = vmatprep.subr.mxu0 0.0
    %3894 = vmatpush2.msra.mxu0 %v3537
    %3895 = vmatprep.subr.mxu0 0.0
    %3896 = vmatpush2.msra.mxu0 %v3536
    %3897 = vmatprep.mubr.f32.mxu0 %v3827
    %3898 = vmatmul.mubr.f32.gmra.mxu0 %v3819
    %v3899 = vpop.f32.mrf.mxu0
    %v3900 = vadd.f32 %v3808, %v3899
    %v3901 = vpop.f32.mrf.mxu0
    %3902 = vdwg.mxu0
    %3903 = vmatprep.subr.mxu0 0.0
    %3904 = vmatpush1.msra.mxu0 %v3567
    %3905 = vmatprep.subr.mxu0 0.0
    %3906 = vmatpush1.msra.mxu0 %v3566
    %3907 = vmatprep.subr.mxu0 0.0
    %3908 = vmatpush1.msra.mxu0 %v3565
    %3909 = vmatprep.subr.mxu0 0.0
    %3910 = vmatpush1.msra.mxu0 %v3564
    %3911 = vmatprep.subr.mxu0 0.0
    %3912 = vmatpush1.msra.mxu0 %v3563
    %3913 = vmatprep.subr.mxu0 0.0
    %3914 = vmatpush1.msra.mxu0 %v3562
    %3915 = vmatprep.subr.mxu0 0.0
    %3916 = vmatpush1.msra.mxu0 %v3561
    %3917 = vmatprep.subr.mxu0 0.0
    %3918 = vmatpush1.msra.mxu0 %v3560
    %3919 = vmatprep.subr.mxu0 0.0
    %3920 = vmatpush1.msra.mxu0 %v3559
    %3921 = vmatprep.subr.mxu0 0.0
    %3922 = vmatpush1.msra.mxu0 %v3558
    %3923 = vmatprep.subr.mxu0 0.0
    %3924 = vmatpush1.msra.mxu0 %v3557
    %3925 = vmatprep.subr.mxu0 0.0
    %3926 = vmatpush1.msra.mxu0 %v3556
    %3927 = vmatprep.subr.mxu0 0.0
    %3928 = vmatpush1.msra.mxu0 %v3555
    %3929 = vmatprep.subr.mxu0 0.0
    %3930 = vmatpush1.msra.mxu0 %v3554
    %3931 = vmatprep.subr.mxu0 0.0
    %3932 = vmatpush1.msra.mxu0 %v3553
    %3933 = vmatprep.subr.mxu0 0.0
    %3934 = vmatpush1.msra.mxu0 %v3552
    %3935 = vmatprep.subr.mxu0 0.0
    %3936 = vmatpush2.msra.mxu0 %v3583
    %3937 = vmatprep.subr.mxu0 0.0
    %3938 = vmatpush2.msra.mxu0 %v3582
    %3939 = vmatprep.subr.mxu0 0.0
    %3940 = vmatpush2.msra.mxu0 %v3581
    %3941 = vmatprep.subr.mxu0 0.0
    %3942 = vmatpush2.msra.mxu0 %v3580
    %3943 = vmatprep.subr.mxu0 0.0
    %3944 = vmatpush2.msra.mxu0 %v3579
    %3945 = vmatprep.subr.mxu0 0.0
    %3946 = vmatpush2.msra.mxu0 %v3578
    %3947 = vmatprep.subr.mxu0 0.0
    %3948 = vmatpush2.msra.mxu0 %v3577
    %3949 = vmatprep.subr.mxu0 0.0
    %3950 = vmatpush2.msra.mxu0 %v3576
    %3951 = vmatprep.subr.mxu0 0.0
    %3952 = vmatpush2.msra.mxu0 %v3575
    %3953 = vmatprep.subr.mxu0 0.0
    %3954 = vmatpush2.msra.mxu0 %v3574
    %3955 = vmatprep.subr.mxu0 0.0
    %3956 = vmatpush2.msra.mxu0 %v3573
    %3957 = vmatprep.subr.mxu0 0.0
    %3958 = vmatpush2.msra.mxu0 %v3572
    %3959 = vmatprep.subr.mxu0 0.0
    %3960 = vmatpush2.msra.mxu0 %v3571
    %3961 = vmatprep.subr.mxu0 0.0
    %3962 = vmatpush2.msra.mxu0 %v3570
    %3963 = vmatprep.subr.mxu0 0.0
    %3964 = vmatpush2.msra.mxu0 %v3569
    %3965 = vmatprep.subr.mxu0 0.0
    %3966 = vmatpush2.msra.mxu0 %v3568
    %3967 = vmatprep.mubr.f32.mxu0 %v3828
    %3968 = vmatmul.mubr.f32.gmra.mxu0 %v3826
    %v3969 = vpop.f32.mrf.mxu0
    %v3970 = vadd.f32 %v3900, %v3969
    %v3971 = vpop.f32.mrf.mxu0
    %3972 = vdwg.mxu0
    %v3973 = vld [vmem:[#allocation6 + $0x10] sm:$0xff]
    %v3974 = vld [vmem:[%s5 + $0x400] sm:$0xff]
    %v3975 = vld [vmem:[%s5 + $0x408] sm:$0xff]
    %v3976 = vld [vmem:[%s5 + $0x410] sm:$0xff]
    %v3977 = vld [vmem:[%s5 + $0x418] sm:$0xff]
    %v3978 = vld [vmem:[%s5 + $0x420] sm:$0xff]
    %v3979 = vld [vmem:[%s5 + $0x428] sm:$0xff]
    %v3980 = vld [vmem:[%s5 + $0x430] sm:$0xff]
    %v3981 = vld [vmem:[%s5 + $0x438] sm:$0xff]
    %v3982 = vld [vmem:[%s5 + $0x440] sm:$0xff]
    %v3983 = vld [vmem:[%s5 + $0x448] sm:$0xff]
    %v3984 = vld [vmem:[%s5 + $0x450] sm:$0xff]
    %v3985 = vld [vmem:[%s5 + $0x458] sm:$0xff]
    %v3986 = vld [vmem:[%s5 + $0x460] sm:$0xff]
    %v3987 = vld [vmem:[%s5 + $0x468] sm:$0xff]
    %v3988 = vld [vmem:[%s5 + $0x470] sm:$0xff]
    %v3989 = vld [vmem:[%s5 + $0x478] sm:$0xff]
    %v3990 = vld [vmem:[%s5 + $0x480] sm:$0xff]
    %v3991 = vld [vmem:[%s5 + $0x488] sm:$0xff]
    %v3992 = vld [vmem:[%s5 + $0x490] sm:$0xff]
    %v3993 = vld [vmem:[%s5 + $0x498] sm:$0xff]
    %v3994 = vld [vmem:[%s5 + $0x4a0] sm:$0xff]
    %v3995 = vld [vmem:[%s5 + $0x4a8] sm:$0xff]
    %v3996 = vld [vmem:[%s5 + $0x4b0] sm:$0xff]
    %v3997 = vld [vmem:[%s5 + $0x4b8] sm:$0xff]
    %v3998 = vld [vmem:[%s5 + $0x4c0] sm:$0xff]
    %v3999 = vld [vmem:[%s5 + $0x4c8] sm:$0xff]
    %v4000 = vld [vmem:[%s5 + $0x4d0] sm:$0xff]
    %v4001 = vld [vmem:[%s5 + $0x4d8] sm:$0xff]
    %v4002 = vld [vmem:[%s5 + $0x4e0] sm:$0xff]
    %v4003 = vld [vmem:[%s5 + $0x4e8] sm:$0xff]
    %v4004 = vld [vmem:[%s5 + $0x4f0] sm:$0xff]
    %v4005 = vld [vmem:[%s5 + $0x4f8] sm:$0xff]
    %v4006 = vld [vmem:[%s5 + $0x500] sm:$0xff]
    %v4007 = vld [vmem:[%s5 + $0x508] sm:$0xff]
    %v4008 = vld [vmem:[%s5 + $0x510] sm:$0xff]
    %v4009 = vld [vmem:[%s5 + $0x518] sm:$0xff]
    %v4010 = vld [vmem:[%s5 + $0x520] sm:$0xff]
    %v4011 = vld [vmem:[%s5 + $0x528] sm:$0xff]
    %v4012 = vld [vmem:[%s5 + $0x530] sm:$0xff]
    %v4013 = vld [vmem:[%s5 + $0x538] sm:$0xff]
    %v4014 = vld [vmem:[%s5 + $0x540] sm:$0xff]
    %v4015 = vld [vmem:[%s5 + $0x548] sm:$0xff]
    %v4016 = vld [vmem:[%s5 + $0x550] sm:$0xff]
    %v4017 = vld [vmem:[%s5 + $0x558] sm:$0xff]
    %v4018 = vld [vmem:[%s5 + $0x560] sm:$0xff]
    %v4019 = vld [vmem:[%s5 + $0x568] sm:$0xff]
    %v4020 = vld [vmem:[%s5 + $0x570] sm:$0xff]
    %v4021 = vld [vmem:[%s5 + $0x578] sm:$0xff]
    %v4022 = vld [vmem:[%s5 + $0x580] sm:$0xff]
    %v4023 = vld [vmem:[%s5 + $0x588] sm:$0xff]
    %v4024 = vld [vmem:[%s5 + $0x590] sm:$0xff]
    %v4025 = vld [vmem:[%s5 + $0x598] sm:$0xff]
    %v4026 = vld [vmem:[%s5 + $0x5a0] sm:$0xff]
    %v4027 = vld [vmem:[%s5 + $0x5a8] sm:$0xff]
    %v4028 = vld [vmem:[%s5 + $0x5b0] sm:$0xff]
    %v4029 = vld [vmem:[%s5 + $0x5b8] sm:$0xff]
    %v4030 = vld [vmem:[%s5 + $0x5c0] sm:$0xff]
    %v4031 = vld [vmem:[%s5 + $0x5c8] sm:$0xff]
    %v4032 = vld [vmem:[%s5 + $0x5d0] sm:$0xff]
    %v4033 = vld [vmem:[%s5 + $0x5d8] sm:$0xff]
    %v4034 = vld [vmem:[%s5 + $0x5e0] sm:$0xff]
    %v4035 = vld [vmem:[%s5 + $0x5e8] sm:$0xff]
    %v4036 = vld [vmem:[%s5 + $0x5f0] sm:$0xff]
    %v4037 = vld [vmem:[%s5 + $0x5f8] sm:$0xff]
    %v4039 = vcombine.high %v3973, %v3973
    %v4041 = vunpack.c.l.s4 1983009808
    %v4042 = vunpack.c.0.s8 %v4041
    %v4043 = vlaneseq
    %v4044 = vshrl.u32 %v4043, 7
    %v4045 = vsub.s32 %v4042, %v4044
    %v4046 = vrot.slane %v3973, %v4045
    %v4048 = vunpack.c.l.s4 1983009808
    %v4049 = vunpack.c.0.s8 %v4048
    %v4050 = vlaneseq
    %v4051 = vshrl.u32 %v4050, 7
    %v4052 = vsub.s32 %v4049, %v4051
    %v4053 = vrot.slane %v4039, %v4052
    %v4054 = vcombine.high %v4046, %v4046
    %v4055 = vcombine.high %v4053, %v4053
    %4060 = vmatprep.subr.mxu0 0.0
    %4061 = vmatpush1.msra.mxu0 %v3989
    %4062 = vmatprep.subr.mxu0 0.0
    %4063 = vmatpush1.msra.mxu0 %v3988
    %4064 = vmatprep.subr.mxu0 0.0
    %4065 = vmatpush1.msra.mxu0 %v3987
    %4066 = vmatprep.subr.mxu0 0.0
    %4067 = vmatpush1.msra.mxu0 %v3986
    %4068 = vmatprep.subr.mxu0 0.0
    %4069 = vmatpush1.msra.mxu0 %v3985
    %4070 = vmatprep.subr.mxu0 0.0
    %4071 = vmatpush1.msra.mxu0 %v3984
    %4072 = vmatprep.subr.mxu0 0.0
    %4073 = vmatpush1.msra.mxu0 %v3983
    %4074 = vmatprep.subr.mxu0 0.0
    %4075 = vmatpush1.msra.mxu0 %v3982
    %4076 = vmatprep.subr.mxu0 0.0
    %4077 = vmatpush1.msra.mxu0 %v3981
    %4078 = vmatprep.subr.mxu0 0.0
    %4079 = vmatpush1.msra.mxu0 %v3980
    %4080 = vmatprep.subr.mxu0 0.0
    %4081 = vmatpush1.msra.mxu0 %v3979
    %4082 = vmatprep.subr.mxu0 0.0
    %4083 = vmatpush1.msra.mxu0 %v3978
    %4084 = vmatprep.subr.mxu0 0.0
    %4085 = vmatpush1.msra.mxu0 %v3977
    %4086 = vmatprep.subr.mxu0 0.0
    %4087 = vmatpush1.msra.mxu0 %v3976
    %4088 = vmatprep.subr.mxu0 0.0
    %4089 = vmatpush1.msra.mxu0 %v3975
    %4090 = vmatprep.subr.mxu0 0.0
    %4091 = vmatpush1.msra.mxu0 %v3974
    %4092 = vmatprep.subr.mxu0 0.0
    %4093 = vmatpush2.msra.mxu0 %v4005
    %4094 = vmatprep.subr.mxu0 0.0
    %4095 = vmatpush2.msra.mxu0 %v4004
    %4096 = vmatprep.subr.mxu0 0.0
    %4097 = vmatpush2.msra.mxu0 %v4003
    %4098 = vmatprep.subr.mxu0 0.0
    %4099 = vmatpush2.msra.mxu0 %v4002
    %4100 = vmatprep.subr.mxu0 0.0
    %4101 = vmatpush2.msra.mxu0 %v4001
    %4102 = vmatprep.subr.mxu0 0.0
    %4103 = vmatpush2.msra.mxu0 %v4000
    %4104 = vmatprep.subr.mxu0 0.0
    %4105 = vmatpush2.msra.mxu0 %v3999
    %4106 = vmatprep.subr.mxu0 0.0
    %4107 = vmatpush2.msra.mxu0 %v3998
    %4108 = vmatprep.subr.mxu0 0.0
    %4109 = vmatpush2.msra.mxu0 %v3997
    %4110 = vmatprep.subr.mxu0 0.0
    %4111 = vmatpush2.msra.mxu0 %v3996
    %4112 = vmatprep.subr.mxu0 0.0
    %4113 = vmatpush2.msra.mxu0 %v3995
    %4114 = vmatprep.subr.mxu0 0.0
    %4115 = vmatpush2.msra.mxu0 %v3994
    %4116 = vmatprep.subr.mxu0 0.0
    %4117 = vmatpush2.msra.mxu0 %v3993
    %4118 = vmatprep.subr.mxu0 0.0
    %4119 = vmatpush2.msra.mxu0 %v3992
    %4120 = vmatprep.subr.mxu0 0.0
    %4121 = vmatpush2.msra.mxu0 %v3991
    %4122 = vmatprep.subr.mxu0 0.0
    %4123 = vmatpush2.msra.mxu0 %v3990
    %4124 = vmatprep.mubr.f32.mxu0 %v4054
    %4125 = vmatmul.mubr.f32.gmra.mxu0 %v4046
    %v4126 = vpop.f32.mrf.mxu0
    %v4127 = vadd.f32 0.0, %v4126
    %v4128 = vpop.f32.mrf.mxu0
    %4129 = vdwg.mxu0
    %4130 = vmatprep.subr.mxu0 0.0
    %4131 = vmatpush1.msra.mxu0 %v4021
    %4132 = vmatprep.subr.mxu0 0.0
    %4133 = vmatpush1.msra.mxu0 %v4020
    %4134 = vmatprep.subr.mxu0 0.0
    %4135 = vmatpush1.msra.mxu0 %v4019
    %4136 = vmatprep.subr.mxu0 0.0
    %4137 = vmatpush1.msra.mxu0 %v4018
    %4138 = vmatprep.subr.mxu0 0.0
    %4139 = vmatpush1.msra.mxu0 %v4017
    %4140 = vmatprep.subr.mxu0 0.0
    %4141 = vmatpush1.msra.mxu0 %v4016
    %4142 = vmatprep.subr.mxu0 0.0
    %4143 = vmatpush1.msra.mxu0 %v4015
    %4144 = vmatprep.subr.mxu0 0.0
    %4145 = vmatpush1.msra.mxu0 %v4014
    %4146 = vmatprep.subr.mxu0 0.0
    %4147 = vmatpush1.msra.mxu0 %v4013
    %4148 = vmatprep.subr.mxu0 0.0
    %4149 = vmatpush1.msra.mxu0 %v4012
    %4150 = vmatprep.subr.mxu0 0.0
    %4151 = vmatpush1.msra.mxu0 %v4011
    %4152 = vmatprep.subr.mxu0 0.0
    %4153 = vmatpush1.msra.mxu0 %v4010
    %4154 = vmatprep.subr.mxu0 0.0
    %4155 = vmatpush1.msra.mxu0 %v4009
    %4156 = vmatprep.subr.mxu0 0.0
    %4157 = vmatpush1.msra.mxu0 %v4008
    %4158 = vmatprep.subr.mxu0 0.0
    %4159 = vmatpush1.msra.mxu0 %v4007
    %4160 = vmatprep.subr.mxu0 0.0
    %4161 = vmatpush1.msra.mxu0 %v4006
    %4162 = vmatprep.subr.mxu0 0.0
    %4163 = vmatpush2.msra.mxu0 %v4037
    %4164 = vmatprep.subr.mxu0 0.0
    %4165 = vmatpush2.msra.mxu0 %v4036
    %4166 = vmatprep.subr.mxu0 0.0
    %4167 = vmatpush2.msra.mxu0 %v4035
    %4168 = vmatprep.subr.mxu0 0.0
    %4169 = vmatpush2.msra.mxu0 %v4034
    %4170 = vmatprep.subr.mxu0 0.0
    %4171 = vmatpush2.msra.mxu0 %v4033
    %4172 = vmatprep.subr.mxu0 0.0
    %4173 = vmatpush2.msra.mxu0 %v4032
    %4174 = vmatprep.subr.mxu0 0.0
    %4175 = vmatpush2.msra.mxu0 %v4031
    %4176 = vmatprep.subr.mxu0 0.0
    %4177 = vmatpush2.msra.mxu0 %v4030
    %4178 = vmatprep.subr.mxu0 0.0
    %4179 = vmatpush2.msra.mxu0 %v4029
    %4180 = vmatprep.subr.mxu0 0.0
    %4181 = vmatpush2.msra.mxu0 %v4028
    %4182 = vmatprep.subr.mxu0 0.0
    %4183 = vmatpush2.msra.mxu0 %v4027
    %4184 = vmatprep.subr.mxu0 0.0
    %4185 = vmatpush2.msra.mxu0 %v4026
    %4186 = vmatprep.subr.mxu0 0.0
    %4187 = vmatpush2.msra.mxu0 %v4025
    %4188 = vmatprep.subr.mxu0 0.0
    %4189 = vmatpush2.msra.mxu0 %v4024
    %4190 = vmatprep.subr.mxu0 0.0
    %4191 = vmatpush2.msra.mxu0 %v4023
    %4192 = vmatprep.subr.mxu0 0.0
    %4193 = vmatpush2.msra.mxu0 %v4022
    %4194 = vmatprep.mubr.f32.mxu0 %v4055
    %4195 = vmatmul.mubr.f32.gmra.mxu0 %v4053
    %v4196 = vpop.f32.mrf.mxu0
    %v4197 = vadd.f32 %v4127, %v4196
    %v4198 = vpop.f32.mrf.mxu0
    %4199 = vdwg.mxu0
    %v4200 = vadd.f32 %v3970, %v4197
    %v4201 = vld [vmem:[#allocation6 + $0x18] sm:$0xff]
    %v4202 = vld [vmem:[%s5 + $0x600] sm:$0xff]
    %v4203 = vld [vmem:[%s5 + $0x608] sm:$0xff]
    %v4204 = vld [vmem:[%s5 + $0x610] sm:$0xff]
    %v4205 = vld [vmem:[%s5 + $0x618] sm:$0xff]
    %v4206 = vld [vmem:[%s5 + $0x620] sm:$0xff]
    %v4207 = vld [vmem:[%s5 + $0x628] sm:$0xff]
    %v4208 = vld [vmem:[%s5 + $0x630] sm:$0xff]
    %v4209 = vld [vmem:[%s5 + $0x638] sm:$0xff]
    %v4210 = vld [vmem:[%s5 + $0x640] sm:$0xff]
    %v4211 = vld [vmem:[%s5 + $0x648] sm:$0xff]
    %v4212 = vld [vmem:[%s5 + $0x650] sm:$0xff]
    %v4213 = vld [vmem:[%s5 + $0x658] sm:$0xff]
    %v4214 = vld [vmem:[%s5 + $0x660] sm:$0xff]
    %v4215 = vld [vmem:[%s5 + $0x668] sm:$0xff]
    %v4216 = vld [vmem:[%s5 + $0x670] sm:$0xff]
    %v4217 = vld [vmem:[%s5 + $0x678] sm:$0xff]
    %v4218 = vld [vmem:[%s5 + $0x680] sm:$0xff]
    %v4219 = vld [vmem:[%s5 + $0x688] sm:$0xff]
    %v4220 = vld [vmem:[%s5 + $0x690] sm:$0xff]
    %v4221 = vld [vmem:[%s5 + $0x698] sm:$0xff]
    %v4222 = vld [vmem:[%s5 + $0x6a0] sm:$0xff]
    %v4223 = vld [vmem:[%s5 + $0x6a8] sm:$0xff]
    %v4224 = vld [vmem:[%s5 + $0x6b0] sm:$0xff]
    %v4225 = vld [vmem:[%s5 + $0x6b8] sm:$0xff]
    %v4226 = vld [vmem:[%s5 + $0x6c0] sm:$0xff]
    %v4227 = vld [vmem:[%s5 + $0x6c8] sm:$0xff]
    %v4228 = vld [vmem:[%s5 + $0x6d0] sm:$0xff]
    %v4229 = vld [vmem:[%s5 + $0x6d8] sm:$0xff]
    %v4230 = vld [vmem:[%s5 + $0x6e0] sm:$0xff]
    %v4231 = vld [vmem:[%s5 + $0x6e8] sm:$0xff]
    %v4232 = vld [vmem:[%s5 + $0x6f0] sm:$0xff]
    %v4233 = vld [vmem:[%s5 + $0x6f8] sm:$0xff]
    %v4234 = vld [vmem:[%s5 + $0x700] sm:$0xff]
    %v4235 = vld [vmem:[%s5 + $0x708] sm:$0xff]
    %v4236 = vld [vmem:[%s5 + $0x710] sm:$0xff]
    %v4237 = vld [vmem:[%s5 + $0x718] sm:$0xff]
    %v4238 = vld [vmem:[%s5 + $0x720] sm:$0xff]
    %v4239 = vld [vmem:[%s5 + $0x728] sm:$0xff]
    %v4240 = vld [vmem:[%s5 + $0x730] sm:$0xff]
    %v4241 = vld [vmem:[%s5 + $0x738] sm:$0xff]
    %v4242 = vld [vmem:[%s5 + $0x740] sm:$0xff]
    %v4243 = vld [vmem:[%s5 + $0x748] sm:$0xff]
    %v4244 = vld [vmem:[%s5 + $0x750] sm:$0xff]
    %v4245 = vld [vmem:[%s5 + $0x758] sm:$0xff]
    %v4246 = vld [vmem:[%s5 + $0x760] sm:$0xff]
    %v4247 = vld [vmem:[%s5 + $0x768] sm:$0xff]
    %v4248 = vld [vmem:[%s5 + $0x770] sm:$0xff]
    %v4249 = vld [vmem:[%s5 + $0x778] sm:$0xff]
    %v4250 = vld [vmem:[%s5 + $0x780] sm:$0xff]
    %v4251 = vld [vmem:[%s5 + $0x788] sm:$0xff]
    %v4252 = vld [vmem:[%s5 + $0x790] sm:$0xff]
    %v4253 = vld [vmem:[%s5 + $0x798] sm:$0xff]
    %v4254 = vld [vmem:[%s5 + $0x7a0] sm:$0xff]
    %v4255 = vld [vmem:[%s5 + $0x7a8] sm:$0xff]
    %v4256 = vld [vmem:[%s5 + $0x7b0] sm:$0xff]
    %v4257 = vld [vmem:[%s5 + $0x7b8] sm:$0xff]
    %v4258 = vld [vmem:[%s5 + $0x7c0] sm:$0xff]
    %v4259 = vld [vmem:[%s5 + $0x7c8] sm:$0xff]
    %v4260 = vld [vmem:[%s5 + $0x7d0] sm:$0xff]
    %v4261 = vld [vmem:[%s5 + $0x7d8] sm:$0xff]
    %v4262 = vld [vmem:[%s5 + $0x7e0] sm:$0xff]
    %v4263 = vld [vmem:[%s5 + $0x7e8] sm:$0xff]
    %v4264 = vld [vmem:[%s5 + $0x7f0] sm:$0xff]
    %v4265 = vld [vmem:[%s5 + $0x7f8] sm:$0xff]
    %v4267 = vcombine.high %v4201, %v4201
    %v4269 = vunpack.c.l.s4 1983009808
    %v4270 = vunpack.c.0.s8 %v4269
    %v4271 = vlaneseq
    %v4272 = vshrl.u32 %v4271, 7
    %v4273 = vsub.s32 %v4270, %v4272
    %v4274 = vrot.slane %v4201, %v4273
    %v4276 = vunpack.c.l.s4 1983009808
    %v4277 = vunpack.c.0.s8 %v4276
    %v4278 = vlaneseq
    %v4279 = vshrl.u32 %v4278, 7
    %v4280 = vsub.s32 %v4277, %v4279
    %v4281 = vrot.slane %v4267, %v4280
    %v4282 = vcombine.high %v4274, %v4274
    %v4283 = vcombine.high %v4281, %v4281
    %4288 = vmatprep.subr.mxu0 0.0
    %4289 = vmatpush1.msra.mxu0 %v4217
    %4290 = vmatprep.subr.mxu0 0.0
    %4291 = vmatpush1.msra.mxu0 %v4216
    %4292 = vmatprep.subr.mxu0 0.0
    %4293 = vmatpush1.msra.mxu0 %v4215
    %4294 = vmatprep.subr.mxu0 0.0
    %4295 = vmatpush1.msra.mxu0 %v4214
    %4296 = vmatprep.subr.mxu0 0.0
    %4297 = vmatpush1.msra.mxu0 %v4213
    %4298 = vmatprep.subr.mxu0 0.0
    %4299 = vmatpush1.msra.mxu0 %v4212
    %4300 = vmatprep.subr.mxu0 0.0
    %4301 = vmatpush1.msra.mxu0 %v4211
    %4302 = vmatprep.subr.mxu0 0.0
    %4303 = vmatpush1.msra.mxu0 %v4210
    %4304 = vmatprep.subr.mxu0 0.0
    %4305 = vmatpush1.msra.mxu0 %v4209
    %4306 = vmatprep.subr.mxu0 0.0
    %4307 = vmatpush1.msra.mxu0 %v4208
    %4308 = vmatprep.subr.mxu0 0.0
    %4309 = vmatpush1.msra.mxu0 %v4207
    %4310 = vmatprep.subr.mxu0 0.0
    %4311 = vmatpush1.msra.mxu0 %v4206
    %4312 = vmatprep.subr.mxu0 0.0
    %4313 = vmatpush1.msra.mxu0 %v4205
    %4314 = vmatprep.subr.mxu0 0.0
    %4315 = vmatpush1.msra.mxu0 %v4204
    %4316 = vmatprep.subr.mxu0 0.0
    %4317 = vmatpush1.msra.mxu0 %v4203
    %4318 = vmatprep.subr.mxu0 0.0
    %4319 = vmatpush1.msra.mxu0 %v4202
    %4320 = vmatprep.subr.mxu0 0.0
    %4321 = vmatpush2.msra.mxu0 %v4233
    %4322 = vmatprep.subr.mxu0 0.0
    %4323 = vmatpush2.msra.mxu0 %v4232
    %4324 = vmatprep.subr.mxu0 0.0
    %4325 = vmatpush2.msra.mxu0 %v4231
    %4326 = vmatprep.subr.mxu0 0.0
    %4327 = vmatpush2.msra.mxu0 %v4230
    %4328 = vmatprep.subr.mxu0 0.0
    %4329 = vmatpush2.msra.mxu0 %v4229
    %4330 = vmatprep.subr.mxu0 0.0
    %4331 = vmatpush2.msra.mxu0 %v4228
    %4332 = vmatprep.subr.mxu0 0.0
    %4333 = vmatpush2.msra.mxu0 %v4227
    %4334 = vmatprep.subr.mxu0 0.0
    %4335 = vmatpush2.msra.mxu0 %v4226
    %4336 = vmatprep.subr.mxu0 0.0
    %4337 = vmatpush2.msra.mxu0 %v4225
    %4338 = vmatprep.subr.mxu0 0.0
    %4339 = vmatpush2.msra.mxu0 %v4224
    %4340 = vmatprep.subr.mxu0 0.0
    %4341 = vmatpush2.msra.mxu0 %v4223
    %4342 = vmatprep.subr.mxu0 0.0
    %4343 = vmatpush2.msra.mxu0 %v4222
    %4344 = vmatprep.subr.mxu0 0.0
    %4345 = vmatpush2.msra.mxu0 %v4221
    %4346 = vmatprep.subr.mxu0 0.0
    %4347 = vmatpush2.msra.mxu0 %v4220
    %4348 = vmatprep.subr.mxu0 0.0
    %4349 = vmatpush2.msra.mxu0 %v4219
    %4350 = vmatprep.subr.mxu0 0.0
    %4351 = vmatpush2.msra.mxu0 %v4218
    %4352 = vmatprep.mubr.f32.mxu0 %v4282
    %4353 = vmatmul.mubr.f32.gmra.mxu0 %v4274
    %v4354 = vpop.f32.mrf.mxu0
    %v4355 = vadd.f32 0.0, %v4354
    %v4356 = vpop.f32.mrf.mxu0
    %4357 = vdwg.mxu0
    %4358 = vmatprep.subr.mxu0 0.0
    %4359 = vmatpush1.msra.mxu0 %v4249
    %4360 = vmatprep.subr.mxu0 0.0
    %4361 = vmatpush1.msra.mxu0 %v4248
    %4362 = vmatprep.subr.mxu0 0.0
    %4363 = vmatpush1.msra.mxu0 %v4247
    %4364 = vmatprep.subr.mxu0 0.0
    %4365 = vmatpush1.msra.mxu0 %v4246
    %4366 = vmatprep.subr.mxu0 0.0
    %4367 = vmatpush1.msra.mxu0 %v4245
    %4368 = vmatprep.subr.mxu0 0.0
    %4369 = vmatpush1.msra.mxu0 %v4244
    %4370 = vmatprep.subr.mxu0 0.0
    %4371 = vmatpush1.msra.mxu0 %v4243
    %4372 = vmatprep.subr.mxu0 0.0
    %4373 = vmatpush1.msra.mxu0 %v4242
    %4374 = vmatprep.subr.mxu0 0.0
    %4375 = vmatpush1.msra.mxu0 %v4241
    %4376 = vmatprep.subr.mxu0 0.0
    %4377 = vmatpush1.msra.mxu0 %v4240
    %4378 = vmatprep.subr.mxu0 0.0
    %4379 = vmatpush1.msra.mxu0 %v4239
    %4380 = vmatprep.subr.mxu0 0.0
    %4381 = vmatpush1.msra.mxu0 %v4238
    %4382 = vmatprep.subr.mxu0 0.0
    %4383 = vmatpush1.msra.mxu0 %v4237
    %4384 = vmatprep.subr.mxu0 0.0
    %4385 = vmatpush1.msra.mxu0 %v4236
    %4386 = vmatprep.subr.mxu0 0.0
    %4387 = vmatpush1.msra.mxu0 %v4235
    %4388 = vmatprep.subr.mxu0 0.0
    %4389 = vmatpush1.msra.mxu0 %v4234
    %4390 = vmatprep.subr.mxu0 0.0
    %4391 = vmatpush2.msra.mxu0 %v4265
    %4392 = vmatprep.subr.mxu0 0.0
    %4393 = vmatpush2.msra.mxu0 %v4264
    %4394 = vmatprep.subr.mxu0 0.0
    %4395 = vmatpush2.msra.mxu0 %v4263
    %4396 = vmatprep.subr.mxu0 0.0
    %4397 = vmatpush2.msra.mxu0 %v4262
    %4398 = vmatprep.subr.mxu0 0.0
    %4399 = vmatpush2.msra.mxu0 %v4261
    %4400 = vmatprep.subr.mxu0 0.0
    %4401 = vmatpush2.msra.mxu0 %v4260
    %4402 = vmatprep.subr.mxu0 0.0
    %4403 = vmatpush2.msra.mxu0 %v4259
    %4404 = vmatprep.subr.mxu0 0.0
    %4405 = vmatpush2.msra.mxu0 %v4258
    %4406 = vmatprep.subr.mxu0 0.0
    %4407 = vmatpush2.msra.mxu0 %v4257
    %4408 = vmatprep.subr.mxu0 0.0
    %4409 = vmatpush2.msra.mxu0 %v4256
    %4410 = vmatprep.subr.mxu0 0.0
    %4411 = vmatpush2.msra.mxu0 %v4255
    %4412 = vmatprep.subr.mxu0 0.0
    %4413 = vmatpush2.msra.mxu0 %v4254
    %4414 = vmatprep.subr.mxu0 0.0
    %4415 = vmatpush2.msra.mxu0 %v4253
    %4416 = vmatprep.subr.mxu0 0.0
    %4417 = vmatpush2.msra.mxu0 %v4252
    %4418 = vmatprep.subr.mxu0 0.0
    %4419 = vmatpush2.msra.mxu0 %v4251
    %4420 = vmatprep.subr.mxu0 0.0
    %4421 = vmatpush2.msra.mxu0 %v4250
    %4422 = vmatprep.mubr.f32.mxu0 %v4283
    %4423 = vmatmul.mubr.f32.gmra.mxu0 %v4281
    %v4424 = vpop.f32.mrf.mxu0
    %v4425 = vadd.f32 %v4355, %v4424
    %v4426 = vpop.f32.mrf.mxu0
    %4427 = vdwg.mxu0
    %v4428 = vadd.f32 %v4200, %v4425
    %v4429 = vld [vmem:[#allocation6 + $0x20] sm:$0xff]
    %v4430 = vld [vmem:[%s5 + $0x800] sm:$0xff]
    %v4431 = vld [vmem:[%s5 + $0x808] sm:$0xff]
    %v4432 = vld [vmem:[%s5 + $0x810] sm:$0xff]
    %v4433 = vld [vmem:[%s5 + $0x818] sm:$0xff]
    %v4434 = vld [vmem:[%s5 + $0x820] sm:$0xff]
    %v4435 = vld [vmem:[%s5 + $0x828] sm:$0xff]
    %v4436 = vld [vmem:[%s5 + $0x830] sm:$0xff]
    %v4437 = vld [vmem:[%s5 + $0x838] sm:$0xff]
    %v4438 = vld [vmem:[%s5 + $0x840] sm:$0xff]
    %v4439 = vld [vmem:[%s5 + $0x848] sm:$0xff]
    %v4440 = vld [vmem:[%s5 + $0x850] sm:$0xff]
    %v4441 = vld [vmem:[%s5 + $0x858] sm:$0xff]
    %v4442 = vld [vmem:[%s5 + $0x860] sm:$0xff]
    %v4443 = vld [vmem:[%s5 + $0x868] sm:$0xff]
    %v4444 = vld [vmem:[%s5 + $0x870] sm:$0xff]
    %v4445 = vld [vmem:[%s5 + $0x878] sm:$0xff]
    %v4446 = vld [vmem:[%s5 + $0x880] sm:$0xff]
    %v4447 = vld [vmem:[%s5 + $0x888] sm:$0xff]
    %v4448 = vld [vmem:[%s5 + $0x890] sm:$0xff]
    %v4449 = vld [vmem:[%s5 + $0x898] sm:$0xff]
    %v4450 = vld [vmem:[%s5 + $0x8a0] sm:$0xff]
    %v4451 = vld [vmem:[%s5 + $0x8a8] sm:$0xff]
    %v4452 = vld [vmem:[%s5 + $0x8b0] sm:$0xff]
    %v4453 = vld [vmem:[%s5 + $0x8b8] sm:$0xff]
    %v4454 = vld [vmem:[%s5 + $0x8c0] sm:$0xff]
    %v4455 = vld [vmem:[%s5 + $0x8c8] sm:$0xff]
    %v4456 = vld [vmem:[%s5 + $0x8d0] sm:$0xff]
    %v4457 = vld [vmem:[%s5 + $0x8d8] sm:$0xff]
    %v4458 = vld [vmem:[%s5 + $0x8e0] sm:$0xff]
    %v4459 = vld [vmem:[%s5 + $0x8e8] sm:$0xff]
    %v4460 = vld [vmem:[%s5 + $0x8f0] sm:$0xff]
    %v4461 = vld [vmem:[%s5 + $0x8f8] sm:$0xff]
    %v4462 = vld [vmem:[%s5 + $0x900] sm:$0xff]
    %v4463 = vld [vmem:[%s5 + $0x908] sm:$0xff]
    %v4464 = vld [vmem:[%s5 + $0x910] sm:$0xff]
    %v4465 = vld [vmem:[%s5 + $0x918] sm:$0xff]
    %v4466 = vld [vmem:[%s5 + $0x920] sm:$0xff]
    %v4467 = vld [vmem:[%s5 + $0x928] sm:$0xff]
    %v4468 = vld [vmem:[%s5 + $0x930] sm:$0xff]
    %v4469 = vld [vmem:[%s5 + $0x938] sm:$0xff]
    %v4470 = vld [vmem:[%s5 + $0x940] sm:$0xff]
    %v4471 = vld [vmem:[%s5 + $0x948] sm:$0xff]
    %v4472 = vld [vmem:[%s5 + $0x950] sm:$0xff]
    %v4473 = vld [vmem:[%s5 + $0x958] sm:$0xff]
    %v4474 = vld [vmem:[%s5 + $0x960] sm:$0xff]
    %v4475 = vld [vmem:[%s5 + $0x968] sm:$0xff]
    %v4476 = vld [vmem:[%s5 + $0x970] sm:$0xff]
    %v4477 = vld [vmem:[%s5 + $0x978] sm:$0xff]
    %v4478 = vld [vmem:[%s5 + $0x980] sm:$0xff]
    %v4479 = vld [vmem:[%s5 + $0x988] sm:$0xff]
    %v4480 = vld [vmem:[%s5 + $0x990] sm:$0xff]
    %v4481 = vld [vmem:[%s5 + $0x998] sm:$0xff]
    %v4482 = vld [vmem:[%s5 + $0x9a0] sm:$0xff]
    %v4483 = vld [vmem:[%s5 + $0x9a8] sm:$0xff]
    %v4484 = vld [vmem:[%s5 + $0x9b0] sm:$0xff]
    %v4485 = vld [vmem:[%s5 + $0x9b8] sm:$0xff]
    %v4486 = vld [vmem:[%s5 + $0x9c0] sm:$0xff]
    %v4487 = vld [vmem:[%s5 + $0x9c8] sm:$0xff]
    %v4488 = vld [vmem:[%s5 + $0x9d0] sm:$0xff]
    %v4489 = vld [vmem:[%s5 + $0x9d8] sm:$0xff]
    %v4490 = vld [vmem:[%s5 + $0x9e0] sm:$0xff]
    %v4491 = vld [vmem:[%s5 + $0x9e8] sm:$0xff]
    %v4492 = vld [vmem:[%s5 + $0x9f0] sm:$0xff]
    %v4493 = vld [vmem:[%s5 + $0x9f8] sm:$0xff]
    %v4495 = vcombine.high %v4429, %v4429
    %v4497 = vunpack.c.l.s4 1983009808
    %v4498 = vunpack.c.0.s8 %v4497
    %v4499 = vlaneseq
    %v4500 = vshrl.u32 %v4499, 7
    %v4501 = vsub.s32 %v4498, %v4500
    %v4502 = vrot.slane %v4429, %v4501
    %v4504 = vunpack.c.l.s4 1983009808
    %v4505 = vunpack.c.0.s8 %v4504
    %v4506 = vlaneseq
    %v4507 = vshrl.u32 %v4506, 7
    %v4508 = vsub.s32 %v4505, %v4507
    %v4509 = vrot.slane %v4495, %v4508
    %v4510 = vcombine.high %v4502, %v4502
    %v4511 = vcombine.high %v4509, %v4509
    %4516 = vmatprep.subr.mxu0 0.0
    %4517 = vmatpush1.msra.mxu0 %v4445
    %4518 = vmatprep.subr.mxu0 0.0
    %4519 = vmatpush1.msra.mxu0 %v4444
    %4520 = vmatprep.subr.mxu0 0.0
    %4521 = vmatpush1.msra.mxu0 %v4443
    %4522 = vmatprep.subr.mxu0 0.0
    %4523 = vmatpush1.msra.mxu0 %v4442
    %4524 = vmatprep.subr.mxu0 0.0
    %4525 = vmatpush1.msra.mxu0 %v4441
    %4526 = vmatprep.subr.mxu0 0.0
    %4527 = vmatpush1.msra.mxu0 %v4440
    %4528 = vmatprep.subr.mxu0 0.0
    %4529 = vmatpush1.msra.mxu0 %v4439
    %4530 = vmatprep.subr.mxu0 0.0
    %4531 = vmatpush1.msra.mxu0 %v4438
    %4532 = vmatprep.subr.mxu0 0.0
    %4533 = vmatpush1.msra.mxu0 %v4437
    %4534 = vmatprep.subr.mxu0 0.0
    %4535 = vmatpush1.msra.mxu0 %v4436
    %4536 = vmatprep.subr.mxu0 0.0
    %4537 = vmatpush1.msra.mxu0 %v4435
    %4538 = vmatprep.subr.mxu0 0.0
    %4539 = vmatpush1.msra.mxu0 %v4434
    %4540 = vmatprep.subr.mxu0 0.0
    %4541 = vmatpush1.msra.mxu0 %v4433
    %4542 = vmatprep.subr.mxu0 0.0
    %4543 = vmatpush1.msra.mxu0 %v4432
    %4544 = vmatprep.subr.mxu0 0.0
    %4545 = vmatpush1.msra.mxu0 %v4431
    %4546 = vmatprep.subr.mxu0 0.0
    %4547 = vmatpush1.msra.mxu0 %v4430
    %4548 = vmatprep.subr.mxu0 0.0
    %4549 = vmatpush2.msra.mxu0 %v4461
    %4550 = vmatprep.subr.mxu0 0.0
    %4551 = vmatpush2.msra.mxu0 %v4460
    %4552 = vmatprep.subr.mxu0 0.0
    %4553 = vmatpush2.msra.mxu0 %v4459
    %4554 = vmatprep.subr.mxu0 0.0
    %4555 = vmatpush2.msra.mxu0 %v4458
    %4556 = vmatprep.subr.mxu0 0.0
    %4557 = vmatpush2.msra.mxu0 %v4457
    %4558 = vmatprep.subr.mxu0 0.0
    %4559 = vmatpush2.msra.mxu0 %v4456
    %4560 = vmatprep.subr.mxu0 0.0
    %4561 = vmatpush2.msra.mxu0 %v4455
    %4562 = vmatprep.subr.mxu0 0.0
    %4563 = vmatpush2.msra.mxu0 %v4454
    %4564 = vmatprep.subr.mxu0 0.0
    %4565 = vmatpush2.msra.mxu0 %v4453
    %4566 = vmatprep.subr.mxu0 0.0
    %4567 = vmatpush2.msra.mxu0 %v4452
    %4568 = vmatprep.subr.mxu0 0.0
    %4569 = vmatpush2.msra.mxu0 %v4451
    %4570 = vmatprep.subr.mxu0 0.0
    %4571 = vmatpush2.msra.mxu0 %v4450
    %4572 = vmatprep.subr.mxu0 0.0
    %4573 = vmatpush2.msra.mxu0 %v4449
    %4574 = vmatprep.subr.mxu0 0.0
    %4575 = vmatpush2.msra.mxu0 %v4448
    %4576 = vmatprep.subr.mxu0 0.0
    %4577 = vmatpush2.msra.mxu0 %v4447
    %4578 = vmatprep.subr.mxu0 0.0
    %4579 = vmatpush2.msra.mxu0 %v4446
    %4580 = vmatprep.mubr.f32.mxu0 %v4510
    %4581 = vmatmul.mubr.f32.gmra.mxu0 %v4502
    %v4582 = vpop.f32.mrf.mxu0
    %v4583 = vadd.f32 0.0, %v4582
    %v4584 = vpop.f32.mrf.mxu0
    %4585 = vdwg.mxu0
    %4586 = vmatprep.subr.mxu0 0.0
    %4587 = vmatpush1.msra.mxu0 %v4477
    %4588 = vmatprep.subr.mxu0 0.0
    %4589 = vmatpush1.msra.mxu0 %v4476
    %4590 = vmatprep.subr.mxu0 0.0
    %4591 = vmatpush1.msra.mxu0 %v4475
    %4592 = vmatprep.subr.mxu0 0.0
    %4593 = vmatpush1.msra.mxu0 %v4474
    %4594 = vmatprep.subr.mxu0 0.0
    %4595 = vmatpush1.msra.mxu0 %v4473
    %4596 = vmatprep.subr.mxu0 0.0
    %4597 = vmatpush1.msra.mxu0 %v4472
    %4598 = vmatprep.subr.mxu0 0.0
    %4599 = vmatpush1.msra.mxu0 %v4471
    %4600 = vmatprep.subr.mxu0 0.0
    %4601 = vmatpush1.msra.mxu0 %v4470
    %4602 = vmatprep.subr.mxu0 0.0
    %4603 = vmatpush1.msra.mxu0 %v4469
    %4604 = vmatprep.subr.mxu0 0.0
    %4605 = vmatpush1.msra.mxu0 %v4468
    %4606 = vmatprep.subr.mxu0 0.0
    %4607 = vmatpush1.msra.mxu0 %v4467
    %4608 = vmatprep.subr.mxu0 0.0
    %4609 = vmatpush1.msra.mxu0 %v4466
    %4610 = vmatprep.subr.mxu0 0.0
    %4611 = vmatpush1.msra.mxu0 %v4465
    %4612 = vmatprep.subr.mxu0 0.0
    %4613 = vmatpush1.msra.mxu0 %v4464
    %4614 = vmatprep.subr.mxu0 0.0
    %4615 = vmatpush1.msra.mxu0 %v4463
    %4616 = vmatprep.subr.mxu0 0.0
    %4617 = vmatpush1.msra.mxu0 %v4462
    %4618 = vmatprep.subr.mxu0 0.0
    %4619 = vmatpush2.msra.mxu0 %v4493
    %4620 = vmatprep.subr.mxu0 0.0
    %4621 = vmatpush2.msra.mxu0 %v4492
    %4622 = vmatprep.subr.mxu0 0.0
    %4623 = vmatpush2.msra.mxu0 %v4491
    %4624 = vmatprep.subr.mxu0 0.0
    %4625 = vmatpush2.msra.mxu0 %v4490
    %4626 = vmatprep.subr.mxu0 0.0
    %4627 = vmatpush2.msra.mxu0 %v4489
    %4628 = vmatprep.subr.mxu0 0.0
    %4629 = vmatpush2.msra.mxu0 %v4488
    %4630 = vmatprep.subr.mxu0 0.0
    %4631 = vmatpush2.msra.mxu0 %v4487
    %4632 = vmatprep.subr.mxu0 0.0
    %4633 = vmatpush2.msra.mxu0 %v4486
    %4634 = vmatprep.subr.mxu0 0.0
    %4635 = vmatpush2.msra.mxu0 %v4485
    %4636 = vmatprep.subr.mxu0 0.0
    %4637 = vmatpush2.msra.mxu0 %v4484
    %4638 = vmatprep.subr.mxu0 0.0
    %4639 = vmatpush2.msra.mxu0 %v4483
    %4640 = vmatprep.subr.mxu0 0.0
    %4641 = vmatpush2.msra.mxu0 %v4482
    %4642 = vmatprep.subr.mxu0 0.0
    %4643 = vmatpush2.msra.mxu0 %v4481
    %4644 = vmatprep.subr.mxu0 0.0
    %4645 = vmatpush2.msra.mxu0 %v4480
    %4646 = vmatprep.subr.mxu0 0.0
    %4647 = vmatpush2.msra.mxu0 %v4479
    %4648 = vmatprep.subr.mxu0 0.0
    %4649 = vmatpush2.msra.mxu0 %v4478
    %4650 = vmatprep.mubr.f32.mxu0 %v4511
    %4651 = vmatmul.mubr.f32.gmra.mxu0 %v4509
    %v4652 = vpop.f32.mrf.mxu0
    %v4653 = vadd.f32 %v4583, %v4652
    %v4654 = vpop.f32.mrf.mxu0
    %4655 = vdwg.mxu0
    %v4656 = vadd.f32 %v4428, %v4653
    %v4657 = vld [vmem:[#allocation6 + $0x28] sm:$0xff]
    %v4658 = vld [vmem:[%s5 + $0xa00] sm:$0xff]
    %v4659 = vld [vmem:[%s5 + $0xa08] sm:$0xff]
    %v4660 = vld [vmem:[%s5 + $0xa10] sm:$0xff]
    %v4661 = vld [vmem:[%s5 + $0xa18] sm:$0xff]
    %v4662 = vld [vmem:[%s5 + $0xa20] sm:$0xff]
    %v4663 = vld [vmem:[%s5 + $0xa28] sm:$0xff]
    %v4664 = vld [vmem:[%s5 + $0xa30] sm:$0xff]
    %v4665 = vld [vmem:[%s5 + $0xa38] sm:$0xff]
    %v4666 = vld [vmem:[%s5 + $0xa40] sm:$0xff]
    %v4667 = vld [vmem:[%s5 + $0xa48] sm:$0xff]
    %v4668 = vld [vmem:[%s5 + $0xa50] sm:$0xff]
    %v4669 = vld [vmem:[%s5 + $0xa58] sm:$0xff]
    %v4670 = vld [vmem:[%s5 + $0xa60] sm:$0xff]
    %v4671 = vld [vmem:[%s5 + $0xa68] sm:$0xff]
    %v4672 = vld [vmem:[%s5 + $0xa70] sm:$0xff]
    %v4673 = vld [vmem:[%s5 + $0xa78] sm:$0xff]
    %v4674 = vld [vmem:[%s5 + $0xa80] sm:$0xff]
    %v4675 = vld [vmem:[%s5 + $0xa88] sm:$0xff]
    %v4676 = vld [vmem:[%s5 + $0xa90] sm:$0xff]
    %v4677 = vld [vmem:[%s5 + $0xa98] sm:$0xff]
    %v4678 = vld [vmem:[%s5 + $0xaa0] sm:$0xff]
    %v4679 = vld [vmem:[%s5 + $0xaa8] sm:$0xff]
    %v4680 = vld [vmem:[%s5 + $0xab0] sm:$0xff]
    %v4681 = vld [vmem:[%s5 + $0xab8] sm:$0xff]
    %v4682 = vld [vmem:[%s5 + $0xac0] sm:$0xff]
    %v4683 = vld [vmem:[%s5 + $0xac8] sm:$0xff]
    %v4684 = vld [vmem:[%s5 + $0xad0] sm:$0xff]
    %v4685 = vld [vmem:[%s5 + $0xad8] sm:$0xff]
    %v4686 = vld [vmem:[%s5 + $0xae0] sm:$0xff]
    %v4687 = vld [vmem:[%s5 + $0xae8] sm:$0xff]
    %v4688 = vld [vmem:[%s5 + $0xaf0] sm:$0xff]
    %v4689 = vld [vmem:[%s5 + $0xaf8] sm:$0xff]
    %v4690 = vld [vmem:[%s5 + $0xb00] sm:$0xff]
    %v4691 = vld [vmem:[%s5 + $0xb08] sm:$0xff]
    %v4692 = vld [vmem:[%s5 + $0xb10] sm:$0xff]
    %v4693 = vld [vmem:[%s5 + $0xb18] sm:$0xff]
    %v4694 = vld [vmem:[%s5 + $0xb20] sm:$0xff]
    %v4695 = vld [vmem:[%s5 + $0xb28] sm:$0xff]
    %v4696 = vld [vmem:[%s5 + $0xb30] sm:$0xff]
    %v4697 = vld [vmem:[%s5 + $0xb38] sm:$0xff]
    %v4698 = vld [vmem:[%s5 + $0xb40] sm:$0xff]
    %v4699 = vld [vmem:[%s5 + $0xb48] sm:$0xff]
    %v4700 = vld [vmem:[%s5 + $0xb50] sm:$0xff]
    %v4701 = vld [vmem:[%s5 + $0xb58] sm:$0xff]
    %v4702 = vld [vmem:[%s5 + $0xb60] sm:$0xff]
    %v4703 = vld [vmem:[%s5 + $0xb68] sm:$0xff]
    %v4704 = vld [vmem:[%s5 + $0xb70] sm:$0xff]
    %v4705 = vld [vmem:[%s5 + $0xb78] sm:$0xff]
    %v4706 = vld [vmem:[%s5 + $0xb80] sm:$0xff]
    %v4707 = vld [vmem:[%s5 + $0xb88] sm:$0xff]
    %v4708 = vld [vmem:[%s5 + $0xb90] sm:$0xff]
    %v4709 = vld [vmem:[%s5 + $0xb98] sm:$0xff]
    %v4710 = vld [vmem:[%s5 + $0xba0] sm:$0xff]
    %v4711 = vld [vmem:[%s5 + $0xba8] sm:$0xff]
    %v4712 = vld [vmem:[%s5 + $0xbb0] sm:$0xff]
    %v4713 = vld [vmem:[%s5 + $0xbb8] sm:$0xff]
    %v4714 = vld [vmem:[%s5 + $0xbc0] sm:$0xff]
    %v4715 = vld [vmem:[%s5 + $0xbc8] sm:$0xff]
    %v4716 = vld [vmem:[%s5 + $0xbd0] sm:$0xff]
    %v4717 = vld [vmem:[%s5 + $0xbd8] sm:$0xff]
    %v4718 = vld [vmem:[%s5 + $0xbe0] sm:$0xff]
    %v4719 = vld [vmem:[%s5 + $0xbe8] sm:$0xff]
    %v4720 = vld [vmem:[%s5 + $0xbf0] sm:$0xff]
    %v4721 = vld [vmem:[%s5 + $0xbf8] sm:$0xff]
    %v4723 = vcombine.high %v4657, %v4657
    %v4725 = vunpack.c.l.s4 1983009808
    %v4726 = vunpack.c.0.s8 %v4725
    %v4727 = vlaneseq
    %v4728 = vshrl.u32 %v4727, 7
    %v4729 = vsub.s32 %v4726, %v4728
    %v4730 = vrot.slane %v4657, %v4729
    %v4732 = vunpack.c.l.s4 1983009808
    %v4733 = vunpack.c.0.s8 %v4732
    %v4734 = vlaneseq
    %v4735 = vshrl.u32 %v4734, 7
    %v4736 = vsub.s32 %v4733, %v4735
    %v4737 = vrot.slane %v4723, %v4736
    %v4738 = vcombine.high %v4730, %v4730
    %v4739 = vcombine.high %v4737, %v4737
    %4744 = vmatprep.subr.mxu0 0.0
    %4745 = vmatpush1.msra.mxu0 %v4673
    %4746 = vmatprep.subr.mxu0 0.0
    %4747 = vmatpush1.msra.mxu0 %v4672
    %4748 = vmatprep.subr.mxu0 0.0
    %4749 = vmatpush1.msra.mxu0 %v4671
    %4750 = vmatprep.subr.mxu0 0.0
    %4751 = vmatpush1.msra.mxu0 %v4670
    %4752 = vmatprep.subr.mxu0 0.0
    %4753 = vmatpush1.msra.mxu0 %v4669
    %4754 = vmatprep.subr.mxu0 0.0
    %4755 = vmatpush1.msra.mxu0 %v4668
    %4756 = vmatprep.subr.mxu0 0.0
    %4757 = vmatpush1.msra.mxu0 %v4667
    %4758 = vmatprep.subr.mxu0 0.0
    %4759 = vmatpush1.msra.mxu0 %v4666
    %4760 = vmatprep.subr.mxu0 0.0
    %4761 = vmatpush1.msra.mxu0 %v4665
    %4762 = vmatprep.subr.mxu0 0.0
    %4763 = vmatpush1.msra.mxu0 %v4664
    %4764 = vmatprep.subr.mxu0 0.0
    %4765 = vmatpush1.msra.mxu0 %v4663
    %4766 = vmatprep.subr.mxu0 0.0
    %4767 = vmatpush1.msra.mxu0 %v4662
    %4768 = vmatprep.subr.mxu0 0.0
    %4769 = vmatpush1.msra.mxu0 %v4661
    %4770 = vmatprep.subr.mxu0 0.0
    %4771 = vmatpush1.msra.mxu0 %v4660
    %4772 = vmatprep.subr.mxu0 0.0
    %4773 = vmatpush1.msra.mxu0 %v4659
    %4774 = vmatprep.subr.mxu0 0.0
    %4775 = vmatpush1.msra.mxu0 %v4658
    %4776 = vmatprep.subr.mxu0 0.0
    %4777 = vmatpush2.msra.mxu0 %v4689
    %4778 = vmatprep.subr.mxu0 0.0
    %4779 = vmatpush2.msra.mxu0 %v4688
    %4780 = vmatprep.subr.mxu0 0.0
    %4781 = vmatpush2.msra.mxu0 %v4687
    %4782 = vmatprep.subr.mxu0 0.0
    %4783 = vmatpush2.msra.mxu0 %v4686
    %4784 = vmatprep.subr.mxu0 0.0
    %4785 = vmatpush2.msra.mxu0 %v4685
    %4786 = vmatprep.subr.mxu0 0.0
    %4787 = vmatpush2.msra.mxu0 %v4684
    %4788 = vmatprep.subr.mxu0 0.0
    %4789 = vmatpush2.msra.mxu0 %v4683
    %4790 = vmatprep.subr.mxu0 0.0
    %4791 = vmatpush2.msra.mxu0 %v4682
    %4792 = vmatprep.subr.mxu0 0.0
    %4793 = vmatpush2.msra.mxu0 %v4681
    %4794 = vmatprep.subr.mxu0 0.0
    %4795 = vmatpush2.msra.mxu0 %v4680
    %4796 = vmatprep.subr.mxu0 0.0
    %4797 = vmatpush2.msra.mxu0 %v4679
    %4798 = vmatprep.subr.mxu0 0.0
    %4799 = vmatpush2.msra.mxu0 %v4678
    %4800 = vmatprep.subr.mxu0 0.0
    %4801 = vmatpush2.msra.mxu0 %v4677
    %4802 = vmatprep.subr.mxu0 0.0
    %4803 = vmatpush2.msra.mxu0 %v4676
    %4804 = vmatprep.subr.mxu0 0.0
    %4805 = vmatpush2.msra.mxu0 %v4675
    %4806 = vmatprep.subr.mxu0 0.0
    %4807 = vmatpush2.msra.mxu0 %v4674
    %4808 = vmatprep.mubr.f32.mxu0 %v4738
    %4809 = vmatmul.mubr.f32.gmra.mxu0 %v4730
    %v4810 = vpop.f32.mrf.mxu0
    %v4811 = vadd.f32 0.0, %v4810
    %v4812 = vpop.f32.mrf.mxu0
    %4813 = vdwg.mxu0
    %4814 = vmatprep.subr.mxu0 0.0
    %4815 = vmatpush1.msra.mxu0 %v4705
    %4816 = vmatprep.subr.mxu0 0.0
    %4817 = vmatpush1.msra.mxu0 %v4704
    %4818 = vmatprep.subr.mxu0 0.0
    %4819 = vmatpush1.msra.mxu0 %v4703
    %4820 = vmatprep.subr.mxu0 0.0
    %4821 = vmatpush1.msra.mxu0 %v4702
    %4822 = vmatprep.subr.mxu0 0.0
    %4823 = vmatpush1.msra.mxu0 %v4701
    %4824 = vmatprep.subr.mxu0 0.0
    %4825 = vmatpush1.msra.mxu0 %v4700
    %4826 = vmatprep.subr.mxu0 0.0
    %4827 = vmatpush1.msra.mxu0 %v4699
    %4828 = vmatprep.subr.mxu0 0.0
    %4829 = vmatpush1.msra.mxu0 %v4698
    %4830 = vmatprep.subr.mxu0 0.0
    %4831 = vmatpush1.msra.mxu0 %v4697
    %4832 = vmatprep.subr.mxu0 0.0
    %4833 = vmatpush1.msra.mxu0 %v4696
    %4834 = vmatprep.subr.mxu0 0.0
    %4835 = vmatpush1.msra.mxu0 %v4695
    %4836 = vmatprep.subr.mxu0 0.0
    %4837 = vmatpush1.msra.mxu0 %v4694
    %4838 = vmatprep.subr.mxu0 0.0
    %4839 = vmatpush1.msra.mxu0 %v4693
    %4840 = vmatprep.subr.mxu0 0.0
    %4841 = vmatpush1.msra.mxu0 %v4692
    %4842 = vmatprep.subr.mxu0 0.0
    %4843 = vmatpush1.msra.mxu0 %v4691
    %4844 = vmatprep.subr.mxu0 0.0
    %4845 = vmatpush1.msra.mxu0 %v4690
    %4846 = vmatprep.subr.mxu0 0.0
    %4847 = vmatpush2.msra.mxu0 %v4721
    %4848 = vmatprep.subr.mxu0 0.0
    %4849 = vmatpush2.msra.mxu0 %v4720
    %4850 = vmatprep.subr.mxu0 0.0
    %4851 = vmatpush2.msra.mxu0 %v4719
    %4852 = vmatprep.subr.mxu0 0.0
    %4853 = vmatpush2.msra.mxu0 %v4718
    %4854 = vmatprep.subr.mxu0 0.0
    %4855 = vmatpush2.msra.mxu0 %v4717
    %4856 = vmatprep.subr.mxu0 0.0
    %4857 = vmatpush2.msra.mxu0 %v4716
    %4858 = vmatprep.subr.mxu0 0.0
    %4859 = vmatpush2.msra.mxu0 %v4715
    %4860 = vmatprep.subr.mxu0 0.0
    %4861 = vmatpush2.msra.mxu0 %v4714
    %4862 = vmatprep.subr.mxu0 0.0
    %4863 = vmatpush2.msra.mxu0 %v4713
    %4864 = vmatprep.subr.mxu0 0.0
    %4865 = vmatpush2.msra.mxu0 %v4712
    %4866 = vmatprep.subr.mxu0 0.0
    %4867 = vmatpush2.msra.mxu0 %v4711
    %4868 = vmatprep.subr.mxu0 0.0
    %4869 = vmatpush2.msra.mxu0 %v4710
    %4870 = vmatprep.subr.mxu0 0.0
    %4871 = vmatpush2.msra.mxu0 %v4709
    %4872 = vmatprep.subr.mxu0 0.0
    %4873 = vmatpush2.msra.mxu0 %v4708
    %4874 = vmatprep.subr.mxu0 0.0
    %4875 = vmatpush2.msra.mxu0 %v4707
    %4876 = vmatprep.subr.mxu0 0.0
    %4877 = vmatpush2.msra.mxu0 %v4706
    %4878 = vmatprep.mubr.f32.mxu0 %v4739
    %4879 = vmatmul.mubr.f32.gmra.mxu0 %v4737
    %v4880 = vpop.f32.mrf.mxu0
    %v4881 = vadd.f32 %v4811, %v4880
    %v4882 = vpop.f32.mrf.mxu0
    %4883 = vdwg.mxu0
    %v4884 = vadd.f32 %v4656, %v4881
    %v4885 = vld [vmem:[#allocation6 + $0x30] sm:$0xff]
    %v4886 = vld [vmem:[%s5 + $0xc00] sm:$0xff]
    %v4887 = vld [vmem:[%s5 + $0xc08] sm:$0xff]
    %v4888 = vld [vmem:[%s5 + $0xc10] sm:$0xff]
    %v4889 = vld [vmem:[%s5 + $0xc18] sm:$0xff]
    %v4890 = vld [vmem:[%s5 + $0xc20] sm:$0xff]
    %v4891 = vld [vmem:[%s5 + $0xc28] sm:$0xff]
    %v4892 = vld [vmem:[%s5 + $0xc30] sm:$0xff]
    %v4893 = vld [vmem:[%s5 + $0xc38] sm:$0xff]
    %v4894 = vld [vmem:[%s5 + $0xc40] sm:$0xff]
    %v4895 = vld [vmem:[%s5 + $0xc48] sm:$0xff]
    %v4896 = vld [vmem:[%s5 + $0xc50] sm:$0xff]
    %v4897 = vld [vmem:[%s5 + $0xc58] sm:$0xff]
    %v4898 = vld [vmem:[%s5 + $0xc60] sm:$0xff]
    %v4899 = vld [vmem:[%s5 + $0xc68] sm:$0xff]
    %v4900 = vld [vmem:[%s5 + $0xc70] sm:$0xff]
    %v4901 = vld [vmem:[%s5 + $0xc78] sm:$0xff]
    %v4902 = vld [vmem:[%s5 + $0xc80] sm:$0xff]
    %v4903 = vld [vmem:[%s5 + $0xc88] sm:$0xff]
    %v4904 = vld [vmem:[%s5 + $0xc90] sm:$0xff]
    %v4905 = vld [vmem:[%s5 + $0xc98] sm:$0xff]
    %v4906 = vld [vmem:[%s5 + $0xca0] sm:$0xff]
    %v4907 = vld [vmem:[%s5 + $0xca8] sm:$0xff]
    %v4908 = vld [vmem:[%s5 + $0xcb0] sm:$0xff]
    %v4909 = vld [vmem:[%s5 + $0xcb8] sm:$0xff]
    %v4910 = vld [vmem:[%s5 + $0xcc0] sm:$0xff]
    %v4911 = vld [vmem:[%s5 + $0xcc8] sm:$0xff]
    %v4912 = vld [vmem:[%s5 + $0xcd0] sm:$0xff]
    %v4913 = vld [vmem:[%s5 + $0xcd8] sm:$0xff]
    %v4914 = vld [vmem:[%s5 + $0xce0] sm:$0xff]
    %v4915 = vld [vmem:[%s5 + $0xce8] sm:$0xff]
    %v4916 = vld [vmem:[%s5 + $0xcf0] sm:$0xff]
    %v4917 = vld [vmem:[%s5 + $0xcf8] sm:$0xff]
    %v4918 = vld [vmem:[%s5 + $0xd00] sm:$0xff]
    %v4919 = vld [vmem:[%s5 + $0xd08] sm:$0xff]
    %v4920 = vld [vmem:[%s5 + $0xd10] sm:$0xff]
    %v4921 = vld [vmem:[%s5 + $0xd18] sm:$0xff]
    %v4922 = vld [vmem:[%s5 + $0xd20] sm:$0xff]
    %v4923 = vld [vmem:[%s5 + $0xd28] sm:$0xff]
    %v4924 = vld [vmem:[%s5 + $0xd30] sm:$0xff]
    %v4925 = vld [vmem:[%s5 + $0xd38] sm:$0xff]
    %v4926 = vld [vmem:[%s5 + $0xd40] sm:$0xff]
    %v4927 = vld [vmem:[%s5 + $0xd48] sm:$0xff]
    %v4928 = vld [vmem:[%s5 + $0xd50] sm:$0xff]
    %v4929 = vld [vmem:[%s5 + $0xd58] sm:$0xff]
    %v4930 = vld [vmem:[%s5 + $0xd60] sm:$0xff]
    %v4931 = vld [vmem:[%s5 + $0xd68] sm:$0xff]
    %v4932 = vld [vmem:[%s5 + $0xd70] sm:$0xff]
    %v4933 = vld [vmem:[%s5 + $0xd78] sm:$0xff]
    %v4934 = vld [vmem:[%s5 + $0xd80] sm:$0xff]
    %v4935 = vld [vmem:[%s5 + $0xd88] sm:$0xff]
    %v4936 = vld [vmem:[%s5 + $0xd90] sm:$0xff]
    %v4937 = vld [vmem:[%s5 + $0xd98] sm:$0xff]
    %v4938 = vld [vmem:[%s5 + $0xda0] sm:$0xff]
    %v4939 = vld [vmem:[%s5 + $0xda8] sm:$0xff]
    %v4940 = vld [vmem:[%s5 + $0xdb0] sm:$0xff]
    %v4941 = vld [vmem:[%s5 + $0xdb8] sm:$0xff]
    %v4942 = vld [vmem:[%s5 + $0xdc0] sm:$0xff]
    %v4943 = vld [vmem:[%s5 + $0xdc8] sm:$0xff]
    %v4944 = vld [vmem:[%s5 + $0xdd0] sm:$0xff]
    %v4945 = vld [vmem:[%s5 + $0xdd8] sm:$0xff]
    %v4946 = vld [vmem:[%s5 + $0xde0] sm:$0xff]
    %v4947 = vld [vmem:[%s5 + $0xde8] sm:$0xff]
    %v4948 = vld [vmem:[%s5 + $0xdf0] sm:$0xff]
    %v4949 = vld [vmem:[%s5 + $0xdf8] sm:$0xff]
    %v4951 = vcombine.high %v4885, %v4885
    %v4953 = vunpack.c.l.s4 1983009808
    %v4954 = vunpack.c.0.s8 %v4953
    %v4955 = vlaneseq
    %v4956 = vshrl.u32 %v4955, 7
    %v4957 = vsub.s32 %v4954, %v4956
    %v4958 = vrot.slane %v4885, %v4957
    %v4960 = vunpack.c.l.s4 1983009808
    %v4961 = vunpack.c.0.s8 %v4960
    %v4962 = vlaneseq
    %v4963 = vshrl.u32 %v4962, 7
    %v4964 = vsub.s32 %v4961, %v4963
    %v4965 = vrot.slane %v4951, %v4964
    %v4966 = vcombine.high %v4958, %v4958
    %v4967 = vcombine.high %v4965, %v4965
    %4972 = vmatprep.subr.mxu0 0.0
    %4973 = vmatpush1.msra.mxu0 %v4901
    %4974 = vmatprep.subr.mxu0 0.0
    %4975 = vmatpush1.msra.mxu0 %v4900
    %4976 = vmatprep.subr.mxu0 0.0
    %4977 = vmatpush1.msra.mxu0 %v4899
    %4978 = vmatprep.subr.mxu0 0.0
    %4979 = vmatpush1.msra.mxu0 %v4898
    %4980 = vmatprep.subr.mxu0 0.0
    %4981 = vmatpush1.msra.mxu0 %v4897
    %4982 = vmatprep.subr.mxu0 0.0
    %4983 = vmatpush1.msra.mxu0 %v4896
    %4984 = vmatprep.subr.mxu0 0.0
    %4985 = vmatpush1.msra.mxu0 %v4895
    %4986 = vmatprep.subr.mxu0 0.0
    %4987 = vmatpush1.msra.mxu0 %v4894
    %4988 = vmatprep.subr.mxu0 0.0
    %4989 = vmatpush1.msra.mxu0 %v4893
    %4990 = vmatprep.subr.mxu0 0.0
    %4991 = vmatpush1.msra.mxu0 %v4892
    %4992 = vmatprep.subr.mxu0 0.0
    %4993 = vmatpush1.msra.mxu0 %v4891
    %4994 = vmatprep.subr.mxu0 0.0
    %4995 = vmatpush1.msra.mxu0 %v4890
    %4996 = vmatprep.subr.mxu0 0.0
    %4997 = vmatpush1.msra.mxu0 %v4889
    %4998 = vmatprep.subr.mxu0 0.0
    %4999 = vmatpush1.msra.mxu0 %v4888
    %5000 = vmatprep.subr.mxu0 0.0
    %5001 = vmatpush1.msra.mxu0 %v4887
    %5002 = vmatprep.subr.mxu0 0.0
    %5003 = vmatpush1.msra.mxu0 %v4886
    %5004 = vmatprep.subr.mxu0 0.0
    %5005 = vmatpush2.msra.mxu0 %v4917
    %5006 = vmatprep.subr.mxu0 0.0
    %5007 = vmatpush2.msra.mxu0 %v4916
    %5008 = vmatprep.subr.mxu0 0.0
    %5009 = vmatpush2.msra.mxu0 %v4915
    %5010 = vmatprep.subr.mxu0 0.0
    %5011 = vmatpush2.msra.mxu0 %v4914
    %5012 = vmatprep.subr.mxu0 0.0
    %5013 = vmatpush2.msra.mxu0 %v4913
    %5014 = vmatprep.subr.mxu0 0.0
    %5015 = vmatpush2.msra.mxu0 %v4912
    %5016 = vmatprep.subr.mxu0 0.0
    %5017 = vmatpush2.msra.mxu0 %v4911
    %5018 = vmatprep.subr.mxu0 0.0
    %5019 = vmatpush2.msra.mxu0 %v4910
    %5020 = vmatprep.subr.mxu0 0.0
    %5021 = vmatpush2.msra.mxu0 %v4909
    %5022 = vmatprep.subr.mxu0 0.0
    %5023 = vmatpush2.msra.mxu0 %v4908
    %5024 = vmatprep.subr.mxu0 0.0
    %5025 = vmatpush2.msra.mxu0 %v4907
    %5026 = vmatprep.subr.mxu0 0.0
    %5027 = vmatpush2.msra.mxu0 %v4906
    %5028 = vmatprep.subr.mxu0 0.0
    %5029 = vmatpush2.msra.mxu0 %v4905
    %5030 = vmatprep.subr.mxu0 0.0
    %5031 = vmatpush2.msra.mxu0 %v4904
    %5032 = vmatprep.subr.mxu0 0.0
    %5033 = vmatpush2.msra.mxu0 %v4903
    %5034 = vmatprep.subr.mxu0 0.0
    %5035 = vmatpush2.msra.mxu0 %v4902
    %5036 = vmatprep.mubr.f32.mxu0 %v4966
    %5037 = vmatmul.mubr.f32.gmra.mxu0 %v4958
    %v5038 = vpop.f32.mrf.mxu0
    %v5039 = vadd.f32 0.0, %v5038
    %v5040 = vpop.f32.mrf.mxu0
    %5041 = vdwg.mxu0
    %5042 = vmatprep.subr.mxu0 0.0
    %5043 = vmatpush1.msra.mxu0 %v4933
    %5044 = vmatprep.subr.mxu0 0.0
    %5045 = vmatpush1.msra.mxu0 %v4932
    %5046 = vmatprep.subr.mxu0 0.0
    %5047 = vmatpush1.msra.mxu0 %v4931
    %5048 = vmatprep.subr.mxu0 0.0
    %5049 = vmatpush1.msra.mxu0 %v4930
    %5050 = vmatprep.subr.mxu0 0.0
    %5051 = vmatpush1.msra.mxu0 %v4929
    %5052 = vmatprep.subr.mxu0 0.0
    %5053 = vmatpush1.msra.mxu0 %v4928
    %5054 = vmatprep.subr.mxu0 0.0
    %5055 = vmatpush1.msra.mxu0 %v4927
    %5056 = vmatprep.subr.mxu0 0.0
    %5057 = vmatpush1.msra.mxu0 %v4926
    %5058 = vmatprep.subr.mxu0 0.0
    %5059 = vmatpush1.msra.mxu0 %v4925
    %5060 = vmatprep.subr.mxu0 0.0
    %5061 = vmatpush1.msra.mxu0 %v4924
    %5062 = vmatprep.subr.mxu0 0.0
    %5063 = vmatpush1.msra.mxu0 %v4923
    %5064 = vmatprep.subr.mxu0 0.0
    %5065 = vmatpush1.msra.mxu0 %v4922
    %5066 = vmatprep.subr.mxu0 0.0
    %5067 = vmatpush1.msra.mxu0 %v4921
    %5068 = vmatprep.subr.mxu0 0.0
    %5069 = vmatpush1.msra.mxu0 %v4920
    %5070 = vmatprep.subr.mxu0 0.0
    %5071 = vmatpush1.msra.mxu0 %v4919
    %5072 = vmatprep.subr.mxu0 0.0
    %5073 = vmatpush1.msra.mxu0 %v4918
    %5074 = vmatprep.subr.mxu0 0.0
    %5075 = vmatpush2.msra.mxu0 %v4949
    %5076 = vmatprep.subr.mxu0 0.0
    %5077 = vmatpush2.msra.mxu0 %v4948
    %5078 = vmatprep.subr.mxu0 0.0
    %5079 = vmatpush2.msra.mxu0 %v4947
    %5080 = vmatprep.subr.mxu0 0.0
    %5081 = vmatpush2.msra.mxu0 %v4946
    %5082 = vmatprep.subr.mxu0 0.0
    %5083 = vmatpush2.msra.mxu0 %v4945
    %5084 = vmatprep.subr.mxu0 0.0
    %5085 = vmatpush2.msra.mxu0 %v4944
    %5086 = vmatprep.subr.mxu0 0.0
    %5087 = vmatpush2.msra.mxu0 %v4943
    %5088 = vmatprep.subr.mxu0 0.0
    %5089 = vmatpush2.msra.mxu0 %v4942
    %5090 = vmatprep.subr.mxu0 0.0
    %5091 = vmatpush2.msra.mxu0 %v4941
    %5092 = vmatprep.subr.mxu0 0.0
    %5093 = vmatpush2.msra.mxu0 %v4940
    %5094 = vmatprep.subr.mxu0 0.0
    %5095 = vmatpush2.msra.mxu0 %v4939
    %5096 = vmatprep.subr.mxu0 0.0
    %5097 = vmatpush2.msra.mxu0 %v4938
    %5098 = vmatprep.subr.mxu0 0.0
    %5099 = vmatpush2.msra.mxu0 %v4937
    %5100 = vmatprep.subr.mxu0 0.0
    %5101 = vmatpush2.msra.mxu0 %v4936
    %5102 = vmatprep.subr.mxu0 0.0
    %5103 = vmatpush2.msra.mxu0 %v4935
    %5104 = vmatprep.subr.mxu0 0.0
    %5105 = vmatpush2.msra.mxu0 %v4934
    %5106 = vmatprep.mubr.f32.mxu0 %v4967
    %5107 = vmatmul.mubr.f32.gmra.mxu0 %v4965
    %v5108 = vpop.f32.mrf.mxu0
    %v5109 = vadd.f32 %v5039, %v5108
    %v5110 = vpop.f32.mrf.mxu0
    %5111 = vdwg.mxu0
    %v5112 = vadd.f32 %v4884, %v5109
    %v5113 = vld [vmem:[#allocation6 + $0x38] sm:$0xff]
    %v5114 = vld [vmem:[%s5 + $0xe00] sm:$0xff]
    %v5115 = vld [vmem:[%s5 + $0xe08] sm:$0xff]
    %v5116 = vld [vmem:[%s5 + $0xe10] sm:$0xff]
    %v5117 = vld [vmem:[%s5 + $0xe18] sm:$0xff]
    %v5118 = vld [vmem:[%s5 + $0xe20] sm:$0xff]
    %v5119 = vld [vmem:[%s5 + $0xe28] sm:$0xff]
    %v5120 = vld [vmem:[%s5 + $0xe30] sm:$0xff]
    %v5121 = vld [vmem:[%s5 + $0xe38] sm:$0xff]
    %v5122 = vld [vmem:[%s5 + $0xe40] sm:$0xff]
    %v5123 = vld [vmem:[%s5 + $0xe48] sm:$0xff]
    %v5124 = vld [vmem:[%s5 + $0xe50] sm:$0xff]
    %v5125 = vld [vmem:[%s5 + $0xe58] sm:$0xff]
    %v5126 = vld [vmem:[%s5 + $0xe60] sm:$0xff]
    %v5127 = vld [vmem:[%s5 + $0xe68] sm:$0xff]
    %v5128 = vld [vmem:[%s5 + $0xe70] sm:$0xff]
    %v5129 = vld [vmem:[%s5 + $0xe78] sm:$0xff]
    %v5130 = vld [vmem:[%s5 + $0xe80] sm:$0xff]
    %v5131 = vld [vmem:[%s5 + $0xe88] sm:$0xff]
    %v5132 = vld [vmem:[%s5 + $0xe90] sm:$0xff]
    %v5133 = vld [vmem:[%s5 + $0xe98] sm:$0xff]
    %v5134 = vld [vmem:[%s5 + $0xea0] sm:$0xff]
    %v5135 = vld [vmem:[%s5 + $0xea8] sm:$0xff]
    %v5136 = vld [vmem:[%s5 + $0xeb0] sm:$0xff]
    %v5137 = vld [vmem:[%s5 + $0xeb8] sm:$0xff]
    %v5138 = vld [vmem:[%s5 + $0xec0] sm:$0xff]
    %v5139 = vld [vmem:[%s5 + $0xec8] sm:$0xff]
    %v5140 = vld [vmem:[%s5 + $0xed0] sm:$0xff]
    %v5141 = vld [vmem:[%s5 + $0xed8] sm:$0xff]
    %v5142 = vld [vmem:[%s5 + $0xee0] sm:$0xff]
    %v5143 = vld [vmem:[%s5 + $0xee8] sm:$0xff]
    %v5144 = vld [vmem:[%s5 + $0xef0] sm:$0xff]
    %v5145 = vld [vmem:[%s5 + $0xef8] sm:$0xff]
    %v5146 = vld [vmem:[%s5 + $0xf00] sm:$0xff]
    %v5147 = vld [vmem:[%s5 + $0xf08] sm:$0xff]
    %v5148 = vld [vmem:[%s5 + $0xf10] sm:$0xff]
    %v5149 = vld [vmem:[%s5 + $0xf18] sm:$0xff]
    %v5150 = vld [vmem:[%s5 + $0xf20] sm:$0xff]
    %v5151 = vld [vmem:[%s5 + $0xf28] sm:$0xff]
    %v5152 = vld [vmem:[%s5 + $0xf30] sm:$0xff]
    %v5153 = vld [vmem:[%s5 + $0xf38] sm:$0xff]
    %v5154 = vld [vmem:[%s5 + $0xf40] sm:$0xff]
    %v5155 = vld [vmem:[%s5 + $0xf48] sm:$0xff]
    %v5156 = vld [vmem:[%s5 + $0xf50] sm:$0xff]
    %v5157 = vld [vmem:[%s5 + $0xf58] sm:$0xff]
    %v5158 = vld [vmem:[%s5 + $0xf60] sm:$0xff]
    %v5159 = vld [vmem:[%s5 + $0xf68] sm:$0xff]
    %v5160 = vld [vmem:[%s5 + $0xf70] sm:$0xff]
    %v5161 = vld [vmem:[%s5 + $0xf78] sm:$0xff]
    %v5162 = vld [vmem:[%s5 + $0xf80] sm:$0xff]
    %v5163 = vld [vmem:[%s5 + $0xf88] sm:$0xff]
    %v5164 = vld [vmem:[%s5 + $0xf90] sm:$0xff]
    %v5165 = vld [vmem:[%s5 + $0xf98] sm:$0xff]
    %v5166 = vld [vmem:[%s5 + $0xfa0] sm:$0xff]
    %v5167 = vld [vmem:[%s5 + $0xfa8] sm:$0xff]
    %v5168 = vld [vmem:[%s5 + $0xfb0] sm:$0xff]
    %v5169 = vld [vmem:[%s5 + $0xfb8] sm:$0xff]
    %v5170 = vld [vmem:[%s5 + $0xfc0] sm:$0xff]
    %v5171 = vld [vmem:[%s5 + $0xfc8] sm:$0xff]
    %v5172 = vld [vmem:[%s5 + $0xfd0] sm:$0xff]
    %v5173 = vld [vmem:[%s5 + $0xfd8] sm:$0xff]
    %v5174 = vld [vmem:[%s5 + $0xfe0] sm:$0xff]
    %v5175 = vld [vmem:[%s5 + $0xfe8] sm:$0xff]
    %v5176 = vld [vmem:[%s5 + $0xff0] sm:$0xff]
    %v5177 = vld [vmem:[%s5 + $0xff8] sm:$0xff]
    %v5179 = vcombine.high %v5113, %v5113
    %v5181 = vunpack.c.l.s4 1983009808
    %v5182 = vunpack.c.0.s8 %v5181
    %v5183 = vlaneseq
    %v5184 = vshrl.u32 %v5183, 7
    %v5185 = vsub.s32 %v5182, %v5184
    %v5186 = vrot.slane %v5113, %v5185
    %v5188 = vunpack.c.l.s4 1983009808
    %v5189 = vunpack.c.0.s8 %v5188
    %v5190 = vlaneseq
    %v5191 = vshrl.u32 %v5190, 7
    %v5192 = vsub.s32 %v5189, %v5191
    %v5193 = vrot.slane %v5179, %v5192
    %v5194 = vcombine.high %v5186, %v5186
    %v5195 = vcombine.high %v5193, %v5193
    %5200 = vmatprep.subr.mxu0 0.0
    %5201 = vmatpush1.msra.mxu0 %v5129
    %5202 = vmatprep.subr.mxu0 0.0
    %5203 = vmatpush1.msra.mxu0 %v5128
    %5204 = vmatprep.subr.mxu0 0.0
    %5205 = vmatpush1.msra.mxu0 %v5127
    %5206 = vmatprep.subr.mxu0 0.0
    %5207 = vmatpush1.msra.mxu0 %v5126
    %5208 = vmatprep.subr.mxu0 0.0
    %5209 = vmatpush1.msra.mxu0 %v5125
    %5210 = vmatprep.subr.mxu0 0.0
    %5211 = vmatpush1.msra.mxu0 %v5124
    %5212 = vmatprep.subr.mxu0 0.0
    %5213 = vmatpush1.msra.mxu0 %v5123
    %5214 = vmatprep.subr.mxu0 0.0
    %5215 = vmatpush1.msra.mxu0 %v5122
    %5216 = vmatprep.subr.mxu0 0.0
    %5217 = vmatpush1.msra.mxu0 %v5121
    %5218 = vmatprep.subr.mxu0 0.0
    %5219 = vmatpush1.msra.mxu0 %v5120
    %5220 = vmatprep.subr.mxu0 0.0
    %5221 = vmatpush1.msra.mxu0 %v5119
    %5222 = vmatprep.subr.mxu0 0.0
    %5223 = vmatpush1.msra.mxu0 %v5118
    %5224 = vmatprep.subr.mxu0 0.0
    %5225 = vmatpush1.msra.mxu0 %v5117
    %5226 = vmatprep.subr.mxu0 0.0
    %5227 = vmatpush1.msra.mxu0 %v5116
    %5228 = vmatprep.subr.mxu0 0.0
    %5229 = vmatpush1.msra.mxu0 %v5115
    %5230 = vmatprep.subr.mxu0 0.0
    %5231 = vmatpush1.msra.mxu0 %v5114
    %5232 = vmatprep.subr.mxu0 0.0
    %5233 = vmatpush2.msra.mxu0 %v5145
    %5234 = vmatprep.subr.mxu0 0.0
    %5235 = vmatpush2.msra.mxu0 %v5144
    %5236 = vmatprep.subr.mxu0 0.0
    %5237 = vmatpush2.msra.mxu0 %v5143
    %5238 = vmatprep.subr.mxu0 0.0
    %5239 = vmatpush2.msra.mxu0 %v5142
    %5240 = vmatprep.subr.mxu0 0.0
    %5241 = vmatpush2.msra.mxu0 %v5141
    %5242 = vmatprep.subr.mxu0 0.0
    %5243 = vmatpush2.msra.mxu0 %v5140
    %5244 = vmatprep.subr.mxu0 0.0
    %5245 = vmatpush2.msra.mxu0 %v5139
    %5246 = vmatprep.subr.mxu0 0.0
    %5247 = vmatpush2.msra.mxu0 %v5138
    %5248 = vmatprep.subr.mxu0 0.0
    %5249 = vmatpush2.msra.mxu0 %v5137
    %5250 = vmatprep.subr.mxu0 0.0
    %5251 = vmatpush2.msra.mxu0 %v5136
    %5252 = vmatprep.subr.mxu0 0.0
    %5253 = vmatpush2.msra.mxu0 %v5135
    %5254 = vmatprep.subr.mxu0 0.0
    %5255 = vmatpush2.msra.mxu0 %v5134
    %5256 = vmatprep.subr.mxu0 0.0
    %5257 = vmatpush2.msra.mxu0 %v5133
    %5258 = vmatprep.subr.mxu0 0.0
    %5259 = vmatpush2.msra.mxu0 %v5132
    %5260 = vmatprep.subr.mxu0 0.0
    %5261 = vmatpush2.msra.mxu0 %v5131
    %5262 = vmatprep.subr.mxu0 0.0
    %5263 = vmatpush2.msra.mxu0 %v5130
    %5264 = vmatprep.mubr.f32.mxu0 %v5194
    %5265 = vmatmul.mubr.f32.gmra.mxu0 %v5186
    %v5266 = vpop.f32.mrf.mxu0
    %v5267 = vadd.f32 0.0, %v5266
    %v5268 = vpop.f32.mrf.mxu0
    %5269 = vdwg.mxu0
    %5270 = vmatprep.subr.mxu0 0.0
    %5271 = vmatpush1.msra.mxu0 %v5161
    %5272 = vmatprep.subr.mxu0 0.0
    %5273 = vmatpush1.msra.mxu0 %v5160
    %5274 = vmatprep.subr.mxu0 0.0
    %5275 = vmatpush1.msra.mxu0 %v5159
    %5276 = vmatprep.subr.mxu0 0.0
    %5277 = vmatpush1.msra.mxu0 %v5158
    %5278 = vmatprep.subr.mxu0 0.0
    %5279 = vmatpush1.msra.mxu0 %v5157
    %5280 = vmatprep.subr.mxu0 0.0
    %5281 = vmatpush1.msra.mxu0 %v5156
    %5282 = vmatprep.subr.mxu0 0.0
    %5283 = vmatpush1.msra.mxu0 %v5155
    %5284 = vmatprep.subr.mxu0 0.0
    %5285 = vmatpush1.msra.mxu0 %v5154
    %5286 = vmatprep.subr.mxu0 0.0
    %5287 = vmatpush1.msra.mxu0 %v5153
    %5288 = vmatprep.subr.mxu0 0.0
    %5289 = vmatpush1.msra.mxu0 %v5152
    %5290 = vmatprep.subr.mxu0 0.0
    %5291 = vmatpush1.msra.mxu0 %v5151
    %5292 = vmatprep.subr.mxu0 0.0
    %5293 = vmatpush1.msra.mxu0 %v5150
    %5294 = vmatprep.subr.mxu0 0.0
    %5295 = vmatpush1.msra.mxu0 %v5149
    %5296 = vmatprep.subr.mxu0 0.0
    %5297 = vmatpush1.msra.mxu0 %v5148
    %5298 = vmatprep.subr.mxu0 0.0
    %5299 = vmatpush1.msra.mxu0 %v5147
    %5300 = vmatprep.subr.mxu0 0.0
    %5301 = vmatpush1.msra.mxu0 %v5146
    %5302 = vmatprep.subr.mxu0 0.0
    %5303 = vmatpush2.msra.mxu0 %v5177
    %5304 = vmatprep.subr.mxu0 0.0
    %5305 = vmatpush2.msra.mxu0 %v5176
    %5306 = vmatprep.subr.mxu0 0.0
    %5307 = vmatpush2.msra.mxu0 %v5175
    %5308 = vmatprep.subr.mxu0 0.0
    %5309 = vmatpush2.msra.mxu0 %v5174
    %5310 = vmatprep.subr.mxu0 0.0
    %5311 = vmatpush2.msra.mxu0 %v5173
    %5312 = vmatprep.subr.mxu0 0.0
    %5313 = vmatpush2.msra.mxu0 %v5172
    %5314 = vmatprep.subr.mxu0 0.0
    %5315 = vmatpush2.msra.mxu0 %v5171
    %5316 = vmatprep.subr.mxu0 0.0
    %5317 = vmatpush2.msra.mxu0 %v5170
    %5318 = vmatprep.subr.mxu0 0.0
    %5319 = vmatpush2.msra.mxu0 %v5169
    %5320 = vmatprep.subr.mxu0 0.0
    %5321 = vmatpush2.msra.mxu0 %v5168
    %5322 = vmatprep.subr.mxu0 0.0
    %5323 = vmatpush2.msra.mxu0 %v5167
    %5324 = vmatprep.subr.mxu0 0.0
    %5325 = vmatpush2.msra.mxu0 %v5166
    %5326 = vmatprep.subr.mxu0 0.0
    %5327 = vmatpush2.msra.mxu0 %v5165
    %5328 = vmatprep.subr.mxu0 0.0
    %5329 = vmatpush2.msra.mxu0 %v5164
    %5330 = vmatprep.subr.mxu0 0.0
    %5331 = vmatpush2.msra.mxu0 %v5163
    %5332 = vmatprep.subr.mxu0 0.0
    %5333 = vmatpush2.msra.mxu0 %v5162
    %5334 = vmatprep.mubr.f32.mxu0 %v5195
    %5335 = vmatmul.mubr.f32.gmra.mxu0 %v5193
    %v5336 = vpop.f32.mrf.mxu0
    %v5337 = vadd.f32 %v5267, %v5336
    %v5338 = vpop.f32.mrf.mxu0
    %5339 = vdwg.mxu0
    %v5340 = vadd.f32 %v5112, %v5337
    %v5341 = vld [vmem:[%s6] sm:$0x1]
    %v5343 = vlaneseq
    %v5344 = vshrl.u32 %v5343, 7
    %v5345 = vsub.s32 0, %v5344
    %v5346 = vrot.slane %v5341, %v5345
    %v5348 = vadd.f32 %v5340, %v5346
    %v5349 = vmax.f32 %v5348, 0.0
    %v5350 = vld [vmem:[%s7] sm:$0xff]
    %v5351 = vld [vmem:[%s7 + $0x8] sm:$0xff]
    %v5352 = vld [vmem:[%s7 + $0x10] sm:$0xff]
    %v5353 = vld [vmem:[%s7 + $0x18] sm:$0xff]
    %v5354 = vld [vmem:[%s7 + $0x20] sm:$0xff]
    %v5355 = vld [vmem:[%s7 + $0x28] sm:$0xff]
    %v5356 = vld [vmem:[%s7 + $0x30] sm:$0xff]
    %v5357 = vld [vmem:[%s7 + $0x38] sm:$0xff]
    %v5358 = vld [vmem:[%s7 + $0x40] sm:$0xff]
    %v5359 = vld [vmem:[%s7 + $0x48] sm:$0xff]
    %v5360 = vld [vmem:[%s7 + $0x50] sm:$0xff]
    %v5361 = vld [vmem:[%s7 + $0x58] sm:$0xff]
    %v5362 = vld [vmem:[%s7 + $0x60] sm:$0xff]
    %v5363 = vld [vmem:[%s7 + $0x68] sm:$0xff]
    %v5364 = vld [vmem:[%s7 + $0x70] sm:$0xff]
    %v5365 = vld [vmem:[%s7 + $0x78] sm:$0xff]
    %v5366 = vld [vmem:[%s8] sm:$0x1]
    %v5368 = vlaneseq
    %v5369 = vshrl.u32 %v5368, 7
    %v5370 = vsub.s32 0, %v5369
    %v5371 = vrot.slane %v5366, %v5370
    %5373 = vmatprep.subr.mxu0 0.0
    %5374 = vmatpush1.msra.mxu0 %v5365
    %5375 = vmatprep.subr.mxu0 0.0
    %5376 = vmatpush1.msra.mxu0 %v5364
    %5377 = vmatprep.subr.mxu0 0.0
    %5378 = vmatpush1.msra.mxu0 %v5363
    %5379 = vmatprep.subr.mxu0 0.0
    %5380 = vmatpush1.msra.mxu0 %v5362
    %5381 = vmatprep.subr.mxu0 0.0
    %5382 = vmatpush1.msra.mxu0 %v5361
    %5383 = vmatprep.subr.mxu0 0.0
    %5384 = vmatpush1.msra.mxu0 %v5360
    %5385 = vmatprep.subr.mxu0 0.0
    %5386 = vmatpush1.msra.mxu0 %v5359
    %5387 = vmatprep.subr.mxu0 0.0
    %5388 = vmatpush1.msra.mxu0 %v5358
    %5389 = vmatprep.subr.mxu0 0.0
    %5390 = vmatpush1.msra.mxu0 %v5357
    %5391 = vmatprep.subr.mxu0 0.0
    %5392 = vmatpush1.msra.mxu0 %v5356
    %5393 = vmatprep.subr.mxu0 0.0
    %5394 = vmatpush1.msra.mxu0 %v5355
    %5395 = vmatprep.subr.mxu0 0.0
    %5396 = vmatpush1.msra.mxu0 %v5354
    %5397 = vmatprep.subr.mxu0 0.0
    %5398 = vmatpush1.msra.mxu0 %v5353
    %5399 = vmatprep.subr.mxu0 0.0
    %5400 = vmatpush1.msra.mxu0 %v5352
    %5401 = vmatprep.subr.mxu0 0.0
    %5402 = vmatpush1.msra.mxu0 %v5351
    %5403 = vmatprep.subr.mxu0 0.0
    %5404 = vmatpush1.msra.mxu0 %v5350
    %5405 = vmatprep.subr.mxu0 0.0
    %5406 = vmatpush2.msra.mxu0 0.0
    %5407 = vmatprep.subr.mxu0 0.0
    %5408 = vmatpush2.msra.mxu0 0.0
    %5409 = vmatprep.subr.mxu0 0.0
    %5410 = vmatpush2.msra.mxu0 0.0
    %5411 = vmatprep.subr.mxu0 0.0
    %5412 = vmatpush2.msra.mxu0 0.0
    %5413 = vmatprep.subr.mxu0 0.0
    %5414 = vmatpush2.msra.mxu0 0.0
    %5415 = vmatprep.subr.mxu0 0.0
    %5416 = vmatpush2.msra.mxu0 0.0
    %5417 = vmatprep.subr.mxu0 0.0
    %5418 = vmatpush2.msra.mxu0 0.0
    %5419 = vmatprep.subr.mxu0 0.0
    %5420 = vmatpush2.msra.mxu0 0.0
    %5421 = vmatprep.subr.mxu0 0.0
    %5422 = vmatpush2.msra.mxu0 0.0
    %5423 = vmatprep.subr.mxu0 0.0
    %5424 = vmatpush2.msra.mxu0 0.0
    %5425 = vmatprep.subr.mxu0 0.0
    %5426 = vmatpush2.msra.mxu0 0.0
    %5427 = vmatprep.subr.mxu0 0.0
    %5428 = vmatpush2.msra.mxu0 0.0
    %5429 = vmatprep.subr.mxu0 0.0
    %5430 = vmatpush2.msra.mxu0 0.0
    %5431 = vmatprep.subr.mxu0 0.0
    %5432 = vmatpush2.msra.mxu0 0.0
    %5433 = vmatprep.subr.mxu0 0.0
    %5434 = vmatpush2.msra.mxu0 0.0
    %5435 = vmatprep.subr.mxu0 0.0
    %5436 = vmatpush2.msra.mxu0 0.0
    %5437 = vmatprep.mubr.f32.mxu0 0.0
    %5438 = vmatmul.mubr.f32.gmra.mxu0 %v5349
    %v5439 = vpop.f32.mrf.mxu0
    %v5440 = vadd.f32 %v5371, %v5439
    %v5441 = vpop.f32.mrf.mxu0
    %5442 = vdwg.mxu0
    %v5443 = vmax.f32 %v5440, 0.0
    %v5444 = vld [vmem:[%s9] sm:$0xff]
    %v5445 = vld [vmem:[%s9 + $0x8] sm:$0xff]
    %v5446 = vld [vmem:[%s9 + $0x10] sm:$0xff]
    %v5447 = vld [vmem:[%s9 + $0x18] sm:$0xff]
    %v5448 = vld [vmem:[%s9 + $0x20] sm:$0xff]
    %v5449 = vld [vmem:[%s9 + $0x28] sm:$0xff]
    %v5450 = vld [vmem:[%s9 + $0x30] sm:$0xff]
    %v5451 = vld [vmem:[%s9 + $0x38] sm:$0xff]
    %v5452 = vld [vmem:[%s9 + $0x40] sm:$0xff]
    %v5453 = vld [vmem:[%s9 + $0x48] sm:$0xff]
    %v5454 = vld [vmem:[%s9 + $0x50] sm:$0xff]
    %v5455 = vld [vmem:[%s9 + $0x58] sm:$0xff]
    %v5456 = vld [vmem:[%s9 + $0x60] sm:$0xff]
    %v5457 = vld [vmem:[%s9 + $0x68] sm:$0xff]
    %v5458 = vld [vmem:[%s9 + $0x70] sm:$0xff]
    %v5459 = vld [vmem:[%s9 + $0x78] sm:$0xff]
    %v5460 = vld [vmem:[%s10] sm:$0x1]
    %v5462 = vlaneseq
    %v5463 = vshrl.u32 %v5462, 7
    %v5464 = vsub.s32 0, %v5463
    %v5465 = vrot.slane %v5460, %v5464
    %5467 = vmatprep.subr.mxu0 0.0
    %5468 = vmatpush1.msra.mxu0 %v5459
    %5469 = vmatprep.subr.mxu0 0.0
    %5470 = vmatpush1.msra.mxu0 %v5458
    %5471 = vmatprep.subr.mxu0 0.0
    %5472 = vmatpush1.msra.mxu0 %v5457
    %5473 = vmatprep.subr.mxu0 0.0
    %5474 = vmatpush1.msra.mxu0 %v5456
    %5475 = vmatprep.subr.mxu0 0.0
    %5476 = vmatpush1.msra.mxu0 %v5455
    %5477 = vmatprep.subr.mxu0 0.0
    %5478 = vmatpush1.msra.mxu0 %v5454
    %5479 = vmatprep.subr.mxu0 0.0
    %5480 = vmatpush1.msra.mxu0 %v5453
    %5481 = vmatprep.subr.mxu0 0.0
    %5482 = vmatpush1.msra.mxu0 %v5452
    %5483 = vmatprep.subr.mxu0 0.0
    %5484 = vmatpush1.msra.mxu0 %v5451
    %5485 = vmatprep.subr.mxu0 0.0
    %5486 = vmatpush1.msra.mxu0 %v5450
    %5487 = vmatprep.subr.mxu0 0.0
    %5488 = vmatpush1.msra.mxu0 %v5449
    %5489 = vmatprep.subr.mxu0 0.0
    %5490 = vmatpush1.msra.mxu0 %v5448
    %5491 = vmatprep.subr.mxu0 0.0
    %5492 = vmatpush1.msra.mxu0 %v5447
    %5493 = vmatprep.subr.mxu0 0.0
    %5494 = vmatpush1.msra.mxu0 %v5446
    %5495 = vmatprep.subr.mxu0 0.0
    %5496 = vmatpush1.msra.mxu0 %v5445
    %5497 = vmatprep.subr.mxu0 0.0
    %5498 = vmatpush1.msra.mxu0 %v5444
    %5499 = vmatprep.subr.mxu0 0.0
    %5500 = vmatpush2.msra.mxu0 0.0
    %5501 = vmatprep.subr.mxu0 0.0
    %5502 = vmatpush2.msra.mxu0 0.0
    %5503 = vmatprep.subr.mxu0 0.0
    %5504 = vmatpush2.msra.mxu0 0.0
    %5505 = vmatprep.subr.mxu0 0.0
    %5506 = vmatpush2.msra.mxu0 0.0
    %5507 = vmatprep.subr.mxu0 0.0
    %5508 = vmatpush2.msra.mxu0 0.0
    %5509 = vmatprep.subr.mxu0 0.0
    %5510 = vmatpush2.msra.mxu0 0.0
    %5511 = vmatprep.subr.mxu0 0.0
    %5512 = vmatpush2.msra.mxu0 0.0
    %5513 = vmatprep.subr.mxu0 0.0
    %5514 = vmatpush2.msra.mxu0 0.0
    %5515 = vmatprep.subr.mxu0 0.0
    %5516 = vmatpush2.msra.mxu0 0.0
    %5517 = vmatprep.subr.mxu0 0.0
    %5518 = vmatpush2.msra.mxu0 0.0
    %5519 = vmatprep.subr.mxu0 0.0
    %5520 = vmatpush2.msra.mxu0 0.0
    %5521 = vmatprep.subr.mxu0 0.0
    %5522 = vmatpush2.msra.mxu0 0.0
    %5523 = vmatprep.subr.mxu0 0.0
    %5524 = vmatpush2.msra.mxu0 0.0
    %5525 = vmatprep.subr.mxu0 0.0
    %5526 = vmatpush2.msra.mxu0 0.0
    %5527 = vmatprep.subr.mxu0 0.0
    %5528 = vmatpush2.msra.mxu0 0.0
    %5529 = vmatprep.subr.mxu0 0.0
    %5530 = vmatpush2.msra.mxu0 0.0
    %5531 = vmatprep.mubr.f32.mxu0 0.0
    %5532 = vmatmul.mubr.f32.gmra.mxu0 %v5443
    %v5533 = vpop.f32.mrf.mxu0
    %v5534 = vadd.f32 %v5465, %v5533
    %v5535 = vpop.f32.mrf.mxu0
    %5536 = vdwg.mxu0
    %5537 = vst [vmem:[#allocation7] sm:$0x3] %v5534
    // Predicated region
    $region50: #{lenet_forward.1} parent=1 // pred_check
      _
    $region51: #{lenet_forward.1} parent=1 // pred_check_branch
      %5539 = sbr.rel (0) target = $region53
    $region52: #{lenet_forward.1} parent=1 // pred_region
      %s5541 = ssub.s32 32, 32
      %5542 = vsyncadd [#allocation8], %s5541
      %s5544 = sshll.u32 [#allocation7], 4
      %s5545 = int_to_ptr.vmem [resolvable:$true] %s5544
      %5547 = dma.vmem_to_hbm [thread:$0]  %s5545, 32, %s11, [#allocation8]
    $region53: #{lenet_forward.1} parent=1 // pred_fallthru
      _
    // Predicated region
    $region54: #{lenet_forward.1} parent=1 // pred_check
      _
    $region55: #{lenet_forward.1} parent=1 // pred_check_branch
      %5549 = sbr.rel (0) target = $region57
    $region56: #{lenet_forward.1} parent=1 // pred_region
      %5550 = dma.done [#allocation8], 32
    $region57: #{lenet_forward.1} parent=1 // pred_fallthru
      _
    %5551 = vsyncpa [#allocation8], 1

</llo_original>
